<compile_context>
chip_gen: v5e
topology: v5e:2x2
jax: 0.10.0
libtpu: 0.0.40
codegen_flags: <defaults>
</compile_context>

<pallas_src>
from functools import partial

import jax
import jax.numpy as jnp
from jax import lax
from jax.experimental import pallas as pl
from jax.experimental.pallas import tpu as pltpu

HIDDEN = 768
VOCAB = 21128          # bert-base-chinese tokenizer vocab size
NUM_LAYERS = 2         # stand-in (real model: 12)
NUM_HEADS = 12
HEAD_DIM = HIDDEN // NUM_HEADS
FFN = 3072
MAX_POS = 512
TYPE_VOCAB = 2


# ---------------------------------------------------------------------------
# Generation-aware decoder config (resolved once, at trace time)
# ---------------------------------------------------------------------------
def _decoder_config():
    """Returns (vocab_tile, weight_mode)."""
    kind = ""
    try:
        kind = jax.devices()[0].device_kind.lower()
    except Exception:
        pass
    if "v7" in kind:
        # 21504 / 5376 = 4 grid steps (even -> both TensorCores balanced), bf16 weights.
        return 5376, "bf16"
    if "v5" in kind or "v6" in kind:
        # 21504 / 2688 = 8 grid steps, int8 weight-only quantization.
        return 2688, "int8"
    return 2688, "bf16"


# ---------------------------------------------------------------------------
# Pallas kernels
#   x:      [B, H]    bf16   (resident across the grid)
#   w_tile: [H, TN]   bf16 or int8  (pre-transposed at init -> plain NN-form dot)
#   s_tile: [1, TN]   f32    (int8 path only: per-vocab-row dequant scale)
#   b_tile: [1, TN]   f32
#   o_tile: [B, TN]   f32    (lane-dense output stores)
# ---------------------------------------------------------------------------
def _decoder_kernel_bf16(x_ref, w_ref, b_ref, o_ref):
    acc = jnp.dot(x_ref[...], w_ref[...], preferred_element_type=jnp.float32)
    o_ref[...] = acc + b_ref[...]


def _decoder_kernel_int8(x_ref, w_ref, s_ref, b_ref, o_ref):
    # int8 quantized weights: integer values are exact in bf16, so cast and use the
    # bf16 MXU; the per-vocab-row scale is folded into the tiny [B, TN] accumulator.
    w = w_ref[...].astype(jnp.bfloat16)
    acc = jnp.dot(x_ref[...], w, preferred_element_type=jnp.float32)
    o_ref[...] = acc * s_ref[...] + b_ref[...]


# ---------------------------------------------------------------------------
# One-time init-side weight prep (NOT per forward)
# ---------------------------------------------------------------------------
def prepare_decoder(weight, bias, *, tn, mode):
    """weight: [V, H] f32 (nn.Linear layout), bias: [V] f32.

    Pads vocab to a multiple of `tn`, pre-transposes to [H, Vpad] (free at init,
    guarantees no in-kernel transpose) and either casts to bf16 or quantizes to
    int8 with per-vocab-row symmetric scales.
    """
    V, H = weight.shape
    vpad = ((V + tn - 1) // tn) * tn
    w_t = jnp.zeros((H, vpad), jnp.float32).at[:, :V].set(
        weight.T.astype(jnp.float32))
    b_pad = jnp.zeros((1, vpad), jnp.float32).at[0, :V].set(
        bias.astype(jnp.float32))

    if mode == "int8":
        amax = jnp.max(jnp.abs(w_t), axis=0, keepdims=True)            # [1, Vpad]
        scale = jnp.where(amax > 0.0, amax / 127.0, 1.0).astype(jnp.float32)
        w_q = jnp.clip(jnp.round(w_t / scale), -127.0, 127.0).astype(jnp.int8)
        return {"vpad": vpad, "w": w_q, "scale": scale, "bias": b_pad}

    return {"vpad": vpad, "w": w_t.astype(jnp.bfloat16), "scale": None, "bias": b_pad}


# ---------------------------------------------------------------------------
# Pallas decoder call
# ---------------------------------------------------------------------------
def decoder_pallas(x, w, scale, bias, *, mode, tn, vpad, vocab):
    """x: [B, H] f32, w: [H, Vpad] (bf16 | int8), scale: [1, Vpad] f32 | None,
    bias: [1, Vpad] f32  ->  [B, vocab] f32."""
    B, H = x.shape
    x_bf16 = x.astype(jnp.bfloat16)

    x_spec = pl.BlockSpec((B, H), lambda j: (0, 0))     # resident across the grid
    w_spec = pl.BlockSpec((H, tn), lambda j: (0, j))    # weight tile, [H, Vpad] layout
    v_spec = pl.BlockSpec((1, tn), lambda j: (0, j))    # bias / scale row tiles
    o_spec = pl.BlockSpec((B, tn), lambda j: (0, j))    # lane-dense output tile

    w_bytes = vpad * H * jnp.dtype(w.dtype).itemsize
    cost = pl.CostEstimate(
        flops=2 * B * H * vpad,
        transcendentals=0,
        bytes_accessed=(w_bytes + B * H * 2 + B * vpad * 4
                        + vpad * 4 * (2 if mode == "int8" else 1)),
    )

    if mode == "int8":
        kernel = _decoder_kernel_int8
        in_specs = [x_spec, w_spec, v_spec, v_spec]
        args = (x_bf16, w, scale, bias)
    else:
        kernel = _decoder_kernel_bf16
        in_specs = [x_spec, w_spec, v_spec]
        args = (x_bf16, w, bias)

    out = pl.pallas_call(
        kernel,
        out_shape=jax.ShapeDtypeStruct((B, vpad), jnp.float32),
        grid_spec=pltpu.PrefetchScalarGridSpec(
            num_scalar_prefetch=0,
            grid=(vpad // tn,),
            in_specs=in_specs,
            out_specs=o_spec,
        ),
        compiler_params=pltpu.CompilerParams(
            dimension_semantics=("parallel",)),
        cost_estimate=cost,
    )(*args)
    return out[:, :vocab]


# ---------------------------------------------------------------------------
# Stand-in BERT encoder (plain JAX glue, deterministic random weights)
# ---------------------------------------------------------------------------
def layer_norm(x, g, b, eps=1e-12):
    mu = x.mean(-1, keepdims=True)
    var = jnp.mean((x - mu) ** 2, axis=-1, keepdims=True)
    return (x - mu) * lax.rsqrt(var + eps) * g + b


def init_bert_params(key):
    ks = iter(jax.random.split(key, 8 + NUM_LAYERS * 16))
    n = lambda shape: 0.02 * jax.random.normal(next(ks), shape, jnp.float32)
    p = {
        "word_emb": n((VOCAB, HIDDEN)),
        "pos_emb": n((MAX_POS, HIDDEN)),
        "type_emb": n((TYPE_VOCAB, HIDDEN)),
        "emb_ln_g": jnp.ones((HIDDEN,), jnp.float32),
        "emb_ln_b": jnp.zeros((HIDDEN,), jnp.float32),
        "layers": [],
    }
    for _ in range(NUM_LAYERS):
        p["layers"].append({
            "wq": n((HIDDEN, HIDDEN)), "bq": jnp.zeros((HIDDEN,), jnp.float32),
            "wk": n((HIDDEN, HIDDEN)), "bk": jnp.zeros((HIDDEN,), jnp.float32),
            "wv": n((HIDDEN, HIDDEN)), "bv": jnp.zeros((HIDDEN,), jnp.float32),
            "wo": n((HIDDEN, HIDDEN)), "bo": jnp.zeros((HIDDEN,), jnp.float32),
            "ln1_g": jnp.ones((HIDDEN,), jnp.float32),
            "ln1_b": jnp.zeros((HIDDEN,), jnp.float32),
            "w1": n((HIDDEN, FFN)), "b1": jnp.zeros((FFN,), jnp.float32),
            "w2": n((FFN, HIDDEN)), "b2": jnp.zeros((HIDDEN,), jnp.float32),
            "ln2_g": jnp.ones((HIDDEN,), jnp.float32),
            "ln2_b": jnp.zeros((HIDDEN,), jnp.float32),
        })
    return p


def bert_encoder(p, input_ids, attention_mask, token_type_ids):
    B, S = input_ids.shape
    pos = jnp.arange(S)
    h = (p["word_emb"][input_ids]
         + p["pos_emb"][pos][None, :, :]
         + p["type_emb"][token_type_ids])
    h = layer_norm(h, p["emb_ln_g"], p["emb_ln_b"])

    ext_mask = (1.0 - attention_mask.astype(jnp.float32))[:, None, None, :] * -1e9

    for lp in p["layers"]:
        def heads(x):  # [B,S,H] -> [B,nh,S,hd]
            return x.reshape(B, S, NUM_HEADS, HEAD_DIM).transpose(0, 2, 1, 3)

        q = heads(h @ lp["wq"] + lp["bq"])
        k = heads(h @ lp["wk"] + lp["bk"])
        v = heads(h @ lp["wv"] + lp["bv"])
        scores = jnp.einsum("bhqd,bhkd->bhqk", q, k) / jnp.sqrt(float(HEAD_DIM))
        scores = scores + ext_mask
        attn = jax.nn.softmax(scores, axis=-1)
        ctx = jnp.einsum("bhqk,bhkd->bhqd", attn, v)
        ctx = ctx.transpose(0, 2, 1, 3).reshape(B, S, HIDDEN)
        h = layer_norm(h + (ctx @ lp["wo"] + lp["bo"]), lp["ln1_g"], lp["ln1_b"])

        ff = jax.nn.gelu(h @ lp["w1"] + lp["b1"], approximate=False)
        h = layer_norm(h + (ff @ lp["w2"] + lp["b2"]), lp["ln2_g"], lp["ln2_b"])
    return h  # last_hidden_state [B, S, HIDDEN]


# ---------------------------------------------------------------------------
# Full Model.forward (decoder weights already prepared once at init)
# ---------------------------------------------------------------------------
def model_forward(bert_params, dec_w, dec_scale, dec_bias,
                  input_ids, attention_mask, token_type_ids,
                  *, mode, tn, vpad, vocab):
    hidden = bert_encoder(bert_params, input_ids, attention_mask, token_type_ids)
    x = hidden[:, 15]                                           # [B, 768] (token index 15)
    return decoder_pallas(x, dec_w, dec_scale, dec_bias,
                          mode=mode, tn=tn, vpad=vpad, vocab=vocab)


if __name__ == "__main__":
    key = jax.random.PRNGKey(0)
    k_bert, k_dec, k_ids = jax.random.split(key, 3)

    bert_params = init_bert_params(k_bert)
    dec_weight = 0.02 * jax.random.normal(k_dec, (VOCAB, HIDDEN), jnp.float32)
    dec_bias = jnp.zeros((VOCAB,), jnp.float32)       # self.bias, tied to decoder

    # one-time init-side prep: pad + pre-transpose + (int8-quantize | bf16-cast)
    tn, mode = _decoder_config()
    dec = prepare_decoder(dec_weight, dec_bias, tn=tn, mode=mode)

    B, S = 2, 32
    input_ids = jax.random.randint(k_ids, (B, S), 0, VOCAB, dtype=jnp.int32)
    attention_mask = jnp.ones((B, S), jnp.int32)
    token_type_ids = jnp.zeros((B, S), jnp.int32)

    fwd = jax.jit(partial(model_forward, mode=mode, tn=tn,
                          vpad=dec["vpad"], vocab=VOCAB))
    logits = fwd(bert_params, dec["w"], dec["scale"], dec["bias"],
                 input_ids, attention_mask, token_type_ids)
    logits = jax.block_until_ready(logits)

    assert logits.shape == (B, VOCAB), logits.shape
    assert logits.dtype == jnp.float32
    assert bool(jnp.all(jnp.isfinite(logits)))

    # Pure-JAX f32 reference with an explicit tolerance (bf16 streaming + optional
    # int8 weight-only quant => small, bounded inference-grade error).
    hidden_ref = bert_encoder(bert_params, input_ids, attention_mask, token_type_ids)
    ref = hidden_ref[:, 15] @ dec_weight.T + dec_bias[None, :]
    max_err = float(jnp.max(jnp.abs(logits - ref)))
    assert max_err < 0.1, f"decoder max abs error too large: {max_err}"

    print("KERNEL_OK")
</pallas_src>

<mosaic_0001>
module attributes {stable_mosaic.version = 11 : i64} {
  func.func @_decoder_kernel_bf16(%arg0: i32, %arg1: memref<2x768xbf16, #tpu.memory_space<vmem>>, %arg2: memref<768x2688xbf16, #tpu.memory_space<vmem>>, %arg3: memref<1x2688xf32, #tpu.memory_space<vmem>>, %arg4: memref<2x2688xf32, #tpu.memory_space<vmem>>) attributes {dimension_semantics = [#tpu.dimension_semantics<parallel>], iteration_bounds = array<i64: 8>, scalar_prefetch = 0 : i64, scratch_operands = 0 : i64, tpu.core_type = #tpu.core_type<tc>, window_params = [{pipeline_mode = #tpu.pipeline_mode<synchronous>, transform_indices = @transform_0, window_bounds = array<i64: 2, 768>}, {transform_indices = @transform_1, window_bounds = array<i64: 768, 2688>}, {transform_indices = @transform_2, window_bounds = array<i64: 1, 2688>}, {transform_indices = @transform_3, window_bounds = array<i64: 2, 2688>}]} {
    %c0 = arith.constant 0 : index
    %c0_0 = arith.constant 0 : index
    %0 = vector.load %arg1[%c0, %c0_0] : memref<2x768xbf16, #tpu.memory_space<vmem>>, vector<2x768xbf16>
    %c0_1 = arith.constant 0 : index
    %c0_2 = arith.constant 0 : index
    %1 = vector.load %arg2[%c0_1, %c0_2] : memref<768x2688xbf16, #tpu.memory_space<vmem>>, vector<768x2688xbf16>
    %cst = arith.constant dense<0.000000e+00> : vector<2x2688xf32>
    %2 = tpu.matmul %0, %1, %cst {dimension_numbers = #tpu.dot_dimension_numbers<[1], [0], [0], [1], [0, 0, 1, 1], [], []>} : vector<2x768xbf16>, vector<768x2688xbf16>, vector<2x2688xf32> -> vector<2x2688xf32>
    %c0_3 = arith.constant 0 : index
    %c0_4 = arith.constant 0 : index
    %3 = vector.load %arg3[%c0_3, %c0_4] : memref<1x2688xf32, #tpu.memory_space<vmem>>, vector<1x2688xf32>
    %4 = vector.broadcast %3 : vector<1x2688xf32> to vector<2x2688xf32>
    %5 = arith.addf %2, %4 : vector<2x2688xf32>
    %c0_5 = arith.constant 0 : index
    %c0_6 = arith.constant 0 : index
    %6 = vector.load %arg4[%c0_5, %c0_6] : memref<2x2688xf32, #tpu.memory_space<vmem>>, vector<2x2688xf32>
    tpu.vector_store %arg4[%c0_5, %c0_6], %5 {strides = array<i32>} : memref<2x2688xf32, #tpu.memory_space<vmem>>, vector<2x2688xf32>,
    return
  }
  func.func @transform_0(%arg0: i32) -> (i32, i32) {
    %c0_i32 = arith.constant 0 : i32
    %c0_i32_0 = arith.constant 0 : i32
    %c0_i32_1 = arith.constant 0 : i32
    return %c0_i32, %c0_i32_0 : i32, i32
  }
  func.func @transform_1(%arg0: i32) -> (i32, i32) {
    %c0_i32 = arith.constant 0 : i32
    %c0_i32_0 = arith.constant 0 : i32
    return %c0_i32, %arg0 : i32, i32
  }
  func.func @transform_2(%arg0: i32) -> (i32, i32) {
    %c0_i32 = arith.constant 0 : i32
    %c0_i32_0 = arith.constant 0 : i32
    return %c0_i32, %arg0 : i32, i32
  }
  func.func @transform_3(%arg0: i32) -> (i32, i32) {
    %c0_i32 = arith.constant 0 : i32
    %c0_i32_0 = arith.constant 0 : i32
    return %c0_i32, %arg0 : i32, i32
  }
}

</mosaic_0001>

<llo_original>
// kernel: model_forward.1
$region0: #{model_forward.1}
  #allocation0 [shape = 'u32[]', space=smem, size = 0x4, offset = 0x4, fixed_abs, tag = 'smem constant byte address 0x4 - core index']
  #allocation1 [shape = 'u32[72,128]{1,0:T(1,128)}', space=vmem, size = 0x9000, scoped, tag = 'internal scratch']
  %s0 = inlined_call_operand.vmem [shape: bf16[2,768], index: 0, kind: input, shape index: {}]
  %s1 = inlined_call_operand.vmem [shape: bf16[768,21504], index: 1, kind: input, shape index: {}]
  %s2 = inlined_call_operand.vmem [shape: f32[1,21504], index: 2, kind: input, shape index: {}]
  %s3 = inlined_call_operand.vmem [shape: f32[2,21504], index: 3, kind: output, shape index: {}]
  %s4 = sld [smem:[#allocation0]]
  $region71: #{model_forward.1} parent=0
    _
  %s6 = ssub.s32 1, %s4
  %s7 = scalar_select 0, %s6, %s4
  $region1: #{model_forward.1} parent=0
    #allocation2 [shape = 'u8[8257536]{0}', space=vmem, size = 0x7e0000, scoped, tag = 'input window, operand 1']
    loop: start=0, step=1, limit=10
    $region2: #{model_forward.1} parent=1 // loop_pre_header
      _
    $region3: #{model_forward.1} parent=1 // loop_header
      %s9 = sphi 0, %s13
      %p10 = scmp.ge.s32.totalorder %s9, 10
      %s17 = sphi 0, %s17
      %s19 = sphi 0, %s17
      %s20 = sphi 0, %s19
      %s34 = sphi 0, %s20
      %s40 = sphi 0, %s42
      %s43 = sphi 0, %s40
      %s44 = sphi 0, %s43
      %s60 = sphi 0, %s44
      %s66 = sphi 0, %s68
      %s69 = sphi 0, %s66
      %s70 = sphi 0, %s69
      %s86 = sphi 0, %s70
      %s92 = sphi 0, %s94
      %s95 = sphi 0, %s92
      %s96 = sphi 0, %s95
      %s112 = sphi 0, %s96
    $region4: #{model_forward.1} parent=1 // loop_header_branch
      %12 = sbr.rel (%p10) target = $region8
    $region5: #{model_forward.1} parent=1 // loop_body
      %s14 = ssub.s32 %s9, 1
      %s15 = ssub.s32 %s9, 2
      %s16 = sadd.s32 %s9, 1
      %s18 = sadd.s32 %s17, 1
      %p21 = scmp.eq.s32.totalorder %s9, 7
      %p22 = scmp.ne.s32.totalorder %s17, %s19
      %p23 = scmp.eq.s32.totalorder %s9, 0
      %p24 = por %p22, %p23
      %p25 = scmp.ne.s32.totalorder %s17, %s19
      %p26 = scmp.eq.s32.totalorder %s14, 7
      %p27 = por %p25, %p26
      %p28 = scmp.ne.s32.totalorder %s19, %s20
      %p29 = scmp.eq.s32.totalorder %s14, 0
      %p30 = por %p28, %p29
      %p31 = scmp.ne.s32.totalorder %s19, %s20
      %p32 = scmp.eq.s32.totalorder %s15, 7
      %p33 = por %p31, %p32
      %p35 = scmp.ne.s32.totalorder %s20, %s34
      %p36 = scmp.eq.s32.totalorder %s15, 0
      %p37 = por %p35, %p36
      %s38 = ssub.s32 %s9, %s16
      %p39 = scmp.eq.s32.totalorder %s38, 0
      %s41 = sadd.s32 %s40, 1
      %s42 = scalar_select %p39, %s40, %s41
      %p45 = pneg %p39
      %p46 = scmp.eq.s32.totalorder %s9, 7
      %p47 = por %p45, %p46
      %p48 = scmp.ne.s32.totalorder %s40, %s43
      %p49 = scmp.eq.s32.totalorder %s9, 0
      %p50 = por %p48, %p49
      %p51 = scmp.ne.s32.totalorder %s40, %s43
      %p52 = scmp.eq.s32.totalorder %s14, 7
      %p53 = por %p51, %p52
      %p54 = scmp.ne.s32.totalorder %s43, %s44
      %p55 = scmp.eq.s32.totalorder %s14, 0
      %p56 = por %p54, %p55
      %p57 = scmp.ne.s32.totalorder %s43, %s44
      %p58 = scmp.eq.s32.totalorder %s15, 7
      %p59 = por %p57, %p58
      %p61 = scmp.ne.s32.totalorder %s44, %s60
      %p62 = scmp.eq.s32.totalorder %s15, 0
      %p63 = por %p61, %p62
      %s64 = ssub.s32 %s9, %s16
      %p65 = scmp.eq.s32.totalorder %s64, 0
      %s67 = sadd.s32 %s66, 1
      %s68 = scalar_select %p65, %s66, %s67
      %p71 = pneg %p65
      %p72 = scmp.eq.s32.totalorder %s9, 7
      %p73 = por %p71, %p72
      %p74 = scmp.ne.s32.totalorder %s66, %s69
      %p75 = scmp.eq.s32.totalorder %s9, 0
      %p76 = por %p74, %p75
      %p77 = scmp.ne.s32.totalorder %s66, %s69
      %p78 = scmp.eq.s32.totalorder %s14, 7
      %p79 = por %p77, %p78
      %p80 = scmp.ne.s32.totalorder %s69, %s70
      %p81 = scmp.eq.s32.totalorder %s14, 0
      %p82 = por %p80, %p81
      %p83 = scmp.ne.s32.totalorder %s69, %s70
      %p84 = scmp.eq.s32.totalorder %s15, 7
      %p85 = por %p83, %p84
      %p87 = scmp.ne.s32.totalorder %s70, %s86
      %p88 = scmp.eq.s32.totalorder %s15, 0
      %p89 = por %p87, %p88
      %s90 = ssub.s32 %s9, %s16
      %p91 = scmp.eq.s32.totalorder %s90, 0
      %s93 = sadd.s32 %s92, 1
      %s94 = scalar_select %p91, %s92, %s93
      %p97 = pneg %p91
      %p98 = scmp.eq.s32.totalorder %s9, 7
      %p99 = por %p97, %p98
      %p100 = scmp.ne.s32.totalorder %s92, %s95
      %p101 = scmp.eq.s32.totalorder %s9, 0
      %p102 = por %p100, %p101
      %p103 = scmp.ne.s32.totalorder %s92, %s95
      %p104 = scmp.eq.s32.totalorder %s14, 7
      %p105 = por %p103, %p104
      %p106 = scmp.ne.s32.totalorder %s95, %s96
      %p107 = scmp.eq.s32.totalorder %s14, 0
      %p108 = por %p106, %p107
      %p109 = scmp.ne.s32.totalorder %s95, %s96
      %p110 = scmp.eq.s32.totalorder %s15, 7
      %p111 = por %p109, %p110
      %p113 = scmp.ne.s32.totalorder %s96, %s112
      %p114 = scmp.eq.s32.totalorder %s15, 0
      %p115 = por %p113, %p114
      %p116 = scmp.le.s32.totalorder 1, %s9
      %p117 = scmp.lt.s32.totalorder %s9, 9
      %p118 = pnand %p116, %p117
      %p119 = pneg %p118
      // Predicated region
      $region9: #{model_forward.1} parent=5 // pred_check
        _
      $region10: #{model_forward.1} parent=5 // pred_check_branch
        %121 = sbr.rel (%p118) target = $region12
      $region11: #{model_forward.1} parent=5 // pred_region
        %s122 = ssub.s32 %s9, 1
        // Predicated region
        $region13: #{model_forward.1} parent=11 // pred_check
          %p123 = pneg %p30
        $region14: #{model_forward.1} parent=11 // pred_check_branch
          %125 = sbr.rel (%p123) target = $region16
        $region15: #{model_forward.1} parent=11 // pred_region
          _
        $region16: #{model_forward.1} parent=11 // pred_fallthru
          _
      $region12: #{model_forward.1} parent=5 // pred_fallthru
        _
      %p126 = scmp.lt.s32.totalorder %s9, 8
      // Predicated region
      $region17: #{model_forward.1} parent=5 // pred_check
        %p127 = pneg %p126
      $region18: #{model_forward.1} parent=5 // pred_check_branch
        %129 = sbr.rel (%p127) target = $region20
      $region19: #{model_forward.1} parent=5 // pred_region
        // Predicated region
        $region21: #{model_forward.1} parent=19 // pred_check
          %p130 = pneg %p50
        $region22: #{model_forward.1} parent=19 // pred_check_branch
          %132 = sbr.rel (%p130) target = $region24
        $region23: #{model_forward.1} parent=19 // pred_region
          %s133 = sand.u32 %s40, 1
          %s134 = sand.u32 %s40, 1
          %s135 = smul.addr %s134, 8064
          %s136 = scalar_lea.vmem [#allocation2], %s135
          %s137 = smul.u32 21, %s9
          %s138 = smul.addr %s137, 4
          %s139 = scalar_lea.vmem %s1, %s138
          // Predicated region
          $region25: #{model_forward.1} parent=23 // pred_check
            _
          $region26: #{model_forward.1} parent=23 // pred_check_branch
            %141 = sbr.rel (0) target = $region28
          $region27: #{model_forward.1} parent=23 // pred_region
            // Predicated region
            $region29: #{model_forward.1} parent=27 // pred_check
              _
            $region30: #{model_forward.1} parent=27 // pred_check_branch
              %143 = sbr.rel (0) target = $region32
            $region31: #{model_forward.1} parent=27 // pred_region
              %s144 = scalar_lea.vmem %s139, 80
              %s145 = scalar_lea.vmem %s136, 80 [#allocation2]
              loop: start=0, step=1, limit=1
              $region33: #{model_forward.1} parent=31 // loop_pre_header
                _
              $region34: #{model_forward.1} parent=31 // loop_header
                %s147 = sphi 0, %s151
                %p148 = scmp.ge.s32.totalorder %s147, 1
                %s152 = sphi %s139, %s139
                %s153 = sphi %s136, %s136
              $region35: #{model_forward.1} parent=31 // loop_header_branch
                %150 = sbr.rel (%p148) target = $region39
              $region36: #{model_forward.1} parent=31 // loop_body
                %v154 = vld [vmem:[%s152] sm:$0xff]
                %155 = vst [vmem:[%s153] sm:$0xff] %v154
                %v156 = vld [vmem:[%s152 + $0x8] sm:$0xff]
                %157 = vst [vmem:[%s153 + $0x8] sm:$0xff] %v156
                %v158 = vld [vmem:[%s152 + $0x10] sm:$0xff]
                %159 = vst [vmem:[%s153 + $0x10] sm:$0xff] %v158
                %v160 = vld [vmem:[%s152 + $0x18] sm:$0xff]
                %161 = vst [vmem:[%s153 + $0x18] sm:$0xff] %v160
                %v162 = vld [vmem:[%s152 + $0x20] sm:$0xff]
                %163 = vst [vmem:[%s153 + $0x20] sm:$0xff] %v162
                %v164 = vld [vmem:[%s152 + $0x28] sm:$0xff]
                %165 = vst [vmem:[%s153 + $0x28] sm:$0xff] %v164
                %v166 = vld [vmem:[%s152 + $0x30] sm:$0xff]
                %167 = vst [vmem:[%s153 + $0x30] sm:$0xff] %v166
                %v168 = vld [vmem:[%s152 + $0x38] sm:$0xff]
                %169 = vst [vmem:[%s153 + $0x38] sm:$0xff] %v168
                %v170 = vld [vmem:[%s152 + $0x40] sm:$0xff]
                %171 = vst [vmem:[%s153 + $0x40] sm:$0xff] %v170
                %v172 = vld [vmem:[%s152 + $0x48] sm:$0xff]
                %173 = vst [vmem:[%s153 + $0x48] sm:$0xff] %v172
                %v174 = vld [vmem:[%s152 + $0x2a0] sm:$0xff]
                %175 = vst [vmem:[%s153 + $0x54] sm:$0xff] %v174
                %v176 = vld [vmem:[%s152 + $0x2a8] sm:$0xff]
                %177 = vst [vmem:[%s153 + $0x5c] sm:$0xff] %v176
                %v178 = vld [vmem:[%s152 + $0x2b0] sm:$0xff]
                %179 = vst [vmem:[%s153 + $0x64] sm:$0xff] %v178
                %v180 = vld [vmem:[%s152 + $0x2b8] sm:$0xff]
                %181 = vst [vmem:[%s153 + $0x6c] sm:$0xff] %v180
                %v182 = vld [vmem:[%s152 + $0x2c0] sm:$0xff]
                %183 = vst [vmem:[%s153 + $0x74] sm:$0xff] %v182
                %v184 = vld [vmem:[%s152 + $0x2c8] sm:$0xff]
                %185 = vst [vmem:[%s153 + $0x7c] sm:$0xff] %v184
                %v186 = vld [vmem:[%s152 + $0x2d0] sm:$0xff]
                %187 = vst [vmem:[%s153 + $0x84] sm:$0xff] %v186
                %v188 = vld [vmem:[%s152 + $0x2d8] sm:$0xff]
                %189 = vst [vmem:[%s153 + $0x8c] sm:$0xff] %v188
                %v190 = vld [vmem:[%s152 + $0x2e0] sm:$0xff]
                %191 = vst [vmem:[%s153 + $0x94] sm:$0xff] %v190
                %v192 = vld [vmem:[%s152 + $0x2e8] sm:$0xff]
                %193 = vst [vmem:[%s153 + $0x9c] sm:$0xff] %v192
                %v194 = vld [vmem:[%s152 + $0x540] sm:$0xff]
                %195 = vst [vmem:[%s153 + $0xa8] sm:$0xff] %v194
                %v196 = vld [vmem:[%s152 + $0x548] sm:$0xff]
                %197 = vst [vmem:[%s153 + $0xb0] sm:$0xff] %v196
                %v198 = vld [vmem:[%s152 + $0x550] sm:$0xff]
                %199 = vst [vmem:[%s153 + $0xb8] sm:$0xff] %v198
                %v200 = vld [vmem:[%s152 + $0x558] sm:$0xff]
                %201 = vst [vmem:[%s153 + $0xc0] sm:$0xff] %v200
                %v202 = vld [vmem:[%s152 + $0x560] sm:$0xff]
                %203 = vst [vmem:[%s153 + $0xc8] sm:$0xff] %v202
                %v204 = vld [vmem:[%s152 + $0x568] sm:$0xff]
                %205 = vst [vmem:[%s153 + $0xd0] sm:$0xff] %v204
                %v206 = vld [vmem:[%s152 + $0x570] sm:$0xff]
                %207 = vst [vmem:[%s153 + $0xd8] sm:$0xff] %v206
                %v208 = vld [vmem:[%s152 + $0x578] sm:$0xff]
                %209 = vst [vmem:[%s153 + $0xe0] sm:$0xff] %v208
                %v210 = vld [vmem:[%s152 + $0x580] sm:$0xff]
                %211 = vst [vmem:[%s153 + $0xe8] sm:$0xff] %v210
                %v212 = vld [vmem:[%s152 + $0x588] sm:$0xff]
                %213 = vst [vmem:[%s153 + $0xf0] sm:$0xff] %v212
                %v214 = vld [vmem:[%s152 + $0x7e0] sm:$0xff]
                %215 = vst [vmem:[%s153 + $0xfc] sm:$0xff] %v214
                %v216 = vld [vmem:[%s152 + $0x7e8] sm:$0xff]
                %217 = vst [vmem:[%s153 + $0x104] sm:$0xff] %v216
                %v218 = vld [vmem:[%s152 + $0x7f0] sm:$0xff]
                %219 = vst [vmem:[%s153 + $0x10c] sm:$0xff] %v218
                %v220 = vld [vmem:[%s152 + $0x7f8] sm:$0xff]
                %221 = vst [vmem:[%s153 + $0x114] sm:$0xff] %v220
                %v222 = vld [vmem:[%s152 + $0x800] sm:$0xff]
                %223 = vst [vmem:[%s153 + $0x11c] sm:$0xff] %v222
                %v224 = vld [vmem:[%s152 + $0x808] sm:$0xff]
                %225 = vst [vmem:[%s153 + $0x124] sm:$0xff] %v224
                %v226 = vld [vmem:[%s152 + $0x810] sm:$0xff]
                %227 = vst [vmem:[%s153 + $0x12c] sm:$0xff] %v226
                %v228 = vld [vmem:[%s152 + $0x818] sm:$0xff]
                %229 = vst [vmem:[%s153 + $0x134] sm:$0xff] %v228
                %v230 = vld [vmem:[%s152 + $0x820] sm:$0xff]
                %231 = vst [vmem:[%s153 + $0x13c] sm:$0xff] %v230
                %v232 = vld [vmem:[%s152 + $0x828] sm:$0xff]
                %233 = vst [vmem:[%s153 + $0x144] sm:$0xff] %v232
                %v234 = vld [vmem:[%s152 + $0xa80] sm:$0xff]
                %235 = vst [vmem:[%s153 + $0x150] sm:$0xff] %v234
                %v236 = vld [vmem:[%s152 + $0xa88] sm:$0xff]
                %237 = vst [vmem:[%s153 + $0x158] sm:$0xff] %v236
                %v238 = vld [vmem:[%s152 + $0xa90] sm:$0xff]
                %239 = vst [vmem:[%s153 + $0x160] sm:$0xff] %v238
                %v240 = vld [vmem:[%s152 + $0xa98] sm:$0xff]
                %241 = vst [vmem:[%s153 + $0x168] sm:$0xff] %v240
                %v242 = vld [vmem:[%s152 + $0xaa0] sm:$0xff]
                %243 = vst [vmem:[%s153 + $0x170] sm:$0xff] %v242
                %v244 = vld [vmem:[%s152 + $0xaa8] sm:$0xff]
                %245 = vst [vmem:[%s153 + $0x178] sm:$0xff] %v244
                %v246 = vld [vmem:[%s152 + $0xab0] sm:$0xff]
                %247 = vst [vmem:[%s153 + $0x180] sm:$0xff] %v246
                %v248 = vld [vmem:[%s152 + $0xab8] sm:$0xff]
                %249 = vst [vmem:[%s153 + $0x188] sm:$0xff] %v248
                %v250 = vld [vmem:[%s152 + $0xac0] sm:$0xff]
                %251 = vst [vmem:[%s153 + $0x190] sm:$0xff] %v250
                %v252 = vld [vmem:[%s152 + $0xac8] sm:$0xff]
                %253 = vst [vmem:[%s153 + $0x198] sm:$0xff] %v252
                %v254 = vld [vmem:[%s152 + $0xd20] sm:$0xff]
                %255 = vst [vmem:[%s153 + $0x1a4] sm:$0xff] %v254
                %v256 = vld [vmem:[%s152 + $0xd28] sm:$0xff]
                %257 = vst [vmem:[%s153 + $0x1ac] sm:$0xff] %v256
                %v258 = vld [vmem:[%s152 + $0xd30] sm:$0xff]
                %259 = vst [vmem:[%s153 + $0x1b4] sm:$0xff] %v258
                %v260 = vld [vmem:[%s152 + $0xd38] sm:$0xff]
                %261 = vst [vmem:[%s153 + $0x1bc] sm:$0xff] %v260
                %v262 = vld [vmem:[%s152 + $0xd40] sm:$0xff]
                %263 = vst [vmem:[%s153 + $0x1c4] sm:$0xff] %v262
                %v264 = vld [vmem:[%s152 + $0xd48] sm:$0xff]
                %265 = vst [vmem:[%s153 + $0x1cc] sm:$0xff] %v264
                %v266 = vld [vmem:[%s152 + $0xd50] sm:$0xff]
                %267 = vst [vmem:[%s153 + $0x1d4] sm:$0xff] %v266
                %v268 = vld [vmem:[%s152 + $0xd58] sm:$0xff]
                %269 = vst [vmem:[%s153 + $0x1dc] sm:$0xff] %v268
                %v270 = vld [vmem:[%s152 + $0xd60] sm:$0xff]
                %271 = vst [vmem:[%s153 + $0x1e4] sm:$0xff] %v270
                %v272 = vld [vmem:[%s152 + $0xd68] sm:$0xff]
                %273 = vst [vmem:[%s153 + $0x1ec] sm:$0xff] %v272
                %v274 = vld [vmem:[%s152 + $0xfc0] sm:$0xff]
                %275 = vst [vmem:[%s153 + $0x1f8] sm:$0xff] %v274
                %v276 = vld [vmem:[%s152 + $0xfc8] sm:$0xff]
                %277 = vst [vmem:[%s153 + $0x200] sm:$0xff] %v276
                %v278 = vld [vmem:[%s152 + $0xfd0] sm:$0xff]
                %279 = vst [vmem:[%s153 + $0x208] sm:$0xff] %v278
                %v280 = vld [vmem:[%s152 + $0xfd8] sm:$0xff]
                %281 = vst [vmem:[%s153 + $0x210] sm:$0xff] %v280
                %v282 = vld [vmem:[%s152 + $0xfe0] sm:$0xff]
                %283 = vst [vmem:[%s153 + $0x218] sm:$0xff] %v282
                %v284 = vld [vmem:[%s152 + $0xfe8] sm:$0xff]
                %285 = vst [vmem:[%s153 + $0x220] sm:$0xff] %v284
                %v286 = vld [vmem:[%s152 + $0xff0] sm:$0xff]
                %287 = vst [vmem:[%s153 + $0x228] sm:$0xff] %v286
                %v288 = vld [vmem:[%s152 + $0xff8] sm:$0xff]
                %289 = vst [vmem:[%s153 + $0x230] sm:$0xff] %v288
                %v290 = vld [vmem:[%s152 + $0x1000] sm:$0xff]
                %291 = vst [vmem:[%s153 + $0x238] sm:$0xff] %v290
                %v292 = vld [vmem:[%s152 + $0x1008] sm:$0xff]
                %293 = vst [vmem:[%s153 + $0x240] sm:$0xff] %v292
                %v294 = vld [vmem:[%s152 + $0x1260] sm:$0xff]
                %295 = vst [vmem:[%s153 + $0x24c] sm:$0xff] %v294
                %v296 = vld [vmem:[%s152 + $0x1268] sm:$0xff]
                %297 = vst [vmem:[%s153 + $0x254] sm:$0xff] %v296
                %v298 = vld [vmem:[%s152 + $0x1270] sm:$0xff]
                %299 = vst [vmem:[%s153 + $0x25c] sm:$0xff] %v298
                %v300 = vld [vmem:[%s152 + $0x1278] sm:$0xff]
                %301 = vst [vmem:[%s153 + $0x264] sm:$0xff] %v300
                %v302 = vld [vmem:[%s152 + $0x1280] sm:$0xff]
                %303 = vst [vmem:[%s153 + $0x26c] sm:$0xff] %v302
                %v304 = vld [vmem:[%s152 + $0x1288] sm:$0xff]
                %305 = vst [vmem:[%s153 + $0x274] sm:$0xff] %v304
                %v306 = vld [vmem:[%s152 + $0x1290] sm:$0xff]
                %307 = vst [vmem:[%s153 + $0x27c] sm:$0xff] %v306
                %v308 = vld [vmem:[%s152 + $0x1298] sm:$0xff]
                %309 = vst [vmem:[%s153 + $0x284] sm:$0xff] %v308
                %v310 = vld [vmem:[%s152 + $0x12a0] sm:$0xff]
                %311 = vst [vmem:[%s153 + $0x28c] sm:$0xff] %v310
                %v312 = vld [vmem:[%s152 + $0x12a8] sm:$0xff]
                %313 = vst [vmem:[%s153 + $0x294] sm:$0xff] %v312
                %v314 = vld [vmem:[%s152 + $0x1500] sm:$0xff]
                %315 = vst [vmem:[%s153 + $0x2a0] sm:$0xff] %v314
                %v316 = vld [vmem:[%s152 + $0x1508] sm:$0xff]
                %317 = vst [vmem:[%s153 + $0x2a8] sm:$0xff] %v316
                %v318 = vld [vmem:[%s152 + $0x1510] sm:$0xff]
                %319 = vst [vmem:[%s153 + $0x2b0] sm:$0xff] %v318
                %v320 = vld [vmem:[%s152 + $0x1518] sm:$0xff]
                %321 = vst [vmem:[%s153 + $0x2b8] sm:$0xff] %v320
                %v322 = vld [vmem:[%s152 + $0x1520] sm:$0xff]
                %323 = vst [vmem:[%s153 + $0x2c0] sm:$0xff] %v322
                %v324 = vld [vmem:[%s152 + $0x1528] sm:$0xff]
                %325 = vst [vmem:[%s153 + $0x2c8] sm:$0xff] %v324
                %v326 = vld [vmem:[%s152 + $0x1530] sm:$0xff]
                %327 = vst [vmem:[%s153 + $0x2d0] sm:$0xff] %v326
                %v328 = vld [vmem:[%s152 + $0x1538] sm:$0xff]
                %329 = vst [vmem:[%s153 + $0x2d8] sm:$0xff] %v328
                %v330 = vld [vmem:[%s152 + $0x1540] sm:$0xff]
                %331 = vst [vmem:[%s153 + $0x2e0] sm:$0xff] %v330
                %v332 = vld [vmem:[%s152 + $0x1548] sm:$0xff]
                %333 = vst [vmem:[%s153 + $0x2e8] sm:$0xff] %v332
                %v334 = vld [vmem:[%s152 + $0x17a0] sm:$0xff]
                %335 = vst [vmem:[%s153 + $0x2f4] sm:$0xff] %v334
                %v336 = vld [vmem:[%s152 + $0x17a8] sm:$0xff]
                %337 = vst [vmem:[%s153 + $0x2fc] sm:$0xff] %v336
                %v338 = vld [vmem:[%s152 + $0x17b0] sm:$0xff]
                %339 = vst [vmem:[%s153 + $0x304] sm:$0xff] %v338
                %v340 = vld [vmem:[%s152 + $0x17b8] sm:$0xff]
                %341 = vst [vmem:[%s153 + $0x30c] sm:$0xff] %v340
                %v342 = vld [vmem:[%s152 + $0x17c0] sm:$0xff]
                %343 = vst [vmem:[%s153 + $0x314] sm:$0xff] %v342
                %v344 = vld [vmem:[%s152 + $0x17c8] sm:$0xff]
                %345 = vst [vmem:[%s153 + $0x31c] sm:$0xff] %v344
                %v346 = vld [vmem:[%s152 + $0x17d0] sm:$0xff]
                %347 = vst [vmem:[%s153 + $0x324] sm:$0xff] %v346
                %v348 = vld [vmem:[%s152 + $0x17d8] sm:$0xff]
                %349 = vst [vmem:[%s153 + $0x32c] sm:$0xff] %v348
                %v350 = vld [vmem:[%s152 + $0x17e0] sm:$0xff]
                %351 = vst [vmem:[%s153 + $0x334] sm:$0xff] %v350
                %v352 = vld [vmem:[%s152 + $0x17e8] sm:$0xff]
                %353 = vst [vmem:[%s153 + $0x33c] sm:$0xff] %v352
                %v354 = vld [vmem:[%s152 + $0x1a40] sm:$0xff]
                %355 = vst [vmem:[%s153 + $0x348] sm:$0xff] %v354
                %v356 = vld [vmem:[%s152 + $0x1a48] sm:$0xff]
                %357 = vst [vmem:[%s153 + $0x350] sm:$0xff] %v356
                %v358 = vld [vmem:[%s152 + $0x1a50] sm:$0xff]
                %359 = vst [vmem:[%s153 + $0x358] sm:$0xff] %v358
                %v360 = vld [vmem:[%s152 + $0x1a58] sm:$0xff]
                %361 = vst [vmem:[%s153 + $0x360] sm:$0xff] %v360
                %v362 = vld [vmem:[%s152 + $0x1a60] sm:$0xff]
                %363 = vst [vmem:[%s153 + $0x368] sm:$0xff] %v362
                %v364 = vld [vmem:[%s152 + $0x1a68] sm:$0xff]
                %365 = vst [vmem:[%s153 + $0x370] sm:$0xff] %v364
                %v366 = vld [vmem:[%s152 + $0x1a70] sm:$0xff]
                %367 = vst [vmem:[%s153 + $0x378] sm:$0xff] %v366
                %v368 = vld [vmem:[%s152 + $0x1a78] sm:$0xff]
                %369 = vst [vmem:[%s153 + $0x380] sm:$0xff] %v368
                %v370 = vld [vmem:[%s152 + $0x1a80] sm:$0xff]
                %371 = vst [vmem:[%s153 + $0x388] sm:$0xff] %v370
                %v372 = vld [vmem:[%s152 + $0x1a88] sm:$0xff]
                %373 = vst [vmem:[%s153 + $0x390] sm:$0xff] %v372
                %v374 = vld [vmem:[%s152 + $0x1ce0] sm:$0xff]
                %375 = vst [vmem:[%s153 + $0x39c] sm:$0xff] %v374
                %v376 = vld [vmem:[%s152 + $0x1ce8] sm:$0xff]
                %377 = vst [vmem:[%s153 + $0x3a4] sm:$0xff] %v376
                %v378 = vld [vmem:[%s152 + $0x1cf0] sm:$0xff]
                %379 = vst [vmem:[%s153 + $0x3ac] sm:$0xff] %v378
                %v380 = vld [vmem:[%s152 + $0x1cf8] sm:$0xff]
                %381 = vst [vmem:[%s153 + $0x3b4] sm:$0xff] %v380
                %v382 = vld [vmem:[%s152 + $0x1d00] sm:$0xff]
                %383 = vst [vmem:[%s153 + $0x3bc] sm:$0xff] %v382
                %v384 = vld [vmem:[%s152 + $0x1d08] sm:$0xff]
                %385 = vst [vmem:[%s153 + $0x3c4] sm:$0xff] %v384
                %v386 = vld [vmem:[%s152 + $0x1d10] sm:$0xff]
                %387 = vst [vmem:[%s153 + $0x3cc] sm:$0xff] %v386
                %v388 = vld [vmem:[%s152 + $0x1d18] sm:$0xff]
                %389 = vst [vmem:[%s153 + $0x3d4] sm:$0xff] %v388
                %v390 = vld [vmem:[%s152 + $0x1d20] sm:$0xff]
                %391 = vst [vmem:[%s153 + $0x3dc] sm:$0xff] %v390
                %v392 = vld [vmem:[%s152 + $0x1d28] sm:$0xff]
                %393 = vst [vmem:[%s153 + $0x3e4] sm:$0xff] %v392
                %v394 = vld [vmem:[%s152 + $0x1f80] sm:$0xff]
                %395 = vst [vmem:[%s153 + $0x3f0] sm:$0xff] %v394
                %v396 = vld [vmem:[%s152 + $0x1f88] sm:$0xff]
                %397 = vst [vmem:[%s153 + $0x3f8] sm:$0xff] %v396
                %v398 = vld [vmem:[%s152 + $0x1f90] sm:$0xff]
                %399 = vst [vmem:[%s153 + $0x400] sm:$0xff] %v398
                %v400 = vld [vmem:[%s152 + $0x1f98] sm:$0xff]
                %401 = vst [vmem:[%s153 + $0x408] sm:$0xff] %v400
                %v402 = vld [vmem:[%s152 + $0x1fa0] sm:$0xff]
                %403 = vst [vmem:[%s153 + $0x410] sm:$0xff] %v402
                %v404 = vld [vmem:[%s152 + $0x1fa8] sm:$0xff]
                %405 = vst [vmem:[%s153 + $0x418] sm:$0xff] %v404
                %v406 = vld [vmem:[%s152 + $0x1fb0] sm:$0xff]
                %407 = vst [vmem:[%s153 + $0x420] sm:$0xff] %v406
                %v408 = vld [vmem:[%s152 + $0x1fb8] sm:$0xff]
                %409 = vst [vmem:[%s153 + $0x428] sm:$0xff] %v408
                %v410 = vld [vmem:[%s152 + $0x1fc0] sm:$0xff]
                %411 = vst [vmem:[%s153 + $0x430] sm:$0xff] %v410
                %v412 = vld [vmem:[%s152 + $0x1fc8] sm:$0xff]
                %413 = vst [vmem:[%s153 + $0x438] sm:$0xff] %v412
                %v414 = vld [vmem:[%s152 + $0x2220] sm:$0xff]
                %415 = vst [vmem:[%s153 + $0x444] sm:$0xff] %v414
                %v416 = vld [vmem:[%s152 + $0x2228] sm:$0xff]
                %417 = vst [vmem:[%s153 + $0x44c] sm:$0xff] %v416
                %v418 = vld [vmem:[%s152 + $0x2230] sm:$0xff]
                %419 = vst [vmem:[%s153 + $0x454] sm:$0xff] %v418
                %v420 = vld [vmem:[%s152 + $0x2238] sm:$0xff]
                %421 = vst [vmem:[%s153 + $0x45c] sm:$0xff] %v420
                %v422 = vld [vmem:[%s152 + $0x2240] sm:$0xff]
                %423 = vst [vmem:[%s153 + $0x464] sm:$0xff] %v422
                %v424 = vld [vmem:[%s152 + $0x2248] sm:$0xff]
                %425 = vst [vmem:[%s153 + $0x46c] sm:$0xff] %v424
                %v426 = vld [vmem:[%s152 + $0x2250] sm:$0xff]
                %427 = vst [vmem:[%s153 + $0x474] sm:$0xff] %v426
                %v428 = vld [vmem:[%s152 + $0x2258] sm:$0xff]
                %429 = vst [vmem:[%s153 + $0x47c] sm:$0xff] %v428
                %v430 = vld [vmem:[%s152 + $0x2260] sm:$0xff]
                %431 = vst [vmem:[%s153 + $0x484] sm:$0xff] %v430
                %v432 = vld [vmem:[%s152 + $0x2268] sm:$0xff]
                %433 = vst [vmem:[%s153 + $0x48c] sm:$0xff] %v432
                %v434 = vld [vmem:[%s152 + $0x24c0] sm:$0xff]
                %435 = vst [vmem:[%s153 + $0x498] sm:$0xff] %v434
                %v436 = vld [vmem:[%s152 + $0x24c8] sm:$0xff]
                %437 = vst [vmem:[%s153 + $0x4a0] sm:$0xff] %v436
                %v438 = vld [vmem:[%s152 + $0x24d0] sm:$0xff]
                %439 = vst [vmem:[%s153 + $0x4a8] sm:$0xff] %v438
                %v440 = vld [vmem:[%s152 + $0x24d8] sm:$0xff]
                %441 = vst [vmem:[%s153 + $0x4b0] sm:$0xff] %v440
                %v442 = vld [vmem:[%s152 + $0x24e0] sm:$0xff]
                %443 = vst [vmem:[%s153 + $0x4b8] sm:$0xff] %v442
                %v444 = vld [vmem:[%s152 + $0x24e8] sm:$0xff]
                %445 = vst [vmem:[%s153 + $0x4c0] sm:$0xff] %v444
                %v446 = vld [vmem:[%s152 + $0x24f0] sm:$0xff]
                %447 = vst [vmem:[%s153 + $0x4c8] sm:$0xff] %v446
                %v448 = vld [vmem:[%s152 + $0x24f8] sm:$0xff]
                %449 = vst [vmem:[%s153 + $0x4d0] sm:$0xff] %v448
                %v450 = vld [vmem:[%s152 + $0x2500] sm:$0xff]
                %451 = vst [vmem:[%s153 + $0x4d8] sm:$0xff] %v450
                %v452 = vld [vmem:[%s152 + $0x2508] sm:$0xff]
                %453 = vst [vmem:[%s153 + $0x4e0] sm:$0xff] %v452
                %v454 = vld [vmem:[%s152 + $0x2760] sm:$0xff]
                %455 = vst [vmem:[%s153 + $0x4ec] sm:$0xff] %v454
                %v456 = vld [vmem:[%s152 + $0x2768] sm:$0xff]
                %457 = vst [vmem:[%s153 + $0x4f4] sm:$0xff] %v456
                %v458 = vld [vmem:[%s152 + $0x2770] sm:$0xff]
                %459 = vst [vmem:[%s153 + $0x4fc] sm:$0xff] %v458
                %v460 = vld [vmem:[%s152 + $0x2778] sm:$0xff]
                %461 = vst [vmem:[%s153 + $0x504] sm:$0xff] %v460
                %v462 = vld [vmem:[%s152 + $0x2780] sm:$0xff]
                %463 = vst [vmem:[%s153 + $0x50c] sm:$0xff] %v462
                %v464 = vld [vmem:[%s152 + $0x2788] sm:$0xff]
                %465 = vst [vmem:[%s153 + $0x514] sm:$0xff] %v464
                %v466 = vld [vmem:[%s152 + $0x2790] sm:$0xff]
                %467 = vst [vmem:[%s153 + $0x51c] sm:$0xff] %v466
                %v468 = vld [vmem:[%s152 + $0x2798] sm:$0xff]
                %469 = vst [vmem:[%s153 + $0x524] sm:$0xff] %v468
                %v470 = vld [vmem:[%s152 + $0x27a0] sm:$0xff]
                %471 = vst [vmem:[%s153 + $0x52c] sm:$0xff] %v470
                %v472 = vld [vmem:[%s152 + $0x27a8] sm:$0xff]
                %473 = vst [vmem:[%s153 + $0x534] sm:$0xff] %v472
                %v474 = vld [vmem:[%s152 + $0x2a00] sm:$0xff]
                %475 = vst [vmem:[%s153 + $0x540] sm:$0xff] %v474
                %v476 = vld [vmem:[%s152 + $0x2a08] sm:$0xff]
                %477 = vst [vmem:[%s153 + $0x548] sm:$0xff] %v476
                %v478 = vld [vmem:[%s152 + $0x2a10] sm:$0xff]
                %479 = vst [vmem:[%s153 + $0x550] sm:$0xff] %v478
                %v480 = vld [vmem:[%s152 + $0x2a18] sm:$0xff]
                %481 = vst [vmem:[%s153 + $0x558] sm:$0xff] %v480
                %v482 = vld [vmem:[%s152 + $0x2a20] sm:$0xff]
                %483 = vst [vmem:[%s153 + $0x560] sm:$0xff] %v482
                %v484 = vld [vmem:[%s152 + $0x2a28] sm:$0xff]
                %485 = vst [vmem:[%s153 + $0x568] sm:$0xff] %v484
                %v486 = vld [vmem:[%s152 + $0x2a30] sm:$0xff]
                %487 = vst [vmem:[%s153 + $0x570] sm:$0xff] %v486
                %v488 = vld [vmem:[%s152 + $0x2a38] sm:$0xff]
                %489 = vst [vmem:[%s153 + $0x578] sm:$0xff] %v488
                %v490 = vld [vmem:[%s152 + $0x2a40] sm:$0xff]
                %491 = vst [vmem:[%s153 + $0x580] sm:$0xff] %v490
                %v492 = vld [vmem:[%s152 + $0x2a48] sm:$0xff]
                %493 = vst [vmem:[%s153 + $0x588] sm:$0xff] %v492
                %v494 = vld [vmem:[%s152 + $0x2ca0] sm:$0xff]
                %495 = vst [vmem:[%s153 + $0x594] sm:$0xff] %v494
                %v496 = vld [vmem:[%s152 + $0x2ca8] sm:$0xff]
                %497 = vst [vmem:[%s153 + $0x59c] sm:$0xff] %v496
                %v498 = vld [vmem:[%s152 + $0x2cb0] sm:$0xff]
                %499 = vst [vmem:[%s153 + $0x5a4] sm:$0xff] %v498
                %v500 = vld [vmem:[%s152 + $0x2cb8] sm:$0xff]
                %501 = vst [vmem:[%s153 + $0x5ac] sm:$0xff] %v500
                %v502 = vld [vmem:[%s152 + $0x2cc0] sm:$0xff]
                %503 = vst [vmem:[%s153 + $0x5b4] sm:$0xff] %v502
                %v504 = vld [vmem:[%s152 + $0x2cc8] sm:$0xff]
                %505 = vst [vmem:[%s153 + $0x5bc] sm:$0xff] %v504
                %v506 = vld [vmem:[%s152 + $0x2cd0] sm:$0xff]
                %507 = vst [vmem:[%s153 + $0x5c4] sm:$0xff] %v506
                %v508 = vld [vmem:[%s152 + $0x2cd8] sm:$0xff]
                %509 = vst [vmem:[%s153 + $0x5cc] sm:$0xff] %v508
                %v510 = vld [vmem:[%s152 + $0x2ce0] sm:$0xff]
                %511 = vst [vmem:[%s153 + $0x5d4] sm:$0xff] %v510
                %v512 = vld [vmem:[%s152 + $0x2ce8] sm:$0xff]
                %513 = vst [vmem:[%s153 + $0x5dc] sm:$0xff] %v512
                %v514 = vld [vmem:[%s152 + $0x2f40] sm:$0xff]
                %515 = vst [vmem:[%s153 + $0x5e8] sm:$0xff] %v514
                %v516 = vld [vmem:[%s152 + $0x2f48] sm:$0xff]
                %517 = vst [vmem:[%s153 + $0x5f0] sm:$0xff] %v516
                %v518 = vld [vmem:[%s152 + $0x2f50] sm:$0xff]
                %519 = vst [vmem:[%s153 + $0x5f8] sm:$0xff] %v518
                %v520 = vld [vmem:[%s152 + $0x2f58] sm:$0xff]
                %521 = vst [vmem:[%s153 + $0x600] sm:$0xff] %v520
                %v522 = vld [vmem:[%s152 + $0x2f60] sm:$0xff]
                %523 = vst [vmem:[%s153 + $0x608] sm:$0xff] %v522
                %v524 = vld [vmem:[%s152 + $0x2f68] sm:$0xff]
                %525 = vst [vmem:[%s153 + $0x610] sm:$0xff] %v524
                %v526 = vld [vmem:[%s152 + $0x2f70] sm:$0xff]
                %527 = vst [vmem:[%s153 + $0x618] sm:$0xff] %v526
                %v528 = vld [vmem:[%s152 + $0x2f78] sm:$0xff]
                %529 = vst [vmem:[%s153 + $0x620] sm:$0xff] %v528
                %v530 = vld [vmem:[%s152 + $0x2f80] sm:$0xff]
                %531 = vst [vmem:[%s153 + $0x628] sm:$0xff] %v530
                %v532 = vld [vmem:[%s152 + $0x2f88] sm:$0xff]
                %533 = vst [vmem:[%s153 + $0x630] sm:$0xff] %v532
                %v534 = vld [vmem:[%s152 + $0x31e0] sm:$0xff]
                %535 = vst [vmem:[%s153 + $0x63c] sm:$0xff] %v534
                %v536 = vld [vmem:[%s152 + $0x31e8] sm:$0xff]
                %537 = vst [vmem:[%s153 + $0x644] sm:$0xff] %v536
                %v538 = vld [vmem:[%s152 + $0x31f0] sm:$0xff]
                %539 = vst [vmem:[%s153 + $0x64c] sm:$0xff] %v538
                %v540 = vld [vmem:[%s152 + $0x31f8] sm:$0xff]
                %541 = vst [vmem:[%s153 + $0x654] sm:$0xff] %v540
                %v542 = vld [vmem:[%s152 + $0x3200] sm:$0xff]
                %543 = vst [vmem:[%s153 + $0x65c] sm:$0xff] %v542
                %v544 = vld [vmem:[%s152 + $0x3208] sm:$0xff]
                %545 = vst [vmem:[%s153 + $0x664] sm:$0xff] %v544
                %v546 = vld [vmem:[%s152 + $0x3210] sm:$0xff]
                %547 = vst [vmem:[%s153 + $0x66c] sm:$0xff] %v546
                %v548 = vld [vmem:[%s152 + $0x3218] sm:$0xff]
                %549 = vst [vmem:[%s153 + $0x674] sm:$0xff] %v548
                %v550 = vld [vmem:[%s152 + $0x3220] sm:$0xff]
                %551 = vst [vmem:[%s153 + $0x67c] sm:$0xff] %v550
                %v552 = vld [vmem:[%s152 + $0x3228] sm:$0xff]
                %553 = vst [vmem:[%s153 + $0x684] sm:$0xff] %v552
                %v554 = vld [vmem:[%s152 + $0x3480] sm:$0xff]
                %555 = vst [vmem:[%s153 + $0x690] sm:$0xff] %v554
                %v556 = vld [vmem:[%s152 + $0x3488] sm:$0xff]
                %557 = vst [vmem:[%s153 + $0x698] sm:$0xff] %v556
                %v558 = vld [vmem:[%s152 + $0x3490] sm:$0xff]
                %559 = vst [vmem:[%s153 + $0x6a0] sm:$0xff] %v558
                %v560 = vld [vmem:[%s152 + $0x3498] sm:$0xff]
                %561 = vst [vmem:[%s153 + $0x6a8] sm:$0xff] %v560
                %v562 = vld [vmem:[%s152 + $0x34a0] sm:$0xff]
                %563 = vst [vmem:[%s153 + $0x6b0] sm:$0xff] %v562
                %v564 = vld [vmem:[%s152 + $0x34a8] sm:$0xff]
                %565 = vst [vmem:[%s153 + $0x6b8] sm:$0xff] %v564
                %v566 = vld [vmem:[%s152 + $0x34b0] sm:$0xff]
                %567 = vst [vmem:[%s153 + $0x6c0] sm:$0xff] %v566
                %v568 = vld [vmem:[%s152 + $0x34b8] sm:$0xff]
                %569 = vst [vmem:[%s153 + $0x6c8] sm:$0xff] %v568
                %v570 = vld [vmem:[%s152 + $0x34c0] sm:$0xff]
                %571 = vst [vmem:[%s153 + $0x6d0] sm:$0xff] %v570
                %v572 = vld [vmem:[%s152 + $0x34c8] sm:$0xff]
                %573 = vst [vmem:[%s153 + $0x6d8] sm:$0xff] %v572
                %v574 = vld [vmem:[%s152 + $0x3720] sm:$0xff]
                %575 = vst [vmem:[%s153 + $0x6e4] sm:$0xff] %v574
                %v576 = vld [vmem:[%s152 + $0x3728] sm:$0xff]
                %577 = vst [vmem:[%s153 + $0x6ec] sm:$0xff] %v576
                %v578 = vld [vmem:[%s152 + $0x3730] sm:$0xff]
                %579 = vst [vmem:[%s153 + $0x6f4] sm:$0xff] %v578
                %v580 = vld [vmem:[%s152 + $0x3738] sm:$0xff]
                %581 = vst [vmem:[%s153 + $0x6fc] sm:$0xff] %v580
                %v582 = vld [vmem:[%s152 + $0x3740] sm:$0xff]
                %583 = vst [vmem:[%s153 + $0x704] sm:$0xff] %v582
                %v584 = vld [vmem:[%s152 + $0x3748] sm:$0xff]
                %585 = vst [vmem:[%s153 + $0x70c] sm:$0xff] %v584
                %v586 = vld [vmem:[%s152 + $0x3750] sm:$0xff]
                %587 = vst [vmem:[%s153 + $0x714] sm:$0xff] %v586
                %v588 = vld [vmem:[%s152 + $0x3758] sm:$0xff]
                %589 = vst [vmem:[%s153 + $0x71c] sm:$0xff] %v588
                %v590 = vld [vmem:[%s152 + $0x3760] sm:$0xff]
                %591 = vst [vmem:[%s153 + $0x724] sm:$0xff] %v590
                %v592 = vld [vmem:[%s152 + $0x3768] sm:$0xff]
                %593 = vst [vmem:[%s153 + $0x72c] sm:$0xff] %v592
                %v594 = vld [vmem:[%s152 + $0x39c0] sm:$0xff]
                %595 = vst [vmem:[%s153 + $0x738] sm:$0xff] %v594
                %v596 = vld [vmem:[%s152 + $0x39c8] sm:$0xff]
                %597 = vst [vmem:[%s153 + $0x740] sm:$0xff] %v596
                %v598 = vld [vmem:[%s152 + $0x39d0] sm:$0xff]
                %599 = vst [vmem:[%s153 + $0x748] sm:$0xff] %v598
                %v600 = vld [vmem:[%s152 + $0x39d8] sm:$0xff]
                %601 = vst [vmem:[%s153 + $0x750] sm:$0xff] %v600
                %v602 = vld [vmem:[%s152 + $0x39e0] sm:$0xff]
                %603 = vst [vmem:[%s153 + $0x758] sm:$0xff] %v602
                %v604 = vld [vmem:[%s152 + $0x39e8] sm:$0xff]
                %605 = vst [vmem:[%s153 + $0x760] sm:$0xff] %v604
                %v606 = vld [vmem:[%s152 + $0x39f0] sm:$0xff]
                %607 = vst [vmem:[%s153 + $0x768] sm:$0xff] %v606
                %v608 = vld [vmem:[%s152 + $0x39f8] sm:$0xff]
                %609 = vst [vmem:[%s153 + $0x770] sm:$0xff] %v608
                %v610 = vld [vmem:[%s152 + $0x3a00] sm:$0xff]
                %611 = vst [vmem:[%s153 + $0x778] sm:$0xff] %v610
                %v612 = vld [vmem:[%s152 + $0x3a08] sm:$0xff]
                %613 = vst [vmem:[%s153 + $0x780] sm:$0xff] %v612
                %v614 = vld [vmem:[%s152 + $0x3c60] sm:$0xff]
                %615 = vst [vmem:[%s153 + $0x78c] sm:$0xff] %v614
                %v616 = vld [vmem:[%s152 + $0x3c68] sm:$0xff]
                %617 = vst [vmem:[%s153 + $0x794] sm:$0xff] %v616
                %v618 = vld [vmem:[%s152 + $0x3c70] sm:$0xff]
                %619 = vst [vmem:[%s153 + $0x79c] sm:$0xff] %v618
                %v620 = vld [vmem:[%s152 + $0x3c78] sm:$0xff]
                %621 = vst [vmem:[%s153 + $0x7a4] sm:$0xff] %v620
                %v622 = vld [vmem:[%s152 + $0x3c80] sm:$0xff]
                %623 = vst [vmem:[%s153 + $0x7ac] sm:$0xff] %v622
                %v624 = vld [vmem:[%s152 + $0x3c88] sm:$0xff]
                %625 = vst [vmem:[%s153 + $0x7b4] sm:$0xff] %v624
                %v626 = vld [vmem:[%s152 + $0x3c90] sm:$0xff]
                %627 = vst [vmem:[%s153 + $0x7bc] sm:$0xff] %v626
                %v628 = vld [vmem:[%s152 + $0x3c98] sm:$0xff]
                %629 = vst [vmem:[%s153 + $0x7c4] sm:$0xff] %v628
                %v630 = vld [vmem:[%s152 + $0x3ca0] sm:$0xff]
                %631 = vst [vmem:[%s153 + $0x7cc] sm:$0xff] %v630
                %v632 = vld [vmem:[%s152 + $0x3ca8] sm:$0xff]
                %633 = vst [vmem:[%s153 + $0x7d4] sm:$0xff] %v632
                %v634 = vld [vmem:[%s152 + $0x3f00] sm:$0xff]
                %635 = vst [vmem:[%s153 + $0x7e0] sm:$0xff] %v634
                %v636 = vld [vmem:[%s152 + $0x3f08] sm:$0xff]
                %637 = vst [vmem:[%s153 + $0x7e8] sm:$0xff] %v636
                %v638 = vld [vmem:[%s152 + $0x3f10] sm:$0xff]
                %639 = vst [vmem:[%s153 + $0x7f0] sm:$0xff] %v638
                %v640 = vld [vmem:[%s152 + $0x3f18] sm:$0xff]
                %641 = vst [vmem:[%s153 + $0x7f8] sm:$0xff] %v640
                %v642 = vld [vmem:[%s152 + $0x3f20] sm:$0xff]
                %643 = vst [vmem:[%s153 + $0x800] sm:$0xff] %v642
                %v644 = vld [vmem:[%s152 + $0x3f28] sm:$0xff]
                %645 = vst [vmem:[%s153 + $0x808] sm:$0xff] %v644
                %v646 = vld [vmem:[%s152 + $0x3f30] sm:$0xff]
                %647 = vst [vmem:[%s153 + $0x810] sm:$0xff] %v646
                %v648 = vld [vmem:[%s152 + $0x3f38] sm:$0xff]
                %649 = vst [vmem:[%s153 + $0x818] sm:$0xff] %v648
                %v650 = vld [vmem:[%s152 + $0x3f40] sm:$0xff]
                %651 = vst [vmem:[%s153 + $0x820] sm:$0xff] %v650
                %v652 = vld [vmem:[%s152 + $0x3f48] sm:$0xff]
                %653 = vst [vmem:[%s153 + $0x828] sm:$0xff] %v652
                %v654 = vld [vmem:[%s152 + $0x41a0] sm:$0xff]
                %655 = vst [vmem:[%s153 + $0x834] sm:$0xff] %v654
                %v656 = vld [vmem:[%s152 + $0x41a8] sm:$0xff]
                %657 = vst [vmem:[%s153 + $0x83c] sm:$0xff] %v656
                %v658 = vld [vmem:[%s152 + $0x41b0] sm:$0xff]
                %659 = vst [vmem:[%s153 + $0x844] sm:$0xff] %v658
                %v660 = vld [vmem:[%s152 + $0x41b8] sm:$0xff]
                %661 = vst [vmem:[%s153 + $0x84c] sm:$0xff] %v660
                %v662 = vld [vmem:[%s152 + $0x41c0] sm:$0xff]
                %663 = vst [vmem:[%s153 + $0x854] sm:$0xff] %v662
                %v664 = vld [vmem:[%s152 + $0x41c8] sm:$0xff]
                %665 = vst [vmem:[%s153 + $0x85c] sm:$0xff] %v664
                %v666 = vld [vmem:[%s152 + $0x41d0] sm:$0xff]
                %667 = vst [vmem:[%s153 + $0x864] sm:$0xff] %v666
                %v668 = vld [vmem:[%s152 + $0x41d8] sm:$0xff]
                %669 = vst [vmem:[%s153 + $0x86c] sm:$0xff] %v668
                %v670 = vld [vmem:[%s152 + $0x41e0] sm:$0xff]
                %671 = vst [vmem:[%s153 + $0x874] sm:$0xff] %v670
                %v672 = vld [vmem:[%s152 + $0x41e8] sm:$0xff]
                %673 = vst [vmem:[%s153 + $0x87c] sm:$0xff] %v672
                %v674 = vld [vmem:[%s152 + $0x4440] sm:$0xff]
                %675 = vst [vmem:[%s153 + $0x888] sm:$0xff] %v674
                %v676 = vld [vmem:[%s152 + $0x4448] sm:$0xff]
                %677 = vst [vmem:[%s153 + $0x890] sm:$0xff] %v676
                %v678 = vld [vmem:[%s152 + $0x4450] sm:$0xff]
                %679 = vst [vmem:[%s153 + $0x898] sm:$0xff] %v678
                %v680 = vld [vmem:[%s152 + $0x4458] sm:$0xff]
                %681 = vst [vmem:[%s153 + $0x8a0] sm:$0xff] %v680
                %v682 = vld [vmem:[%s152 + $0x4460] sm:$0xff]
                %683 = vst [vmem:[%s153 + $0x8a8] sm:$0xff] %v682
                %v684 = vld [vmem:[%s152 + $0x4468] sm:$0xff]
                %685 = vst [vmem:[%s153 + $0x8b0] sm:$0xff] %v684
                %v686 = vld [vmem:[%s152 + $0x4470] sm:$0xff]
                %687 = vst [vmem:[%s153 + $0x8b8] sm:$0xff] %v686
                %v688 = vld [vmem:[%s152 + $0x4478] sm:$0xff]
                %689 = vst [vmem:[%s153 + $0x8c0] sm:$0xff] %v688
                %v690 = vld [vmem:[%s152 + $0x4480] sm:$0xff]
                %691 = vst [vmem:[%s153 + $0x8c8] sm:$0xff] %v690
                %v692 = vld [vmem:[%s152 + $0x4488] sm:$0xff]
                %693 = vst [vmem:[%s153 + $0x8d0] sm:$0xff] %v692
                %v694 = vld [vmem:[%s152 + $0x46e0] sm:$0xff]
                %695 = vst [vmem:[%s153 + $0x8dc] sm:$0xff] %v694
                %v696 = vld [vmem:[%s152 + $0x46e8] sm:$0xff]
                %697 = vst [vmem:[%s153 + $0x8e4] sm:$0xff] %v696
                %v698 = vld [vmem:[%s152 + $0x46f0] sm:$0xff]
                %699 = vst [vmem:[%s153 + $0x8ec] sm:$0xff] %v698
                %v700 = vld [vmem:[%s152 + $0x46f8] sm:$0xff]
                %701 = vst [vmem:[%s153 + $0x8f4] sm:$0xff] %v700
                %v702 = vld [vmem:[%s152 + $0x4700] sm:$0xff]
                %703 = vst [vmem:[%s153 + $0x8fc] sm:$0xff] %v702
                %v704 = vld [vmem:[%s152 + $0x4708] sm:$0xff]
                %705 = vst [vmem:[%s153 + $0x904] sm:$0xff] %v704
                %v706 = vld [vmem:[%s152 + $0x4710] sm:$0xff]
                %707 = vst [vmem:[%s153 + $0x90c] sm:$0xff] %v706
                %v708 = vld [vmem:[%s152 + $0x4718] sm:$0xff]
                %709 = vst [vmem:[%s153 + $0x914] sm:$0xff] %v708
                %v710 = vld [vmem:[%s152 + $0x4720] sm:$0xff]
                %711 = vst [vmem:[%s153 + $0x91c] sm:$0xff] %v710
                %v712 = vld [vmem:[%s152 + $0x4728] sm:$0xff]
                %713 = vst [vmem:[%s153 + $0x924] sm:$0xff] %v712
                %v714 = vld [vmem:[%s152 + $0x4980] sm:$0xff]
                %715 = vst [vmem:[%s153 + $0x930] sm:$0xff] %v714
                %v716 = vld [vmem:[%s152 + $0x4988] sm:$0xff]
                %717 = vst [vmem:[%s153 + $0x938] sm:$0xff] %v716
                %v718 = vld [vmem:[%s152 + $0x4990] sm:$0xff]
                %719 = vst [vmem:[%s153 + $0x940] sm:$0xff] %v718
                %v720 = vld [vmem:[%s152 + $0x4998] sm:$0xff]
                %721 = vst [vmem:[%s153 + $0x948] sm:$0xff] %v720
                %v722 = vld [vmem:[%s152 + $0x49a0] sm:$0xff]
                %723 = vst [vmem:[%s153 + $0x950] sm:$0xff] %v722
                %v724 = vld [vmem:[%s152 + $0x49a8] sm:$0xff]
                %725 = vst [vmem:[%s153 + $0x958] sm:$0xff] %v724
                %v726 = vld [vmem:[%s152 + $0x49b0] sm:$0xff]
                %727 = vst [vmem:[%s153 + $0x960] sm:$0xff] %v726
                %v728 = vld [vmem:[%s152 + $0x49b8] sm:$0xff]
                %729 = vst [vmem:[%s153 + $0x968] sm:$0xff] %v728
                %v730 = vld [vmem:[%s152 + $0x49c0] sm:$0xff]
                %731 = vst [vmem:[%s153 + $0x970] sm:$0xff] %v730
                %v732 = vld [vmem:[%s152 + $0x49c8] sm:$0xff]
                %733 = vst [vmem:[%s153 + $0x978] sm:$0xff] %v732
                %v734 = vld [vmem:[%s152 + $0x4c20] sm:$0xff]
                %735 = vst [vmem:[%s153 + $0x984] sm:$0xff] %v734
                %v736 = vld [vmem:[%s152 + $0x4c28] sm:$0xff]
                %737 = vst [vmem:[%s153 + $0x98c] sm:$0xff] %v736
                %v738 = vld [vmem:[%s152 + $0x4c30] sm:$0xff]
                %739 = vst [vmem:[%s153 + $0x994] sm:$0xff] %v738
                %v740 = vld [vmem:[%s152 + $0x4c38] sm:$0xff]
                %741 = vst [vmem:[%s153 + $0x99c] sm:$0xff] %v740
                %v742 = vld [vmem:[%s152 + $0x4c40] sm:$0xff]
                %743 = vst [vmem:[%s153 + $0x9a4] sm:$0xff] %v742
                %v744 = vld [vmem:[%s152 + $0x4c48] sm:$0xff]
                %745 = vst [vmem:[%s153 + $0x9ac] sm:$0xff] %v744
                %v746 = vld [vmem:[%s152 + $0x4c50] sm:$0xff]
                %747 = vst [vmem:[%s153 + $0x9b4] sm:$0xff] %v746
                %v748 = vld [vmem:[%s152 + $0x4c58] sm:$0xff]
                %749 = vst [vmem:[%s153 + $0x9bc] sm:$0xff] %v748
                %v750 = vld [vmem:[%s152 + $0x4c60] sm:$0xff]
                %751 = vst [vmem:[%s153 + $0x9c4] sm:$0xff] %v750
                %v752 = vld [vmem:[%s152 + $0x4c68] sm:$0xff]
                %753 = vst [vmem:[%s153 + $0x9cc] sm:$0xff] %v752
                %v754 = vld [vmem:[%s152 + $0x4ec0] sm:$0xff]
                %755 = vst [vmem:[%s153 + $0x9d8] sm:$0xff] %v754
                %v756 = vld [vmem:[%s152 + $0x4ec8] sm:$0xff]
                %757 = vst [vmem:[%s153 + $0x9e0] sm:$0xff] %v756
                %v758 = vld [vmem:[%s152 + $0x4ed0] sm:$0xff]
                %759 = vst [vmem:[%s153 + $0x9e8] sm:$0xff] %v758
                %v760 = vld [vmem:[%s152 + $0x4ed8] sm:$0xff]
                %761 = vst [vmem:[%s153 + $0x9f0] sm:$0xff] %v760
                %v762 = vld [vmem:[%s152 + $0x4ee0] sm:$0xff]
                %763 = vst [vmem:[%s153 + $0x9f8] sm:$0xff] %v762
                %v764 = vld [vmem:[%s152 + $0x4ee8] sm:$0xff]
                %765 = vst [vmem:[%s153 + $0xa00] sm:$0xff] %v764
                %v766 = vld [vmem:[%s152 + $0x4ef0] sm:$0xff]
                %767 = vst [vmem:[%s153 + $0xa08] sm:$0xff] %v766
                %v768 = vld [vmem:[%s152 + $0x4ef8] sm:$0xff]
                %769 = vst [vmem:[%s153 + $0xa10] sm:$0xff] %v768
                %v770 = vld [vmem:[%s152 + $0x4f00] sm:$0xff]
                %771 = vst [vmem:[%s153 + $0xa18] sm:$0xff] %v770
                %v772 = vld [vmem:[%s152 + $0x4f08] sm:$0xff]
                %773 = vst [vmem:[%s153 + $0xa20] sm:$0xff] %v772
                %v774 = vld [vmem:[%s152 + $0x5160] sm:$0xff]
                %775 = vst [vmem:[%s153 + $0xa2c] sm:$0xff] %v774
                %v776 = vld [vmem:[%s152 + $0x5168] sm:$0xff]
                %777 = vst [vmem:[%s153 + $0xa34] sm:$0xff] %v776
                %v778 = vld [vmem:[%s152 + $0x5170] sm:$0xff]
                %779 = vst [vmem:[%s153 + $0xa3c] sm:$0xff] %v778
                %v780 = vld [vmem:[%s152 + $0x5178] sm:$0xff]
                %781 = vst [vmem:[%s153 + $0xa44] sm:$0xff] %v780
                %v782 = vld [vmem:[%s152 + $0x5180] sm:$0xff]
                %783 = vst [vmem:[%s153 + $0xa4c] sm:$0xff] %v782
                %v784 = vld [vmem:[%s152 + $0x5188] sm:$0xff]
                %785 = vst [vmem:[%s153 + $0xa54] sm:$0xff] %v784
                %v786 = vld [vmem:[%s152 + $0x5190] sm:$0xff]
                %787 = vst [vmem:[%s153 + $0xa5c] sm:$0xff] %v786
                %v788 = vld [vmem:[%s152 + $0x5198] sm:$0xff]
                %789 = vst [vmem:[%s153 + $0xa64] sm:$0xff] %v788
                %v790 = vld [vmem:[%s152 + $0x51a0] sm:$0xff]
                %791 = vst [vmem:[%s153 + $0xa6c] sm:$0xff] %v790
                %v792 = vld [vmem:[%s152 + $0x51a8] sm:$0xff]
                %793 = vst [vmem:[%s153 + $0xa74] sm:$0xff] %v792
                %v794 = vld [vmem:[%s152 + $0x5400] sm:$0xff]
                %795 = vst [vmem:[%s153 + $0xa80] sm:$0xff] %v794
                %v796 = vld [vmem:[%s152 + $0x5408] sm:$0xff]
                %797 = vst [vmem:[%s153 + $0xa88] sm:$0xff] %v796
                %v798 = vld [vmem:[%s152 + $0x5410] sm:$0xff]
                %799 = vst [vmem:[%s153 + $0xa90] sm:$0xff] %v798
                %v800 = vld [vmem:[%s152 + $0x5418] sm:$0xff]
                %801 = vst [vmem:[%s153 + $0xa98] sm:$0xff] %v800
                %v802 = vld [vmem:[%s152 + $0x5420] sm:$0xff]
                %803 = vst [vmem:[%s153 + $0xaa0] sm:$0xff] %v802
                %v804 = vld [vmem:[%s152 + $0x5428] sm:$0xff]
                %805 = vst [vmem:[%s153 + $0xaa8] sm:$0xff] %v804
                %v806 = vld [vmem:[%s152 + $0x5430] sm:$0xff]
                %807 = vst [vmem:[%s153 + $0xab0] sm:$0xff] %v806
                %v808 = vld [vmem:[%s152 + $0x5438] sm:$0xff]
                %809 = vst [vmem:[%s153 + $0xab8] sm:$0xff] %v808
                %v810 = vld [vmem:[%s152 + $0x5440] sm:$0xff]
                %811 = vst [vmem:[%s153 + $0xac0] sm:$0xff] %v810
                %v812 = vld [vmem:[%s152 + $0x5448] sm:$0xff]
                %813 = vst [vmem:[%s153 + $0xac8] sm:$0xff] %v812
                %v814 = vld [vmem:[%s152 + $0x56a0] sm:$0xff]
                %815 = vst [vmem:[%s153 + $0xad4] sm:$0xff] %v814
                %v816 = vld [vmem:[%s152 + $0x56a8] sm:$0xff]
                %817 = vst [vmem:[%s153 + $0xadc] sm:$0xff] %v816
                %v818 = vld [vmem:[%s152 + $0x56b0] sm:$0xff]
                %819 = vst [vmem:[%s153 + $0xae4] sm:$0xff] %v818
                %v820 = vld [vmem:[%s152 + $0x56b8] sm:$0xff]
                %821 = vst [vmem:[%s153 + $0xaec] sm:$0xff] %v820
                %v822 = vld [vmem:[%s152 + $0x56c0] sm:$0xff]
                %823 = vst [vmem:[%s153 + $0xaf4] sm:$0xff] %v822
                %v824 = vld [vmem:[%s152 + $0x56c8] sm:$0xff]
                %825 = vst [vmem:[%s153 + $0xafc] sm:$0xff] %v824
                %v826 = vld [vmem:[%s152 + $0x56d0] sm:$0xff]
                %827 = vst [vmem:[%s153 + $0xb04] sm:$0xff] %v826
                %v828 = vld [vmem:[%s152 + $0x56d8] sm:$0xff]
                %829 = vst [vmem:[%s153 + $0xb0c] sm:$0xff] %v828
                %v830 = vld [vmem:[%s152 + $0x56e0] sm:$0xff]
                %831 = vst [vmem:[%s153 + $0xb14] sm:$0xff] %v830
                %v832 = vld [vmem:[%s152 + $0x56e8] sm:$0xff]
                %833 = vst [vmem:[%s153 + $0xb1c] sm:$0xff] %v832
                %v834 = vld [vmem:[%s152 + $0x5940] sm:$0xff]
                %835 = vst [vmem:[%s153 + $0xb28] sm:$0xff] %v834
                %v836 = vld [vmem:[%s152 + $0x5948] sm:$0xff]
                %837 = vst [vmem:[%s153 + $0xb30] sm:$0xff] %v836
                %v838 = vld [vmem:[%s152 + $0x5950] sm:$0xff]
                %839 = vst [vmem:[%s153 + $0xb38] sm:$0xff] %v838
                %v840 = vld [vmem:[%s152 + $0x5958] sm:$0xff]
                %841 = vst [vmem:[%s153 + $0xb40] sm:$0xff] %v840
                %v842 = vld [vmem:[%s152 + $0x5960] sm:$0xff]
                %843 = vst [vmem:[%s153 + $0xb48] sm:$0xff] %v842
                %v844 = vld [vmem:[%s152 + $0x5968] sm:$0xff]
                %845 = vst [vmem:[%s153 + $0xb50] sm:$0xff] %v844
                %v846 = vld [vmem:[%s152 + $0x5970] sm:$0xff]
                %847 = vst [vmem:[%s153 + $0xb58] sm:$0xff] %v846
                %v848 = vld [vmem:[%s152 + $0x5978] sm:$0xff]
                %849 = vst [vmem:[%s153 + $0xb60] sm:$0xff] %v848
                %v850 = vld [vmem:[%s152 + $0x5980] sm:$0xff]
                %851 = vst [vmem:[%s153 + $0xb68] sm:$0xff] %v850
                %v852 = vld [vmem:[%s152 + $0x5988] sm:$0xff]
                %853 = vst [vmem:[%s153 + $0xb70] sm:$0xff] %v852
                %v854 = vld [vmem:[%s152 + $0x5be0] sm:$0xff]
                %855 = vst [vmem:[%s153 + $0xb7c] sm:$0xff] %v854
                %v856 = vld [vmem:[%s152 + $0x5be8] sm:$0xff]
                %857 = vst [vmem:[%s153 + $0xb84] sm:$0xff] %v856
                %v858 = vld [vmem:[%s152 + $0x5bf0] sm:$0xff]
                %859 = vst [vmem:[%s153 + $0xb8c] sm:$0xff] %v858
                %v860 = vld [vmem:[%s152 + $0x5bf8] sm:$0xff]
                %861 = vst [vmem:[%s153 + $0xb94] sm:$0xff] %v860
                %v862 = vld [vmem:[%s152 + $0x5c00] sm:$0xff]
                %863 = vst [vmem:[%s153 + $0xb9c] sm:$0xff] %v862
                %v864 = vld [vmem:[%s152 + $0x5c08] sm:$0xff]
                %865 = vst [vmem:[%s153 + $0xba4] sm:$0xff] %v864
                %v866 = vld [vmem:[%s152 + $0x5c10] sm:$0xff]
                %867 = vst [vmem:[%s153 + $0xbac] sm:$0xff] %v866
                %v868 = vld [vmem:[%s152 + $0x5c18] sm:$0xff]
                %869 = vst [vmem:[%s153 + $0xbb4] sm:$0xff] %v868
                %v870 = vld [vmem:[%s152 + $0x5c20] sm:$0xff]
                %871 = vst [vmem:[%s153 + $0xbbc] sm:$0xff] %v870
                %v872 = vld [vmem:[%s152 + $0x5c28] sm:$0xff]
                %873 = vst [vmem:[%s153 + $0xbc4] sm:$0xff] %v872
                %v874 = vld [vmem:[%s152 + $0x5e80] sm:$0xff]
                %875 = vst [vmem:[%s153 + $0xbd0] sm:$0xff] %v874
                %v876 = vld [vmem:[%s152 + $0x5e88] sm:$0xff]
                %877 = vst [vmem:[%s153 + $0xbd8] sm:$0xff] %v876
                %v878 = vld [vmem:[%s152 + $0x5e90] sm:$0xff]
                %879 = vst [vmem:[%s153 + $0xbe0] sm:$0xff] %v878
                %v880 = vld [vmem:[%s152 + $0x5e98] sm:$0xff]
                %881 = vst [vmem:[%s153 + $0xbe8] sm:$0xff] %v880
                %v882 = vld [vmem:[%s152 + $0x5ea0] sm:$0xff]
                %883 = vst [vmem:[%s153 + $0xbf0] sm:$0xff] %v882
                %v884 = vld [vmem:[%s152 + $0x5ea8] sm:$0xff]
                %885 = vst [vmem:[%s153 + $0xbf8] sm:$0xff] %v884
                %v886 = vld [vmem:[%s152 + $0x5eb0] sm:$0xff]
                %887 = vst [vmem:[%s153 + $0xc00] sm:$0xff] %v886
                %v888 = vld [vmem:[%s152 + $0x5eb8] sm:$0xff]
                %889 = vst [vmem:[%s153 + $0xc08] sm:$0xff] %v888
                %v890 = vld [vmem:[%s152 + $0x5ec0] sm:$0xff]
                %891 = vst [vmem:[%s153 + $0xc10] sm:$0xff] %v890
                %v892 = vld [vmem:[%s152 + $0x5ec8] sm:$0xff]
                %893 = vst [vmem:[%s153 + $0xc18] sm:$0xff] %v892
                %v894 = vld [vmem:[%s152 + $0x6120] sm:$0xff]
                %895 = vst [vmem:[%s153 + $0xc24] sm:$0xff] %v894
                %v896 = vld [vmem:[%s152 + $0x6128] sm:$0xff]
                %897 = vst [vmem:[%s153 + $0xc2c] sm:$0xff] %v896
                %v898 = vld [vmem:[%s152 + $0x6130] sm:$0xff]
                %899 = vst [vmem:[%s153 + $0xc34] sm:$0xff] %v898
                %v900 = vld [vmem:[%s152 + $0x6138] sm:$0xff]
                %901 = vst [vmem:[%s153 + $0xc3c] sm:$0xff] %v900
                %v902 = vld [vmem:[%s152 + $0x6140] sm:$0xff]
                %903 = vst [vmem:[%s153 + $0xc44] sm:$0xff] %v902
                %v904 = vld [vmem:[%s152 + $0x6148] sm:$0xff]
                %905 = vst [vmem:[%s153 + $0xc4c] sm:$0xff] %v904
                %v906 = vld [vmem:[%s152 + $0x6150] sm:$0xff]
                %907 = vst [vmem:[%s153 + $0xc54] sm:$0xff] %v906
                %v908 = vld [vmem:[%s152 + $0x6158] sm:$0xff]
                %909 = vst [vmem:[%s153 + $0xc5c] sm:$0xff] %v908
                %v910 = vld [vmem:[%s152 + $0x6160] sm:$0xff]
                %911 = vst [vmem:[%s153 + $0xc64] sm:$0xff] %v910
                %v912 = vld [vmem:[%s152 + $0x6168] sm:$0xff]
                %913 = vst [vmem:[%s153 + $0xc6c] sm:$0xff] %v912
                %v914 = vld [vmem:[%s152 + $0x63c0] sm:$0xff]
                %915 = vst [vmem:[%s153 + $0xc78] sm:$0xff] %v914
                %v916 = vld [vmem:[%s152 + $0x63c8] sm:$0xff]
                %917 = vst [vmem:[%s153 + $0xc80] sm:$0xff] %v916
                %v918 = vld [vmem:[%s152 + $0x63d0] sm:$0xff]
                %919 = vst [vmem:[%s153 + $0xc88] sm:$0xff] %v918
                %v920 = vld [vmem:[%s152 + $0x63d8] sm:$0xff]
                %921 = vst [vmem:[%s153 + $0xc90] sm:$0xff] %v920
                %v922 = vld [vmem:[%s152 + $0x63e0] sm:$0xff]
                %923 = vst [vmem:[%s153 + $0xc98] sm:$0xff] %v922
                %v924 = vld [vmem:[%s152 + $0x63e8] sm:$0xff]
                %925 = vst [vmem:[%s153 + $0xca0] sm:$0xff] %v924
                %v926 = vld [vmem:[%s152 + $0x63f0] sm:$0xff]
                %927 = vst [vmem:[%s153 + $0xca8] sm:$0xff] %v926
                %v928 = vld [vmem:[%s152 + $0x63f8] sm:$0xff]
                %929 = vst [vmem:[%s153 + $0xcb0] sm:$0xff] %v928
                %v930 = vld [vmem:[%s152 + $0x6400] sm:$0xff]
                %931 = vst [vmem:[%s153 + $0xcb8] sm:$0xff] %v930
                %v932 = vld [vmem:[%s152 + $0x6408] sm:$0xff]
                %933 = vst [vmem:[%s153 + $0xcc0] sm:$0xff] %v932
                %v934 = vld [vmem:[%s152 + $0x6660] sm:$0xff]
                %935 = vst [vmem:[%s153 + $0xccc] sm:$0xff] %v934
                %v936 = vld [vmem:[%s152 + $0x6668] sm:$0xff]
                %937 = vst [vmem:[%s153 + $0xcd4] sm:$0xff] %v936
                %v938 = vld [vmem:[%s152 + $0x6670] sm:$0xff]
                %939 = vst [vmem:[%s153 + $0xcdc] sm:$0xff] %v938
                %v940 = vld [vmem:[%s152 + $0x6678] sm:$0xff]
                %941 = vst [vmem:[%s153 + $0xce4] sm:$0xff] %v940
                %v942 = vld [vmem:[%s152 + $0x6680] sm:$0xff]
                %943 = vst [vmem:[%s153 + $0xcec] sm:$0xff] %v942
                %v944 = vld [vmem:[%s152 + $0x6688] sm:$0xff]
                %945 = vst [vmem:[%s153 + $0xcf4] sm:$0xff] %v944
                %v946 = vld [vmem:[%s152 + $0x6690] sm:$0xff]
                %947 = vst [vmem:[%s153 + $0xcfc] sm:$0xff] %v946
                %v948 = vld [vmem:[%s152 + $0x6698] sm:$0xff]
                %949 = vst [vmem:[%s153 + $0xd04] sm:$0xff] %v948
                %v950 = vld [vmem:[%s152 + $0x66a0] sm:$0xff]
                %951 = vst [vmem:[%s153 + $0xd0c] sm:$0xff] %v950
                %v952 = vld [vmem:[%s152 + $0x66a8] sm:$0xff]
                %953 = vst [vmem:[%s153 + $0xd14] sm:$0xff] %v952
                %v954 = vld [vmem:[%s152 + $0x6900] sm:$0xff]
                %955 = vst [vmem:[%s153 + $0xd20] sm:$0xff] %v954
                %v956 = vld [vmem:[%s152 + $0x6908] sm:$0xff]
                %957 = vst [vmem:[%s153 + $0xd28] sm:$0xff] %v956
                %v958 = vld [vmem:[%s152 + $0x6910] sm:$0xff]
                %959 = vst [vmem:[%s153 + $0xd30] sm:$0xff] %v958
                %v960 = vld [vmem:[%s152 + $0x6918] sm:$0xff]
                %961 = vst [vmem:[%s153 + $0xd38] sm:$0xff] %v960
                %v962 = vld [vmem:[%s152 + $0x6920] sm:$0xff]
                %963 = vst [vmem:[%s153 + $0xd40] sm:$0xff] %v962
                %v964 = vld [vmem:[%s152 + $0x6928] sm:$0xff]
                %965 = vst [vmem:[%s153 + $0xd48] sm:$0xff] %v964
                %v966 = vld [vmem:[%s152 + $0x6930] sm:$0xff]
                %967 = vst [vmem:[%s153 + $0xd50] sm:$0xff] %v966
                %v968 = vld [vmem:[%s152 + $0x6938] sm:$0xff]
                %969 = vst [vmem:[%s153 + $0xd58] sm:$0xff] %v968
                %v970 = vld [vmem:[%s152 + $0x6940] sm:$0xff]
                %971 = vst [vmem:[%s153 + $0xd60] sm:$0xff] %v970
                %v972 = vld [vmem:[%s152 + $0x6948] sm:$0xff]
                %973 = vst [vmem:[%s153 + $0xd68] sm:$0xff] %v972
                %v974 = vld [vmem:[%s152 + $0x6ba0] sm:$0xff]
                %975 = vst [vmem:[%s153 + $0xd74] sm:$0xff] %v974
                %v976 = vld [vmem:[%s152 + $0x6ba8] sm:$0xff]
                %977 = vst [vmem:[%s153 + $0xd7c] sm:$0xff] %v976
                %v978 = vld [vmem:[%s152 + $0x6bb0] sm:$0xff]
                %979 = vst [vmem:[%s153 + $0xd84] sm:$0xff] %v978
                %v980 = vld [vmem:[%s152 + $0x6bb8] sm:$0xff]
                %981 = vst [vmem:[%s153 + $0xd8c] sm:$0xff] %v980
                %v982 = vld [vmem:[%s152 + $0x6bc0] sm:$0xff]
                %983 = vst [vmem:[%s153 + $0xd94] sm:$0xff] %v982
                %v984 = vld [vmem:[%s152 + $0x6bc8] sm:$0xff]
                %985 = vst [vmem:[%s153 + $0xd9c] sm:$0xff] %v984
                %v986 = vld [vmem:[%s152 + $0x6bd0] sm:$0xff]
                %987 = vst [vmem:[%s153 + $0xda4] sm:$0xff] %v986
                %v988 = vld [vmem:[%s152 + $0x6bd8] sm:$0xff]
                %989 = vst [vmem:[%s153 + $0xdac] sm:$0xff] %v988
                %v990 = vld [vmem:[%s152 + $0x6be0] sm:$0xff]
                %991 = vst [vmem:[%s153 + $0xdb4] sm:$0xff] %v990
                %v992 = vld [vmem:[%s152 + $0x6be8] sm:$0xff]
                %993 = vst [vmem:[%s153 + $0xdbc] sm:$0xff] %v992
                %v994 = vld [vmem:[%s152 + $0x6e40] sm:$0xff]
                %995 = vst [vmem:[%s153 + $0xdc8] sm:$0xff] %v994
                %v996 = vld [vmem:[%s152 + $0x6e48] sm:$0xff]
                %997 = vst [vmem:[%s153 + $0xdd0] sm:$0xff] %v996
                %v998 = vld [vmem:[%s152 + $0x6e50] sm:$0xff]
                %999 = vst [vmem:[%s153 + $0xdd8] sm:$0xff] %v998
                %v1000 = vld [vmem:[%s152 + $0x6e58] sm:$0xff]
                %1001 = vst [vmem:[%s153 + $0xde0] sm:$0xff] %v1000
                %v1002 = vld [vmem:[%s152 + $0x6e60] sm:$0xff]
                %1003 = vst [vmem:[%s153 + $0xde8] sm:$0xff] %v1002
                %v1004 = vld [vmem:[%s152 + $0x6e68] sm:$0xff]
                %1005 = vst [vmem:[%s153 + $0xdf0] sm:$0xff] %v1004
                %v1006 = vld [vmem:[%s152 + $0x6e70] sm:$0xff]
                %1007 = vst [vmem:[%s153 + $0xdf8] sm:$0xff] %v1006
                %v1008 = vld [vmem:[%s152 + $0x6e78] sm:$0xff]
                %1009 = vst [vmem:[%s153 + $0xe00] sm:$0xff] %v1008
                %v1010 = vld [vmem:[%s152 + $0x6e80] sm:$0xff]
                %1011 = vst [vmem:[%s153 + $0xe08] sm:$0xff] %v1010
                %v1012 = vld [vmem:[%s152 + $0x6e88] sm:$0xff]
                %1013 = vst [vmem:[%s153 + $0xe10] sm:$0xff] %v1012
                %v1014 = vld [vmem:[%s152 + $0x70e0] sm:$0xff]
                %1015 = vst [vmem:[%s153 + $0xe1c] sm:$0xff] %v1014
                %v1016 = vld [vmem:[%s152 + $0x70e8] sm:$0xff]
                %1017 = vst [vmem:[%s153 + $0xe24] sm:$0xff] %v1016
                %v1018 = vld [vmem:[%s152 + $0x70f0] sm:$0xff]
                %1019 = vst [vmem:[%s153 + $0xe2c] sm:$0xff] %v1018
                %v1020 = vld [vmem:[%s152 + $0x70f8] sm:$0xff]
                %1021 = vst [vmem:[%s153 + $0xe34] sm:$0xff] %v1020
                %v1022 = vld [vmem:[%s152 + $0x7100] sm:$0xff]
                %1023 = vst [vmem:[%s153 + $0xe3c] sm:$0xff] %v1022
                %v1024 = vld [vmem:[%s152 + $0x7108] sm:$0xff]
                %1025 = vst [vmem:[%s153 + $0xe44] sm:$0xff] %v1024
                %v1026 = vld [vmem:[%s152 + $0x7110] sm:$0xff]
                %1027 = vst [vmem:[%s153 + $0xe4c] sm:$0xff] %v1026
                %v1028 = vld [vmem:[%s152 + $0x7118] sm:$0xff]
                %1029 = vst [vmem:[%s153 + $0xe54] sm:$0xff] %v1028
                %v1030 = vld [vmem:[%s152 + $0x7120] sm:$0xff]
                %1031 = vst [vmem:[%s153 + $0xe5c] sm:$0xff] %v1030
                %v1032 = vld [vmem:[%s152 + $0x7128] sm:$0xff]
                %1033 = vst [vmem:[%s153 + $0xe64] sm:$0xff] %v1032
                %v1034 = vld [vmem:[%s152 + $0x7380] sm:$0xff]
                %1035 = vst [vmem:[%s153 + $0xe70] sm:$0xff] %v1034
                %v1036 = vld [vmem:[%s152 + $0x7388] sm:$0xff]
                %1037 = vst [vmem:[%s153 + $0xe78] sm:$0xff] %v1036
                %v1038 = vld [vmem:[%s152 + $0x7390] sm:$0xff]
                %1039 = vst [vmem:[%s153 + $0xe80] sm:$0xff] %v1038
                %v1040 = vld [vmem:[%s152 + $0x7398] sm:$0xff]
                %1041 = vst [vmem:[%s153 + $0xe88] sm:$0xff] %v1040
                %v1042 = vld [vmem:[%s152 + $0x73a0] sm:$0xff]
                %1043 = vst [vmem:[%s153 + $0xe90] sm:$0xff] %v1042
                %v1044 = vld [vmem:[%s152 + $0x73a8] sm:$0xff]
                %1045 = vst [vmem:[%s153 + $0xe98] sm:$0xff] %v1044
                %v1046 = vld [vmem:[%s152 + $0x73b0] sm:$0xff]
                %1047 = vst [vmem:[%s153 + $0xea0] sm:$0xff] %v1046
                %v1048 = vld [vmem:[%s152 + $0x73b8] sm:$0xff]
                %1049 = vst [vmem:[%s153 + $0xea8] sm:$0xff] %v1048
                %v1050 = vld [vmem:[%s152 + $0x73c0] sm:$0xff]
                %1051 = vst [vmem:[%s153 + $0xeb0] sm:$0xff] %v1050
                %v1052 = vld [vmem:[%s152 + $0x73c8] sm:$0xff]
                %1053 = vst [vmem:[%s153 + $0xeb8] sm:$0xff] %v1052
                %v1054 = vld [vmem:[%s152 + $0x7620] sm:$0xff]
                %1055 = vst [vmem:[%s153 + $0xec4] sm:$0xff] %v1054
                %v1056 = vld [vmem:[%s152 + $0x7628] sm:$0xff]
                %1057 = vst [vmem:[%s153 + $0xecc] sm:$0xff] %v1056
                %v1058 = vld [vmem:[%s152 + $0x7630] sm:$0xff]
                %1059 = vst [vmem:[%s153 + $0xed4] sm:$0xff] %v1058
                %v1060 = vld [vmem:[%s152 + $0x7638] sm:$0xff]
                %1061 = vst [vmem:[%s153 + $0xedc] sm:$0xff] %v1060
                %v1062 = vld [vmem:[%s152 + $0x7640] sm:$0xff]
                %1063 = vst [vmem:[%s153 + $0xee4] sm:$0xff] %v1062
                %v1064 = vld [vmem:[%s152 + $0x7648] sm:$0xff]
                %1065 = vst [vmem:[%s153 + $0xeec] sm:$0xff] %v1064
                %v1066 = vld [vmem:[%s152 + $0x7650] sm:$0xff]
                %1067 = vst [vmem:[%s153 + $0xef4] sm:$0xff] %v1066
                %v1068 = vld [vmem:[%s152 + $0x7658] sm:$0xff]
                %1069 = vst [vmem:[%s153 + $0xefc] sm:$0xff] %v1068
                %v1070 = vld [vmem:[%s152 + $0x7660] sm:$0xff]
                %1071 = vst [vmem:[%s153 + $0xf04] sm:$0xff] %v1070
                %v1072 = vld [vmem:[%s152 + $0x7668] sm:$0xff]
                %1073 = vst [vmem:[%s153 + $0xf0c] sm:$0xff] %v1072
                %v1074 = vld [vmem:[%s152 + $0x78c0] sm:$0xff]
                %1075 = vst [vmem:[%s153 + $0xf18] sm:$0xff] %v1074
                %v1076 = vld [vmem:[%s152 + $0x78c8] sm:$0xff]
                %1077 = vst [vmem:[%s153 + $0xf20] sm:$0xff] %v1076
                %v1078 = vld [vmem:[%s152 + $0x78d0] sm:$0xff]
                %1079 = vst [vmem:[%s153 + $0xf28] sm:$0xff] %v1078
                %v1080 = vld [vmem:[%s152 + $0x78d8] sm:$0xff]
                %1081 = vst [vmem:[%s153 + $0xf30] sm:$0xff] %v1080
                %v1082 = vld [vmem:[%s152 + $0x78e0] sm:$0xff]
                %1083 = vst [vmem:[%s153 + $0xf38] sm:$0xff] %v1082
                %v1084 = vld [vmem:[%s152 + $0x78e8] sm:$0xff]
                %1085 = vst [vmem:[%s153 + $0xf40] sm:$0xff] %v1084
                %v1086 = vld [vmem:[%s152 + $0x78f0] sm:$0xff]
                %1087 = vst [vmem:[%s153 + $0xf48] sm:$0xff] %v1086
                %v1088 = vld [vmem:[%s152 + $0x78f8] sm:$0xff]
                %1089 = vst [vmem:[%s153 + $0xf50] sm:$0xff] %v1088
                %v1090 = vld [vmem:[%s152 + $0x7900] sm:$0xff]
                %1091 = vst [vmem:[%s153 + $0xf58] sm:$0xff] %v1090
                %v1092 = vld [vmem:[%s152 + $0x7908] sm:$0xff]
                %1093 = vst [vmem:[%s153 + $0xf60] sm:$0xff] %v1092
                %v1094 = vld [vmem:[%s152 + $0x7b60] sm:$0xff]
                %1095 = vst [vmem:[%s153 + $0xf6c] sm:$0xff] %v1094
                %v1096 = vld [vmem:[%s152 + $0x7b68] sm:$0xff]
                %1097 = vst [vmem:[%s153 + $0xf74] sm:$0xff] %v1096
                %v1098 = vld [vmem:[%s152 + $0x7b70] sm:$0xff]
                %1099 = vst [vmem:[%s153 + $0xf7c] sm:$0xff] %v1098
                %v1100 = vld [vmem:[%s152 + $0x7b78] sm:$0xff]
                %1101 = vst [vmem:[%s153 + $0xf84] sm:$0xff] %v1100
                %v1102 = vld [vmem:[%s152 + $0x7b80] sm:$0xff]
                %1103 = vst [vmem:[%s153 + $0xf8c] sm:$0xff] %v1102
                %v1104 = vld [vmem:[%s152 + $0x7b88] sm:$0xff]
                %1105 = vst [vmem:[%s153 + $0xf94] sm:$0xff] %v1104
                %v1106 = vld [vmem:[%s152 + $0x7b90] sm:$0xff]
                %1107 = vst [vmem:[%s153 + $0xf9c] sm:$0xff] %v1106
                %v1108 = vld [vmem:[%s152 + $0x7b98] sm:$0xff]
                %1109 = vst [vmem:[%s153 + $0xfa4] sm:$0xff] %v1108
                %v1110 = vld [vmem:[%s152 + $0x7ba0] sm:$0xff]
                %1111 = vst [vmem:[%s153 + $0xfac] sm:$0xff] %v1110
                %v1112 = vld [vmem:[%s152 + $0x7ba8] sm:$0xff]
                %1113 = vst [vmem:[%s153 + $0xfb4] sm:$0xff] %v1112
                %v1114 = vld [vmem:[%s152 + $0x7e00] sm:$0xff]
                %1115 = vst [vmem:[%s153 + $0xfc0] sm:$0xff] %v1114
                %v1116 = vld [vmem:[%s152 + $0x7e08] sm:$0xff]
                %1117 = vst [vmem:[%s153 + $0xfc8] sm:$0xff] %v1116
                %v1118 = vld [vmem:[%s152 + $0x7e10] sm:$0xff]
                %1119 = vst [vmem:[%s153 + $0xfd0] sm:$0xff] %v1118
                %v1120 = vld [vmem:[%s152 + $0x7e18] sm:$0xff]
                %1121 = vst [vmem:[%s153 + $0xfd8] sm:$0xff] %v1120
                %v1122 = vld [vmem:[%s152 + $0x7e20] sm:$0xff]
                %1123 = vst [vmem:[%s153 + $0xfe0] sm:$0xff] %v1122
                %v1124 = vld [vmem:[%s152 + $0x7e28] sm:$0xff]
                %1125 = vst [vmem:[%s153 + $0xfe8] sm:$0xff] %v1124
                %v1126 = vld [vmem:[%s152 + $0x7e30] sm:$0xff]
                %1127 = vst [vmem:[%s153 + $0xff0] sm:$0xff] %v1126
                %v1128 = vld [vmem:[%s152 + $0x7e38] sm:$0xff]
                %1129 = vst [vmem:[%s153 + $0xff8] sm:$0xff] %v1128
                %v1130 = vld [vmem:[%s152 + $0x7e40] sm:$0xff]
                %1131 = vst [vmem:[%s153 + $0x1000] sm:$0xff] %v1130
                %v1132 = vld [vmem:[%s152 + $0x7e48] sm:$0xff]
                %1133 = vst [vmem:[%s153 + $0x1008] sm:$0xff] %v1132
                %v1134 = vld [vmem:[%s152 + $0x80a0] sm:$0xff]
                %1135 = vst [vmem:[%s153 + $0x1014] sm:$0xff] %v1134
                %v1136 = vld [vmem:[%s152 + $0x80a8] sm:$0xff]
                %1137 = vst [vmem:[%s153 + $0x101c] sm:$0xff] %v1136
                %v1138 = vld [vmem:[%s152 + $0x80b0] sm:$0xff]
                %1139 = vst [vmem:[%s153 + $0x1024] sm:$0xff] %v1138
                %v1140 = vld [vmem:[%s152 + $0x80b8] sm:$0xff]
                %1141 = vst [vmem:[%s153 + $0x102c] sm:$0xff] %v1140
                %v1142 = vld [vmem:[%s152 + $0x80c0] sm:$0xff]
                %1143 = vst [vmem:[%s153 + $0x1034] sm:$0xff] %v1142
                %v1144 = vld [vmem:[%s152 + $0x80c8] sm:$0xff]
                %1145 = vst [vmem:[%s153 + $0x103c] sm:$0xff] %v1144
                %v1146 = vld [vmem:[%s152 + $0x80d0] sm:$0xff]
                %1147 = vst [vmem:[%s153 + $0x1044] sm:$0xff] %v1146
                %v1148 = vld [vmem:[%s152 + $0x80d8] sm:$0xff]
                %1149 = vst [vmem:[%s153 + $0x104c] sm:$0xff] %v1148
                %v1150 = vld [vmem:[%s152 + $0x80e0] sm:$0xff]
                %1151 = vst [vmem:[%s153 + $0x1054] sm:$0xff] %v1150
                %v1152 = vld [vmem:[%s152 + $0x80e8] sm:$0xff]
                %1153 = vst [vmem:[%s153 + $0x105c] sm:$0xff] %v1152
                %v1154 = vld [vmem:[%s152 + $0x8340] sm:$0xff]
                %1155 = vst [vmem:[%s153 + $0x1068] sm:$0xff] %v1154
                %v1156 = vld [vmem:[%s152 + $0x8348] sm:$0xff]
                %1157 = vst [vmem:[%s153 + $0x1070] sm:$0xff] %v1156
                %v1158 = vld [vmem:[%s152 + $0x8350] sm:$0xff]
                %1159 = vst [vmem:[%s153 + $0x1078] sm:$0xff] %v1158
                %v1160 = vld [vmem:[%s152 + $0x8358] sm:$0xff]
                %1161 = vst [vmem:[%s153 + $0x1080] sm:$0xff] %v1160
                %v1162 = vld [vmem:[%s152 + $0x8360] sm:$0xff]
                %1163 = vst [vmem:[%s153 + $0x1088] sm:$0xff] %v1162
                %v1164 = vld [vmem:[%s152 + $0x8368] sm:$0xff]
                %1165 = vst [vmem:[%s153 + $0x1090] sm:$0xff] %v1164
                %v1166 = vld [vmem:[%s152 + $0x8370] sm:$0xff]
                %1167 = vst [vmem:[%s153 + $0x1098] sm:$0xff] %v1166
                %v1168 = vld [vmem:[%s152 + $0x8378] sm:$0xff]
                %1169 = vst [vmem:[%s153 + $0x10a0] sm:$0xff] %v1168
                %v1170 = vld [vmem:[%s152 + $0x8380] sm:$0xff]
                %1171 = vst [vmem:[%s153 + $0x10a8] sm:$0xff] %v1170
                %v1172 = vld [vmem:[%s152 + $0x8388] sm:$0xff]
                %1173 = vst [vmem:[%s153 + $0x10b0] sm:$0xff] %v1172
                %v1174 = vld [vmem:[%s152 + $0x85e0] sm:$0xff]
                %1175 = vst [vmem:[%s153 + $0x10bc] sm:$0xff] %v1174
                %v1176 = vld [vmem:[%s152 + $0x85e8] sm:$0xff]
                %1177 = vst [vmem:[%s153 + $0x10c4] sm:$0xff] %v1176
                %v1178 = vld [vmem:[%s152 + $0x85f0] sm:$0xff]
                %1179 = vst [vmem:[%s153 + $0x10cc] sm:$0xff] %v1178
                %v1180 = vld [vmem:[%s152 + $0x85f8] sm:$0xff]
                %1181 = vst [vmem:[%s153 + $0x10d4] sm:$0xff] %v1180
                %v1182 = vld [vmem:[%s152 + $0x8600] sm:$0xff]
                %1183 = vst [vmem:[%s153 + $0x10dc] sm:$0xff] %v1182
                %v1184 = vld [vmem:[%s152 + $0x8608] sm:$0xff]
                %1185 = vst [vmem:[%s153 + $0x10e4] sm:$0xff] %v1184
                %v1186 = vld [vmem:[%s152 + $0x8610] sm:$0xff]
                %1187 = vst [vmem:[%s153 + $0x10ec] sm:$0xff] %v1186
                %v1188 = vld [vmem:[%s152 + $0x8618] sm:$0xff]
                %1189 = vst [vmem:[%s153 + $0x10f4] sm:$0xff] %v1188
                %v1190 = vld [vmem:[%s152 + $0x8620] sm:$0xff]
                %1191 = vst [vmem:[%s153 + $0x10fc] sm:$0xff] %v1190
                %v1192 = vld [vmem:[%s152 + $0x8628] sm:$0xff]
                %1193 = vst [vmem:[%s153 + $0x1104] sm:$0xff] %v1192
                %v1194 = vld [vmem:[%s152 + $0x8880] sm:$0xff]
                %1195 = vst [vmem:[%s153 + $0x1110] sm:$0xff] %v1194
                %v1196 = vld [vmem:[%s152 + $0x8888] sm:$0xff]
                %1197 = vst [vmem:[%s153 + $0x1118] sm:$0xff] %v1196
                %v1198 = vld [vmem:[%s152 + $0x8890] sm:$0xff]
                %1199 = vst [vmem:[%s153 + $0x1120] sm:$0xff] %v1198
                %v1200 = vld [vmem:[%s152 + $0x8898] sm:$0xff]
                %1201 = vst [vmem:[%s153 + $0x1128] sm:$0xff] %v1200
                %v1202 = vld [vmem:[%s152 + $0x88a0] sm:$0xff]
                %1203 = vst [vmem:[%s153 + $0x1130] sm:$0xff] %v1202
                %v1204 = vld [vmem:[%s152 + $0x88a8] sm:$0xff]
                %1205 = vst [vmem:[%s153 + $0x1138] sm:$0xff] %v1204
                %v1206 = vld [vmem:[%s152 + $0x88b0] sm:$0xff]
                %1207 = vst [vmem:[%s153 + $0x1140] sm:$0xff] %v1206
                %v1208 = vld [vmem:[%s152 + $0x88b8] sm:$0xff]
                %1209 = vst [vmem:[%s153 + $0x1148] sm:$0xff] %v1208
                %v1210 = vld [vmem:[%s152 + $0x88c0] sm:$0xff]
                %1211 = vst [vmem:[%s153 + $0x1150] sm:$0xff] %v1210
                %v1212 = vld [vmem:[%s152 + $0x88c8] sm:$0xff]
                %1213 = vst [vmem:[%s153 + $0x1158] sm:$0xff] %v1212
                %v1214 = vld [vmem:[%s152 + $0x8b20] sm:$0xff]
                %1215 = vst [vmem:[%s153 + $0x1164] sm:$0xff] %v1214
                %v1216 = vld [vmem:[%s152 + $0x8b28] sm:$0xff]
                %1217 = vst [vmem:[%s153 + $0x116c] sm:$0xff] %v1216
                %v1218 = vld [vmem:[%s152 + $0x8b30] sm:$0xff]
                %1219 = vst [vmem:[%s153 + $0x1174] sm:$0xff] %v1218
                %v1220 = vld [vmem:[%s152 + $0x8b38] sm:$0xff]
                %1221 = vst [vmem:[%s153 + $0x117c] sm:$0xff] %v1220
                %v1222 = vld [vmem:[%s152 + $0x8b40] sm:$0xff]
                %1223 = vst [vmem:[%s153 + $0x1184] sm:$0xff] %v1222
                %v1224 = vld [vmem:[%s152 + $0x8b48] sm:$0xff]
                %1225 = vst [vmem:[%s153 + $0x118c] sm:$0xff] %v1224
                %v1226 = vld [vmem:[%s152 + $0x8b50] sm:$0xff]
                %1227 = vst [vmem:[%s153 + $0x1194] sm:$0xff] %v1226
                %v1228 = vld [vmem:[%s152 + $0x8b58] sm:$0xff]
                %1229 = vst [vmem:[%s153 + $0x119c] sm:$0xff] %v1228
                %v1230 = vld [vmem:[%s152 + $0x8b60] sm:$0xff]
                %1231 = vst [vmem:[%s153 + $0x11a4] sm:$0xff] %v1230
                %v1232 = vld [vmem:[%s152 + $0x8b68] sm:$0xff]
                %1233 = vst [vmem:[%s153 + $0x11ac] sm:$0xff] %v1232
                %v1234 = vld [vmem:[%s152 + $0x8dc0] sm:$0xff]
                %1235 = vst [vmem:[%s153 + $0x11b8] sm:$0xff] %v1234
                %v1236 = vld [vmem:[%s152 + $0x8dc8] sm:$0xff]
                %1237 = vst [vmem:[%s153 + $0x11c0] sm:$0xff] %v1236
                %v1238 = vld [vmem:[%s152 + $0x8dd0] sm:$0xff]
                %1239 = vst [vmem:[%s153 + $0x11c8] sm:$0xff] %v1238
                %v1240 = vld [vmem:[%s152 + $0x8dd8] sm:$0xff]
                %1241 = vst [vmem:[%s153 + $0x11d0] sm:$0xff] %v1240
                %v1242 = vld [vmem:[%s152 + $0x8de0] sm:$0xff]
                %1243 = vst [vmem:[%s153 + $0x11d8] sm:$0xff] %v1242
                %v1244 = vld [vmem:[%s152 + $0x8de8] sm:$0xff]
                %1245 = vst [vmem:[%s153 + $0x11e0] sm:$0xff] %v1244
                %v1246 = vld [vmem:[%s152 + $0x8df0] sm:$0xff]
                %1247 = vst [vmem:[%s153 + $0x11e8] sm:$0xff] %v1246
                %v1248 = vld [vmem:[%s152 + $0x8df8] sm:$0xff]
                %1249 = vst [vmem:[%s153 + $0x11f0] sm:$0xff] %v1248
                %v1250 = vld [vmem:[%s152 + $0x8e00] sm:$0xff]
                %1251 = vst [vmem:[%s153 + $0x11f8] sm:$0xff] %v1250
                %v1252 = vld [vmem:[%s152 + $0x8e08] sm:$0xff]
                %1253 = vst [vmem:[%s153 + $0x1200] sm:$0xff] %v1252
                %v1254 = vld [vmem:[%s152 + $0x9060] sm:$0xff]
                %1255 = vst [vmem:[%s153 + $0x120c] sm:$0xff] %v1254
                %v1256 = vld [vmem:[%s152 + $0x9068] sm:$0xff]
                %1257 = vst [vmem:[%s153 + $0x1214] sm:$0xff] %v1256
                %v1258 = vld [vmem:[%s152 + $0x9070] sm:$0xff]
                %1259 = vst [vmem:[%s153 + $0x121c] sm:$0xff] %v1258
                %v1260 = vld [vmem:[%s152 + $0x9078] sm:$0xff]
                %1261 = vst [vmem:[%s153 + $0x1224] sm:$0xff] %v1260
                %v1262 = vld [vmem:[%s152 + $0x9080] sm:$0xff]
                %1263 = vst [vmem:[%s153 + $0x122c] sm:$0xff] %v1262
                %v1264 = vld [vmem:[%s152 + $0x9088] sm:$0xff]
                %1265 = vst [vmem:[%s153 + $0x1234] sm:$0xff] %v1264
                %v1266 = vld [vmem:[%s152 + $0x9090] sm:$0xff]
                %1267 = vst [vmem:[%s153 + $0x123c] sm:$0xff] %v1266
                %v1268 = vld [vmem:[%s152 + $0x9098] sm:$0xff]
                %1269 = vst [vmem:[%s153 + $0x1244] sm:$0xff] %v1268
                %v1270 = vld [vmem:[%s152 + $0x90a0] sm:$0xff]
                %1271 = vst [vmem:[%s153 + $0x124c] sm:$0xff] %v1270
                %v1272 = vld [vmem:[%s152 + $0x90a8] sm:$0xff]
                %1273 = vst [vmem:[%s153 + $0x1254] sm:$0xff] %v1272
                %v1274 = vld [vmem:[%s152 + $0x9300] sm:$0xff]
                %1275 = vst [vmem:[%s153 + $0x1260] sm:$0xff] %v1274
                %v1276 = vld [vmem:[%s152 + $0x9308] sm:$0xff]
                %1277 = vst [vmem:[%s153 + $0x1268] sm:$0xff] %v1276
                %v1278 = vld [vmem:[%s152 + $0x9310] sm:$0xff]
                %1279 = vst [vmem:[%s153 + $0x1270] sm:$0xff] %v1278
                %v1280 = vld [vmem:[%s152 + $0x9318] sm:$0xff]
                %1281 = vst [vmem:[%s153 + $0x1278] sm:$0xff] %v1280
                %v1282 = vld [vmem:[%s152 + $0x9320] sm:$0xff]
                %1283 = vst [vmem:[%s153 + $0x1280] sm:$0xff] %v1282
                %v1284 = vld [vmem:[%s152 + $0x9328] sm:$0xff]
                %1285 = vst [vmem:[%s153 + $0x1288] sm:$0xff] %v1284
                %v1286 = vld [vmem:[%s152 + $0x9330] sm:$0xff]
                %1287 = vst [vmem:[%s153 + $0x1290] sm:$0xff] %v1286
                %v1288 = vld [vmem:[%s152 + $0x9338] sm:$0xff]
                %1289 = vst [vmem:[%s153 + $0x1298] sm:$0xff] %v1288
                %v1290 = vld [vmem:[%s152 + $0x9340] sm:$0xff]
                %1291 = vst [vmem:[%s153 + $0x12a0] sm:$0xff] %v1290
                %v1292 = vld [vmem:[%s152 + $0x9348] sm:$0xff]
                %1293 = vst [vmem:[%s153 + $0x12a8] sm:$0xff] %v1292
                %v1294 = vld [vmem:[%s152 + $0x95a0] sm:$0xff]
                %1295 = vst [vmem:[%s153 + $0x12b4] sm:$0xff] %v1294
                %v1296 = vld [vmem:[%s152 + $0x95a8] sm:$0xff]
                %1297 = vst [vmem:[%s153 + $0x12bc] sm:$0xff] %v1296
                %v1298 = vld [vmem:[%s152 + $0x95b0] sm:$0xff]
                %1299 = vst [vmem:[%s153 + $0x12c4] sm:$0xff] %v1298
                %v1300 = vld [vmem:[%s152 + $0x95b8] sm:$0xff]
                %1301 = vst [vmem:[%s153 + $0x12cc] sm:$0xff] %v1300
                %v1302 = vld [vmem:[%s152 + $0x95c0] sm:$0xff]
                %1303 = vst [vmem:[%s153 + $0x12d4] sm:$0xff] %v1302
                %v1304 = vld [vmem:[%s152 + $0x95c8] sm:$0xff]
                %1305 = vst [vmem:[%s153 + $0x12dc] sm:$0xff] %v1304
                %v1306 = vld [vmem:[%s152 + $0x95d0] sm:$0xff]
                %1307 = vst [vmem:[%s153 + $0x12e4] sm:$0xff] %v1306
                %v1308 = vld [vmem:[%s152 + $0x95d8] sm:$0xff]
                %1309 = vst [vmem:[%s153 + $0x12ec] sm:$0xff] %v1308
                %v1310 = vld [vmem:[%s152 + $0x95e0] sm:$0xff]
                %1311 = vst [vmem:[%s153 + $0x12f4] sm:$0xff] %v1310
                %v1312 = vld [vmem:[%s152 + $0x95e8] sm:$0xff]
                %1313 = vst [vmem:[%s153 + $0x12fc] sm:$0xff] %v1312
                %v1314 = vld [vmem:[%s152 + $0x9840] sm:$0xff]
                %1315 = vst [vmem:[%s153 + $0x1308] sm:$0xff] %v1314
                %v1316 = vld [vmem:[%s152 + $0x9848] sm:$0xff]
                %1317 = vst [vmem:[%s153 + $0x1310] sm:$0xff] %v1316
                %v1318 = vld [vmem:[%s152 + $0x9850] sm:$0xff]
                %1319 = vst [vmem:[%s153 + $0x1318] sm:$0xff] %v1318
                %v1320 = vld [vmem:[%s152 + $0x9858] sm:$0xff]
                %1321 = vst [vmem:[%s153 + $0x1320] sm:$0xff] %v1320
                %v1322 = vld [vmem:[%s152 + $0x9860] sm:$0xff]
                %1323 = vst [vmem:[%s153 + $0x1328] sm:$0xff] %v1322
                %v1324 = vld [vmem:[%s152 + $0x9868] sm:$0xff]
                %1325 = vst [vmem:[%s153 + $0x1330] sm:$0xff] %v1324
                %v1326 = vld [vmem:[%s152 + $0x9870] sm:$0xff]
                %1327 = vst [vmem:[%s153 + $0x1338] sm:$0xff] %v1326
                %v1328 = vld [vmem:[%s152 + $0x9878] sm:$0xff]
                %1329 = vst [vmem:[%s153 + $0x1340] sm:$0xff] %v1328
                %v1330 = vld [vmem:[%s152 + $0x9880] sm:$0xff]
                %1331 = vst [vmem:[%s153 + $0x1348] sm:$0xff] %v1330
                %v1332 = vld [vmem:[%s152 + $0x9888] sm:$0xff]
                %1333 = vst [vmem:[%s153 + $0x1350] sm:$0xff] %v1332
                %v1334 = vld [vmem:[%s152 + $0x9ae0] sm:$0xff]
                %1335 = vst [vmem:[%s153 + $0x135c] sm:$0xff] %v1334
                %v1336 = vld [vmem:[%s152 + $0x9ae8] sm:$0xff]
                %1337 = vst [vmem:[%s153 + $0x1364] sm:$0xff] %v1336
                %v1338 = vld [vmem:[%s152 + $0x9af0] sm:$0xff]
                %1339 = vst [vmem:[%s153 + $0x136c] sm:$0xff] %v1338
                %v1340 = vld [vmem:[%s152 + $0x9af8] sm:$0xff]
                %1341 = vst [vmem:[%s153 + $0x1374] sm:$0xff] %v1340
                %v1342 = vld [vmem:[%s152 + $0x9b00] sm:$0xff]
                %1343 = vst [vmem:[%s153 + $0x137c] sm:$0xff] %v1342
                %v1344 = vld [vmem:[%s152 + $0x9b08] sm:$0xff]
                %1345 = vst [vmem:[%s153 + $0x1384] sm:$0xff] %v1344
                %v1346 = vld [vmem:[%s152 + $0x9b10] sm:$0xff]
                %1347 = vst [vmem:[%s153 + $0x138c] sm:$0xff] %v1346
                %v1348 = vld [vmem:[%s152 + $0x9b18] sm:$0xff]
                %1349 = vst [vmem:[%s153 + $0x1394] sm:$0xff] %v1348
                %v1350 = vld [vmem:[%s152 + $0x9b20] sm:$0xff]
                %1351 = vst [vmem:[%s153 + $0x139c] sm:$0xff] %v1350
                %v1352 = vld [vmem:[%s152 + $0x9b28] sm:$0xff]
                %1353 = vst [vmem:[%s153 + $0x13a4] sm:$0xff] %v1352
                %v1354 = vld [vmem:[%s152 + $0x9d80] sm:$0xff]
                %1355 = vst [vmem:[%s153 + $0x13b0] sm:$0xff] %v1354
                %v1356 = vld [vmem:[%s152 + $0x9d88] sm:$0xff]
                %1357 = vst [vmem:[%s153 + $0x13b8] sm:$0xff] %v1356
                %v1358 = vld [vmem:[%s152 + $0x9d90] sm:$0xff]
                %1359 = vst [vmem:[%s153 + $0x13c0] sm:$0xff] %v1358
                %v1360 = vld [vmem:[%s152 + $0x9d98] sm:$0xff]
                %1361 = vst [vmem:[%s153 + $0x13c8] sm:$0xff] %v1360
                %v1362 = vld [vmem:[%s152 + $0x9da0] sm:$0xff]
                %1363 = vst [vmem:[%s153 + $0x13d0] sm:$0xff] %v1362
                %v1364 = vld [vmem:[%s152 + $0x9da8] sm:$0xff]
                %1365 = vst [vmem:[%s153 + $0x13d8] sm:$0xff] %v1364
                %v1366 = vld [vmem:[%s152 + $0x9db0] sm:$0xff]
                %1367 = vst [vmem:[%s153 + $0x13e0] sm:$0xff] %v1366
                %v1368 = vld [vmem:[%s152 + $0x9db8] sm:$0xff]
                %1369 = vst [vmem:[%s153 + $0x13e8] sm:$0xff] %v1368
                %v1370 = vld [vmem:[%s152 + $0x9dc0] sm:$0xff]
                %1371 = vst [vmem:[%s153 + $0x13f0] sm:$0xff] %v1370
                %v1372 = vld [vmem:[%s152 + $0x9dc8] sm:$0xff]
                %1373 = vst [vmem:[%s153 + $0x13f8] sm:$0xff] %v1372
                %v1374 = vld [vmem:[%s152 + $0xa020] sm:$0xff]
                %1375 = vst [vmem:[%s153 + $0x1404] sm:$0xff] %v1374
                %v1376 = vld [vmem:[%s152 + $0xa028] sm:$0xff]
                %1377 = vst [vmem:[%s153 + $0x140c] sm:$0xff] %v1376
                %v1378 = vld [vmem:[%s152 + $0xa030] sm:$0xff]
                %1379 = vst [vmem:[%s153 + $0x1414] sm:$0xff] %v1378
                %v1380 = vld [vmem:[%s152 + $0xa038] sm:$0xff]
                %1381 = vst [vmem:[%s153 + $0x141c] sm:$0xff] %v1380
                %v1382 = vld [vmem:[%s152 + $0xa040] sm:$0xff]
                %1383 = vst [vmem:[%s153 + $0x1424] sm:$0xff] %v1382
                %v1384 = vld [vmem:[%s152 + $0xa048] sm:$0xff]
                %1385 = vst [vmem:[%s153 + $0x142c] sm:$0xff] %v1384
                %v1386 = vld [vmem:[%s152 + $0xa050] sm:$0xff]
                %1387 = vst [vmem:[%s153 + $0x1434] sm:$0xff] %v1386
                %v1388 = vld [vmem:[%s152 + $0xa058] sm:$0xff]
                %1389 = vst [vmem:[%s153 + $0x143c] sm:$0xff] %v1388
                %v1390 = vld [vmem:[%s152 + $0xa060] sm:$0xff]
                %1391 = vst [vmem:[%s153 + $0x1444] sm:$0xff] %v1390
                %v1392 = vld [vmem:[%s152 + $0xa068] sm:$0xff]
                %1393 = vst [vmem:[%s153 + $0x144c] sm:$0xff] %v1392
                %v1394 = vld [vmem:[%s152 + $0xa2c0] sm:$0xff]
                %1395 = vst [vmem:[%s153 + $0x1458] sm:$0xff] %v1394
                %v1396 = vld [vmem:[%s152 + $0xa2c8] sm:$0xff]
                %1397 = vst [vmem:[%s153 + $0x1460] sm:$0xff] %v1396
                %v1398 = vld [vmem:[%s152 + $0xa2d0] sm:$0xff]
                %1399 = vst [vmem:[%s153 + $0x1468] sm:$0xff] %v1398
                %v1400 = vld [vmem:[%s152 + $0xa2d8] sm:$0xff]
                %1401 = vst [vmem:[%s153 + $0x1470] sm:$0xff] %v1400
                %v1402 = vld [vmem:[%s152 + $0xa2e0] sm:$0xff]
                %1403 = vst [vmem:[%s153 + $0x1478] sm:$0xff] %v1402
                %v1404 = vld [vmem:[%s152 + $0xa2e8] sm:$0xff]
                %1405 = vst [vmem:[%s153 + $0x1480] sm:$0xff] %v1404
                %v1406 = vld [vmem:[%s152 + $0xa2f0] sm:$0xff]
                %1407 = vst [vmem:[%s153 + $0x1488] sm:$0xff] %v1406
                %v1408 = vld [vmem:[%s152 + $0xa2f8] sm:$0xff]
                %1409 = vst [vmem:[%s153 + $0x1490] sm:$0xff] %v1408
                %v1410 = vld [vmem:[%s152 + $0xa300] sm:$0xff]
                %1411 = vst [vmem:[%s153 + $0x1498] sm:$0xff] %v1410
                %v1412 = vld [vmem:[%s152 + $0xa308] sm:$0xff]
                %1413 = vst [vmem:[%s153 + $0x14a0] sm:$0xff] %v1412
                %v1414 = vld [vmem:[%s152 + $0xa560] sm:$0xff]
                %1415 = vst [vmem:[%s153 + $0x14ac] sm:$0xff] %v1414
                %v1416 = vld [vmem:[%s152 + $0xa568] sm:$0xff]
                %1417 = vst [vmem:[%s153 + $0x14b4] sm:$0xff] %v1416
                %v1418 = vld [vmem:[%s152 + $0xa570] sm:$0xff]
                %1419 = vst [vmem:[%s153 + $0x14bc] sm:$0xff] %v1418
                %v1420 = vld [vmem:[%s152 + $0xa578] sm:$0xff]
                %1421 = vst [vmem:[%s153 + $0x14c4] sm:$0xff] %v1420
                %v1422 = vld [vmem:[%s152 + $0xa580] sm:$0xff]
                %1423 = vst [vmem:[%s153 + $0x14cc] sm:$0xff] %v1422
                %v1424 = vld [vmem:[%s152 + $0xa588] sm:$0xff]
                %1425 = vst [vmem:[%s153 + $0x14d4] sm:$0xff] %v1424
                %v1426 = vld [vmem:[%s152 + $0xa590] sm:$0xff]
                %1427 = vst [vmem:[%s153 + $0x14dc] sm:$0xff] %v1426
                %v1428 = vld [vmem:[%s152 + $0xa598] sm:$0xff]
                %1429 = vst [vmem:[%s153 + $0x14e4] sm:$0xff] %v1428
                %v1430 = vld [vmem:[%s152 + $0xa5a0] sm:$0xff]
                %1431 = vst [vmem:[%s153 + $0x14ec] sm:$0xff] %v1430
                %v1432 = vld [vmem:[%s152 + $0xa5a8] sm:$0xff]
                %1433 = vst [vmem:[%s153 + $0x14f4] sm:$0xff] %v1432
                %v1434 = vld [vmem:[%s152 + $0xa800] sm:$0xff]
                %1435 = vst [vmem:[%s153 + $0x1500] sm:$0xff] %v1434
                %v1436 = vld [vmem:[%s152 + $0xa808] sm:$0xff]
                %1437 = vst [vmem:[%s153 + $0x1508] sm:$0xff] %v1436
                %v1438 = vld [vmem:[%s152 + $0xa810] sm:$0xff]
                %1439 = vst [vmem:[%s153 + $0x1510] sm:$0xff] %v1438
                %v1440 = vld [vmem:[%s152 + $0xa818] sm:$0xff]
                %1441 = vst [vmem:[%s153 + $0x1518] sm:$0xff] %v1440
                %v1442 = vld [vmem:[%s152 + $0xa820] sm:$0xff]
                %1443 = vst [vmem:[%s153 + $0x1520] sm:$0xff] %v1442
                %v1444 = vld [vmem:[%s152 + $0xa828] sm:$0xff]
                %1445 = vst [vmem:[%s153 + $0x1528] sm:$0xff] %v1444
                %v1446 = vld [vmem:[%s152 + $0xa830] sm:$0xff]
                %1447 = vst [vmem:[%s153 + $0x1530] sm:$0xff] %v1446
                %v1448 = vld [vmem:[%s152 + $0xa838] sm:$0xff]
                %1449 = vst [vmem:[%s153 + $0x1538] sm:$0xff] %v1448
                %v1450 = vld [vmem:[%s152 + $0xa840] sm:$0xff]
                %1451 = vst [vmem:[%s153 + $0x1540] sm:$0xff] %v1450
                %v1452 = vld [vmem:[%s152 + $0xa848] sm:$0xff]
                %1453 = vst [vmem:[%s153 + $0x1548] sm:$0xff] %v1452
                %v1454 = vld [vmem:[%s152 + $0xaaa0] sm:$0xff]
                %1455 = vst [vmem:[%s153 + $0x1554] sm:$0xff] %v1454
                %v1456 = vld [vmem:[%s152 + $0xaaa8] sm:$0xff]
                %1457 = vst [vmem:[%s153 + $0x155c] sm:$0xff] %v1456
                %v1458 = vld [vmem:[%s152 + $0xaab0] sm:$0xff]
                %1459 = vst [vmem:[%s153 + $0x1564] sm:$0xff] %v1458
                %v1460 = vld [vmem:[%s152 + $0xaab8] sm:$0xff]
                %1461 = vst [vmem:[%s153 + $0x156c] sm:$0xff] %v1460
                %v1462 = vld [vmem:[%s152 + $0xaac0] sm:$0xff]
                %1463 = vst [vmem:[%s153 + $0x1574] sm:$0xff] %v1462
                %v1464 = vld [vmem:[%s152 + $0xaac8] sm:$0xff]
                %1465 = vst [vmem:[%s153 + $0x157c] sm:$0xff] %v1464
                %v1466 = vld [vmem:[%s152 + $0xaad0] sm:$0xff]
                %1467 = vst [vmem:[%s153 + $0x1584] sm:$0xff] %v1466
                %v1468 = vld [vmem:[%s152 + $0xaad8] sm:$0xff]
                %1469 = vst [vmem:[%s153 + $0x158c] sm:$0xff] %v1468
                %v1470 = vld [vmem:[%s152 + $0xaae0] sm:$0xff]
                %1471 = vst [vmem:[%s153 + $0x1594] sm:$0xff] %v1470
                %v1472 = vld [vmem:[%s152 + $0xaae8] sm:$0xff]
                %1473 = vst [vmem:[%s153 + $0x159c] sm:$0xff] %v1472
                %v1474 = vld [vmem:[%s152 + $0xad40] sm:$0xff]
                %1475 = vst [vmem:[%s153 + $0x15a8] sm:$0xff] %v1474
                %v1476 = vld [vmem:[%s152 + $0xad48] sm:$0xff]
                %1477 = vst [vmem:[%s153 + $0x15b0] sm:$0xff] %v1476
                %v1478 = vld [vmem:[%s152 + $0xad50] sm:$0xff]
                %1479 = vst [vmem:[%s153 + $0x15b8] sm:$0xff] %v1478
                %v1480 = vld [vmem:[%s152 + $0xad58] sm:$0xff]
                %1481 = vst [vmem:[%s153 + $0x15c0] sm:$0xff] %v1480
                %v1482 = vld [vmem:[%s152 + $0xad60] sm:$0xff]
                %1483 = vst [vmem:[%s153 + $0x15c8] sm:$0xff] %v1482
                %v1484 = vld [vmem:[%s152 + $0xad68] sm:$0xff]
                %1485 = vst [vmem:[%s153 + $0x15d0] sm:$0xff] %v1484
                %v1486 = vld [vmem:[%s152 + $0xad70] sm:$0xff]
                %1487 = vst [vmem:[%s153 + $0x15d8] sm:$0xff] %v1486
                %v1488 = vld [vmem:[%s152 + $0xad78] sm:$0xff]
                %1489 = vst [vmem:[%s153 + $0x15e0] sm:$0xff] %v1488
                %v1490 = vld [vmem:[%s152 + $0xad80] sm:$0xff]
                %1491 = vst [vmem:[%s153 + $0x15e8] sm:$0xff] %v1490
                %v1492 = vld [vmem:[%s152 + $0xad88] sm:$0xff]
                %1493 = vst [vmem:[%s153 + $0x15f0] sm:$0xff] %v1492
                %v1494 = vld [vmem:[%s152 + $0xafe0] sm:$0xff]
                %1495 = vst [vmem:[%s153 + $0x15fc] sm:$0xff] %v1494
                %v1496 = vld [vmem:[%s152 + $0xafe8] sm:$0xff]
                %1497 = vst [vmem:[%s153 + $0x1604] sm:$0xff] %v1496
                %v1498 = vld [vmem:[%s152 + $0xaff0] sm:$0xff]
                %1499 = vst [vmem:[%s153 + $0x160c] sm:$0xff] %v1498
                %v1500 = vld [vmem:[%s152 + $0xaff8] sm:$0xff]
                %1501 = vst [vmem:[%s153 + $0x1614] sm:$0xff] %v1500
                %v1502 = vld [vmem:[%s152 + $0xb000] sm:$0xff]
                %1503 = vst [vmem:[%s153 + $0x161c] sm:$0xff] %v1502
                %v1504 = vld [vmem:[%s152 + $0xb008] sm:$0xff]
                %1505 = vst [vmem:[%s153 + $0x1624] sm:$0xff] %v1504
                %v1506 = vld [vmem:[%s152 + $0xb010] sm:$0xff]
                %1507 = vst [vmem:[%s153 + $0x162c] sm:$0xff] %v1506
                %v1508 = vld [vmem:[%s152 + $0xb018] sm:$0xff]
                %1509 = vst [vmem:[%s153 + $0x1634] sm:$0xff] %v1508
                %v1510 = vld [vmem:[%s152 + $0xb020] sm:$0xff]
                %1511 = vst [vmem:[%s153 + $0x163c] sm:$0xff] %v1510
                %v1512 = vld [vmem:[%s152 + $0xb028] sm:$0xff]
                %1513 = vst [vmem:[%s153 + $0x1644] sm:$0xff] %v1512
                %v1514 = vld [vmem:[%s152 + $0xb280] sm:$0xff]
                %1515 = vst [vmem:[%s153 + $0x1650] sm:$0xff] %v1514
                %v1516 = vld [vmem:[%s152 + $0xb288] sm:$0xff]
                %1517 = vst [vmem:[%s153 + $0x1658] sm:$0xff] %v1516
                %v1518 = vld [vmem:[%s152 + $0xb290] sm:$0xff]
                %1519 = vst [vmem:[%s153 + $0x1660] sm:$0xff] %v1518
                %v1520 = vld [vmem:[%s152 + $0xb298] sm:$0xff]
                %1521 = vst [vmem:[%s153 + $0x1668] sm:$0xff] %v1520
                %v1522 = vld [vmem:[%s152 + $0xb2a0] sm:$0xff]
                %1523 = vst [vmem:[%s153 + $0x1670] sm:$0xff] %v1522
                %v1524 = vld [vmem:[%s152 + $0xb2a8] sm:$0xff]
                %1525 = vst [vmem:[%s153 + $0x1678] sm:$0xff] %v1524
                %v1526 = vld [vmem:[%s152 + $0xb2b0] sm:$0xff]
                %1527 = vst [vmem:[%s153 + $0x1680] sm:$0xff] %v1526
                %v1528 = vld [vmem:[%s152 + $0xb2b8] sm:$0xff]
                %1529 = vst [vmem:[%s153 + $0x1688] sm:$0xff] %v1528
                %v1530 = vld [vmem:[%s152 + $0xb2c0] sm:$0xff]
                %1531 = vst [vmem:[%s153 + $0x1690] sm:$0xff] %v1530
                %v1532 = vld [vmem:[%s152 + $0xb2c8] sm:$0xff]
                %1533 = vst [vmem:[%s153 + $0x1698] sm:$0xff] %v1532
                %v1534 = vld [vmem:[%s152 + $0xb520] sm:$0xff]
                %1535 = vst [vmem:[%s153 + $0x16a4] sm:$0xff] %v1534
                %v1536 = vld [vmem:[%s152 + $0xb528] sm:$0xff]
                %1537 = vst [vmem:[%s153 + $0x16ac] sm:$0xff] %v1536
                %v1538 = vld [vmem:[%s152 + $0xb530] sm:$0xff]
                %1539 = vst [vmem:[%s153 + $0x16b4] sm:$0xff] %v1538
                %v1540 = vld [vmem:[%s152 + $0xb538] sm:$0xff]
                %1541 = vst [vmem:[%s153 + $0x16bc] sm:$0xff] %v1540
                %v1542 = vld [vmem:[%s152 + $0xb540] sm:$0xff]
                %1543 = vst [vmem:[%s153 + $0x16c4] sm:$0xff] %v1542
                %v1544 = vld [vmem:[%s152 + $0xb548] sm:$0xff]
                %1545 = vst [vmem:[%s153 + $0x16cc] sm:$0xff] %v1544
                %v1546 = vld [vmem:[%s152 + $0xb550] sm:$0xff]
                %1547 = vst [vmem:[%s153 + $0x16d4] sm:$0xff] %v1546
                %v1548 = vld [vmem:[%s152 + $0xb558] sm:$0xff]
                %1549 = vst [vmem:[%s153 + $0x16dc] sm:$0xff] %v1548
                %v1550 = vld [vmem:[%s152 + $0xb560] sm:$0xff]
                %1551 = vst [vmem:[%s153 + $0x16e4] sm:$0xff] %v1550
                %v1552 = vld [vmem:[%s152 + $0xb568] sm:$0xff]
                %1553 = vst [vmem:[%s153 + $0x16ec] sm:$0xff] %v1552
                %v1554 = vld [vmem:[%s152 + $0xb7c0] sm:$0xff]
                %1555 = vst [vmem:[%s153 + $0x16f8] sm:$0xff] %v1554
                %v1556 = vld [vmem:[%s152 + $0xb7c8] sm:$0xff]
                %1557 = vst [vmem:[%s153 + $0x1700] sm:$0xff] %v1556
                %v1558 = vld [vmem:[%s152 + $0xb7d0] sm:$0xff]
                %1559 = vst [vmem:[%s153 + $0x1708] sm:$0xff] %v1558
                %v1560 = vld [vmem:[%s152 + $0xb7d8] sm:$0xff]
                %1561 = vst [vmem:[%s153 + $0x1710] sm:$0xff] %v1560
                %v1562 = vld [vmem:[%s152 + $0xb7e0] sm:$0xff]
                %1563 = vst [vmem:[%s153 + $0x1718] sm:$0xff] %v1562
                %v1564 = vld [vmem:[%s152 + $0xb7e8] sm:$0xff]
                %1565 = vst [vmem:[%s153 + $0x1720] sm:$0xff] %v1564
                %v1566 = vld [vmem:[%s152 + $0xb7f0] sm:$0xff]
                %1567 = vst [vmem:[%s153 + $0x1728] sm:$0xff] %v1566
                %v1568 = vld [vmem:[%s152 + $0xb7f8] sm:$0xff]
                %1569 = vst [vmem:[%s153 + $0x1730] sm:$0xff] %v1568
                %v1570 = vld [vmem:[%s152 + $0xb800] sm:$0xff]
                %1571 = vst [vmem:[%s153 + $0x1738] sm:$0xff] %v1570
                %v1572 = vld [vmem:[%s152 + $0xb808] sm:$0xff]
                %1573 = vst [vmem:[%s153 + $0x1740] sm:$0xff] %v1572
                %v1574 = vld [vmem:[%s152 + $0xba60] sm:$0xff]
                %1575 = vst [vmem:[%s153 + $0x174c] sm:$0xff] %v1574
                %v1576 = vld [vmem:[%s152 + $0xba68] sm:$0xff]
                %1577 = vst [vmem:[%s153 + $0x1754] sm:$0xff] %v1576
                %v1578 = vld [vmem:[%s152 + $0xba70] sm:$0xff]
                %1579 = vst [vmem:[%s153 + $0x175c] sm:$0xff] %v1578
                %v1580 = vld [vmem:[%s152 + $0xba78] sm:$0xff]
                %1581 = vst [vmem:[%s153 + $0x1764] sm:$0xff] %v1580
                %v1582 = vld [vmem:[%s152 + $0xba80] sm:$0xff]
                %1583 = vst [vmem:[%s153 + $0x176c] sm:$0xff] %v1582
                %v1584 = vld [vmem:[%s152 + $0xba88] sm:$0xff]
                %1585 = vst [vmem:[%s153 + $0x1774] sm:$0xff] %v1584
                %v1586 = vld [vmem:[%s152 + $0xba90] sm:$0xff]
                %1587 = vst [vmem:[%s153 + $0x177c] sm:$0xff] %v1586
                %v1588 = vld [vmem:[%s152 + $0xba98] sm:$0xff]
                %1589 = vst [vmem:[%s153 + $0x1784] sm:$0xff] %v1588
                %v1590 = vld [vmem:[%s152 + $0xbaa0] sm:$0xff]
                %1591 = vst [vmem:[%s153 + $0x178c] sm:$0xff] %v1590
                %v1592 = vld [vmem:[%s152 + $0xbaa8] sm:$0xff]
                %1593 = vst [vmem:[%s153 + $0x1794] sm:$0xff] %v1592
                %v1594 = vld [vmem:[%s152 + $0xbd00] sm:$0xff]
                %1595 = vst [vmem:[%s153 + $0x17a0] sm:$0xff] %v1594
                %v1596 = vld [vmem:[%s152 + $0xbd08] sm:$0xff]
                %1597 = vst [vmem:[%s153 + $0x17a8] sm:$0xff] %v1596
                %v1598 = vld [vmem:[%s152 + $0xbd10] sm:$0xff]
                %1599 = vst [vmem:[%s153 + $0x17b0] sm:$0xff] %v1598
                %v1600 = vld [vmem:[%s152 + $0xbd18] sm:$0xff]
                %1601 = vst [vmem:[%s153 + $0x17b8] sm:$0xff] %v1600
                %v1602 = vld [vmem:[%s152 + $0xbd20] sm:$0xff]
                %1603 = vst [vmem:[%s153 + $0x17c0] sm:$0xff] %v1602
                %v1604 = vld [vmem:[%s152 + $0xbd28] sm:$0xff]
                %1605 = vst [vmem:[%s153 + $0x17c8] sm:$0xff] %v1604
                %v1606 = vld [vmem:[%s152 + $0xbd30] sm:$0xff]
                %1607 = vst [vmem:[%s153 + $0x17d0] sm:$0xff] %v1606
                %v1608 = vld [vmem:[%s152 + $0xbd38] sm:$0xff]
                %1609 = vst [vmem:[%s153 + $0x17d8] sm:$0xff] %v1608
                %v1610 = vld [vmem:[%s152 + $0xbd40] sm:$0xff]
                %1611 = vst [vmem:[%s153 + $0x17e0] sm:$0xff] %v1610
                %v1612 = vld [vmem:[%s152 + $0xbd48] sm:$0xff]
                %1613 = vst [vmem:[%s153 + $0x17e8] sm:$0xff] %v1612
                %v1614 = vld [vmem:[%s152 + $0xbfa0] sm:$0xff]
                %1615 = vst [vmem:[%s153 + $0x17f4] sm:$0xff] %v1614
                %v1616 = vld [vmem:[%s152 + $0xbfa8] sm:$0xff]
                %1617 = vst [vmem:[%s153 + $0x17fc] sm:$0xff] %v1616
                %v1618 = vld [vmem:[%s152 + $0xbfb0] sm:$0xff]
                %1619 = vst [vmem:[%s153 + $0x1804] sm:$0xff] %v1618
                %v1620 = vld [vmem:[%s152 + $0xbfb8] sm:$0xff]
                %1621 = vst [vmem:[%s153 + $0x180c] sm:$0xff] %v1620
                %v1622 = vld [vmem:[%s152 + $0xbfc0] sm:$0xff]
                %1623 = vst [vmem:[%s153 + $0x1814] sm:$0xff] %v1622
                %v1624 = vld [vmem:[%s152 + $0xbfc8] sm:$0xff]
                %1625 = vst [vmem:[%s153 + $0x181c] sm:$0xff] %v1624
                %v1626 = vld [vmem:[%s152 + $0xbfd0] sm:$0xff]
                %1627 = vst [vmem:[%s153 + $0x1824] sm:$0xff] %v1626
                %v1628 = vld [vmem:[%s152 + $0xbfd8] sm:$0xff]
                %1629 = vst [vmem:[%s153 + $0x182c] sm:$0xff] %v1628
                %v1630 = vld [vmem:[%s152 + $0xbfe0] sm:$0xff]
                %1631 = vst [vmem:[%s153 + $0x1834] sm:$0xff] %v1630
                %v1632 = vld [vmem:[%s152 + $0xbfe8] sm:$0xff]
                %1633 = vst [vmem:[%s153 + $0x183c] sm:$0xff] %v1632
                %v1634 = vld [vmem:[%s152 + $0xc240] sm:$0xff]
                %1635 = vst [vmem:[%s153 + $0x1848] sm:$0xff] %v1634
                %v1636 = vld [vmem:[%s152 + $0xc248] sm:$0xff]
                %1637 = vst [vmem:[%s153 + $0x1850] sm:$0xff] %v1636
                %v1638 = vld [vmem:[%s152 + $0xc250] sm:$0xff]
                %1639 = vst [vmem:[%s153 + $0x1858] sm:$0xff] %v1638
                %v1640 = vld [vmem:[%s152 + $0xc258] sm:$0xff]
                %1641 = vst [vmem:[%s153 + $0x1860] sm:$0xff] %v1640
                %v1642 = vld [vmem:[%s152 + $0xc260] sm:$0xff]
                %1643 = vst [vmem:[%s153 + $0x1868] sm:$0xff] %v1642
                %v1644 = vld [vmem:[%s152 + $0xc268] sm:$0xff]
                %1645 = vst [vmem:[%s153 + $0x1870] sm:$0xff] %v1644
                %v1646 = vld [vmem:[%s152 + $0xc270] sm:$0xff]
                %1647 = vst [vmem:[%s153 + $0x1878] sm:$0xff] %v1646
                %v1648 = vld [vmem:[%s152 + $0xc278] sm:$0xff]
                %1649 = vst [vmem:[%s153 + $0x1880] sm:$0xff] %v1648
                %v1650 = vld [vmem:[%s152 + $0xc280] sm:$0xff]
                %1651 = vst [vmem:[%s153 + $0x1888] sm:$0xff] %v1650
                %v1652 = vld [vmem:[%s152 + $0xc288] sm:$0xff]
                %1653 = vst [vmem:[%s153 + $0x1890] sm:$0xff] %v1652
                %v1654 = vld [vmem:[%s152 + $0xc4e0] sm:$0xff]
                %1655 = vst [vmem:[%s153 + $0x189c] sm:$0xff] %v1654
                %v1656 = vld [vmem:[%s152 + $0xc4e8] sm:$0xff]
                %1657 = vst [vmem:[%s153 + $0x18a4] sm:$0xff] %v1656
                %v1658 = vld [vmem:[%s152 + $0xc4f0] sm:$0xff]
                %1659 = vst [vmem:[%s153 + $0x18ac] sm:$0xff] %v1658
                %v1660 = vld [vmem:[%s152 + $0xc4f8] sm:$0xff]
                %1661 = vst [vmem:[%s153 + $0x18b4] sm:$0xff] %v1660
                %v1662 = vld [vmem:[%s152 + $0xc500] sm:$0xff]
                %1663 = vst [vmem:[%s153 + $0x18bc] sm:$0xff] %v1662
                %v1664 = vld [vmem:[%s152 + $0xc508] sm:$0xff]
                %1665 = vst [vmem:[%s153 + $0x18c4] sm:$0xff] %v1664
                %v1666 = vld [vmem:[%s152 + $0xc510] sm:$0xff]
                %1667 = vst [vmem:[%s153 + $0x18cc] sm:$0xff] %v1666
                %v1668 = vld [vmem:[%s152 + $0xc518] sm:$0xff]
                %1669 = vst [vmem:[%s153 + $0x18d4] sm:$0xff] %v1668
                %v1670 = vld [vmem:[%s152 + $0xc520] sm:$0xff]
                %1671 = vst [vmem:[%s153 + $0x18dc] sm:$0xff] %v1670
                %v1672 = vld [vmem:[%s152 + $0xc528] sm:$0xff]
                %1673 = vst [vmem:[%s153 + $0x18e4] sm:$0xff] %v1672
                %v1674 = vld [vmem:[%s152 + $0xc780] sm:$0xff]
                %1675 = vst [vmem:[%s153 + $0x18f0] sm:$0xff] %v1674
                %v1676 = vld [vmem:[%s152 + $0xc788] sm:$0xff]
                %1677 = vst [vmem:[%s153 + $0x18f8] sm:$0xff] %v1676
                %v1678 = vld [vmem:[%s152 + $0xc790] sm:$0xff]
                %1679 = vst [vmem:[%s153 + $0x1900] sm:$0xff] %v1678
                %v1680 = vld [vmem:[%s152 + $0xc798] sm:$0xff]
                %1681 = vst [vmem:[%s153 + $0x1908] sm:$0xff] %v1680
                %v1682 = vld [vmem:[%s152 + $0xc7a0] sm:$0xff]
                %1683 = vst [vmem:[%s153 + $0x1910] sm:$0xff] %v1682
                %v1684 = vld [vmem:[%s152 + $0xc7a8] sm:$0xff]
                %1685 = vst [vmem:[%s153 + $0x1918] sm:$0xff] %v1684
                %v1686 = vld [vmem:[%s152 + $0xc7b0] sm:$0xff]
                %1687 = vst [vmem:[%s153 + $0x1920] sm:$0xff] %v1686
                %v1688 = vld [vmem:[%s152 + $0xc7b8] sm:$0xff]
                %1689 = vst [vmem:[%s153 + $0x1928] sm:$0xff] %v1688
                %v1690 = vld [vmem:[%s152 + $0xc7c0] sm:$0xff]
                %1691 = vst [vmem:[%s153 + $0x1930] sm:$0xff] %v1690
                %v1692 = vld [vmem:[%s152 + $0xc7c8] sm:$0xff]
                %1693 = vst [vmem:[%s153 + $0x1938] sm:$0xff] %v1692
                %v1694 = vld [vmem:[%s152 + $0xca20] sm:$0xff]
                %1695 = vst [vmem:[%s153 + $0x1944] sm:$0xff] %v1694
                %v1696 = vld [vmem:[%s152 + $0xca28] sm:$0xff]
                %1697 = vst [vmem:[%s153 + $0x194c] sm:$0xff] %v1696
                %v1698 = vld [vmem:[%s152 + $0xca30] sm:$0xff]
                %1699 = vst [vmem:[%s153 + $0x1954] sm:$0xff] %v1698
                %v1700 = vld [vmem:[%s152 + $0xca38] sm:$0xff]
                %1701 = vst [vmem:[%s153 + $0x195c] sm:$0xff] %v1700
                %v1702 = vld [vmem:[%s152 + $0xca40] sm:$0xff]
                %1703 = vst [vmem:[%s153 + $0x1964] sm:$0xff] %v1702
                %v1704 = vld [vmem:[%s152 + $0xca48] sm:$0xff]
                %1705 = vst [vmem:[%s153 + $0x196c] sm:$0xff] %v1704
                %v1706 = vld [vmem:[%s152 + $0xca50] sm:$0xff]
                %1707 = vst [vmem:[%s153 + $0x1974] sm:$0xff] %v1706
                %v1708 = vld [vmem:[%s152 + $0xca58] sm:$0xff]
                %1709 = vst [vmem:[%s153 + $0x197c] sm:$0xff] %v1708
                %v1710 = vld [vmem:[%s152 + $0xca60] sm:$0xff]
                %1711 = vst [vmem:[%s153 + $0x1984] sm:$0xff] %v1710
                %v1712 = vld [vmem:[%s152 + $0xca68] sm:$0xff]
                %1713 = vst [vmem:[%s153 + $0x198c] sm:$0xff] %v1712
                %v1714 = vld [vmem:[%s152 + $0xccc0] sm:$0xff]
                %1715 = vst [vmem:[%s153 + $0x1998] sm:$0xff] %v1714
                %v1716 = vld [vmem:[%s152 + $0xccc8] sm:$0xff]
                %1717 = vst [vmem:[%s153 + $0x19a0] sm:$0xff] %v1716
                %v1718 = vld [vmem:[%s152 + $0xccd0] sm:$0xff]
                %1719 = vst [vmem:[%s153 + $0x19a8] sm:$0xff] %v1718
                %v1720 = vld [vmem:[%s152 + $0xccd8] sm:$0xff]
                %1721 = vst [vmem:[%s153 + $0x19b0] sm:$0xff] %v1720
                %v1722 = vld [vmem:[%s152 + $0xcce0] sm:$0xff]
                %1723 = vst [vmem:[%s153 + $0x19b8] sm:$0xff] %v1722
                %v1724 = vld [vmem:[%s152 + $0xcce8] sm:$0xff]
                %1725 = vst [vmem:[%s153 + $0x19c0] sm:$0xff] %v1724
                %v1726 = vld [vmem:[%s152 + $0xccf0] sm:$0xff]
                %1727 = vst [vmem:[%s153 + $0x19c8] sm:$0xff] %v1726
                %v1728 = vld [vmem:[%s152 + $0xccf8] sm:$0xff]
                %1729 = vst [vmem:[%s153 + $0x19d0] sm:$0xff] %v1728
                %v1730 = vld [vmem:[%s152 + $0xcd00] sm:$0xff]
                %1731 = vst [vmem:[%s153 + $0x19d8] sm:$0xff] %v1730
                %v1732 = vld [vmem:[%s152 + $0xcd08] sm:$0xff]
                %1733 = vst [vmem:[%s153 + $0x19e0] sm:$0xff] %v1732
                %v1734 = vld [vmem:[%s152 + $0xcf60] sm:$0xff]
                %1735 = vst [vmem:[%s153 + $0x19ec] sm:$0xff] %v1734
                %v1736 = vld [vmem:[%s152 + $0xcf68] sm:$0xff]
                %1737 = vst [vmem:[%s153 + $0x19f4] sm:$0xff] %v1736
                %v1738 = vld [vmem:[%s152 + $0xcf70] sm:$0xff]
                %1739 = vst [vmem:[%s153 + $0x19fc] sm:$0xff] %v1738
                %v1740 = vld [vmem:[%s152 + $0xcf78] sm:$0xff]
                %1741 = vst [vmem:[%s153 + $0x1a04] sm:$0xff] %v1740
                %v1742 = vld [vmem:[%s152 + $0xcf80] sm:$0xff]
                %1743 = vst [vmem:[%s153 + $0x1a0c] sm:$0xff] %v1742
                %v1744 = vld [vmem:[%s152 + $0xcf88] sm:$0xff]
                %1745 = vst [vmem:[%s153 + $0x1a14] sm:$0xff] %v1744
                %v1746 = vld [vmem:[%s152 + $0xcf90] sm:$0xff]
                %1747 = vst [vmem:[%s153 + $0x1a1c] sm:$0xff] %v1746
                %v1748 = vld [vmem:[%s152 + $0xcf98] sm:$0xff]
                %1749 = vst [vmem:[%s153 + $0x1a24] sm:$0xff] %v1748
                %v1750 = vld [vmem:[%s152 + $0xcfa0] sm:$0xff]
                %1751 = vst [vmem:[%s153 + $0x1a2c] sm:$0xff] %v1750
                %v1752 = vld [vmem:[%s152 + $0xcfa8] sm:$0xff]
                %1753 = vst [vmem:[%s153 + $0x1a34] sm:$0xff] %v1752
                %v1754 = vld [vmem:[%s152 + $0xd200] sm:$0xff]
                %1755 = vst [vmem:[%s153 + $0x1a40] sm:$0xff] %v1754
                %v1756 = vld [vmem:[%s152 + $0xd208] sm:$0xff]
                %1757 = vst [vmem:[%s153 + $0x1a48] sm:$0xff] %v1756
                %v1758 = vld [vmem:[%s152 + $0xd210] sm:$0xff]
                %1759 = vst [vmem:[%s153 + $0x1a50] sm:$0xff] %v1758
                %v1760 = vld [vmem:[%s152 + $0xd218] sm:$0xff]
                %1761 = vst [vmem:[%s153 + $0x1a58] sm:$0xff] %v1760
                %v1762 = vld [vmem:[%s152 + $0xd220] sm:$0xff]
                %1763 = vst [vmem:[%s153 + $0x1a60] sm:$0xff] %v1762
                %v1764 = vld [vmem:[%s152 + $0xd228] sm:$0xff]
                %1765 = vst [vmem:[%s153 + $0x1a68] sm:$0xff] %v1764
                %v1766 = vld [vmem:[%s152 + $0xd230] sm:$0xff]
                %1767 = vst [vmem:[%s153 + $0x1a70] sm:$0xff] %v1766
                %v1768 = vld [vmem:[%s152 + $0xd238] sm:$0xff]
                %1769 = vst [vmem:[%s153 + $0x1a78] sm:$0xff] %v1768
                %v1770 = vld [vmem:[%s152 + $0xd240] sm:$0xff]
                %1771 = vst [vmem:[%s153 + $0x1a80] sm:$0xff] %v1770
                %v1772 = vld [vmem:[%s152 + $0xd248] sm:$0xff]
                %1773 = vst [vmem:[%s153 + $0x1a88] sm:$0xff] %v1772
                %v1774 = vld [vmem:[%s152 + $0xd4a0] sm:$0xff]
                %1775 = vst [vmem:[%s153 + $0x1a94] sm:$0xff] %v1774
                %v1776 = vld [vmem:[%s152 + $0xd4a8] sm:$0xff]
                %1777 = vst [vmem:[%s153 + $0x1a9c] sm:$0xff] %v1776
                %v1778 = vld [vmem:[%s152 + $0xd4b0] sm:$0xff]
                %1779 = vst [vmem:[%s153 + $0x1aa4] sm:$0xff] %v1778
                %v1780 = vld [vmem:[%s152 + $0xd4b8] sm:$0xff]
                %1781 = vst [vmem:[%s153 + $0x1aac] sm:$0xff] %v1780
                %v1782 = vld [vmem:[%s152 + $0xd4c0] sm:$0xff]
                %1783 = vst [vmem:[%s153 + $0x1ab4] sm:$0xff] %v1782
                %v1784 = vld [vmem:[%s152 + $0xd4c8] sm:$0xff]
                %1785 = vst [vmem:[%s153 + $0x1abc] sm:$0xff] %v1784
                %v1786 = vld [vmem:[%s152 + $0xd4d0] sm:$0xff]
                %1787 = vst [vmem:[%s153 + $0x1ac4] sm:$0xff] %v1786
                %v1788 = vld [vmem:[%s152 + $0xd4d8] sm:$0xff]
                %1789 = vst [vmem:[%s153 + $0x1acc] sm:$0xff] %v1788
                %v1790 = vld [vmem:[%s152 + $0xd4e0] sm:$0xff]
                %1791 = vst [vmem:[%s153 + $0x1ad4] sm:$0xff] %v1790
                %v1792 = vld [vmem:[%s152 + $0xd4e8] sm:$0xff]
                %1793 = vst [vmem:[%s153 + $0x1adc] sm:$0xff] %v1792
                %v1794 = vld [vmem:[%s152 + $0xd740] sm:$0xff]
                %1795 = vst [vmem:[%s153 + $0x1ae8] sm:$0xff] %v1794
                %v1796 = vld [vmem:[%s152 + $0xd748] sm:$0xff]
                %1797 = vst [vmem:[%s153 + $0x1af0] sm:$0xff] %v1796
                %v1798 = vld [vmem:[%s152 + $0xd750] sm:$0xff]
                %1799 = vst [vmem:[%s153 + $0x1af8] sm:$0xff] %v1798
                %v1800 = vld [vmem:[%s152 + $0xd758] sm:$0xff]
                %1801 = vst [vmem:[%s153 + $0x1b00] sm:$0xff] %v1800
                %v1802 = vld [vmem:[%s152 + $0xd760] sm:$0xff]
                %1803 = vst [vmem:[%s153 + $0x1b08] sm:$0xff] %v1802
                %v1804 = vld [vmem:[%s152 + $0xd768] sm:$0xff]
                %1805 = vst [vmem:[%s153 + $0x1b10] sm:$0xff] %v1804
                %v1806 = vld [vmem:[%s152 + $0xd770] sm:$0xff]
                %1807 = vst [vmem:[%s153 + $0x1b18] sm:$0xff] %v1806
                %v1808 = vld [vmem:[%s152 + $0xd778] sm:$0xff]
                %1809 = vst [vmem:[%s153 + $0x1b20] sm:$0xff] %v1808
                %v1810 = vld [vmem:[%s152 + $0xd780] sm:$0xff]
                %1811 = vst [vmem:[%s153 + $0x1b28] sm:$0xff] %v1810
                %v1812 = vld [vmem:[%s152 + $0xd788] sm:$0xff]
                %1813 = vst [vmem:[%s153 + $0x1b30] sm:$0xff] %v1812
                %v1814 = vld [vmem:[%s152 + $0xd9e0] sm:$0xff]
                %1815 = vst [vmem:[%s153 + $0x1b3c] sm:$0xff] %v1814
                %v1816 = vld [vmem:[%s152 + $0xd9e8] sm:$0xff]
                %1817 = vst [vmem:[%s153 + $0x1b44] sm:$0xff] %v1816
                %v1818 = vld [vmem:[%s152 + $0xd9f0] sm:$0xff]
                %1819 = vst [vmem:[%s153 + $0x1b4c] sm:$0xff] %v1818
                %v1820 = vld [vmem:[%s152 + $0xd9f8] sm:$0xff]
                %1821 = vst [vmem:[%s153 + $0x1b54] sm:$0xff] %v1820
                %v1822 = vld [vmem:[%s152 + $0xda00] sm:$0xff]
                %1823 = vst [vmem:[%s153 + $0x1b5c] sm:$0xff] %v1822
                %v1824 = vld [vmem:[%s152 + $0xda08] sm:$0xff]
                %1825 = vst [vmem:[%s153 + $0x1b64] sm:$0xff] %v1824
                %v1826 = vld [vmem:[%s152 + $0xda10] sm:$0xff]
                %1827 = vst [vmem:[%s153 + $0x1b6c] sm:$0xff] %v1826
                %v1828 = vld [vmem:[%s152 + $0xda18] sm:$0xff]
                %1829 = vst [vmem:[%s153 + $0x1b74] sm:$0xff] %v1828
                %v1830 = vld [vmem:[%s152 + $0xda20] sm:$0xff]
                %1831 = vst [vmem:[%s153 + $0x1b7c] sm:$0xff] %v1830
                %v1832 = vld [vmem:[%s152 + $0xda28] sm:$0xff]
                %1833 = vst [vmem:[%s153 + $0x1b84] sm:$0xff] %v1832
                %v1834 = vld [vmem:[%s152 + $0xdc80] sm:$0xff]
                %1835 = vst [vmem:[%s153 + $0x1b90] sm:$0xff] %v1834
                %v1836 = vld [vmem:[%s152 + $0xdc88] sm:$0xff]
                %1837 = vst [vmem:[%s153 + $0x1b98] sm:$0xff] %v1836
                %v1838 = vld [vmem:[%s152 + $0xdc90] sm:$0xff]
                %1839 = vst [vmem:[%s153 + $0x1ba0] sm:$0xff] %v1838
                %v1840 = vld [vmem:[%s152 + $0xdc98] sm:$0xff]
                %1841 = vst [vmem:[%s153 + $0x1ba8] sm:$0xff] %v1840
                %v1842 = vld [vmem:[%s152 + $0xdca0] sm:$0xff]
                %1843 = vst [vmem:[%s153 + $0x1bb0] sm:$0xff] %v1842
                %v1844 = vld [vmem:[%s152 + $0xdca8] sm:$0xff]
                %1845 = vst [vmem:[%s153 + $0x1bb8] sm:$0xff] %v1844
                %v1846 = vld [vmem:[%s152 + $0xdcb0] sm:$0xff]
                %1847 = vst [vmem:[%s153 + $0x1bc0] sm:$0xff] %v1846
                %v1848 = vld [vmem:[%s152 + $0xdcb8] sm:$0xff]
                %1849 = vst [vmem:[%s153 + $0x1bc8] sm:$0xff] %v1848
                %v1850 = vld [vmem:[%s152 + $0xdcc0] sm:$0xff]
                %1851 = vst [vmem:[%s153 + $0x1bd0] sm:$0xff] %v1850
                %v1852 = vld [vmem:[%s152 + $0xdcc8] sm:$0xff]
                %1853 = vst [vmem:[%s153 + $0x1bd8] sm:$0xff] %v1852
                %v1854 = vld [vmem:[%s152 + $0xdf20] sm:$0xff]
                %1855 = vst [vmem:[%s153 + $0x1be4] sm:$0xff] %v1854
                %v1856 = vld [vmem:[%s152 + $0xdf28] sm:$0xff]
                %1857 = vst [vmem:[%s153 + $0x1bec] sm:$0xff] %v1856
                %v1858 = vld [vmem:[%s152 + $0xdf30] sm:$0xff]
                %1859 = vst [vmem:[%s153 + $0x1bf4] sm:$0xff] %v1858
                %v1860 = vld [vmem:[%s152 + $0xdf38] sm:$0xff]
                %1861 = vst [vmem:[%s153 + $0x1bfc] sm:$0xff] %v1860
                %v1862 = vld [vmem:[%s152 + $0xdf40] sm:$0xff]
                %1863 = vst [vmem:[%s153 + $0x1c04] sm:$0xff] %v1862
                %v1864 = vld [vmem:[%s152 + $0xdf48] sm:$0xff]
                %1865 = vst [vmem:[%s153 + $0x1c0c] sm:$0xff] %v1864
                %v1866 = vld [vmem:[%s152 + $0xdf50] sm:$0xff]
                %1867 = vst [vmem:[%s153 + $0x1c14] sm:$0xff] %v1866
                %v1868 = vld [vmem:[%s152 + $0xdf58] sm:$0xff]
                %1869 = vst [vmem:[%s153 + $0x1c1c] sm:$0xff] %v1868
                %v1870 = vld [vmem:[%s152 + $0xdf60] sm:$0xff]
                %1871 = vst [vmem:[%s153 + $0x1c24] sm:$0xff] %v1870
                %v1872 = vld [vmem:[%s152 + $0xdf68] sm:$0xff]
                %1873 = vst [vmem:[%s153 + $0x1c2c] sm:$0xff] %v1872
                %v1874 = vld [vmem:[%s152 + $0xe1c0] sm:$0xff]
                %1875 = vst [vmem:[%s153 + $0x1c38] sm:$0xff] %v1874
                %v1876 = vld [vmem:[%s152 + $0xe1c8] sm:$0xff]
                %1877 = vst [vmem:[%s153 + $0x1c40] sm:$0xff] %v1876
                %v1878 = vld [vmem:[%s152 + $0xe1d0] sm:$0xff]
                %1879 = vst [vmem:[%s153 + $0x1c48] sm:$0xff] %v1878
                %v1880 = vld [vmem:[%s152 + $0xe1d8] sm:$0xff]
                %1881 = vst [vmem:[%s153 + $0x1c50] sm:$0xff] %v1880
                %v1882 = vld [vmem:[%s152 + $0xe1e0] sm:$0xff]
                %1883 = vst [vmem:[%s153 + $0x1c58] sm:$0xff] %v1882
                %v1884 = vld [vmem:[%s152 + $0xe1e8] sm:$0xff]
                %1885 = vst [vmem:[%s153 + $0x1c60] sm:$0xff] %v1884
                %v1886 = vld [vmem:[%s152 + $0xe1f0] sm:$0xff]
                %1887 = vst [vmem:[%s153 + $0x1c68] sm:$0xff] %v1886
                %v1888 = vld [vmem:[%s152 + $0xe1f8] sm:$0xff]
                %1889 = vst [vmem:[%s153 + $0x1c70] sm:$0xff] %v1888
                %v1890 = vld [vmem:[%s152 + $0xe200] sm:$0xff]
                %1891 = vst [vmem:[%s153 + $0x1c78] sm:$0xff] %v1890
                %v1892 = vld [vmem:[%s152 + $0xe208] sm:$0xff]
                %1893 = vst [vmem:[%s153 + $0x1c80] sm:$0xff] %v1892
                %v1894 = vld [vmem:[%s152 + $0xe460] sm:$0xff]
                %1895 = vst [vmem:[%s153 + $0x1c8c] sm:$0xff] %v1894
                %v1896 = vld [vmem:[%s152 + $0xe468] sm:$0xff]
                %1897 = vst [vmem:[%s153 + $0x1c94] sm:$0xff] %v1896
                %v1898 = vld [vmem:[%s152 + $0xe470] sm:$0xff]
                %1899 = vst [vmem:[%s153 + $0x1c9c] sm:$0xff] %v1898
                %v1900 = vld [vmem:[%s152 + $0xe478] sm:$0xff]
                %1901 = vst [vmem:[%s153 + $0x1ca4] sm:$0xff] %v1900
                %v1902 = vld [vmem:[%s152 + $0xe480] sm:$0xff]
                %1903 = vst [vmem:[%s153 + $0x1cac] sm:$0xff] %v1902
                %v1904 = vld [vmem:[%s152 + $0xe488] sm:$0xff]
                %1905 = vst [vmem:[%s153 + $0x1cb4] sm:$0xff] %v1904
                %v1906 = vld [vmem:[%s152 + $0xe490] sm:$0xff]
                %1907 = vst [vmem:[%s153 + $0x1cbc] sm:$0xff] %v1906
                %v1908 = vld [vmem:[%s152 + $0xe498] sm:$0xff]
                %1909 = vst [vmem:[%s153 + $0x1cc4] sm:$0xff] %v1908
                %v1910 = vld [vmem:[%s152 + $0xe4a0] sm:$0xff]
                %1911 = vst [vmem:[%s153 + $0x1ccc] sm:$0xff] %v1910
                %v1912 = vld [vmem:[%s152 + $0xe4a8] sm:$0xff]
                %1913 = vst [vmem:[%s153 + $0x1cd4] sm:$0xff] %v1912
                %v1914 = vld [vmem:[%s152 + $0xe700] sm:$0xff]
                %1915 = vst [vmem:[%s153 + $0x1ce0] sm:$0xff] %v1914
                %v1916 = vld [vmem:[%s152 + $0xe708] sm:$0xff]
                %1917 = vst [vmem:[%s153 + $0x1ce8] sm:$0xff] %v1916
                %v1918 = vld [vmem:[%s152 + $0xe710] sm:$0xff]
                %1919 = vst [vmem:[%s153 + $0x1cf0] sm:$0xff] %v1918
                %v1920 = vld [vmem:[%s152 + $0xe718] sm:$0xff]
                %1921 = vst [vmem:[%s153 + $0x1cf8] sm:$0xff] %v1920
                %v1922 = vld [vmem:[%s152 + $0xe720] sm:$0xff]
                %1923 = vst [vmem:[%s153 + $0x1d00] sm:$0xff] %v1922
                %v1924 = vld [vmem:[%s152 + $0xe728] sm:$0xff]
                %1925 = vst [vmem:[%s153 + $0x1d08] sm:$0xff] %v1924
                %v1926 = vld [vmem:[%s152 + $0xe730] sm:$0xff]
                %1927 = vst [vmem:[%s153 + $0x1d10] sm:$0xff] %v1926
                %v1928 = vld [vmem:[%s152 + $0xe738] sm:$0xff]
                %1929 = vst [vmem:[%s153 + $0x1d18] sm:$0xff] %v1928
                %v1930 = vld [vmem:[%s152 + $0xe740] sm:$0xff]
                %1931 = vst [vmem:[%s153 + $0x1d20] sm:$0xff] %v1930
                %v1932 = vld [vmem:[%s152 + $0xe748] sm:$0xff]
                %1933 = vst [vmem:[%s153 + $0x1d28] sm:$0xff] %v1932
                %v1934 = vld [vmem:[%s152 + $0xe9a0] sm:$0xff]
                %1935 = vst [vmem:[%s153 + $0x1d34] sm:$0xff] %v1934
                %v1936 = vld [vmem:[%s152 + $0xe9a8] sm:$0xff]
                %1937 = vst [vmem:[%s153 + $0x1d3c] sm:$0xff] %v1936
                %v1938 = vld [vmem:[%s152 + $0xe9b0] sm:$0xff]
                %1939 = vst [vmem:[%s153 + $0x1d44] sm:$0xff] %v1938
                %v1940 = vld [vmem:[%s152 + $0xe9b8] sm:$0xff]
                %1941 = vst [vmem:[%s153 + $0x1d4c] sm:$0xff] %v1940
                %v1942 = vld [vmem:[%s152 + $0xe9c0] sm:$0xff]
                %1943 = vst [vmem:[%s153 + $0x1d54] sm:$0xff] %v1942
                %v1944 = vld [vmem:[%s152 + $0xe9c8] sm:$0xff]
                %1945 = vst [vmem:[%s153 + $0x1d5c] sm:$0xff] %v1944
                %v1946 = vld [vmem:[%s152 + $0xe9d0] sm:$0xff]
                %1947 = vst [vmem:[%s153 + $0x1d64] sm:$0xff] %v1946
                %v1948 = vld [vmem:[%s152 + $0xe9d8] sm:$0xff]
                %1949 = vst [vmem:[%s153 + $0x1d6c] sm:$0xff] %v1948
                %v1950 = vld [vmem:[%s152 + $0xe9e0] sm:$0xff]
                %1951 = vst [vmem:[%s153 + $0x1d74] sm:$0xff] %v1950
                %v1952 = vld [vmem:[%s152 + $0xe9e8] sm:$0xff]
                %1953 = vst [vmem:[%s153 + $0x1d7c] sm:$0xff] %v1952
                %v1954 = vld [vmem:[%s152 + $0xec40] sm:$0xff]
                %1955 = vst [vmem:[%s153 + $0x1d88] sm:$0xff] %v1954
                %v1956 = vld [vmem:[%s152 + $0xec48] sm:$0xff]
                %1957 = vst [vmem:[%s153 + $0x1d90] sm:$0xff] %v1956
                %v1958 = vld [vmem:[%s152 + $0xec50] sm:$0xff]
                %1959 = vst [vmem:[%s153 + $0x1d98] sm:$0xff] %v1958
                %v1960 = vld [vmem:[%s152 + $0xec58] sm:$0xff]
                %1961 = vst [vmem:[%s153 + $0x1da0] sm:$0xff] %v1960
                %v1962 = vld [vmem:[%s152 + $0xec60] sm:$0xff]
                %1963 = vst [vmem:[%s153 + $0x1da8] sm:$0xff] %v1962
                %v1964 = vld [vmem:[%s152 + $0xec68] sm:$0xff]
                %1965 = vst [vmem:[%s153 + $0x1db0] sm:$0xff] %v1964
                %v1966 = vld [vmem:[%s152 + $0xec70] sm:$0xff]
                %1967 = vst [vmem:[%s153 + $0x1db8] sm:$0xff] %v1966
                %v1968 = vld [vmem:[%s152 + $0xec78] sm:$0xff]
                %1969 = vst [vmem:[%s153 + $0x1dc0] sm:$0xff] %v1968
                %v1970 = vld [vmem:[%s152 + $0xec80] sm:$0xff]
                %1971 = vst [vmem:[%s153 + $0x1dc8] sm:$0xff] %v1970
                %v1972 = vld [vmem:[%s152 + $0xec88] sm:$0xff]
                %1973 = vst [vmem:[%s153 + $0x1dd0] sm:$0xff] %v1972
                %v1974 = vld [vmem:[%s152 + $0xeee0] sm:$0xff]
                %1975 = vst [vmem:[%s153 + $0x1ddc] sm:$0xff] %v1974
                %v1976 = vld [vmem:[%s152 + $0xeee8] sm:$0xff]
                %1977 = vst [vmem:[%s153 + $0x1de4] sm:$0xff] %v1976
                %v1978 = vld [vmem:[%s152 + $0xeef0] sm:$0xff]
                %1979 = vst [vmem:[%s153 + $0x1dec] sm:$0xff] %v1978
                %v1980 = vld [vmem:[%s152 + $0xeef8] sm:$0xff]
                %1981 = vst [vmem:[%s153 + $0x1df4] sm:$0xff] %v1980
                %v1982 = vld [vmem:[%s152 + $0xef00] sm:$0xff]
                %1983 = vst [vmem:[%s153 + $0x1dfc] sm:$0xff] %v1982
                %v1984 = vld [vmem:[%s152 + $0xef08] sm:$0xff]
                %1985 = vst [vmem:[%s153 + $0x1e04] sm:$0xff] %v1984
                %v1986 = vld [vmem:[%s152 + $0xef10] sm:$0xff]
                %1987 = vst [vmem:[%s153 + $0x1e0c] sm:$0xff] %v1986
                %v1988 = vld [vmem:[%s152 + $0xef18] sm:$0xff]
                %1989 = vst [vmem:[%s153 + $0x1e14] sm:$0xff] %v1988
                %v1990 = vld [vmem:[%s152 + $0xef20] sm:$0xff]
                %1991 = vst [vmem:[%s153 + $0x1e1c] sm:$0xff] %v1990
                %v1992 = vld [vmem:[%s152 + $0xef28] sm:$0xff]
                %1993 = vst [vmem:[%s153 + $0x1e24] sm:$0xff] %v1992
                %v1994 = vld [vmem:[%s152 + $0xf180] sm:$0xff]
                %1995 = vst [vmem:[%s153 + $0x1e30] sm:$0xff] %v1994
                %v1996 = vld [vmem:[%s152 + $0xf188] sm:$0xff]
                %1997 = vst [vmem:[%s153 + $0x1e38] sm:$0xff] %v1996
                %v1998 = vld [vmem:[%s152 + $0xf190] sm:$0xff]
                %1999 = vst [vmem:[%s153 + $0x1e40] sm:$0xff] %v1998
                %v2000 = vld [vmem:[%s152 + $0xf198] sm:$0xff]
                %2001 = vst [vmem:[%s153 + $0x1e48] sm:$0xff] %v2000
                %v2002 = vld [vmem:[%s152 + $0xf1a0] sm:$0xff]
                %2003 = vst [vmem:[%s153 + $0x1e50] sm:$0xff] %v2002
                %v2004 = vld [vmem:[%s152 + $0xf1a8] sm:$0xff]
                %2005 = vst [vmem:[%s153 + $0x1e58] sm:$0xff] %v2004
                %v2006 = vld [vmem:[%s152 + $0xf1b0] sm:$0xff]
                %2007 = vst [vmem:[%s153 + $0x1e60] sm:$0xff] %v2006
                %v2008 = vld [vmem:[%s152 + $0xf1b8] sm:$0xff]
                %2009 = vst [vmem:[%s153 + $0x1e68] sm:$0xff] %v2008
                %v2010 = vld [vmem:[%s152 + $0xf1c0] sm:$0xff]
                %2011 = vst [vmem:[%s153 + $0x1e70] sm:$0xff] %v2010
                %v2012 = vld [vmem:[%s152 + $0xf1c8] sm:$0xff]
                %2013 = vst [vmem:[%s153 + $0x1e78] sm:$0xff] %v2012
                %v2014 = vld [vmem:[%s152 + $0xf420] sm:$0xff]
                %2015 = vst [vmem:[%s153 + $0x1e84] sm:$0xff] %v2014
                %v2016 = vld [vmem:[%s152 + $0xf428] sm:$0xff]
                %2017 = vst [vmem:[%s153 + $0x1e8c] sm:$0xff] %v2016
                %v2018 = vld [vmem:[%s152 + $0xf430] sm:$0xff]
                %2019 = vst [vmem:[%s153 + $0x1e94] sm:$0xff] %v2018
                %v2020 = vld [vmem:[%s152 + $0xf438] sm:$0xff]
                %2021 = vst [vmem:[%s153 + $0x1e9c] sm:$0xff] %v2020
                %v2022 = vld [vmem:[%s152 + $0xf440] sm:$0xff]
                %2023 = vst [vmem:[%s153 + $0x1ea4] sm:$0xff] %v2022
                %v2024 = vld [vmem:[%s152 + $0xf448] sm:$0xff]
                %2025 = vst [vmem:[%s153 + $0x1eac] sm:$0xff] %v2024
                %v2026 = vld [vmem:[%s152 + $0xf450] sm:$0xff]
                %2027 = vst [vmem:[%s153 + $0x1eb4] sm:$0xff] %v2026
                %v2028 = vld [vmem:[%s152 + $0xf458] sm:$0xff]
                %2029 = vst [vmem:[%s153 + $0x1ebc] sm:$0xff] %v2028
                %v2030 = vld [vmem:[%s152 + $0xf460] sm:$0xff]
                %2031 = vst [vmem:[%s153 + $0x1ec4] sm:$0xff] %v2030
                %v2032 = vld [vmem:[%s152 + $0xf468] sm:$0xff]
                %2033 = vst [vmem:[%s153 + $0x1ecc] sm:$0xff] %v2032
                %v2034 = vld [vmem:[%s152 + $0xf6c0] sm:$0xff]
                %2035 = vst [vmem:[%s153 + $0x1ed8] sm:$0xff] %v2034
                %v2036 = vld [vmem:[%s152 + $0xf6c8] sm:$0xff]
                %2037 = vst [vmem:[%s153 + $0x1ee0] sm:$0xff] %v2036
                %v2038 = vld [vmem:[%s152 + $0xf6d0] sm:$0xff]
                %2039 = vst [vmem:[%s153 + $0x1ee8] sm:$0xff] %v2038
                %v2040 = vld [vmem:[%s152 + $0xf6d8] sm:$0xff]
                %2041 = vst [vmem:[%s153 + $0x1ef0] sm:$0xff] %v2040
                %v2042 = vld [vmem:[%s152 + $0xf6e0] sm:$0xff]
                %2043 = vst [vmem:[%s153 + $0x1ef8] sm:$0xff] %v2042
                %v2044 = vld [vmem:[%s152 + $0xf6e8] sm:$0xff]
                %2045 = vst [vmem:[%s153 + $0x1f00] sm:$0xff] %v2044
                %v2046 = vld [vmem:[%s152 + $0xf6f0] sm:$0xff]
                %2047 = vst [vmem:[%s153 + $0x1f08] sm:$0xff] %v2046
                %v2048 = vld [vmem:[%s152 + $0xf6f8] sm:$0xff]
                %2049 = vst [vmem:[%s153 + $0x1f10] sm:$0xff] %v2048
                %v2050 = vld [vmem:[%s152 + $0xf700] sm:$0xff]
                %2051 = vst [vmem:[%s153 + $0x1f18] sm:$0xff] %v2050
                %v2052 = vld [vmem:[%s152 + $0xf708] sm:$0xff]
                %2053 = vst [vmem:[%s153 + $0x1f20] sm:$0xff] %v2052
                %v2054 = vld [vmem:[%s152 + $0xf960] sm:$0xff]
                %2055 = vst [vmem:[%s153 + $0x1f2c] sm:$0xff] %v2054
                %v2056 = vld [vmem:[%s152 + $0xf968] sm:$0xff]
                %2057 = vst [vmem:[%s153 + $0x1f34] sm:$0xff] %v2056
                %v2058 = vld [vmem:[%s152 + $0xf970] sm:$0xff]
                %2059 = vst [vmem:[%s153 + $0x1f3c] sm:$0xff] %v2058
                %v2060 = vld [vmem:[%s152 + $0xf978] sm:$0xff]
                %2061 = vst [vmem:[%s153 + $0x1f44] sm:$0xff] %v2060
                %v2062 = vld [vmem:[%s152 + $0xf980] sm:$0xff]
                %2063 = vst [vmem:[%s153 + $0x1f4c] sm:$0xff] %v2062
                %v2064 = vld [vmem:[%s152 + $0xf988] sm:$0xff]
                %2065 = vst [vmem:[%s153 + $0x1f54] sm:$0xff] %v2064
                %v2066 = vld [vmem:[%s152 + $0xf990] sm:$0xff]
                %2067 = vst [vmem:[%s153 + $0x1f5c] sm:$0xff] %v2066
                %v2068 = vld [vmem:[%s152 + $0xf998] sm:$0xff]
                %2069 = vst [vmem:[%s153 + $0x1f64] sm:$0xff] %v2068
                %v2070 = vld [vmem:[%s152 + $0xf9a0] sm:$0xff]
                %2071 = vst [vmem:[%s153 + $0x1f6c] sm:$0xff] %v2070
                %v2072 = vld [vmem:[%s152 + $0xf9a8] sm:$0xff]
                %2073 = vst [vmem:[%s153 + $0x1f74] sm:$0xff] %v2072
              $region37: #{model_forward.1} parent=31 // loop_footer
                %s151 = sadd.s32 1, %s147
              $region38: #{model_forward.1} parent=31 // loop_footer_branch
                %146 = sbr.rel target = $region34
              $region39: #{model_forward.1} parent=31 // loop_exit
                _
              %s2075 = ssub.s32 16, 1
              loop: start=0, step=1, limit=1
              $region40: #{model_forward.1} parent=31 // loop_pre_header
                _
              $region41: #{model_forward.1} parent=31 // loop_header
                %s2077 = sphi 0, %s2081
                %p2078 = scmp.ge.s32.totalorder %s2077, 1
                %s2082 = sphi %s144, %s144
                %s2083 = sphi %s145, %s145
              $region42: #{model_forward.1} parent=31 // loop_header_branch
                %2080 = sbr.rel (%p2078) target = $region46
              $region43: #{model_forward.1} parent=31 // loop_body
                %v2084 = vld [vmem:[%s2082] sm:%s2075]
                %2085 = vst [vmem:[%s2083] sm:%s2075] %v2084
                %v2086 = vld [vmem:[%s2082 + $0x2a0] sm:%s2075]
                %2087 = vst [vmem:[%s2083 + $0x54] sm:%s2075] %v2086
                %v2088 = vld [vmem:[%s2082 + $0x540] sm:%s2075]
                %2089 = vst [vmem:[%s2083 + $0xa8] sm:%s2075] %v2088
                %v2090 = vld [vmem:[%s2082 + $0x7e0] sm:%s2075]
                %2091 = vst [vmem:[%s2083 + $0xfc] sm:%s2075] %v2090
                %v2092 = vld [vmem:[%s2082 + $0xa80] sm:%s2075]
                %2093 = vst [vmem:[%s2083 + $0x150] sm:%s2075] %v2092
                %v2094 = vld [vmem:[%s2082 + $0xd20] sm:%s2075]
                %2095 = vst [vmem:[%s2083 + $0x1a4] sm:%s2075] %v2094
                %v2096 = vld [vmem:[%s2082 + $0xfc0] sm:%s2075]
                %2097 = vst [vmem:[%s2083 + $0x1f8] sm:%s2075] %v2096
                %v2098 = vld [vmem:[%s2082 + $0x1260] sm:%s2075]
                %2099 = vst [vmem:[%s2083 + $0x24c] sm:%s2075] %v2098
                %v2100 = vld [vmem:[%s2082 + $0x1500] sm:%s2075]
                %2101 = vst [vmem:[%s2083 + $0x2a0] sm:%s2075] %v2100
                %v2102 = vld [vmem:[%s2082 + $0x17a0] sm:%s2075]
                %2103 = vst [vmem:[%s2083 + $0x2f4] sm:%s2075] %v2102
                %v2104 = vld [vmem:[%s2082 + $0x1a40] sm:%s2075]
                %2105 = vst [vmem:[%s2083 + $0x348] sm:%s2075] %v2104
                %v2106 = vld [vmem:[%s2082 + $0x1ce0] sm:%s2075]
                %2107 = vst [vmem:[%s2083 + $0x39c] sm:%s2075] %v2106
                %v2108 = vld [vmem:[%s2082 + $0x1f80] sm:%s2075]
                %2109 = vst [vmem:[%s2083 + $0x3f0] sm:%s2075] %v2108
                %v2110 = vld [vmem:[%s2082 + $0x2220] sm:%s2075]
                %2111 = vst [vmem:[%s2083 + $0x444] sm:%s2075] %v2110
                %v2112 = vld [vmem:[%s2082 + $0x24c0] sm:%s2075]
                %2113 = vst [vmem:[%s2083 + $0x498] sm:%s2075] %v2112
                %v2114 = vld [vmem:[%s2082 + $0x2760] sm:%s2075]
                %2115 = vst [vmem:[%s2083 + $0x4ec] sm:%s2075] %v2114
                %v2116 = vld [vmem:[%s2082 + $0x2a00] sm:%s2075]
                %2117 = vst [vmem:[%s2083 + $0x540] sm:%s2075] %v2116
                %v2118 = vld [vmem:[%s2082 + $0x2ca0] sm:%s2075]
                %2119 = vst [vmem:[%s2083 + $0x594] sm:%s2075] %v2118
                %v2120 = vld [vmem:[%s2082 + $0x2f40] sm:%s2075]
                %2121 = vst [vmem:[%s2083 + $0x5e8] sm:%s2075] %v2120
                %v2122 = vld [vmem:[%s2082 + $0x31e0] sm:%s2075]
                %2123 = vst [vmem:[%s2083 + $0x63c] sm:%s2075] %v2122
                %v2124 = vld [vmem:[%s2082 + $0x3480] sm:%s2075]
                %2125 = vst [vmem:[%s2083 + $0x690] sm:%s2075] %v2124
                %v2126 = vld [vmem:[%s2082 + $0x3720] sm:%s2075]
                %2127 = vst [vmem:[%s2083 + $0x6e4] sm:%s2075] %v2126
                %v2128 = vld [vmem:[%s2082 + $0x39c0] sm:%s2075]
                %2129 = vst [vmem:[%s2083 + $0x738] sm:%s2075] %v2128
                %v2130 = vld [vmem:[%s2082 + $0x3c60] sm:%s2075]
                %2131 = vst [vmem:[%s2083 + $0x78c] sm:%s2075] %v2130
                %v2132 = vld [vmem:[%s2082 + $0x3f00] sm:%s2075]
                %2133 = vst [vmem:[%s2083 + $0x7e0] sm:%s2075] %v2132
                %v2134 = vld [vmem:[%s2082 + $0x41a0] sm:%s2075]
                %2135 = vst [vmem:[%s2083 + $0x834] sm:%s2075] %v2134
                %v2136 = vld [vmem:[%s2082 + $0x4440] sm:%s2075]
                %2137 = vst [vmem:[%s2083 + $0x888] sm:%s2075] %v2136
                %v2138 = vld [vmem:[%s2082 + $0x46e0] sm:%s2075]
                %2139 = vst [vmem:[%s2083 + $0x8dc] sm:%s2075] %v2138
                %v2140 = vld [vmem:[%s2082 + $0x4980] sm:%s2075]
                %2141 = vst [vmem:[%s2083 + $0x930] sm:%s2075] %v2140
                %v2142 = vld [vmem:[%s2082 + $0x4c20] sm:%s2075]
                %2143 = vst [vmem:[%s2083 + $0x984] sm:%s2075] %v2142
                %v2144 = vld [vmem:[%s2082 + $0x4ec0] sm:%s2075]
                %2145 = vst [vmem:[%s2083 + $0x9d8] sm:%s2075] %v2144
                %v2146 = vld [vmem:[%s2082 + $0x5160] sm:%s2075]
                %2147 = vst [vmem:[%s2083 + $0xa2c] sm:%s2075] %v2146
                %v2148 = vld [vmem:[%s2082 + $0x5400] sm:%s2075]
                %2149 = vst [vmem:[%s2083 + $0xa80] sm:%s2075] %v2148
                %v2150 = vld [vmem:[%s2082 + $0x56a0] sm:%s2075]
                %2151 = vst [vmem:[%s2083 + $0xad4] sm:%s2075] %v2150
                %v2152 = vld [vmem:[%s2082 + $0x5940] sm:%s2075]
                %2153 = vst [vmem:[%s2083 + $0xb28] sm:%s2075] %v2152
                %v2154 = vld [vmem:[%s2082 + $0x5be0] sm:%s2075]
                %2155 = vst [vmem:[%s2083 + $0xb7c] sm:%s2075] %v2154
                %v2156 = vld [vmem:[%s2082 + $0x5e80] sm:%s2075]
                %2157 = vst [vmem:[%s2083 + $0xbd0] sm:%s2075] %v2156
                %v2158 = vld [vmem:[%s2082 + $0x6120] sm:%s2075]
                %2159 = vst [vmem:[%s2083 + $0xc24] sm:%s2075] %v2158
                %v2160 = vld [vmem:[%s2082 + $0x63c0] sm:%s2075]
                %2161 = vst [vmem:[%s2083 + $0xc78] sm:%s2075] %v2160
                %v2162 = vld [vmem:[%s2082 + $0x6660] sm:%s2075]
                %2163 = vst [vmem:[%s2083 + $0xccc] sm:%s2075] %v2162
                %v2164 = vld [vmem:[%s2082 + $0x6900] sm:%s2075]
                %2165 = vst [vmem:[%s2083 + $0xd20] sm:%s2075] %v2164
                %v2166 = vld [vmem:[%s2082 + $0x6ba0] sm:%s2075]
                %2167 = vst [vmem:[%s2083 + $0xd74] sm:%s2075] %v2166
                %v2168 = vld [vmem:[%s2082 + $0x6e40] sm:%s2075]
                %2169 = vst [vmem:[%s2083 + $0xdc8] sm:%s2075] %v2168
                %v2170 = vld [vmem:[%s2082 + $0x70e0] sm:%s2075]
                %2171 = vst [vmem:[%s2083 + $0xe1c] sm:%s2075] %v2170
                %v2172 = vld [vmem:[%s2082 + $0x7380] sm:%s2075]
                %2173 = vst [vmem:[%s2083 + $0xe70] sm:%s2075] %v2172
                %v2174 = vld [vmem:[%s2082 + $0x7620] sm:%s2075]
                %2175 = vst [vmem:[%s2083 + $0xec4] sm:%s2075] %v2174
                %v2176 = vld [vmem:[%s2082 + $0x78c0] sm:%s2075]
                %2177 = vst [vmem:[%s2083 + $0xf18] sm:%s2075] %v2176
                %v2178 = vld [vmem:[%s2082 + $0x7b60] sm:%s2075]
                %2179 = vst [vmem:[%s2083 + $0xf6c] sm:%s2075] %v2178
                %v2180 = vld [vmem:[%s2082 + $0x7e00] sm:%s2075]
                %2181 = vst [vmem:[%s2083 + $0xfc0] sm:%s2075] %v2180
                %v2182 = vld [vmem:[%s2082 + $0x80a0] sm:%s2075]
                %2183 = vst [vmem:[%s2083 + $0x1014] sm:%s2075] %v2182
                %v2184 = vld [vmem:[%s2082 + $0x8340] sm:%s2075]
                %2185 = vst [vmem:[%s2083 + $0x1068] sm:%s2075] %v2184
                %v2186 = vld [vmem:[%s2082 + $0x85e0] sm:%s2075]
                %2187 = vst [vmem:[%s2083 + $0x10bc] sm:%s2075] %v2186
                %v2188 = vld [vmem:[%s2082 + $0x8880] sm:%s2075]
                %2189 = vst [vmem:[%s2083 + $0x1110] sm:%s2075] %v2188
                %v2190 = vld [vmem:[%s2082 + $0x8b20] sm:%s2075]
                %2191 = vst [vmem:[%s2083 + $0x1164] sm:%s2075] %v2190
                %v2192 = vld [vmem:[%s2082 + $0x8dc0] sm:%s2075]
                %2193 = vst [vmem:[%s2083 + $0x11b8] sm:%s2075] %v2192
                %v2194 = vld [vmem:[%s2082 + $0x9060] sm:%s2075]
                %2195 = vst [vmem:[%s2083 + $0x120c] sm:%s2075] %v2194
                %v2196 = vld [vmem:[%s2082 + $0x9300] sm:%s2075]
                %2197 = vst [vmem:[%s2083 + $0x1260] sm:%s2075] %v2196
                %v2198 = vld [vmem:[%s2082 + $0x95a0] sm:%s2075]
                %2199 = vst [vmem:[%s2083 + $0x12b4] sm:%s2075] %v2198
                %v2200 = vld [vmem:[%s2082 + $0x9840] sm:%s2075]
                %2201 = vst [vmem:[%s2083 + $0x1308] sm:%s2075] %v2200
                %v2202 = vld [vmem:[%s2082 + $0x9ae0] sm:%s2075]
                %2203 = vst [vmem:[%s2083 + $0x135c] sm:%s2075] %v2202
                %v2204 = vld [vmem:[%s2082 + $0x9d80] sm:%s2075]
                %2205 = vst [vmem:[%s2083 + $0x13b0] sm:%s2075] %v2204
                %v2206 = vld [vmem:[%s2082 + $0xa020] sm:%s2075]
                %2207 = vst [vmem:[%s2083 + $0x1404] sm:%s2075] %v2206
                %v2208 = vld [vmem:[%s2082 + $0xa2c0] sm:%s2075]
                %2209 = vst [vmem:[%s2083 + $0x1458] sm:%s2075] %v2208
                %v2210 = vld [vmem:[%s2082 + $0xa560] sm:%s2075]
                %2211 = vst [vmem:[%s2083 + $0x14ac] sm:%s2075] %v2210
                %v2212 = vld [vmem:[%s2082 + $0xa800] sm:%s2075]
                %2213 = vst [vmem:[%s2083 + $0x1500] sm:%s2075] %v2212
                %v2214 = vld [vmem:[%s2082 + $0xaaa0] sm:%s2075]
                %2215 = vst [vmem:[%s2083 + $0x1554] sm:%s2075] %v2214
                %v2216 = vld [vmem:[%s2082 + $0xad40] sm:%s2075]
                %2217 = vst [vmem:[%s2083 + $0x15a8] sm:%s2075] %v2216
                %v2218 = vld [vmem:[%s2082 + $0xafe0] sm:%s2075]
                %2219 = vst [vmem:[%s2083 + $0x15fc] sm:%s2075] %v2218
                %v2220 = vld [vmem:[%s2082 + $0xb280] sm:%s2075]
                %2221 = vst [vmem:[%s2083 + $0x1650] sm:%s2075] %v2220
                %v2222 = vld [vmem:[%s2082 + $0xb520] sm:%s2075]
                %2223 = vst [vmem:[%s2083 + $0x16a4] sm:%s2075] %v2222
                %v2224 = vld [vmem:[%s2082 + $0xb7c0] sm:%s2075]
                %2225 = vst [vmem:[%s2083 + $0x16f8] sm:%s2075] %v2224
                %v2226 = vld [vmem:[%s2082 + $0xba60] sm:%s2075]
                %2227 = vst [vmem:[%s2083 + $0x174c] sm:%s2075] %v2226
                %v2228 = vld [vmem:[%s2082 + $0xbd00] sm:%s2075]
                %2229 = vst [vmem:[%s2083 + $0x17a0] sm:%s2075] %v2228
                %v2230 = vld [vmem:[%s2082 + $0xbfa0] sm:%s2075]
                %2231 = vst [vmem:[%s2083 + $0x17f4] sm:%s2075] %v2230
                %v2232 = vld [vmem:[%s2082 + $0xc240] sm:%s2075]
                %2233 = vst [vmem:[%s2083 + $0x1848] sm:%s2075] %v2232
                %v2234 = vld [vmem:[%s2082 + $0xc4e0] sm:%s2075]
                %2235 = vst [vmem:[%s2083 + $0x189c] sm:%s2075] %v2234
                %v2236 = vld [vmem:[%s2082 + $0xc780] sm:%s2075]
                %2237 = vst [vmem:[%s2083 + $0x18f0] sm:%s2075] %v2236
                %v2238 = vld [vmem:[%s2082 + $0xca20] sm:%s2075]
                %2239 = vst [vmem:[%s2083 + $0x1944] sm:%s2075] %v2238
                %v2240 = vld [vmem:[%s2082 + $0xccc0] sm:%s2075]
                %2241 = vst [vmem:[%s2083 + $0x1998] sm:%s2075] %v2240
                %v2242 = vld [vmem:[%s2082 + $0xcf60] sm:%s2075]
                %2243 = vst [vmem:[%s2083 + $0x19ec] sm:%s2075] %v2242
                %v2244 = vld [vmem:[%s2082 + $0xd200] sm:%s2075]
                %2245 = vst [vmem:[%s2083 + $0x1a40] sm:%s2075] %v2244
                %v2246 = vld [vmem:[%s2082 + $0xd4a0] sm:%s2075]
                %2247 = vst [vmem:[%s2083 + $0x1a94] sm:%s2075] %v2246
                %v2248 = vld [vmem:[%s2082 + $0xd740] sm:%s2075]
                %2249 = vst [vmem:[%s2083 + $0x1ae8] sm:%s2075] %v2248
                %v2250 = vld [vmem:[%s2082 + $0xd9e0] sm:%s2075]
                %2251 = vst [vmem:[%s2083 + $0x1b3c] sm:%s2075] %v2250
                %v2252 = vld [vmem:[%s2082 + $0xdc80] sm:%s2075]
                %2253 = vst [vmem:[%s2083 + $0x1b90] sm:%s2075] %v2252
                %v2254 = vld [vmem:[%s2082 + $0xdf20] sm:%s2075]
                %2255 = vst [vmem:[%s2083 + $0x1be4] sm:%s2075] %v2254
                %v2256 = vld [vmem:[%s2082 + $0xe1c0] sm:%s2075]
                %2257 = vst [vmem:[%s2083 + $0x1c38] sm:%s2075] %v2256
                %v2258 = vld [vmem:[%s2082 + $0xe460] sm:%s2075]
                %2259 = vst [vmem:[%s2083 + $0x1c8c] sm:%s2075] %v2258
                %v2260 = vld [vmem:[%s2082 + $0xe700] sm:%s2075]
                %2261 = vst [vmem:[%s2083 + $0x1ce0] sm:%s2075] %v2260
                %v2262 = vld [vmem:[%s2082 + $0xe9a0] sm:%s2075]
                %2263 = vst [vmem:[%s2083 + $0x1d34] sm:%s2075] %v2262
                %v2264 = vld [vmem:[%s2082 + $0xec40] sm:%s2075]
                %2265 = vst [vmem:[%s2083 + $0x1d88] sm:%s2075] %v2264
                %v2266 = vld [vmem:[%s2082 + $0xeee0] sm:%s2075]
                %2267 = vst [vmem:[%s2083 + $0x1ddc] sm:%s2075] %v2266
                %v2268 = vld [vmem:[%s2082 + $0xf180] sm:%s2075]
                %2269 = vst [vmem:[%s2083 + $0x1e30] sm:%s2075] %v2268
                %v2270 = vld [vmem:[%s2082 + $0xf420] sm:%s2075]
                %2271 = vst [vmem:[%s2083 + $0x1e84] sm:%s2075] %v2270
                %v2272 = vld [vmem:[%s2082 + $0xf6c0] sm:%s2075]
                %2273 = vst [vmem:[%s2083 + $0x1ed8] sm:%s2075] %v2272
                %v2274 = vld [vmem:[%s2082 + $0xf960] sm:%s2075]
                %2275 = vst [vmem:[%s2083 + $0x1f2c] sm:%s2075] %v2274
              $region44: #{model_forward.1} parent=31 // loop_footer
                %s2081 = sadd.s32 1, %s2077
              $region45: #{model_forward.1} parent=31 // loop_footer_branch
                %2076 = sbr.rel target = $region41
              $region46: #{model_forward.1} parent=31 // loop_exit
                _
            $region32: #{model_forward.1} parent=27 // pred_fallthru
              _
          $region28: #{model_forward.1} parent=23 // pred_fallthru
            _
          %2276 = vnop
        $region24: #{model_forward.1} parent=19 // pred_fallthru
          _
        // Predicated region
        $region47: #{model_forward.1} parent=19 // pred_check
          %p2277 = pneg %p76
        $region48: #{model_forward.1} parent=19 // pred_check_branch
          %2279 = sbr.rel (%p2277) target = $region50
        $region49: #{model_forward.1} parent=19 // pred_region
          %s2280 = smul.u32 21, %s9
          %p2281 = scmp.lt.s32.totalorder %s2280, 167
          %s2282 = scalar_select %p2281, %s2280, 167
          %s2283 = scalar_lea.vmem %s2, %s2282
          %s2284 = smul.u32 21, %s9
        $region50: #{model_forward.1} parent=19 // pred_fallthru
          _
      $region20: #{model_forward.1} parent=5 // pred_fallthru
        _
      %p2285 = scmp.le.s32.totalorder 1, %s9
      %p2286 = scmp.lt.s32.totalorder %s9, 9
      %p2287 = pnand %p2285, %p2286
      %p2288 = pneg %p2287
      // Predicated region
      $region51: #{model_forward.1} parent=5 // pred_check
        _
      $region52: #{model_forward.1} parent=5 // pred_check_branch
        %2290 = sbr.rel (%p2287) target = $region54
      $region53: #{model_forward.1} parent=5 // pred_region
        %s2291 = ssub.s32 %s9, 1
        %s2292 = sand.u32 %s43, 1
        %s2293 = sand.u32 %s43, 1
        %s2294 = smul.addr %s2293, 8064
        %s2295 = scalar_lea.vmem [#allocation2], %s2294
        // Predicated region
        $region55: #{model_forward.1} parent=53 // pred_check
          %p2296 = pneg %p56
        $region56: #{model_forward.1} parent=53 // pred_check_branch
          %2298 = sbr.rel (%p2296) target = $region58
        $region57: #{model_forward.1} parent=53 // pred_region
          _
        $region58: #{model_forward.1} parent=53 // pred_fallthru
          _
        %p2299 = pneg %p30
        %p2300 = pneg %p27
        %s2301 = sand.u32 %s43, 1
        %s2302 = sand.u32 %s43, 1
        %s2303 = smul.addr %s2302, 8064
        %s2304 = scalar_lea.vmem [#allocation2], %s2303
        %p2305 = pneg %p56
        %p2306 = pneg %p53
        %s2307 = smul.u32 21, %s14
        %p2308 = scmp.lt.s32.totalorder %s2307, 167
        %s2309 = scalar_select %p2308, %s2307, 167
        %s2310 = scalar_lea.vmem %s2, %s2309
        %p2311 = pneg %p82
        %p2312 = pneg %p79
        %p2313 = pneg %p108
        %p2314 = pneg %p105
        %s2315 = smul.u32 21, %s14
        %p2316 = scmp.lt.s32.totalorder %s2315, 167
        %s2317 = scalar_select %p2316, %s2315, 167
        %s2318 = smul.addr %s2317, 2
        %s2319 = scalar_lea.vmem %s3, %s2318
        %s2320 = smul.u32 21, %s14
        %s2321 = smul.u32 21, %s14
        %p2322 = scmp.lt.s32.totalorder %s2321, 167
        %s2323 = scalar_select %p2322, %s2321, 167
        %s2324 = scalar_lea.vmem %s2, %s2323
        %s2325 = smul.u32 21, %s14
        %s2326 = smul.u32 21, %s14
        %p2327 = scmp.lt.s32.totalorder %s2326, 167
        %s2328 = scalar_select %p2327, %s2326, 167
        %s2329 = smul.addr %s2328, 2
        %s2330 = scalar_lea.vmem %s3, %s2329
        %s2331 = smul.u32 21, %s14
        %v2332 = vld [vmem:[%s0] sm:$0x3f]
        %v2333 = vld [vmem:[%s2295] sm:$0xff]
        %v2334 = vld [vmem:[%s2295 + $0x8] sm:$0xff]
        %v2335 = vld [vmem:[%s2295 + $0x10] sm:$0xff]
        %v2336 = vld [vmem:[%s2295 + $0x18] sm:$0xff]
        %v2337 = vld [vmem:[%s2295 + $0x20] sm:$0xff]
        %v2338 = vld [vmem:[%s2295 + $0x28] sm:$0xff]
        %v2339 = vld [vmem:[%s2295 + $0x30] sm:$0xff]
        %v2340 = vld [vmem:[%s2295 + $0x38] sm:$0xff]
        %v2341 = vld [vmem:[%s2295 + $0x40] sm:$0xff]
        %v2342 = vld [vmem:[%s2295 + $0x48] sm:$0xff]
        %v2343 = vld [vmem:[%s2295 + $0x50] sm:$0xf]
        %v2344 = vld [vmem:[%s2295 + $0x54] sm:$0xff]
        %v2345 = vld [vmem:[%s2295 + $0x5c] sm:$0xff]
        %v2346 = vld [vmem:[%s2295 + $0x64] sm:$0xff]
        %v2347 = vld [vmem:[%s2295 + $0x6c] sm:$0xff]
        %v2348 = vld [vmem:[%s2295 + $0x74] sm:$0xff]
        %v2349 = vld [vmem:[%s2295 + $0x7c] sm:$0xff]
        %v2350 = vld [vmem:[%s2295 + $0x84] sm:$0xff]
        %v2351 = vld [vmem:[%s2295 + $0x8c] sm:$0xff]
        %v2352 = vld [vmem:[%s2295 + $0x94] sm:$0xff]
        %v2353 = vld [vmem:[%s2295 + $0x9c] sm:$0xff]
        %v2354 = vld [vmem:[%s2295 + $0xa4] sm:$0xf]
        %v2355 = vld [vmem:[%s2295 + $0xa8] sm:$0xff]
        %v2356 = vld [vmem:[%s2295 + $0xb0] sm:$0xff]
        %v2357 = vld [vmem:[%s2295 + $0xb8] sm:$0xff]
        %v2358 = vld [vmem:[%s2295 + $0xc0] sm:$0xff]
        %v2359 = vld [vmem:[%s2295 + $0xc8] sm:$0xff]
        %v2360 = vld [vmem:[%s2295 + $0xd0] sm:$0xff]
        %v2361 = vld [vmem:[%s2295 + $0xd8] sm:$0xff]
        %v2362 = vld [vmem:[%s2295 + $0xe0] sm:$0xff]
        %v2363 = vld [vmem:[%s2295 + $0xe8] sm:$0xff]
        %v2364 = vld [vmem:[%s2295 + $0xf0] sm:$0xff]
        %v2365 = vld [vmem:[%s2295 + $0xf8] sm:$0xf]
        %v2366 = vld [vmem:[%s2295 + $0xfc] sm:$0xff]
        %v2367 = vld [vmem:[%s2295 + $0x104] sm:$0xff]
        %v2368 = vld [vmem:[%s2295 + $0x10c] sm:$0xff]
        %v2369 = vld [vmem:[%s2295 + $0x114] sm:$0xff]
        %v2370 = vld [vmem:[%s2295 + $0x11c] sm:$0xff]
        %v2371 = vld [vmem:[%s2295 + $0x124] sm:$0xff]
        %v2372 = vld [vmem:[%s2295 + $0x12c] sm:$0xff]
        %v2373 = vld [vmem:[%s2295 + $0x134] sm:$0xff]
        %v2374 = vld [vmem:[%s2295 + $0x13c] sm:$0xff]
        %v2375 = vld [vmem:[%s2295 + $0x144] sm:$0xff]
        %v2376 = vld [vmem:[%s2295 + $0x14c] sm:$0xf]
        %v2377 = vld [vmem:[%s2295 + $0x150] sm:$0xff]
        %v2378 = vld [vmem:[%s2295 + $0x158] sm:$0xff]
        %v2379 = vld [vmem:[%s2295 + $0x160] sm:$0xff]
        %v2380 = vld [vmem:[%s2295 + $0x168] sm:$0xff]
        %v2381 = vld [vmem:[%s2295 + $0x170] sm:$0xff]
        %v2382 = vld [vmem:[%s2295 + $0x178] sm:$0xff]
        %v2383 = vld [vmem:[%s2295 + $0x180] sm:$0xff]
        %v2384 = vld [vmem:[%s2295 + $0x188] sm:$0xff]
        %v2385 = vld [vmem:[%s2295 + $0x190] sm:$0xff]
        %v2386 = vld [vmem:[%s2295 + $0x198] sm:$0xff]
        %v2387 = vld [vmem:[%s2295 + $0x1a0] sm:$0xf]
        %v2388 = vld [vmem:[%s2295 + $0x1a4] sm:$0xff]
        %v2389 = vld [vmem:[%s2295 + $0x1ac] sm:$0xff]
        %v2390 = vld [vmem:[%s2295 + $0x1b4] sm:$0xff]
        %v2391 = vld [vmem:[%s2295 + $0x1bc] sm:$0xff]
        %v2392 = vld [vmem:[%s2295 + $0x1c4] sm:$0xff]
        %v2393 = vld [vmem:[%s2295 + $0x1cc] sm:$0xff]
        %v2394 = vld [vmem:[%s2295 + $0x1d4] sm:$0xff]
        %v2395 = vld [vmem:[%s2295 + $0x1dc] sm:$0xff]
        %v2396 = vld [vmem:[%s2295 + $0x1e4] sm:$0xff]
        %v2397 = vld [vmem:[%s2295 + $0x1ec] sm:$0xff]
        %v2398 = vld [vmem:[%s2295 + $0x1f4] sm:$0xf]
        %v2399 = vld [vmem:[%s2295 + $0x1f8] sm:$0xff]
        %v2400 = vld [vmem:[%s2295 + $0x200] sm:$0xff]
        %v2401 = vld [vmem:[%s2295 + $0x208] sm:$0xff]
        %v2402 = vld [vmem:[%s2295 + $0x210] sm:$0xff]
        %v2403 = vld [vmem:[%s2295 + $0x218] sm:$0xff]
        %v2404 = vld [vmem:[%s2295 + $0x220] sm:$0xff]
        %v2405 = vld [vmem:[%s2295 + $0x228] sm:$0xff]
        %v2406 = vld [vmem:[%s2295 + $0x230] sm:$0xff]
        %v2407 = vld [vmem:[%s2295 + $0x238] sm:$0xff]
        %v2408 = vld [vmem:[%s2295 + $0x240] sm:$0xff]
        %v2409 = vld [vmem:[%s2295 + $0x248] sm:$0xf]
        %v2410 = vld [vmem:[%s2295 + $0x24c] sm:$0xff]
        %v2411 = vld [vmem:[%s2295 + $0x254] sm:$0xff]
        %v2412 = vld [vmem:[%s2295 + $0x25c] sm:$0xff]
        %v2413 = vld [vmem:[%s2295 + $0x264] sm:$0xff]
        %v2414 = vld [vmem:[%s2295 + $0x26c] sm:$0xff]
        %v2415 = vld [vmem:[%s2295 + $0x274] sm:$0xff]
        %v2416 = vld [vmem:[%s2295 + $0x27c] sm:$0xff]
        %v2417 = vld [vmem:[%s2295 + $0x284] sm:$0xff]
        %v2418 = vld [vmem:[%s2295 + $0x28c] sm:$0xff]
        %v2419 = vld [vmem:[%s2295 + $0x294] sm:$0xff]
        %v2420 = vld [vmem:[%s2295 + $0x29c] sm:$0xf]
        %v2421 = vld [vmem:[%s2295 + $0x2a0] sm:$0xff]
        %v2422 = vld [vmem:[%s2295 + $0x2a8] sm:$0xff]
        %v2423 = vld [vmem:[%s2295 + $0x2b0] sm:$0xff]
        %v2424 = vld [vmem:[%s2295 + $0x2b8] sm:$0xff]
        %v2425 = vld [vmem:[%s2295 + $0x2c0] sm:$0xff]
        %v2426 = vld [vmem:[%s2295 + $0x2c8] sm:$0xff]
        %v2427 = vld [vmem:[%s2295 + $0x2d0] sm:$0xff]
        %v2428 = vld [vmem:[%s2295 + $0x2d8] sm:$0xff]
        %v2429 = vld [vmem:[%s2295 + $0x2e0] sm:$0xff]
        %v2430 = vld [vmem:[%s2295 + $0x2e8] sm:$0xff]
        %v2431 = vld [vmem:[%s2295 + $0x2f0] sm:$0xf]
        %v2432 = vld [vmem:[%s2295 + $0x2f4] sm:$0xff]
        %v2433 = vld [vmem:[%s2295 + $0x2fc] sm:$0xff]
        %v2434 = vld [vmem:[%s2295 + $0x304] sm:$0xff]
        %v2435 = vld [vmem:[%s2295 + $0x30c] sm:$0xff]
        %v2436 = vld [vmem:[%s2295 + $0x314] sm:$0xff]
        %v2437 = vld [vmem:[%s2295 + $0x31c] sm:$0xff]
        %v2438 = vld [vmem:[%s2295 + $0x324] sm:$0xff]
        %v2439 = vld [vmem:[%s2295 + $0x32c] sm:$0xff]
        %v2440 = vld [vmem:[%s2295 + $0x334] sm:$0xff]
        %v2441 = vld [vmem:[%s2295 + $0x33c] sm:$0xff]
        %v2442 = vld [vmem:[%s2295 + $0x344] sm:$0xf]
        %v2443 = vld [vmem:[%s2295 + $0x348] sm:$0xff]
        %v2444 = vld [vmem:[%s2295 + $0x350] sm:$0xff]
        %v2445 = vld [vmem:[%s2295 + $0x358] sm:$0xff]
        %v2446 = vld [vmem:[%s2295 + $0x360] sm:$0xff]
        %v2447 = vld [vmem:[%s2295 + $0x368] sm:$0xff]
        %v2448 = vld [vmem:[%s2295 + $0x370] sm:$0xff]
        %v2449 = vld [vmem:[%s2295 + $0x378] sm:$0xff]
        %v2450 = vld [vmem:[%s2295 + $0x380] sm:$0xff]
        %v2451 = vld [vmem:[%s2295 + $0x388] sm:$0xff]
        %v2452 = vld [vmem:[%s2295 + $0x390] sm:$0xff]
        %v2453 = vld [vmem:[%s2295 + $0x398] sm:$0xf]
        %v2454 = vld [vmem:[%s2295 + $0x39c] sm:$0xff]
        %v2455 = vld [vmem:[%s2295 + $0x3a4] sm:$0xff]
        %v2456 = vld [vmem:[%s2295 + $0x3ac] sm:$0xff]
        %v2457 = vld [vmem:[%s2295 + $0x3b4] sm:$0xff]
        %v2458 = vld [vmem:[%s2295 + $0x3bc] sm:$0xff]
        %v2459 = vld [vmem:[%s2295 + $0x3c4] sm:$0xff]
        %v2460 = vld [vmem:[%s2295 + $0x3cc] sm:$0xff]
        %v2461 = vld [vmem:[%s2295 + $0x3d4] sm:$0xff]
        %v2462 = vld [vmem:[%s2295 + $0x3dc] sm:$0xff]
        %v2463 = vld [vmem:[%s2295 + $0x3e4] sm:$0xff]
        %v2464 = vld [vmem:[%s2295 + $0x3ec] sm:$0xf]
        %v2465 = vld [vmem:[%s2295 + $0x3f0] sm:$0xff]
        %v2466 = vld [vmem:[%s2295 + $0x3f8] sm:$0xff]
        %v2467 = vld [vmem:[%s2295 + $0x400] sm:$0xff]
        %v2468 = vld [vmem:[%s2295 + $0x408] sm:$0xff]
        %v2469 = vld [vmem:[%s2295 + $0x410] sm:$0xff]
        %v2470 = vld [vmem:[%s2295 + $0x418] sm:$0xff]
        %v2471 = vld [vmem:[%s2295 + $0x420] sm:$0xff]
        %v2472 = vld [vmem:[%s2295 + $0x428] sm:$0xff]
        %v2473 = vld [vmem:[%s2295 + $0x430] sm:$0xff]
        %v2474 = vld [vmem:[%s2295 + $0x438] sm:$0xff]
        %v2475 = vld [vmem:[%s2295 + $0x440] sm:$0xf]
        %v2476 = vld [vmem:[%s2295 + $0x444] sm:$0xff]
        %v2477 = vld [vmem:[%s2295 + $0x44c] sm:$0xff]
        %v2478 = vld [vmem:[%s2295 + $0x454] sm:$0xff]
        %v2479 = vld [vmem:[%s2295 + $0x45c] sm:$0xff]
        %v2480 = vld [vmem:[%s2295 + $0x464] sm:$0xff]
        %v2481 = vld [vmem:[%s2295 + $0x46c] sm:$0xff]
        %v2482 = vld [vmem:[%s2295 + $0x474] sm:$0xff]
        %v2483 = vld [vmem:[%s2295 + $0x47c] sm:$0xff]
        %v2484 = vld [vmem:[%s2295 + $0x484] sm:$0xff]
        %v2485 = vld [vmem:[%s2295 + $0x48c] sm:$0xff]
        %v2486 = vld [vmem:[%s2295 + $0x494] sm:$0xf]
        %v2487 = vld [vmem:[%s2295 + $0x498] sm:$0xff]
        %v2488 = vld [vmem:[%s2295 + $0x4a0] sm:$0xff]
        %v2489 = vld [vmem:[%s2295 + $0x4a8] sm:$0xff]
        %v2490 = vld [vmem:[%s2295 + $0x4b0] sm:$0xff]
        %v2491 = vld [vmem:[%s2295 + $0x4b8] sm:$0xff]
        %v2492 = vld [vmem:[%s2295 + $0x4c0] sm:$0xff]
        %v2493 = vld [vmem:[%s2295 + $0x4c8] sm:$0xff]
        %v2494 = vld [vmem:[%s2295 + $0x4d0] sm:$0xff]
        %v2495 = vld [vmem:[%s2295 + $0x4d8] sm:$0xff]
        %v2496 = vld [vmem:[%s2295 + $0x4e0] sm:$0xff]
        %v2497 = vld [vmem:[%s2295 + $0x4e8] sm:$0xf]
        %v2498 = vld [vmem:[%s2295 + $0x4ec] sm:$0xff]
        %v2499 = vld [vmem:[%s2295 + $0x4f4] sm:$0xff]
        %v2500 = vld [vmem:[%s2295 + $0x4fc] sm:$0xff]
        %v2501 = vld [vmem:[%s2295 + $0x504] sm:$0xff]
        %v2502 = vld [vmem:[%s2295 + $0x50c] sm:$0xff]
        %v2503 = vld [vmem:[%s2295 + $0x514] sm:$0xff]
        %v2504 = vld [vmem:[%s2295 + $0x51c] sm:$0xff]
        %v2505 = vld [vmem:[%s2295 + $0x524] sm:$0xff]
        %v2506 = vld [vmem:[%s2295 + $0x52c] sm:$0xff]
        %v2507 = vld [vmem:[%s2295 + $0x534] sm:$0xff]
        %v2508 = vld [vmem:[%s2295 + $0x53c] sm:$0xf]
        %v2509 = vld [vmem:[%s2295 + $0x540] sm:$0xff]
        %v2510 = vld [vmem:[%s2295 + $0x548] sm:$0xff]
        %v2511 = vld [vmem:[%s2295 + $0x550] sm:$0xff]
        %v2512 = vld [vmem:[%s2295 + $0x558] sm:$0xff]
        %v2513 = vld [vmem:[%s2295 + $0x560] sm:$0xff]
        %v2514 = vld [vmem:[%s2295 + $0x568] sm:$0xff]
        %v2515 = vld [vmem:[%s2295 + $0x570] sm:$0xff]
        %v2516 = vld [vmem:[%s2295 + $0x578] sm:$0xff]
        %v2517 = vld [vmem:[%s2295 + $0x580] sm:$0xff]
        %v2518 = vld [vmem:[%s2295 + $0x588] sm:$0xff]
        %v2519 = vld [vmem:[%s2295 + $0x590] sm:$0xf]
        %v2520 = vld [vmem:[%s2295 + $0x594] sm:$0xff]
        %v2521 = vld [vmem:[%s2295 + $0x59c] sm:$0xff]
        %v2522 = vld [vmem:[%s2295 + $0x5a4] sm:$0xff]
        %v2523 = vld [vmem:[%s2295 + $0x5ac] sm:$0xff]
        %v2524 = vld [vmem:[%s2295 + $0x5b4] sm:$0xff]
        %v2525 = vld [vmem:[%s2295 + $0x5bc] sm:$0xff]
        %v2526 = vld [vmem:[%s2295 + $0x5c4] sm:$0xff]
        %v2527 = vld [vmem:[%s2295 + $0x5cc] sm:$0xff]
        %v2528 = vld [vmem:[%s2295 + $0x5d4] sm:$0xff]
        %v2529 = vld [vmem:[%s2295 + $0x5dc] sm:$0xff]
        %v2530 = vld [vmem:[%s2295 + $0x5e4] sm:$0xf]
        %v2531 = vld [vmem:[%s2295 + $0x5e8] sm:$0xff]
        %v2532 = vld [vmem:[%s2295 + $0x5f0] sm:$0xff]
        %v2533 = vld [vmem:[%s2295 + $0x5f8] sm:$0xff]
        %v2534 = vld [vmem:[%s2295 + $0x600] sm:$0xff]
        %v2535 = vld [vmem:[%s2295 + $0x608] sm:$0xff]
        %v2536 = vld [vmem:[%s2295 + $0x610] sm:$0xff]
        %v2537 = vld [vmem:[%s2295 + $0x618] sm:$0xff]
        %v2538 = vld [vmem:[%s2295 + $0x620] sm:$0xff]
        %v2539 = vld [vmem:[%s2295 + $0x628] sm:$0xff]
        %v2540 = vld [vmem:[%s2295 + $0x630] sm:$0xff]
        %v2541 = vld [vmem:[%s2295 + $0x638] sm:$0xf]
        %v2542 = vld [vmem:[%s2295 + $0x63c] sm:$0xff]
        %v2543 = vld [vmem:[%s2295 + $0x644] sm:$0xff]
        %v2544 = vld [vmem:[%s2295 + $0x64c] sm:$0xff]
        %v2545 = vld [vmem:[%s2295 + $0x654] sm:$0xff]
        %v2546 = vld [vmem:[%s2295 + $0x65c] sm:$0xff]
        %v2547 = vld [vmem:[%s2295 + $0x664] sm:$0xff]
        %v2548 = vld [vmem:[%s2295 + $0x66c] sm:$0xff]
        %v2549 = vld [vmem:[%s2295 + $0x674] sm:$0xff]
        %v2550 = vld [vmem:[%s2295 + $0x67c] sm:$0xff]
        %v2551 = vld [vmem:[%s2295 + $0x684] sm:$0xff]
        %v2552 = vld [vmem:[%s2295 + $0x68c] sm:$0xf]
        %v2553 = vld [vmem:[%s2295 + $0x690] sm:$0xff]
        %v2554 = vld [vmem:[%s2295 + $0x698] sm:$0xff]
        %v2555 = vld [vmem:[%s2295 + $0x6a0] sm:$0xff]
        %v2556 = vld [vmem:[%s2295 + $0x6a8] sm:$0xff]
        %v2557 = vld [vmem:[%s2295 + $0x6b0] sm:$0xff]
        %v2558 = vld [vmem:[%s2295 + $0x6b8] sm:$0xff]
        %v2559 = vld [vmem:[%s2295 + $0x6c0] sm:$0xff]
        %v2560 = vld [vmem:[%s2295 + $0x6c8] sm:$0xff]
        %v2561 = vld [vmem:[%s2295 + $0x6d0] sm:$0xff]
        %v2562 = vld [vmem:[%s2295 + $0x6d8] sm:$0xff]
        %v2563 = vld [vmem:[%s2295 + $0x6e0] sm:$0xf]
        %v2564 = vld [vmem:[%s2295 + $0x6e4] sm:$0xff]
        %v2565 = vld [vmem:[%s2295 + $0x6ec] sm:$0xff]
        %v2566 = vld [vmem:[%s2295 + $0x6f4] sm:$0xff]
        %v2567 = vld [vmem:[%s2295 + $0x6fc] sm:$0xff]
        %v2568 = vld [vmem:[%s2295 + $0x704] sm:$0xff]
        %v2569 = vld [vmem:[%s2295 + $0x70c] sm:$0xff]
        %v2570 = vld [vmem:[%s2295 + $0x714] sm:$0xff]
        %v2571 = vld [vmem:[%s2295 + $0x71c] sm:$0xff]
        %v2572 = vld [vmem:[%s2295 + $0x724] sm:$0xff]
        %v2573 = vld [vmem:[%s2295 + $0x72c] sm:$0xff]
        %v2574 = vld [vmem:[%s2295 + $0x734] sm:$0xf]
        %v2575 = vld [vmem:[%s2295 + $0x738] sm:$0xff]
        %v2576 = vld [vmem:[%s2295 + $0x740] sm:$0xff]
        %v2577 = vld [vmem:[%s2295 + $0x748] sm:$0xff]
        %v2578 = vld [vmem:[%s2295 + $0x750] sm:$0xff]
        %v2579 = vld [vmem:[%s2295 + $0x758] sm:$0xff]
        %v2580 = vld [vmem:[%s2295 + $0x760] sm:$0xff]
        %v2581 = vld [vmem:[%s2295 + $0x768] sm:$0xff]
        %v2582 = vld [vmem:[%s2295 + $0x770] sm:$0xff]
        %v2583 = vld [vmem:[%s2295 + $0x778] sm:$0xff]
        %v2584 = vld [vmem:[%s2295 + $0x780] sm:$0xff]
        %v2585 = vld [vmem:[%s2295 + $0x788] sm:$0xf]
        %v2586 = vld [vmem:[%s2295 + $0x78c] sm:$0xff]
        %v2587 = vld [vmem:[%s2295 + $0x794] sm:$0xff]
        %v2588 = vld [vmem:[%s2295 + $0x79c] sm:$0xff]
        %v2589 = vld [vmem:[%s2295 + $0x7a4] sm:$0xff]
        %v2590 = vld [vmem:[%s2295 + $0x7ac] sm:$0xff]
        %v2591 = vld [vmem:[%s2295 + $0x7b4] sm:$0xff]
        %v2592 = vld [vmem:[%s2295 + $0x7bc] sm:$0xff]
        %v2593 = vld [vmem:[%s2295 + $0x7c4] sm:$0xff]
        %v2594 = vld [vmem:[%s2295 + $0x7cc] sm:$0xff]
        %v2595 = vld [vmem:[%s2295 + $0x7d4] sm:$0xff]
        %v2596 = vld [vmem:[%s2295 + $0x7dc] sm:$0xf]
        %v2597 = vld [vmem:[%s2295 + $0x7e0] sm:$0xff]
        %v2598 = vld [vmem:[%s2295 + $0x7e8] sm:$0xff]
        %v2599 = vld [vmem:[%s2295 + $0x7f0] sm:$0xff]
        %v2600 = vld [vmem:[%s2295 + $0x7f8] sm:$0xff]
        %v2601 = vld [vmem:[%s2295 + $0x800] sm:$0xff]
        %v2602 = vld [vmem:[%s2295 + $0x808] sm:$0xff]
        %v2603 = vld [vmem:[%s2295 + $0x810] sm:$0xff]
        %v2604 = vld [vmem:[%s2295 + $0x818] sm:$0xff]
        %v2605 = vld [vmem:[%s2295 + $0x820] sm:$0xff]
        %v2606 = vld [vmem:[%s2295 + $0x828] sm:$0xff]
        %v2607 = vld [vmem:[%s2295 + $0x830] sm:$0xf]
        %v2608 = vld [vmem:[%s2295 + $0x834] sm:$0xff]
        %v2609 = vld [vmem:[%s2295 + $0x83c] sm:$0xff]
        %v2610 = vld [vmem:[%s2295 + $0x844] sm:$0xff]
        %v2611 = vld [vmem:[%s2295 + $0x84c] sm:$0xff]
        %v2612 = vld [vmem:[%s2295 + $0x854] sm:$0xff]
        %v2613 = vld [vmem:[%s2295 + $0x85c] sm:$0xff]
        %v2614 = vld [vmem:[%s2295 + $0x864] sm:$0xff]
        %v2615 = vld [vmem:[%s2295 + $0x86c] sm:$0xff]
        %v2616 = vld [vmem:[%s2295 + $0x874] sm:$0xff]
        %v2617 = vld [vmem:[%s2295 + $0x87c] sm:$0xff]
        %v2618 = vld [vmem:[%s2295 + $0x884] sm:$0xf]
        %v2619 = vld [vmem:[%s2295 + $0x888] sm:$0xff]
        %v2620 = vld [vmem:[%s2295 + $0x890] sm:$0xff]
        %v2621 = vld [vmem:[%s2295 + $0x898] sm:$0xff]
        %v2622 = vld [vmem:[%s2295 + $0x8a0] sm:$0xff]
        %v2623 = vld [vmem:[%s2295 + $0x8a8] sm:$0xff]
        %v2624 = vld [vmem:[%s2295 + $0x8b0] sm:$0xff]
        %v2625 = vld [vmem:[%s2295 + $0x8b8] sm:$0xff]
        %v2626 = vld [vmem:[%s2295 + $0x8c0] sm:$0xff]
        %v2627 = vld [vmem:[%s2295 + $0x8c8] sm:$0xff]
        %v2628 = vld [vmem:[%s2295 + $0x8d0] sm:$0xff]
        %v2629 = vld [vmem:[%s2295 + $0x8d8] sm:$0xf]
        %v2630 = vld [vmem:[%s2295 + $0x8dc] sm:$0xff]
        %v2631 = vld [vmem:[%s2295 + $0x8e4] sm:$0xff]
        %v2632 = vld [vmem:[%s2295 + $0x8ec] sm:$0xff]
        %v2633 = vld [vmem:[%s2295 + $0x8f4] sm:$0xff]
        %v2634 = vld [vmem:[%s2295 + $0x8fc] sm:$0xff]
        %v2635 = vld [vmem:[%s2295 + $0x904] sm:$0xff]
        %v2636 = vld [vmem:[%s2295 + $0x90c] sm:$0xff]
        %v2637 = vld [vmem:[%s2295 + $0x914] sm:$0xff]
        %v2638 = vld [vmem:[%s2295 + $0x91c] sm:$0xff]
        %v2639 = vld [vmem:[%s2295 + $0x924] sm:$0xff]
        %v2640 = vld [vmem:[%s2295 + $0x92c] sm:$0xf]
        %v2641 = vld [vmem:[%s2295 + $0x930] sm:$0xff]
        %v2642 = vld [vmem:[%s2295 + $0x938] sm:$0xff]
        %v2643 = vld [vmem:[%s2295 + $0x940] sm:$0xff]
        %v2644 = vld [vmem:[%s2295 + $0x948] sm:$0xff]
        %v2645 = vld [vmem:[%s2295 + $0x950] sm:$0xff]
        %v2646 = vld [vmem:[%s2295 + $0x958] sm:$0xff]
        %v2647 = vld [vmem:[%s2295 + $0x960] sm:$0xff]
        %v2648 = vld [vmem:[%s2295 + $0x968] sm:$0xff]
        %v2649 = vld [vmem:[%s2295 + $0x970] sm:$0xff]
        %v2650 = vld [vmem:[%s2295 + $0x978] sm:$0xff]
        %v2651 = vld [vmem:[%s2295 + $0x980] sm:$0xf]
        %v2652 = vld [vmem:[%s2295 + $0x984] sm:$0xff]
        %v2653 = vld [vmem:[%s2295 + $0x98c] sm:$0xff]
        %v2654 = vld [vmem:[%s2295 + $0x994] sm:$0xff]
        %v2655 = vld [vmem:[%s2295 + $0x99c] sm:$0xff]
        %v2656 = vld [vmem:[%s2295 + $0x9a4] sm:$0xff]
        %v2657 = vld [vmem:[%s2295 + $0x9ac] sm:$0xff]
        %v2658 = vld [vmem:[%s2295 + $0x9b4] sm:$0xff]
        %v2659 = vld [vmem:[%s2295 + $0x9bc] sm:$0xff]
        %v2660 = vld [vmem:[%s2295 + $0x9c4] sm:$0xff]
        %v2661 = vld [vmem:[%s2295 + $0x9cc] sm:$0xff]
        %v2662 = vld [vmem:[%s2295 + $0x9d4] sm:$0xf]
        %v2663 = vld [vmem:[%s2295 + $0x9d8] sm:$0xff]
        %v2664 = vld [vmem:[%s2295 + $0x9e0] sm:$0xff]
        %v2665 = vld [vmem:[%s2295 + $0x9e8] sm:$0xff]
        %v2666 = vld [vmem:[%s2295 + $0x9f0] sm:$0xff]
        %v2667 = vld [vmem:[%s2295 + $0x9f8] sm:$0xff]
        %v2668 = vld [vmem:[%s2295 + $0xa00] sm:$0xff]
        %v2669 = vld [vmem:[%s2295 + $0xa08] sm:$0xff]
        %v2670 = vld [vmem:[%s2295 + $0xa10] sm:$0xff]
        %v2671 = vld [vmem:[%s2295 + $0xa18] sm:$0xff]
        %v2672 = vld [vmem:[%s2295 + $0xa20] sm:$0xff]
        %v2673 = vld [vmem:[%s2295 + $0xa28] sm:$0xf]
        %v2674 = vld [vmem:[%s2295 + $0xa2c] sm:$0xff]
        %v2675 = vld [vmem:[%s2295 + $0xa34] sm:$0xff]
        %v2676 = vld [vmem:[%s2295 + $0xa3c] sm:$0xff]
        %v2677 = vld [vmem:[%s2295 + $0xa44] sm:$0xff]
        %v2678 = vld [vmem:[%s2295 + $0xa4c] sm:$0xff]
        %v2679 = vld [vmem:[%s2295 + $0xa54] sm:$0xff]
        %v2680 = vld [vmem:[%s2295 + $0xa5c] sm:$0xff]
        %v2681 = vld [vmem:[%s2295 + $0xa64] sm:$0xff]
        %v2682 = vld [vmem:[%s2295 + $0xa6c] sm:$0xff]
        %v2683 = vld [vmem:[%s2295 + $0xa74] sm:$0xff]
        %v2684 = vld [vmem:[%s2295 + $0xa7c] sm:$0xf]
        %v2685 = vld [vmem:[%s2295 + $0xa80] sm:$0xff]
        %v2686 = vld [vmem:[%s2295 + $0xa88] sm:$0xff]
        %v2687 = vld [vmem:[%s2295 + $0xa90] sm:$0xff]
        %v2688 = vld [vmem:[%s2295 + $0xa98] sm:$0xff]
        %v2689 = vld [vmem:[%s2295 + $0xaa0] sm:$0xff]
        %v2690 = vld [vmem:[%s2295 + $0xaa8] sm:$0xff]
        %v2691 = vld [vmem:[%s2295 + $0xab0] sm:$0xff]
        %v2692 = vld [vmem:[%s2295 + $0xab8] sm:$0xff]
        %v2693 = vld [vmem:[%s2295 + $0xac0] sm:$0xff]
        %v2694 = vld [vmem:[%s2295 + $0xac8] sm:$0xff]
        %v2695 = vld [vmem:[%s2295 + $0xad0] sm:$0xf]
        %v2696 = vld [vmem:[%s2295 + $0xad4] sm:$0xff]
        %v2697 = vld [vmem:[%s2295 + $0xadc] sm:$0xff]
        %v2698 = vld [vmem:[%s2295 + $0xae4] sm:$0xff]
        %v2699 = vld [vmem:[%s2295 + $0xaec] sm:$0xff]
        %v2700 = vld [vmem:[%s2295 + $0xaf4] sm:$0xff]
        %v2701 = vld [vmem:[%s2295 + $0xafc] sm:$0xff]
        %v2702 = vld [vmem:[%s2295 + $0xb04] sm:$0xff]
        %v2703 = vld [vmem:[%s2295 + $0xb0c] sm:$0xff]
        %v2704 = vld [vmem:[%s2295 + $0xb14] sm:$0xff]
        %v2705 = vld [vmem:[%s2295 + $0xb1c] sm:$0xff]
        %v2706 = vld [vmem:[%s2295 + $0xb24] sm:$0xf]
        %v2707 = vld [vmem:[%s2295 + $0xb28] sm:$0xff]
        %v2708 = vld [vmem:[%s2295 + $0xb30] sm:$0xff]
        %v2709 = vld [vmem:[%s2295 + $0xb38] sm:$0xff]
        %v2710 = vld [vmem:[%s2295 + $0xb40] sm:$0xff]
        %v2711 = vld [vmem:[%s2295 + $0xb48] sm:$0xff]
        %v2712 = vld [vmem:[%s2295 + $0xb50] sm:$0xff]
        %v2713 = vld [vmem:[%s2295 + $0xb58] sm:$0xff]
        %v2714 = vld [vmem:[%s2295 + $0xb60] sm:$0xff]
        %v2715 = vld [vmem:[%s2295 + $0xb68] sm:$0xff]
        %v2716 = vld [vmem:[%s2295 + $0xb70] sm:$0xff]
        %v2717 = vld [vmem:[%s2295 + $0xb78] sm:$0xf]
        %v2718 = vld [vmem:[%s2295 + $0xb7c] sm:$0xff]
        %v2719 = vld [vmem:[%s2295 + $0xb84] sm:$0xff]
        %v2720 = vld [vmem:[%s2295 + $0xb8c] sm:$0xff]
        %v2721 = vld [vmem:[%s2295 + $0xb94] sm:$0xff]
        %v2722 = vld [vmem:[%s2295 + $0xb9c] sm:$0xff]
        %v2723 = vld [vmem:[%s2295 + $0xba4] sm:$0xff]
        %v2724 = vld [vmem:[%s2295 + $0xbac] sm:$0xff]
        %v2725 = vld [vmem:[%s2295 + $0xbb4] sm:$0xff]
        %v2726 = vld [vmem:[%s2295 + $0xbbc] sm:$0xff]
        %v2727 = vld [vmem:[%s2295 + $0xbc4] sm:$0xff]
        %v2728 = vld [vmem:[%s2295 + $0xbcc] sm:$0xf]
        %v2729 = vld [vmem:[%s2295 + $0xbd0] sm:$0xff]
        %v2730 = vld [vmem:[%s2295 + $0xbd8] sm:$0xff]
        %v2731 = vld [vmem:[%s2295 + $0xbe0] sm:$0xff]
        %v2732 = vld [vmem:[%s2295 + $0xbe8] sm:$0xff]
        %v2733 = vld [vmem:[%s2295 + $0xbf0] sm:$0xff]
        %v2734 = vld [vmem:[%s2295 + $0xbf8] sm:$0xff]
        %v2735 = vld [vmem:[%s2295 + $0xc00] sm:$0xff]
        %v2736 = vld [vmem:[%s2295 + $0xc08] sm:$0xff]
        %v2737 = vld [vmem:[%s2295 + $0xc10] sm:$0xff]
        %v2738 = vld [vmem:[%s2295 + $0xc18] sm:$0xff]
        %v2739 = vld [vmem:[%s2295 + $0xc20] sm:$0xf]
        %v2740 = vld [vmem:[%s2295 + $0xc24] sm:$0xff]
        %v2741 = vld [vmem:[%s2295 + $0xc2c] sm:$0xff]
        %v2742 = vld [vmem:[%s2295 + $0xc34] sm:$0xff]
        %v2743 = vld [vmem:[%s2295 + $0xc3c] sm:$0xff]
        %v2744 = vld [vmem:[%s2295 + $0xc44] sm:$0xff]
        %v2745 = vld [vmem:[%s2295 + $0xc4c] sm:$0xff]
        %v2746 = vld [vmem:[%s2295 + $0xc54] sm:$0xff]
        %v2747 = vld [vmem:[%s2295 + $0xc5c] sm:$0xff]
        %v2748 = vld [vmem:[%s2295 + $0xc64] sm:$0xff]
        %v2749 = vld [vmem:[%s2295 + $0xc6c] sm:$0xff]
        %v2750 = vld [vmem:[%s2295 + $0xc74] sm:$0xf]
        %v2751 = vld [vmem:[%s2295 + $0xc78] sm:$0xff]
        %v2752 = vld [vmem:[%s2295 + $0xc80] sm:$0xff]
        %v2753 = vld [vmem:[%s2295 + $0xc88] sm:$0xff]
        %v2754 = vld [vmem:[%s2295 + $0xc90] sm:$0xff]
        %v2755 = vld [vmem:[%s2295 + $0xc98] sm:$0xff]
        %v2756 = vld [vmem:[%s2295 + $0xca0] sm:$0xff]
        %v2757 = vld [vmem:[%s2295 + $0xca8] sm:$0xff]
        %v2758 = vld [vmem:[%s2295 + $0xcb0] sm:$0xff]
        %v2759 = vld [vmem:[%s2295 + $0xcb8] sm:$0xff]
        %v2760 = vld [vmem:[%s2295 + $0xcc0] sm:$0xff]
        %v2761 = vld [vmem:[%s2295 + $0xcc8] sm:$0xf]
        %v2762 = vld [vmem:[%s2295 + $0xccc] sm:$0xff]
        %v2763 = vld [vmem:[%s2295 + $0xcd4] sm:$0xff]
        %v2764 = vld [vmem:[%s2295 + $0xcdc] sm:$0xff]
        %v2765 = vld [vmem:[%s2295 + $0xce4] sm:$0xff]
        %v2766 = vld [vmem:[%s2295 + $0xcec] sm:$0xff]
        %v2767 = vld [vmem:[%s2295 + $0xcf4] sm:$0xff]
        %v2768 = vld [vmem:[%s2295 + $0xcfc] sm:$0xff]
        %v2769 = vld [vmem:[%s2295 + $0xd04] sm:$0xff]
        %v2770 = vld [vmem:[%s2295 + $0xd0c] sm:$0xff]
        %v2771 = vld [vmem:[%s2295 + $0xd14] sm:$0xff]
        %v2772 = vld [vmem:[%s2295 + $0xd1c] sm:$0xf]
        %v2773 = vld [vmem:[%s2295 + $0xd20] sm:$0xff]
        %v2774 = vld [vmem:[%s2295 + $0xd28] sm:$0xff]
        %v2775 = vld [vmem:[%s2295 + $0xd30] sm:$0xff]
        %v2776 = vld [vmem:[%s2295 + $0xd38] sm:$0xff]
        %v2777 = vld [vmem:[%s2295 + $0xd40] sm:$0xff]
        %v2778 = vld [vmem:[%s2295 + $0xd48] sm:$0xff]
        %v2779 = vld [vmem:[%s2295 + $0xd50] sm:$0xff]
        %v2780 = vld [vmem:[%s2295 + $0xd58] sm:$0xff]
        %v2781 = vld [vmem:[%s2295 + $0xd60] sm:$0xff]
        %v2782 = vld [vmem:[%s2295 + $0xd68] sm:$0xff]
        %v2783 = vld [vmem:[%s2295 + $0xd70] sm:$0xf]
        %v2784 = vld [vmem:[%s2295 + $0xd74] sm:$0xff]
        %v2785 = vld [vmem:[%s2295 + $0xd7c] sm:$0xff]
        %v2786 = vld [vmem:[%s2295 + $0xd84] sm:$0xff]
        %v2787 = vld [vmem:[%s2295 + $0xd8c] sm:$0xff]
        %v2788 = vld [vmem:[%s2295 + $0xd94] sm:$0xff]
        %v2789 = vld [vmem:[%s2295 + $0xd9c] sm:$0xff]
        %v2790 = vld [vmem:[%s2295 + $0xda4] sm:$0xff]
        %v2791 = vld [vmem:[%s2295 + $0xdac] sm:$0xff]
        %v2792 = vld [vmem:[%s2295 + $0xdb4] sm:$0xff]
        %v2793 = vld [vmem:[%s2295 + $0xdbc] sm:$0xff]
        %v2794 = vld [vmem:[%s2295 + $0xdc4] sm:$0xf]
        %v2795 = vld [vmem:[%s2295 + $0xdc8] sm:$0xff]
        %v2796 = vld [vmem:[%s2295 + $0xdd0] sm:$0xff]
        %v2797 = vld [vmem:[%s2295 + $0xdd8] sm:$0xff]
        %v2798 = vld [vmem:[%s2295 + $0xde0] sm:$0xff]
        %v2799 = vld [vmem:[%s2295 + $0xde8] sm:$0xff]
        %v2800 = vld [vmem:[%s2295 + $0xdf0] sm:$0xff]
        %v2801 = vld [vmem:[%s2295 + $0xdf8] sm:$0xff]
        %v2802 = vld [vmem:[%s2295 + $0xe00] sm:$0xff]
        %v2803 = vld [vmem:[%s2295 + $0xe08] sm:$0xff]
        %v2804 = vld [vmem:[%s2295 + $0xe10] sm:$0xff]
        %v2805 = vld [vmem:[%s2295 + $0xe18] sm:$0xf]
        %v2806 = vld [vmem:[%s2295 + $0xe1c] sm:$0xff]
        %v2807 = vld [vmem:[%s2295 + $0xe24] sm:$0xff]
        %v2808 = vld [vmem:[%s2295 + $0xe2c] sm:$0xff]
        %v2809 = vld [vmem:[%s2295 + $0xe34] sm:$0xff]
        %v2810 = vld [vmem:[%s2295 + $0xe3c] sm:$0xff]
        %v2811 = vld [vmem:[%s2295 + $0xe44] sm:$0xff]
        %v2812 = vld [vmem:[%s2295 + $0xe4c] sm:$0xff]
        %v2813 = vld [vmem:[%s2295 + $0xe54] sm:$0xff]
        %v2814 = vld [vmem:[%s2295 + $0xe5c] sm:$0xff]
        %v2815 = vld [vmem:[%s2295 + $0xe64] sm:$0xff]
        %v2816 = vld [vmem:[%s2295 + $0xe6c] sm:$0xf]
        %v2817 = vld [vmem:[%s2295 + $0xe70] sm:$0xff]
        %v2818 = vld [vmem:[%s2295 + $0xe78] sm:$0xff]
        %v2819 = vld [vmem:[%s2295 + $0xe80] sm:$0xff]
        %v2820 = vld [vmem:[%s2295 + $0xe88] sm:$0xff]
        %v2821 = vld [vmem:[%s2295 + $0xe90] sm:$0xff]
        %v2822 = vld [vmem:[%s2295 + $0xe98] sm:$0xff]
        %v2823 = vld [vmem:[%s2295 + $0xea0] sm:$0xff]
        %v2824 = vld [vmem:[%s2295 + $0xea8] sm:$0xff]
        %v2825 = vld [vmem:[%s2295 + $0xeb0] sm:$0xff]
        %v2826 = vld [vmem:[%s2295 + $0xeb8] sm:$0xff]
        %v2827 = vld [vmem:[%s2295 + $0xec0] sm:$0xf]
        %v2828 = vld [vmem:[%s2295 + $0xec4] sm:$0xff]
        %v2829 = vld [vmem:[%s2295 + $0xecc] sm:$0xff]
        %v2830 = vld [vmem:[%s2295 + $0xed4] sm:$0xff]
        %v2831 = vld [vmem:[%s2295 + $0xedc] sm:$0xff]
        %v2832 = vld [vmem:[%s2295 + $0xee4] sm:$0xff]
        %v2833 = vld [vmem:[%s2295 + $0xeec] sm:$0xff]
        %v2834 = vld [vmem:[%s2295 + $0xef4] sm:$0xff]
        %v2835 = vld [vmem:[%s2295 + $0xefc] sm:$0xff]
        %v2836 = vld [vmem:[%s2295 + $0xf04] sm:$0xff]
        %v2837 = vld [vmem:[%s2295 + $0xf0c] sm:$0xff]
        %v2838 = vld [vmem:[%s2295 + $0xf14] sm:$0xf]
        %v2839 = vld [vmem:[%s2295 + $0xf18] sm:$0xff]
        %v2840 = vld [vmem:[%s2295 + $0xf20] sm:$0xff]
        %v2841 = vld [vmem:[%s2295 + $0xf28] sm:$0xff]
        %v2842 = vld [vmem:[%s2295 + $0xf30] sm:$0xff]
        %v2843 = vld [vmem:[%s2295 + $0xf38] sm:$0xff]
        %v2844 = vld [vmem:[%s2295 + $0xf40] sm:$0xff]
        %v2845 = vld [vmem:[%s2295 + $0xf48] sm:$0xff]
        %v2846 = vld [vmem:[%s2295 + $0xf50] sm:$0xff]
        %v2847 = vld [vmem:[%s2295 + $0xf58] sm:$0xff]
        %v2848 = vld [vmem:[%s2295 + $0xf60] sm:$0xff]
        %v2849 = vld [vmem:[%s2295 + $0xf68] sm:$0xf]
        %v2850 = vld [vmem:[%s2295 + $0xf6c] sm:$0xff]
        %v2851 = vld [vmem:[%s2295 + $0xf74] sm:$0xff]
        %v2852 = vld [vmem:[%s2295 + $0xf7c] sm:$0xff]
        %v2853 = vld [vmem:[%s2295 + $0xf84] sm:$0xff]
        %v2854 = vld [vmem:[%s2295 + $0xf8c] sm:$0xff]
        %v2855 = vld [vmem:[%s2295 + $0xf94] sm:$0xff]
        %v2856 = vld [vmem:[%s2295 + $0xf9c] sm:$0xff]
        %v2857 = vld [vmem:[%s2295 + $0xfa4] sm:$0xff]
        %v2858 = vld [vmem:[%s2295 + $0xfac] sm:$0xff]
        %v2859 = vld [vmem:[%s2295 + $0xfb4] sm:$0xff]
        %v2860 = vld [vmem:[%s2295 + $0xfbc] sm:$0xf]
        %v2861 = vld [vmem:[%s2295 + $0xfc0] sm:$0xff]
        %v2862 = vld [vmem:[%s2295 + $0xfc8] sm:$0xff]
        %v2863 = vld [vmem:[%s2295 + $0xfd0] sm:$0xff]
        %v2864 = vld [vmem:[%s2295 + $0xfd8] sm:$0xff]
        %v2865 = vld [vmem:[%s2295 + $0xfe0] sm:$0xff]
        %v2866 = vld [vmem:[%s2295 + $0xfe8] sm:$0xff]
        %v2867 = vld [vmem:[%s2295 + $0xff0] sm:$0xff]
        %v2868 = vld [vmem:[%s2295 + $0xff8] sm:$0xff]
        %v2869 = vld [vmem:[%s2295 + $0x1000] sm:$0xff]
        %v2870 = vld [vmem:[%s2295 + $0x1008] sm:$0xff]
        %v2871 = vld [vmem:[%s2295 + $0x1010] sm:$0xf]
        %v2872 = vld [vmem:[%s2295 + $0x1014] sm:$0xff]
        %v2873 = vld [vmem:[%s2295 + $0x101c] sm:$0xff]
        %v2874 = vld [vmem:[%s2295 + $0x1024] sm:$0xff]
        %v2875 = vld [vmem:[%s2295 + $0x102c] sm:$0xff]
        %v2876 = vld [vmem:[%s2295 + $0x1034] sm:$0xff]
        %v2877 = vld [vmem:[%s2295 + $0x103c] sm:$0xff]
        %v2878 = vld [vmem:[%s2295 + $0x1044] sm:$0xff]
        %v2879 = vld [vmem:[%s2295 + $0x104c] sm:$0xff]
        %v2880 = vld [vmem:[%s2295 + $0x1054] sm:$0xff]
        %v2881 = vld [vmem:[%s2295 + $0x105c] sm:$0xff]
        %v2882 = vld [vmem:[%s2295 + $0x1064] sm:$0xf]
        %v2883 = vld [vmem:[%s2295 + $0x1068] sm:$0xff]
        %v2884 = vld [vmem:[%s2295 + $0x1070] sm:$0xff]
        %v2885 = vld [vmem:[%s2295 + $0x1078] sm:$0xff]
        %v2886 = vld [vmem:[%s2295 + $0x1080] sm:$0xff]
        %v2887 = vld [vmem:[%s2295 + $0x1088] sm:$0xff]
        %v2888 = vld [vmem:[%s2295 + $0x1090] sm:$0xff]
        %v2889 = vld [vmem:[%s2295 + $0x1098] sm:$0xff]
        %v2890 = vld [vmem:[%s2295 + $0x10a0] sm:$0xff]
        %v2891 = vld [vmem:[%s2295 + $0x10a8] sm:$0xff]
        %v2892 = vld [vmem:[%s2295 + $0x10b0] sm:$0xff]
        %v2893 = vld [vmem:[%s2295 + $0x10b8] sm:$0xf]
        %v2894 = vld [vmem:[%s2295 + $0x10bc] sm:$0xff]
        %v2895 = vld [vmem:[%s2295 + $0x10c4] sm:$0xff]
        %v2896 = vld [vmem:[%s2295 + $0x10cc] sm:$0xff]
        %v2897 = vld [vmem:[%s2295 + $0x10d4] sm:$0xff]
        %v2898 = vld [vmem:[%s2295 + $0x10dc] sm:$0xff]
        %v2899 = vld [vmem:[%s2295 + $0x10e4] sm:$0xff]
        %v2900 = vld [vmem:[%s2295 + $0x10ec] sm:$0xff]
        %v2901 = vld [vmem:[%s2295 + $0x10f4] sm:$0xff]
        %v2902 = vld [vmem:[%s2295 + $0x10fc] sm:$0xff]
        %v2903 = vld [vmem:[%s2295 + $0x1104] sm:$0xff]
        %v2904 = vld [vmem:[%s2295 + $0x110c] sm:$0xf]
        %v2905 = vld [vmem:[%s2295 + $0x1110] sm:$0xff]
        %v2906 = vld [vmem:[%s2295 + $0x1118] sm:$0xff]
        %v2907 = vld [vmem:[%s2295 + $0x1120] sm:$0xff]
        %v2908 = vld [vmem:[%s2295 + $0x1128] sm:$0xff]
        %v2909 = vld [vmem:[%s2295 + $0x1130] sm:$0xff]
        %v2910 = vld [vmem:[%s2295 + $0x1138] sm:$0xff]
        %v2911 = vld [vmem:[%s2295 + $0x1140] sm:$0xff]
        %v2912 = vld [vmem:[%s2295 + $0x1148] sm:$0xff]
        %v2913 = vld [vmem:[%s2295 + $0x1150] sm:$0xff]
        %v2914 = vld [vmem:[%s2295 + $0x1158] sm:$0xff]
        %v2915 = vld [vmem:[%s2295 + $0x1160] sm:$0xf]
        %v2916 = vld [vmem:[%s2295 + $0x1164] sm:$0xff]
        %v2917 = vld [vmem:[%s2295 + $0x116c] sm:$0xff]
        %v2918 = vld [vmem:[%s2295 + $0x1174] sm:$0xff]
        %v2919 = vld [vmem:[%s2295 + $0x117c] sm:$0xff]
        %v2920 = vld [vmem:[%s2295 + $0x1184] sm:$0xff]
        %v2921 = vld [vmem:[%s2295 + $0x118c] sm:$0xff]
        %v2922 = vld [vmem:[%s2295 + $0x1194] sm:$0xff]
        %v2923 = vld [vmem:[%s2295 + $0x119c] sm:$0xff]
        %v2924 = vld [vmem:[%s2295 + $0x11a4] sm:$0xff]
        %v2925 = vld [vmem:[%s2295 + $0x11ac] sm:$0xff]
        %v2926 = vld [vmem:[%s2295 + $0x11b4] sm:$0xf]
        %v2927 = vld [vmem:[%s2295 + $0x11b8] sm:$0xff]
        %v2928 = vld [vmem:[%s2295 + $0x11c0] sm:$0xff]
        %v2929 = vld [vmem:[%s2295 + $0x11c8] sm:$0xff]
        %v2930 = vld [vmem:[%s2295 + $0x11d0] sm:$0xff]
        %v2931 = vld [vmem:[%s2295 + $0x11d8] sm:$0xff]
        %v2932 = vld [vmem:[%s2295 + $0x11e0] sm:$0xff]
        %v2933 = vld [vmem:[%s2295 + $0x11e8] sm:$0xff]
        %v2934 = vld [vmem:[%s2295 + $0x11f0] sm:$0xff]
        %v2935 = vld [vmem:[%s2295 + $0x11f8] sm:$0xff]
        %v2936 = vld [vmem:[%s2295 + $0x1200] sm:$0xff]
        %v2937 = vld [vmem:[%s2295 + $0x1208] sm:$0xf]
        %v2938 = vld [vmem:[%s2295 + $0x120c] sm:$0xff]
        %v2939 = vld [vmem:[%s2295 + $0x1214] sm:$0xff]
        %v2940 = vld [vmem:[%s2295 + $0x121c] sm:$0xff]
        %v2941 = vld [vmem:[%s2295 + $0x1224] sm:$0xff]
        %v2942 = vld [vmem:[%s2295 + $0x122c] sm:$0xff]
        %v2943 = vld [vmem:[%s2295 + $0x1234] sm:$0xff]
        %v2944 = vld [vmem:[%s2295 + $0x123c] sm:$0xff]
        %v2945 = vld [vmem:[%s2295 + $0x1244] sm:$0xff]
        %v2946 = vld [vmem:[%s2295 + $0x124c] sm:$0xff]
        %v2947 = vld [vmem:[%s2295 + $0x1254] sm:$0xff]
        %v2948 = vld [vmem:[%s2295 + $0x125c] sm:$0xf]
        %v2949 = vld [vmem:[%s2295 + $0x1260] sm:$0xff]
        %v2950 = vld [vmem:[%s2295 + $0x1268] sm:$0xff]
        %v2951 = vld [vmem:[%s2295 + $0x1270] sm:$0xff]
        %v2952 = vld [vmem:[%s2295 + $0x1278] sm:$0xff]
        %v2953 = vld [vmem:[%s2295 + $0x1280] sm:$0xff]
        %v2954 = vld [vmem:[%s2295 + $0x1288] sm:$0xff]
        %v2955 = vld [vmem:[%s2295 + $0x1290] sm:$0xff]
        %v2956 = vld [vmem:[%s2295 + $0x1298] sm:$0xff]
        %v2957 = vld [vmem:[%s2295 + $0x12a0] sm:$0xff]
        %v2958 = vld [vmem:[%s2295 + $0x12a8] sm:$0xff]
        %v2959 = vld [vmem:[%s2295 + $0x12b0] sm:$0xf]
        %v2960 = vld [vmem:[%s2295 + $0x12b4] sm:$0xff]
        %v2961 = vld [vmem:[%s2295 + $0x12bc] sm:$0xff]
        %v2962 = vld [vmem:[%s2295 + $0x12c4] sm:$0xff]
        %v2963 = vld [vmem:[%s2295 + $0x12cc] sm:$0xff]
        %v2964 = vld [vmem:[%s2295 + $0x12d4] sm:$0xff]
        %v2965 = vld [vmem:[%s2295 + $0x12dc] sm:$0xff]
        %v2966 = vld [vmem:[%s2295 + $0x12e4] sm:$0xff]
        %v2967 = vld [vmem:[%s2295 + $0x12ec] sm:$0xff]
        %v2968 = vld [vmem:[%s2295 + $0x12f4] sm:$0xff]
        %v2969 = vld [vmem:[%s2295 + $0x12fc] sm:$0xff]
        %v2970 = vld [vmem:[%s2295 + $0x1304] sm:$0xf]
        %v2971 = vld [vmem:[%s2295 + $0x1308] sm:$0xff]
        %v2972 = vld [vmem:[%s2295 + $0x1310] sm:$0xff]
        %v2973 = vld [vmem:[%s2295 + $0x1318] sm:$0xff]
        %v2974 = vld [vmem:[%s2295 + $0x1320] sm:$0xff]
        %v2975 = vld [vmem:[%s2295 + $0x1328] sm:$0xff]
        %v2976 = vld [vmem:[%s2295 + $0x1330] sm:$0xff]
        %v2977 = vld [vmem:[%s2295 + $0x1338] sm:$0xff]
        %v2978 = vld [vmem:[%s2295 + $0x1340] sm:$0xff]
        %v2979 = vld [vmem:[%s2295 + $0x1348] sm:$0xff]
        %v2980 = vld [vmem:[%s2295 + $0x1350] sm:$0xff]
        %v2981 = vld [vmem:[%s2295 + $0x1358] sm:$0xf]
        %v2982 = vld [vmem:[%s2295 + $0x135c] sm:$0xff]
        %v2983 = vld [vmem:[%s2295 + $0x1364] sm:$0xff]
        %v2984 = vld [vmem:[%s2295 + $0x136c] sm:$0xff]
        %v2985 = vld [vmem:[%s2295 + $0x1374] sm:$0xff]
        %v2986 = vld [vmem:[%s2295 + $0x137c] sm:$0xff]
        %v2987 = vld [vmem:[%s2295 + $0x1384] sm:$0xff]
        %v2988 = vld [vmem:[%s2295 + $0x138c] sm:$0xff]
        %v2989 = vld [vmem:[%s2295 + $0x1394] sm:$0xff]
        %v2990 = vld [vmem:[%s2295 + $0x139c] sm:$0xff]
        %v2991 = vld [vmem:[%s2295 + $0x13a4] sm:$0xff]
        %v2992 = vld [vmem:[%s2295 + $0x13ac] sm:$0xf]
        %v2993 = vld [vmem:[%s2295 + $0x13b0] sm:$0xff]
        %v2994 = vld [vmem:[%s2295 + $0x13b8] sm:$0xff]
        %v2995 = vld [vmem:[%s2295 + $0x13c0] sm:$0xff]
        %v2996 = vld [vmem:[%s2295 + $0x13c8] sm:$0xff]
        %v2997 = vld [vmem:[%s2295 + $0x13d0] sm:$0xff]
        %v2998 = vld [vmem:[%s2295 + $0x13d8] sm:$0xff]
        %v2999 = vld [vmem:[%s2295 + $0x13e0] sm:$0xff]
        %v3000 = vld [vmem:[%s2295 + $0x13e8] sm:$0xff]
        %v3001 = vld [vmem:[%s2295 + $0x13f0] sm:$0xff]
        %v3002 = vld [vmem:[%s2295 + $0x13f8] sm:$0xff]
        %v3003 = vld [vmem:[%s2295 + $0x1400] sm:$0xf]
        %v3004 = vld [vmem:[%s2295 + $0x1404] sm:$0xff]
        %v3005 = vld [vmem:[%s2295 + $0x140c] sm:$0xff]
        %v3006 = vld [vmem:[%s2295 + $0x1414] sm:$0xff]
        %v3007 = vld [vmem:[%s2295 + $0x141c] sm:$0xff]
        %v3008 = vld [vmem:[%s2295 + $0x1424] sm:$0xff]
        %v3009 = vld [vmem:[%s2295 + $0x142c] sm:$0xff]
        %v3010 = vld [vmem:[%s2295 + $0x1434] sm:$0xff]
        %v3011 = vld [vmem:[%s2295 + $0x143c] sm:$0xff]
        %v3012 = vld [vmem:[%s2295 + $0x1444] sm:$0xff]
        %v3013 = vld [vmem:[%s2295 + $0x144c] sm:$0xff]
        %v3014 = vld [vmem:[%s2295 + $0x1454] sm:$0xf]
        %v3015 = vld [vmem:[%s2295 + $0x1458] sm:$0xff]
        %v3016 = vld [vmem:[%s2295 + $0x1460] sm:$0xff]
        %v3017 = vld [vmem:[%s2295 + $0x1468] sm:$0xff]
        %v3018 = vld [vmem:[%s2295 + $0x1470] sm:$0xff]
        %v3019 = vld [vmem:[%s2295 + $0x1478] sm:$0xff]
        %v3020 = vld [vmem:[%s2295 + $0x1480] sm:$0xff]
        %v3021 = vld [vmem:[%s2295 + $0x1488] sm:$0xff]
        %v3022 = vld [vmem:[%s2295 + $0x1490] sm:$0xff]
        %v3023 = vld [vmem:[%s2295 + $0x1498] sm:$0xff]
        %v3024 = vld [vmem:[%s2295 + $0x14a0] sm:$0xff]
        %v3025 = vld [vmem:[%s2295 + $0x14a8] sm:$0xf]
        %v3026 = vld [vmem:[%s2295 + $0x14ac] sm:$0xff]
        %v3027 = vld [vmem:[%s2295 + $0x14b4] sm:$0xff]
        %v3028 = vld [vmem:[%s2295 + $0x14bc] sm:$0xff]
        %v3029 = vld [vmem:[%s2295 + $0x14c4] sm:$0xff]
        %v3030 = vld [vmem:[%s2295 + $0x14cc] sm:$0xff]
        %v3031 = vld [vmem:[%s2295 + $0x14d4] sm:$0xff]
        %v3032 = vld [vmem:[%s2295 + $0x14dc] sm:$0xff]
        %v3033 = vld [vmem:[%s2295 + $0x14e4] sm:$0xff]
        %v3034 = vld [vmem:[%s2295 + $0x14ec] sm:$0xff]
        %v3035 = vld [vmem:[%s2295 + $0x14f4] sm:$0xff]
        %v3036 = vld [vmem:[%s2295 + $0x14fc] sm:$0xf]
        %v3037 = vld [vmem:[%s2295 + $0x1500] sm:$0xff]
        %v3038 = vld [vmem:[%s2295 + $0x1508] sm:$0xff]
        %v3039 = vld [vmem:[%s2295 + $0x1510] sm:$0xff]
        %v3040 = vld [vmem:[%s2295 + $0x1518] sm:$0xff]
        %v3041 = vld [vmem:[%s2295 + $0x1520] sm:$0xff]
        %v3042 = vld [vmem:[%s2295 + $0x1528] sm:$0xff]
        %v3043 = vld [vmem:[%s2295 + $0x1530] sm:$0xff]
        %v3044 = vld [vmem:[%s2295 + $0x1538] sm:$0xff]
        %v3045 = vld [vmem:[%s2295 + $0x1540] sm:$0xff]
        %v3046 = vld [vmem:[%s2295 + $0x1548] sm:$0xff]
        %v3047 = vld [vmem:[%s2295 + $0x1550] sm:$0xf]
        %v3048 = vld [vmem:[%s2295 + $0x1554] sm:$0xff]
        %v3049 = vld [vmem:[%s2295 + $0x155c] sm:$0xff]
        %v3050 = vld [vmem:[%s2295 + $0x1564] sm:$0xff]
        %v3051 = vld [vmem:[%s2295 + $0x156c] sm:$0xff]
        %v3052 = vld [vmem:[%s2295 + $0x1574] sm:$0xff]
        %v3053 = vld [vmem:[%s2295 + $0x157c] sm:$0xff]
        %v3054 = vld [vmem:[%s2295 + $0x1584] sm:$0xff]
        %v3055 = vld [vmem:[%s2295 + $0x158c] sm:$0xff]
        %v3056 = vld [vmem:[%s2295 + $0x1594] sm:$0xff]
        %v3057 = vld [vmem:[%s2295 + $0x159c] sm:$0xff]
        %v3058 = vld [vmem:[%s2295 + $0x15a4] sm:$0xf]
        %v3059 = vld [vmem:[%s2295 + $0x15a8] sm:$0xff]
        %v3060 = vld [vmem:[%s2295 + $0x15b0] sm:$0xff]
        %v3061 = vld [vmem:[%s2295 + $0x15b8] sm:$0xff]
        %v3062 = vld [vmem:[%s2295 + $0x15c0] sm:$0xff]
        %v3063 = vld [vmem:[%s2295 + $0x15c8] sm:$0xff]
        %v3064 = vld [vmem:[%s2295 + $0x15d0] sm:$0xff]
        %v3065 = vld [vmem:[%s2295 + $0x15d8] sm:$0xff]
        %v3066 = vld [vmem:[%s2295 + $0x15e0] sm:$0xff]
        %v3067 = vld [vmem:[%s2295 + $0x15e8] sm:$0xff]
        %v3068 = vld [vmem:[%s2295 + $0x15f0] sm:$0xff]
        %v3069 = vld [vmem:[%s2295 + $0x15f8] sm:$0xf]
        %v3070 = vld [vmem:[%s2295 + $0x15fc] sm:$0xff]
        %v3071 = vld [vmem:[%s2295 + $0x1604] sm:$0xff]
        %v3072 = vld [vmem:[%s2295 + $0x160c] sm:$0xff]
        %v3073 = vld [vmem:[%s2295 + $0x1614] sm:$0xff]
        %v3074 = vld [vmem:[%s2295 + $0x161c] sm:$0xff]
        %v3075 = vld [vmem:[%s2295 + $0x1624] sm:$0xff]
        %v3076 = vld [vmem:[%s2295 + $0x162c] sm:$0xff]
        %v3077 = vld [vmem:[%s2295 + $0x1634] sm:$0xff]
        %v3078 = vld [vmem:[%s2295 + $0x163c] sm:$0xff]
        %v3079 = vld [vmem:[%s2295 + $0x1644] sm:$0xff]
        %v3080 = vld [vmem:[%s2295 + $0x164c] sm:$0xf]
        %v3081 = vld [vmem:[%s2295 + $0x1650] sm:$0xff]
        %v3082 = vld [vmem:[%s2295 + $0x1658] sm:$0xff]
        %v3083 = vld [vmem:[%s2295 + $0x1660] sm:$0xff]
        %v3084 = vld [vmem:[%s2295 + $0x1668] sm:$0xff]
        %v3085 = vld [vmem:[%s2295 + $0x1670] sm:$0xff]
        %v3086 = vld [vmem:[%s2295 + $0x1678] sm:$0xff]
        %v3087 = vld [vmem:[%s2295 + $0x1680] sm:$0xff]
        %v3088 = vld [vmem:[%s2295 + $0x1688] sm:$0xff]
        %v3089 = vld [vmem:[%s2295 + $0x1690] sm:$0xff]
        %v3090 = vld [vmem:[%s2295 + $0x1698] sm:$0xff]
        %v3091 = vld [vmem:[%s2295 + $0x16a0] sm:$0xf]
        %v3092 = vld [vmem:[%s2295 + $0x16a4] sm:$0xff]
        %v3093 = vld [vmem:[%s2295 + $0x16ac] sm:$0xff]
        %v3094 = vld [vmem:[%s2295 + $0x16b4] sm:$0xff]
        %v3095 = vld [vmem:[%s2295 + $0x16bc] sm:$0xff]
        %v3096 = vld [vmem:[%s2295 + $0x16c4] sm:$0xff]
        %v3097 = vld [vmem:[%s2295 + $0x16cc] sm:$0xff]
        %v3098 = vld [vmem:[%s2295 + $0x16d4] sm:$0xff]
        %v3099 = vld [vmem:[%s2295 + $0x16dc] sm:$0xff]
        %v3100 = vld [vmem:[%s2295 + $0x16e4] sm:$0xff]
        %v3101 = vld [vmem:[%s2295 + $0x16ec] sm:$0xff]
        %v3102 = vld [vmem:[%s2295 + $0x16f4] sm:$0xf]
        %v3103 = vld [vmem:[%s2295 + $0x16f8] sm:$0xff]
        %v3104 = vld [vmem:[%s2295 + $0x1700] sm:$0xff]
        %v3105 = vld [vmem:[%s2295 + $0x1708] sm:$0xff]
        %v3106 = vld [vmem:[%s2295 + $0x1710] sm:$0xff]
        %v3107 = vld [vmem:[%s2295 + $0x1718] sm:$0xff]
        %v3108 = vld [vmem:[%s2295 + $0x1720] sm:$0xff]
        %v3109 = vld [vmem:[%s2295 + $0x1728] sm:$0xff]
        %v3110 = vld [vmem:[%s2295 + $0x1730] sm:$0xff]
        %v3111 = vld [vmem:[%s2295 + $0x1738] sm:$0xff]
        %v3112 = vld [vmem:[%s2295 + $0x1740] sm:$0xff]
        %v3113 = vld [vmem:[%s2295 + $0x1748] sm:$0xf]
        %v3114 = vld [vmem:[%s2295 + $0x174c] sm:$0xff]
        %v3115 = vld [vmem:[%s2295 + $0x1754] sm:$0xff]
        %v3116 = vld [vmem:[%s2295 + $0x175c] sm:$0xff]
        %v3117 = vld [vmem:[%s2295 + $0x1764] sm:$0xff]
        %v3118 = vld [vmem:[%s2295 + $0x176c] sm:$0xff]
        %v3119 = vld [vmem:[%s2295 + $0x1774] sm:$0xff]
        %v3120 = vld [vmem:[%s2295 + $0x177c] sm:$0xff]
        %v3121 = vld [vmem:[%s2295 + $0x1784] sm:$0xff]
        %v3122 = vld [vmem:[%s2295 + $0x178c] sm:$0xff]
        %v3123 = vld [vmem:[%s2295 + $0x1794] sm:$0xff]
        %v3124 = vld [vmem:[%s2295 + $0x179c] sm:$0xf]
        %v3125 = vld [vmem:[%s2295 + $0x17a0] sm:$0xff]
        %v3126 = vld [vmem:[%s2295 + $0x17a8] sm:$0xff]
        %v3127 = vld [vmem:[%s2295 + $0x17b0] sm:$0xff]
        %v3128 = vld [vmem:[%s2295 + $0x17b8] sm:$0xff]
        %v3129 = vld [vmem:[%s2295 + $0x17c0] sm:$0xff]
        %v3130 = vld [vmem:[%s2295 + $0x17c8] sm:$0xff]
        %v3131 = vld [vmem:[%s2295 + $0x17d0] sm:$0xff]
        %v3132 = vld [vmem:[%s2295 + $0x17d8] sm:$0xff]
        %v3133 = vld [vmem:[%s2295 + $0x17e0] sm:$0xff]
        %v3134 = vld [vmem:[%s2295 + $0x17e8] sm:$0xff]
        %v3135 = vld [vmem:[%s2295 + $0x17f0] sm:$0xf]
        %v3136 = vld [vmem:[%s2295 + $0x17f4] sm:$0xff]
        %v3137 = vld [vmem:[%s2295 + $0x17fc] sm:$0xff]
        %v3138 = vld [vmem:[%s2295 + $0x1804] sm:$0xff]
        %v3139 = vld [vmem:[%s2295 + $0x180c] sm:$0xff]
        %v3140 = vld [vmem:[%s2295 + $0x1814] sm:$0xff]
        %v3141 = vld [vmem:[%s2295 + $0x181c] sm:$0xff]
        %v3142 = vld [vmem:[%s2295 + $0x1824] sm:$0xff]
        %v3143 = vld [vmem:[%s2295 + $0x182c] sm:$0xff]
        %v3144 = vld [vmem:[%s2295 + $0x1834] sm:$0xff]
        %v3145 = vld [vmem:[%s2295 + $0x183c] sm:$0xff]
        %v3146 = vld [vmem:[%s2295 + $0x1844] sm:$0xf]
        %v3147 = vld [vmem:[%s2295 + $0x1848] sm:$0xff]
        %v3148 = vld [vmem:[%s2295 + $0x1850] sm:$0xff]
        %v3149 = vld [vmem:[%s2295 + $0x1858] sm:$0xff]
        %v3150 = vld [vmem:[%s2295 + $0x1860] sm:$0xff]
        %v3151 = vld [vmem:[%s2295 + $0x1868] sm:$0xff]
        %v3152 = vld [vmem:[%s2295 + $0x1870] sm:$0xff]
        %v3153 = vld [vmem:[%s2295 + $0x1878] sm:$0xff]
        %v3154 = vld [vmem:[%s2295 + $0x1880] sm:$0xff]
        %v3155 = vld [vmem:[%s2295 + $0x1888] sm:$0xff]
        %v3156 = vld [vmem:[%s2295 + $0x1890] sm:$0xff]
        %v3157 = vld [vmem:[%s2295 + $0x1898] sm:$0xf]
        %v3158 = vld [vmem:[%s2295 + $0x189c] sm:$0xff]
        %v3159 = vld [vmem:[%s2295 + $0x18a4] sm:$0xff]
        %v3160 = vld [vmem:[%s2295 + $0x18ac] sm:$0xff]
        %v3161 = vld [vmem:[%s2295 + $0x18b4] sm:$0xff]
        %v3162 = vld [vmem:[%s2295 + $0x18bc] sm:$0xff]
        %v3163 = vld [vmem:[%s2295 + $0x18c4] sm:$0xff]
        %v3164 = vld [vmem:[%s2295 + $0x18cc] sm:$0xff]
        %v3165 = vld [vmem:[%s2295 + $0x18d4] sm:$0xff]
        %v3166 = vld [vmem:[%s2295 + $0x18dc] sm:$0xff]
        %v3167 = vld [vmem:[%s2295 + $0x18e4] sm:$0xff]
        %v3168 = vld [vmem:[%s2295 + $0x18ec] sm:$0xf]
        %v3169 = vld [vmem:[%s2295 + $0x18f0] sm:$0xff]
        %v3170 = vld [vmem:[%s2295 + $0x18f8] sm:$0xff]
        %v3171 = vld [vmem:[%s2295 + $0x1900] sm:$0xff]
        %v3172 = vld [vmem:[%s2295 + $0x1908] sm:$0xff]
        %v3173 = vld [vmem:[%s2295 + $0x1910] sm:$0xff]
        %v3174 = vld [vmem:[%s2295 + $0x1918] sm:$0xff]
        %v3175 = vld [vmem:[%s2295 + $0x1920] sm:$0xff]
        %v3176 = vld [vmem:[%s2295 + $0x1928] sm:$0xff]
        %v3177 = vld [vmem:[%s2295 + $0x1930] sm:$0xff]
        %v3178 = vld [vmem:[%s2295 + $0x1938] sm:$0xff]
        %v3179 = vld [vmem:[%s2295 + $0x1940] sm:$0xf]
        %v3180 = vld [vmem:[%s2295 + $0x1944] sm:$0xff]
        %v3181 = vld [vmem:[%s2295 + $0x194c] sm:$0xff]
        %v3182 = vld [vmem:[%s2295 + $0x1954] sm:$0xff]
        %v3183 = vld [vmem:[%s2295 + $0x195c] sm:$0xff]
        %v3184 = vld [vmem:[%s2295 + $0x1964] sm:$0xff]
        %v3185 = vld [vmem:[%s2295 + $0x196c] sm:$0xff]
        %v3186 = vld [vmem:[%s2295 + $0x1974] sm:$0xff]
        %v3187 = vld [vmem:[%s2295 + $0x197c] sm:$0xff]
        %v3188 = vld [vmem:[%s2295 + $0x1984] sm:$0xff]
        %v3189 = vld [vmem:[%s2295 + $0x198c] sm:$0xff]
        %v3190 = vld [vmem:[%s2295 + $0x1994] sm:$0xf]
        %v3191 = vld [vmem:[%s2295 + $0x1998] sm:$0xff]
        %v3192 = vld [vmem:[%s2295 + $0x19a0] sm:$0xff]
        %v3193 = vld [vmem:[%s2295 + $0x19a8] sm:$0xff]
        %v3194 = vld [vmem:[%s2295 + $0x19b0] sm:$0xff]
        %v3195 = vld [vmem:[%s2295 + $0x19b8] sm:$0xff]
        %v3196 = vld [vmem:[%s2295 + $0x19c0] sm:$0xff]
        %v3197 = vld [vmem:[%s2295 + $0x19c8] sm:$0xff]
        %v3198 = vld [vmem:[%s2295 + $0x19d0] sm:$0xff]
        %v3199 = vld [vmem:[%s2295 + $0x19d8] sm:$0xff]
        %v3200 = vld [vmem:[%s2295 + $0x19e0] sm:$0xff]
        %v3201 = vld [vmem:[%s2295 + $0x19e8] sm:$0xf]
        %v3202 = vld [vmem:[%s2295 + $0x19ec] sm:$0xff]
        %v3203 = vld [vmem:[%s2295 + $0x19f4] sm:$0xff]
        %v3204 = vld [vmem:[%s2295 + $0x19fc] sm:$0xff]
        %v3205 = vld [vmem:[%s2295 + $0x1a04] sm:$0xff]
        %v3206 = vld [vmem:[%s2295 + $0x1a0c] sm:$0xff]
        %v3207 = vld [vmem:[%s2295 + $0x1a14] sm:$0xff]
        %v3208 = vld [vmem:[%s2295 + $0x1a1c] sm:$0xff]
        %v3209 = vld [vmem:[%s2295 + $0x1a24] sm:$0xff]
        %v3210 = vld [vmem:[%s2295 + $0x1a2c] sm:$0xff]
        %v3211 = vld [vmem:[%s2295 + $0x1a34] sm:$0xff]
        %v3212 = vld [vmem:[%s2295 + $0x1a3c] sm:$0xf]
        %v3213 = vld [vmem:[%s2295 + $0x1a40] sm:$0xff]
        %v3214 = vld [vmem:[%s2295 + $0x1a48] sm:$0xff]
        %v3215 = vld [vmem:[%s2295 + $0x1a50] sm:$0xff]
        %v3216 = vld [vmem:[%s2295 + $0x1a58] sm:$0xff]
        %v3217 = vld [vmem:[%s2295 + $0x1a60] sm:$0xff]
        %v3218 = vld [vmem:[%s2295 + $0x1a68] sm:$0xff]
        %v3219 = vld [vmem:[%s2295 + $0x1a70] sm:$0xff]
        %v3220 = vld [vmem:[%s2295 + $0x1a78] sm:$0xff]
        %v3221 = vld [vmem:[%s2295 + $0x1a80] sm:$0xff]
        %v3222 = vld [vmem:[%s2295 + $0x1a88] sm:$0xff]
        %v3223 = vld [vmem:[%s2295 + $0x1a90] sm:$0xf]
        %v3224 = vld [vmem:[%s2295 + $0x1a94] sm:$0xff]
        %v3225 = vld [vmem:[%s2295 + $0x1a9c] sm:$0xff]
        %v3226 = vld [vmem:[%s2295 + $0x1aa4] sm:$0xff]
        %v3227 = vld [vmem:[%s2295 + $0x1aac] sm:$0xff]
        %v3228 = vld [vmem:[%s2295 + $0x1ab4] sm:$0xff]
        %v3229 = vld [vmem:[%s2295 + $0x1abc] sm:$0xff]
        %v3230 = vld [vmem:[%s2295 + $0x1ac4] sm:$0xff]
        %v3231 = vld [vmem:[%s2295 + $0x1acc] sm:$0xff]
        %v3232 = vld [vmem:[%s2295 + $0x1ad4] sm:$0xff]
        %v3233 = vld [vmem:[%s2295 + $0x1adc] sm:$0xff]
        %v3234 = vld [vmem:[%s2295 + $0x1ae4] sm:$0xf]
        %v3235 = vld [vmem:[%s2295 + $0x1ae8] sm:$0xff]
        %v3236 = vld [vmem:[%s2295 + $0x1af0] sm:$0xff]
        %v3237 = vld [vmem:[%s2295 + $0x1af8] sm:$0xff]
        %v3238 = vld [vmem:[%s2295 + $0x1b00] sm:$0xff]
        %v3239 = vld [vmem:[%s2295 + $0x1b08] sm:$0xff]
        %v3240 = vld [vmem:[%s2295 + $0x1b10] sm:$0xff]
        %v3241 = vld [vmem:[%s2295 + $0x1b18] sm:$0xff]
        %v3242 = vld [vmem:[%s2295 + $0x1b20] sm:$0xff]
        %v3243 = vld [vmem:[%s2295 + $0x1b28] sm:$0xff]
        %v3244 = vld [vmem:[%s2295 + $0x1b30] sm:$0xff]
        %v3245 = vld [vmem:[%s2295 + $0x1b38] sm:$0xf]
        %v3246 = vld [vmem:[%s2295 + $0x1b3c] sm:$0xff]
        %v3247 = vld [vmem:[%s2295 + $0x1b44] sm:$0xff]
        %v3248 = vld [vmem:[%s2295 + $0x1b4c] sm:$0xff]
        %v3249 = vld [vmem:[%s2295 + $0x1b54] sm:$0xff]
        %v3250 = vld [vmem:[%s2295 + $0x1b5c] sm:$0xff]
        %v3251 = vld [vmem:[%s2295 + $0x1b64] sm:$0xff]
        %v3252 = vld [vmem:[%s2295 + $0x1b6c] sm:$0xff]
        %v3253 = vld [vmem:[%s2295 + $0x1b74] sm:$0xff]
        %v3254 = vld [vmem:[%s2295 + $0x1b7c] sm:$0xff]
        %v3255 = vld [vmem:[%s2295 + $0x1b84] sm:$0xff]
        %v3256 = vld [vmem:[%s2295 + $0x1b8c] sm:$0xf]
        %v3257 = vld [vmem:[%s2295 + $0x1b90] sm:$0xff]
        %v3258 = vld [vmem:[%s2295 + $0x1b98] sm:$0xff]
        %v3259 = vld [vmem:[%s2295 + $0x1ba0] sm:$0xff]
        %v3260 = vld [vmem:[%s2295 + $0x1ba8] sm:$0xff]
        %v3261 = vld [vmem:[%s2295 + $0x1bb0] sm:$0xff]
        %v3262 = vld [vmem:[%s2295 + $0x1bb8] sm:$0xff]
        %v3263 = vld [vmem:[%s2295 + $0x1bc0] sm:$0xff]
        %v3264 = vld [vmem:[%s2295 + $0x1bc8] sm:$0xff]
        %v3265 = vld [vmem:[%s2295 + $0x1bd0] sm:$0xff]
        %v3266 = vld [vmem:[%s2295 + $0x1bd8] sm:$0xff]
        %v3267 = vld [vmem:[%s2295 + $0x1be0] sm:$0xf]
        %v3268 = vld [vmem:[%s2295 + $0x1be4] sm:$0xff]
        %v3269 = vld [vmem:[%s2295 + $0x1bec] sm:$0xff]
        %v3270 = vld [vmem:[%s2295 + $0x1bf4] sm:$0xff]
        %v3271 = vld [vmem:[%s2295 + $0x1bfc] sm:$0xff]
        %v3272 = vld [vmem:[%s2295 + $0x1c04] sm:$0xff]
        %v3273 = vld [vmem:[%s2295 + $0x1c0c] sm:$0xff]
        %v3274 = vld [vmem:[%s2295 + $0x1c14] sm:$0xff]
        %v3275 = vld [vmem:[%s2295 + $0x1c1c] sm:$0xff]
        %v3276 = vld [vmem:[%s2295 + $0x1c24] sm:$0xff]
        %v3277 = vld [vmem:[%s2295 + $0x1c2c] sm:$0xff]
        %v3278 = vld [vmem:[%s2295 + $0x1c34] sm:$0xf]
        %v3279 = vld [vmem:[%s2295 + $0x1c38] sm:$0xff]
        %v3280 = vld [vmem:[%s2295 + $0x1c40] sm:$0xff]
        %v3281 = vld [vmem:[%s2295 + $0x1c48] sm:$0xff]
        %v3282 = vld [vmem:[%s2295 + $0x1c50] sm:$0xff]
        %v3283 = vld [vmem:[%s2295 + $0x1c58] sm:$0xff]
        %v3284 = vld [vmem:[%s2295 + $0x1c60] sm:$0xff]
        %v3285 = vld [vmem:[%s2295 + $0x1c68] sm:$0xff]
        %v3286 = vld [vmem:[%s2295 + $0x1c70] sm:$0xff]
        %v3287 = vld [vmem:[%s2295 + $0x1c78] sm:$0xff]
        %v3288 = vld [vmem:[%s2295 + $0x1c80] sm:$0xff]
        %v3289 = vld [vmem:[%s2295 + $0x1c88] sm:$0xf]
        %v3290 = vld [vmem:[%s2295 + $0x1c8c] sm:$0xff]
        %v3291 = vld [vmem:[%s2295 + $0x1c94] sm:$0xff]
        %v3292 = vld [vmem:[%s2295 + $0x1c9c] sm:$0xff]
        %v3293 = vld [vmem:[%s2295 + $0x1ca4] sm:$0xff]
        %v3294 = vld [vmem:[%s2295 + $0x1cac] sm:$0xff]
        %v3295 = vld [vmem:[%s2295 + $0x1cb4] sm:$0xff]
        %v3296 = vld [vmem:[%s2295 + $0x1cbc] sm:$0xff]
        %v3297 = vld [vmem:[%s2295 + $0x1cc4] sm:$0xff]
        %v3298 = vld [vmem:[%s2295 + $0x1ccc] sm:$0xff]
        %v3299 = vld [vmem:[%s2295 + $0x1cd4] sm:$0xff]
        %v3300 = vld [vmem:[%s2295 + $0x1cdc] sm:$0xf]
        %v3301 = vld [vmem:[%s2295 + $0x1ce0] sm:$0xff]
        %v3302 = vld [vmem:[%s2295 + $0x1ce8] sm:$0xff]
        %v3303 = vld [vmem:[%s2295 + $0x1cf0] sm:$0xff]
        %v3304 = vld [vmem:[%s2295 + $0x1cf8] sm:$0xff]
        %v3305 = vld [vmem:[%s2295 + $0x1d00] sm:$0xff]
        %v3306 = vld [vmem:[%s2295 + $0x1d08] sm:$0xff]
        %v3307 = vld [vmem:[%s2295 + $0x1d10] sm:$0xff]
        %v3308 = vld [vmem:[%s2295 + $0x1d18] sm:$0xff]
        %v3309 = vld [vmem:[%s2295 + $0x1d20] sm:$0xff]
        %v3310 = vld [vmem:[%s2295 + $0x1d28] sm:$0xff]
        %v3311 = vld [vmem:[%s2295 + $0x1d30] sm:$0xf]
        %v3312 = vld [vmem:[%s2295 + $0x1d34] sm:$0xff]
        %v3313 = vld [vmem:[%s2295 + $0x1d3c] sm:$0xff]
        %v3314 = vld [vmem:[%s2295 + $0x1d44] sm:$0xff]
        %v3315 = vld [vmem:[%s2295 + $0x1d4c] sm:$0xff]
        %v3316 = vld [vmem:[%s2295 + $0x1d54] sm:$0xff]
        %v3317 = vld [vmem:[%s2295 + $0x1d5c] sm:$0xff]
        %v3318 = vld [vmem:[%s2295 + $0x1d64] sm:$0xff]
        %v3319 = vld [vmem:[%s2295 + $0x1d6c] sm:$0xff]
        %v3320 = vld [vmem:[%s2295 + $0x1d74] sm:$0xff]
        %v3321 = vld [vmem:[%s2295 + $0x1d7c] sm:$0xff]
        %v3322 = vld [vmem:[%s2295 + $0x1d84] sm:$0xf]
        %v3323 = vld [vmem:[%s2295 + $0x1d88] sm:$0xff]
        %v3324 = vld [vmem:[%s2295 + $0x1d90] sm:$0xff]
        %v3325 = vld [vmem:[%s2295 + $0x1d98] sm:$0xff]
        %v3326 = vld [vmem:[%s2295 + $0x1da0] sm:$0xff]
        %v3327 = vld [vmem:[%s2295 + $0x1da8] sm:$0xff]
        %v3328 = vld [vmem:[%s2295 + $0x1db0] sm:$0xff]
        %v3329 = vld [vmem:[%s2295 + $0x1db8] sm:$0xff]
        %v3330 = vld [vmem:[%s2295 + $0x1dc0] sm:$0xff]
        %v3331 = vld [vmem:[%s2295 + $0x1dc8] sm:$0xff]
        %v3332 = vld [vmem:[%s2295 + $0x1dd0] sm:$0xff]
        %v3333 = vld [vmem:[%s2295 + $0x1dd8] sm:$0xf]
        %v3334 = vld [vmem:[%s2295 + $0x1ddc] sm:$0xff]
        %v3335 = vld [vmem:[%s2295 + $0x1de4] sm:$0xff]
        %v3336 = vld [vmem:[%s2295 + $0x1dec] sm:$0xff]
        %v3337 = vld [vmem:[%s2295 + $0x1df4] sm:$0xff]
        %v3338 = vld [vmem:[%s2295 + $0x1dfc] sm:$0xff]
        %v3339 = vld [vmem:[%s2295 + $0x1e04] sm:$0xff]
        %v3340 = vld [vmem:[%s2295 + $0x1e0c] sm:$0xff]
        %v3341 = vld [vmem:[%s2295 + $0x1e14] sm:$0xff]
        %v3342 = vld [vmem:[%s2295 + $0x1e1c] sm:$0xff]
        %v3343 = vld [vmem:[%s2295 + $0x1e24] sm:$0xff]
        %v3344 = vld [vmem:[%s2295 + $0x1e2c] sm:$0xf]
        %v3345 = vld [vmem:[%s2295 + $0x1e30] sm:$0xff]
        %v3346 = vld [vmem:[%s2295 + $0x1e38] sm:$0xff]
        %v3347 = vld [vmem:[%s2295 + $0x1e40] sm:$0xff]
        %v3348 = vld [vmem:[%s2295 + $0x1e48] sm:$0xff]
        %v3349 = vld [vmem:[%s2295 + $0x1e50] sm:$0xff]
        %v3350 = vld [vmem:[%s2295 + $0x1e58] sm:$0xff]
        %v3351 = vld [vmem:[%s2295 + $0x1e60] sm:$0xff]
        %v3352 = vld [vmem:[%s2295 + $0x1e68] sm:$0xff]
        %v3353 = vld [vmem:[%s2295 + $0x1e70] sm:$0xff]
        %v3354 = vld [vmem:[%s2295 + $0x1e78] sm:$0xff]
        %v3355 = vld [vmem:[%s2295 + $0x1e80] sm:$0xf]
        %v3356 = vld [vmem:[%s2295 + $0x1e84] sm:$0xff]
        %v3357 = vld [vmem:[%s2295 + $0x1e8c] sm:$0xff]
        %v3358 = vld [vmem:[%s2295 + $0x1e94] sm:$0xff]
        %v3359 = vld [vmem:[%s2295 + $0x1e9c] sm:$0xff]
        %v3360 = vld [vmem:[%s2295 + $0x1ea4] sm:$0xff]
        %v3361 = vld [vmem:[%s2295 + $0x1eac] sm:$0xff]
        %v3362 = vld [vmem:[%s2295 + $0x1eb4] sm:$0xff]
        %v3363 = vld [vmem:[%s2295 + $0x1ebc] sm:$0xff]
        %v3364 = vld [vmem:[%s2295 + $0x1ec4] sm:$0xff]
        %v3365 = vld [vmem:[%s2295 + $0x1ecc] sm:$0xff]
        %v3366 = vld [vmem:[%s2295 + $0x1ed4] sm:$0xf]
        %v3367 = vld [vmem:[%s2295 + $0x1ed8] sm:$0xff]
        %v3368 = vld [vmem:[%s2295 + $0x1ee0] sm:$0xff]
        %v3369 = vld [vmem:[%s2295 + $0x1ee8] sm:$0xff]
        %v3370 = vld [vmem:[%s2295 + $0x1ef0] sm:$0xff]
        %v3371 = vld [vmem:[%s2295 + $0x1ef8] sm:$0xff]
        %v3372 = vld [vmem:[%s2295 + $0x1f00] sm:$0xff]
        %v3373 = vld [vmem:[%s2295 + $0x1f08] sm:$0xff]
        %v3374 = vld [vmem:[%s2295 + $0x1f10] sm:$0xff]
        %v3375 = vld [vmem:[%s2295 + $0x1f18] sm:$0xff]
        %v3376 = vld [vmem:[%s2295 + $0x1f20] sm:$0xff]
        %v3377 = vld [vmem:[%s2295 + $0x1f28] sm:$0xf]
        %v3378 = vld [vmem:[%s2295 + $0x1f2c] sm:$0xff]
        %v3379 = vld [vmem:[%s2295 + $0x1f34] sm:$0xff]
        %v3380 = vld [vmem:[%s2295 + $0x1f3c] sm:$0xff]
        %v3381 = vld [vmem:[%s2295 + $0x1f44] sm:$0xff]
        %v3382 = vld [vmem:[%s2295 + $0x1f4c] sm:$0xff]
        %v3383 = vld [vmem:[%s2295 + $0x1f54] sm:$0xff]
        %v3384 = vld [vmem:[%s2295 + $0x1f5c] sm:$0xff]
        %v3385 = vld [vmem:[%s2295 + $0x1f64] sm:$0xff]
        %v3386 = vld [vmem:[%s2295 + $0x1f6c] sm:$0xff]
        %v3387 = vld [vmem:[%s2295 + $0x1f74] sm:$0xff]
        %v3388 = vld [vmem:[%s2295 + $0x1f7c] sm:$0xf]
        %v3389 = vld [vmem:[%s2324] sm:$0xff]
        %v3390 = vld [vmem:[%s2324 + $0x8] sm:$0xff]
        %v3391 = vld [vmem:[%s2324 + $0x10] sm:$0x1f]
        %v3395 = vperm.slane %v3389, 0
        %v3396 = vperm.slane %v3389, 1
        %v3397 = vperm.slane %v3389, 2
        %v3398 = vperm.slane %v3389, 3
        %v3399 = vperm.slane %v3389, 4
        %v3400 = vperm.slane %v3389, 5
        %v3401 = vperm.slane %v3389, 6
        %v3402 = vperm.slane %v3389, 7
        %v3403 = vperm.slane %v3390, 0
        %v3404 = vperm.slane %v3390, 1
        %v3405 = vperm.slane %v3390, 2
        %v3406 = vperm.slane %v3390, 3
        %v3407 = vperm.slane %v3390, 4
        %v3408 = vperm.slane %v3390, 5
        %v3409 = vperm.slane %v3390, 6
        %v3410 = vperm.slane %v3390, 7
        %v3411 = vperm.slane %v3391, 0
        %v3412 = vperm.slane %v3391, 1
        %v3413 = vperm.slane %v3391, 2
        %v3414 = vperm.slane %v3391, 3
        %v3415 = vperm.slane %v3391, 4
        %3438 = vst [vmem:[#allocation1] ss:$9 sm:$0xff] %v2332
        %v3439 = vld [vmem:[#allocation1] sm:$0xff]
        %v3440 = vld [vmem:[#allocation1 + $0x9] sm:$0xff]
        %v3441 = vld [vmem:[#allocation1 + $0x12] sm:$0xff]
        %v3442 = vld [vmem:[#allocation1 + $0x1b] sm:$0xff]
        %v3443 = vld [vmem:[#allocation1 + $0x24] sm:$0xff]
        %v3444 = vld [vmem:[#allocation1 + $0x2d] sm:$0xff]
        %v4507 = vunpack.c.l.b16 %v2333
        %v4508 = vunpack.c.h.b16 %v2333
        %v4509 = vunpack.c.l.b16 %v2334
        %v4510 = vunpack.c.h.b16 %v2334
        %v4511 = vunpack.c.l.b16 %v2335
        %v4512 = vunpack.c.h.b16 %v2335
        %v4513 = vunpack.c.l.b16 %v2336
        %v4514 = vunpack.c.h.b16 %v2336
        %v4515 = vunpack.c.l.b16 %v2337
        %v4516 = vunpack.c.h.b16 %v2337
        %v4517 = vunpack.c.l.b16 %v2338
        %v4518 = vunpack.c.h.b16 %v2338
        %v4519 = vunpack.c.l.b16 %v2339
        %v4520 = vunpack.c.h.b16 %v2339
        %v4521 = vunpack.c.l.b16 %v2340
        %v4522 = vunpack.c.h.b16 %v2340
        %v4523 = vunpack.c.l.b16 %v2341
        %v4524 = vunpack.c.h.b16 %v2341
        %v4525 = vunpack.c.l.b16 %v2342
        %v4526 = vunpack.c.h.b16 %v2342
        %v4527 = vunpack.c.l.b16 %v2343
        %v4528 = vunpack.c.l.b16 %v2344
        %v4529 = vunpack.c.h.b16 %v2344
        %v4530 = vunpack.c.l.b16 %v2345
        %v4531 = vunpack.c.h.b16 %v2345
        %v4532 = vunpack.c.l.b16 %v2346
        %v4533 = vunpack.c.h.b16 %v2346
        %v4534 = vunpack.c.l.b16 %v2347
        %v4535 = vunpack.c.h.b16 %v2347
        %v4536 = vunpack.c.l.b16 %v2348
        %v4537 = vunpack.c.h.b16 %v2348
        %v4538 = vunpack.c.l.b16 %v2349
        %v4539 = vunpack.c.h.b16 %v2349
        %v4540 = vunpack.c.l.b16 %v2350
        %v4541 = vunpack.c.h.b16 %v2350
        %v4542 = vunpack.c.l.b16 %v2351
        %v4543 = vunpack.c.h.b16 %v2351
        %v4544 = vunpack.c.l.b16 %v2352
        %v4545 = vunpack.c.h.b16 %v2352
        %v4546 = vunpack.c.l.b16 %v2353
        %v4547 = vunpack.c.h.b16 %v2353
        %v4548 = vunpack.c.l.b16 %v2354
        %v4549 = vunpack.c.l.b16 %v2355
        %v4550 = vunpack.c.h.b16 %v2355
        %v4551 = vunpack.c.l.b16 %v2356
        %v4552 = vunpack.c.h.b16 %v2356
        %v4553 = vunpack.c.l.b16 %v2357
        %v4554 = vunpack.c.h.b16 %v2357
        %v4555 = vunpack.c.l.b16 %v2358
        %v4556 = vunpack.c.h.b16 %v2358
        %v4557 = vunpack.c.l.b16 %v2359
        %v4558 = vunpack.c.h.b16 %v2359
        %v4559 = vunpack.c.l.b16 %v2360
        %v4560 = vunpack.c.h.b16 %v2360
        %v4561 = vunpack.c.l.b16 %v2361
        %v4562 = vunpack.c.h.b16 %v2361
        %v4563 = vunpack.c.l.b16 %v2362
        %v4564 = vunpack.c.h.b16 %v2362
        %v4565 = vunpack.c.l.b16 %v2363
        %v4566 = vunpack.c.h.b16 %v2363
        %v4567 = vunpack.c.l.b16 %v2364
        %v4568 = vunpack.c.h.b16 %v2364
        %v4569 = vunpack.c.l.b16 %v2365
        %v4570 = vunpack.c.l.b16 %v2366
        %v4571 = vunpack.c.h.b16 %v2366
        %v4572 = vunpack.c.l.b16 %v2367
        %v4573 = vunpack.c.h.b16 %v2367
        %v4574 = vunpack.c.l.b16 %v2368
        %v4575 = vunpack.c.h.b16 %v2368
        %v4576 = vunpack.c.l.b16 %v2369
        %v4577 = vunpack.c.h.b16 %v2369
        %v4578 = vunpack.c.l.b16 %v2370
        %v4579 = vunpack.c.h.b16 %v2370
        %v4580 = vunpack.c.l.b16 %v2371
        %v4581 = vunpack.c.h.b16 %v2371
        %v4582 = vunpack.c.l.b16 %v2372
        %v4583 = vunpack.c.h.b16 %v2372
        %v4584 = vunpack.c.l.b16 %v2373
        %v4585 = vunpack.c.h.b16 %v2373
        %v4586 = vunpack.c.l.b16 %v2374
        %v4587 = vunpack.c.h.b16 %v2374
        %v4588 = vunpack.c.l.b16 %v2375
        %v4589 = vunpack.c.h.b16 %v2375
        %v4590 = vunpack.c.l.b16 %v2376
        %v4591 = vunpack.c.l.b16 %v2377
        %v4592 = vunpack.c.h.b16 %v2377
        %v4593 = vunpack.c.l.b16 %v2378
        %v4594 = vunpack.c.h.b16 %v2378
        %v4595 = vunpack.c.l.b16 %v2379
        %v4596 = vunpack.c.h.b16 %v2379
        %v4597 = vunpack.c.l.b16 %v2380
        %v4598 = vunpack.c.h.b16 %v2380
        %v4599 = vunpack.c.l.b16 %v2381
        %v4600 = vunpack.c.h.b16 %v2381
        %v4601 = vunpack.c.l.b16 %v2382
        %v4602 = vunpack.c.h.b16 %v2382
        %v4603 = vunpack.c.l.b16 %v2383
        %v4604 = vunpack.c.h.b16 %v2383
        %v4605 = vunpack.c.l.b16 %v2384
        %v4606 = vunpack.c.h.b16 %v2384
        %v4607 = vunpack.c.l.b16 %v2385
        %v4608 = vunpack.c.h.b16 %v2385
        %v4609 = vunpack.c.l.b16 %v2386
        %v4610 = vunpack.c.h.b16 %v2386
        %v4611 = vunpack.c.l.b16 %v2387
        %v4612 = vunpack.c.l.b16 %v2388
        %v4613 = vunpack.c.h.b16 %v2388
        %v4614 = vunpack.c.l.b16 %v2389
        %v4615 = vunpack.c.h.b16 %v2389
        %v4616 = vunpack.c.l.b16 %v2390
        %v4617 = vunpack.c.h.b16 %v2390
        %v4618 = vunpack.c.l.b16 %v2391
        %v4619 = vunpack.c.h.b16 %v2391
        %v4620 = vunpack.c.l.b16 %v2392
        %v4621 = vunpack.c.h.b16 %v2392
        %v4622 = vunpack.c.l.b16 %v2393
        %v4623 = vunpack.c.h.b16 %v2393
        %v4624 = vunpack.c.l.b16 %v2394
        %v4625 = vunpack.c.h.b16 %v2394
        %v4626 = vunpack.c.l.b16 %v2395
        %v4627 = vunpack.c.h.b16 %v2395
        %v4628 = vunpack.c.l.b16 %v2396
        %v4629 = vunpack.c.h.b16 %v2396
        %v4630 = vunpack.c.l.b16 %v2397
        %v4631 = vunpack.c.h.b16 %v2397
        %v4632 = vunpack.c.l.b16 %v2398
        %v4633 = vunpack.c.l.b16 %v2399
        %v4634 = vunpack.c.h.b16 %v2399
        %v4635 = vunpack.c.l.b16 %v2400
        %v4636 = vunpack.c.h.b16 %v2400
        %v4637 = vunpack.c.l.b16 %v2401
        %v4638 = vunpack.c.h.b16 %v2401
        %v4639 = vunpack.c.l.b16 %v2402
        %v4640 = vunpack.c.h.b16 %v2402
        %v4641 = vunpack.c.l.b16 %v2403
        %v4642 = vunpack.c.h.b16 %v2403
        %v4643 = vunpack.c.l.b16 %v2404
        %v4644 = vunpack.c.h.b16 %v2404
        %v4645 = vunpack.c.l.b16 %v2405
        %v4646 = vunpack.c.h.b16 %v2405
        %v4647 = vunpack.c.l.b16 %v2406
        %v4648 = vunpack.c.h.b16 %v2406
        %v4649 = vunpack.c.l.b16 %v2407
        %v4650 = vunpack.c.h.b16 %v2407
        %v4651 = vunpack.c.l.b16 %v2408
        %v4652 = vunpack.c.h.b16 %v2408
        %v4653 = vunpack.c.l.b16 %v2409
        %v4654 = vunpack.c.l.b16 %v2410
        %v4655 = vunpack.c.h.b16 %v2410
        %v4656 = vunpack.c.l.b16 %v2411
        %v4657 = vunpack.c.h.b16 %v2411
        %v4658 = vunpack.c.l.b16 %v2412
        %v4659 = vunpack.c.h.b16 %v2412
        %v4660 = vunpack.c.l.b16 %v2413
        %v4661 = vunpack.c.h.b16 %v2413
        %v4662 = vunpack.c.l.b16 %v2414
        %v4663 = vunpack.c.h.b16 %v2414
        %v4664 = vunpack.c.l.b16 %v2415
        %v4665 = vunpack.c.h.b16 %v2415
        %v4666 = vunpack.c.l.b16 %v2416
        %v4667 = vunpack.c.h.b16 %v2416
        %v4668 = vunpack.c.l.b16 %v2417
        %v4669 = vunpack.c.h.b16 %v2417
        %v4670 = vunpack.c.l.b16 %v2418
        %v4671 = vunpack.c.h.b16 %v2418
        %v4672 = vunpack.c.l.b16 %v2419
        %v4673 = vunpack.c.h.b16 %v2419
        %v4674 = vunpack.c.l.b16 %v2420
        %v4675 = vunpack.c.l.b16 %v2421
        %v4676 = vunpack.c.h.b16 %v2421
        %v4677 = vunpack.c.l.b16 %v2422
        %v4678 = vunpack.c.h.b16 %v2422
        %v4679 = vunpack.c.l.b16 %v2423
        %v4680 = vunpack.c.h.b16 %v2423
        %v4681 = vunpack.c.l.b16 %v2424
        %v4682 = vunpack.c.h.b16 %v2424
        %v4683 = vunpack.c.l.b16 %v2425
        %v4684 = vunpack.c.h.b16 %v2425
        %v4685 = vunpack.c.l.b16 %v2426
        %v4686 = vunpack.c.h.b16 %v2426
        %v4687 = vunpack.c.l.b16 %v2427
        %v4688 = vunpack.c.h.b16 %v2427
        %v4689 = vunpack.c.l.b16 %v2428
        %v4690 = vunpack.c.h.b16 %v2428
        %v4691 = vunpack.c.l.b16 %v2429
        %v4692 = vunpack.c.h.b16 %v2429
        %v4693 = vunpack.c.l.b16 %v2430
        %v4694 = vunpack.c.h.b16 %v2430
        %v4695 = vunpack.c.l.b16 %v2431
        %v4696 = vunpack.c.l.b16 %v2432
        %v4697 = vunpack.c.h.b16 %v2432
        %v4698 = vunpack.c.l.b16 %v2433
        %v4699 = vunpack.c.h.b16 %v2433
        %v4700 = vunpack.c.l.b16 %v2434
        %v4701 = vunpack.c.h.b16 %v2434
        %v4702 = vunpack.c.l.b16 %v2435
        %v4703 = vunpack.c.h.b16 %v2435
        %v4704 = vunpack.c.l.b16 %v2436
        %v4705 = vunpack.c.h.b16 %v2436
        %v4706 = vunpack.c.l.b16 %v2437
        %v4707 = vunpack.c.h.b16 %v2437
        %v4708 = vunpack.c.l.b16 %v2438
        %v4709 = vunpack.c.h.b16 %v2438
        %v4710 = vunpack.c.l.b16 %v2439
        %v4711 = vunpack.c.h.b16 %v2439
        %v4712 = vunpack.c.l.b16 %v2440
        %v4713 = vunpack.c.h.b16 %v2440
        %v4714 = vunpack.c.l.b16 %v2441
        %v4715 = vunpack.c.h.b16 %v2441
        %v4716 = vunpack.c.l.b16 %v2442
        %v4717 = vunpack.c.l.b16 %v2443
        %v4718 = vunpack.c.h.b16 %v2443
        %v4719 = vunpack.c.l.b16 %v2444
        %v4720 = vunpack.c.h.b16 %v2444
        %v4721 = vunpack.c.l.b16 %v2445
        %v4722 = vunpack.c.h.b16 %v2445
        %v4723 = vunpack.c.l.b16 %v2446
        %v4724 = vunpack.c.h.b16 %v2446
        %v4725 = vunpack.c.l.b16 %v2447
        %v4726 = vunpack.c.h.b16 %v2447
        %v4727 = vunpack.c.l.b16 %v2448
        %v4728 = vunpack.c.h.b16 %v2448
        %v4729 = vunpack.c.l.b16 %v2449
        %v4730 = vunpack.c.h.b16 %v2449
        %v4731 = vunpack.c.l.b16 %v2450
        %v4732 = vunpack.c.h.b16 %v2450
        %v4733 = vunpack.c.l.b16 %v2451
        %v4734 = vunpack.c.h.b16 %v2451
        %v4735 = vunpack.c.l.b16 %v2452
        %v4736 = vunpack.c.h.b16 %v2452
        %v4737 = vunpack.c.l.b16 %v2453
        %v4738 = vunpack.c.l.b16 %v2454
        %v4739 = vunpack.c.h.b16 %v2454
        %v4740 = vunpack.c.l.b16 %v2455
        %v4741 = vunpack.c.h.b16 %v2455
        %v4742 = vunpack.c.l.b16 %v2456
        %v4743 = vunpack.c.h.b16 %v2456
        %v4744 = vunpack.c.l.b16 %v2457
        %v4745 = vunpack.c.h.b16 %v2457
        %v4746 = vunpack.c.l.b16 %v2458
        %v4747 = vunpack.c.h.b16 %v2458
        %v4748 = vunpack.c.l.b16 %v2459
        %v4749 = vunpack.c.h.b16 %v2459
        %v4750 = vunpack.c.l.b16 %v2460
        %v4751 = vunpack.c.h.b16 %v2460
        %v4752 = vunpack.c.l.b16 %v2461
        %v4753 = vunpack.c.h.b16 %v2461
        %v4754 = vunpack.c.l.b16 %v2462
        %v4755 = vunpack.c.h.b16 %v2462
        %v4756 = vunpack.c.l.b16 %v2463
        %v4757 = vunpack.c.h.b16 %v2463
        %v4758 = vunpack.c.l.b16 %v2464
        %v4759 = vunpack.c.l.b16 %v2465
        %v4760 = vunpack.c.h.b16 %v2465
        %v4761 = vunpack.c.l.b16 %v2466
        %v4762 = vunpack.c.h.b16 %v2466
        %v4763 = vunpack.c.l.b16 %v2467
        %v4764 = vunpack.c.h.b16 %v2467
        %v4765 = vunpack.c.l.b16 %v2468
        %v4766 = vunpack.c.h.b16 %v2468
        %v4767 = vunpack.c.l.b16 %v2469
        %v4768 = vunpack.c.h.b16 %v2469
        %v4769 = vunpack.c.l.b16 %v2470
        %v4770 = vunpack.c.h.b16 %v2470
        %v4771 = vunpack.c.l.b16 %v2471
        %v4772 = vunpack.c.h.b16 %v2471
        %v4773 = vunpack.c.l.b16 %v2472
        %v4774 = vunpack.c.h.b16 %v2472
        %v4775 = vunpack.c.l.b16 %v2473
        %v4776 = vunpack.c.h.b16 %v2473
        %v4777 = vunpack.c.l.b16 %v2474
        %v4778 = vunpack.c.h.b16 %v2474
        %v4779 = vunpack.c.l.b16 %v2475
        %v4780 = vunpack.c.l.b16 %v2476
        %v4781 = vunpack.c.h.b16 %v2476
        %v4782 = vunpack.c.l.b16 %v2477
        %v4783 = vunpack.c.h.b16 %v2477
        %v4784 = vunpack.c.l.b16 %v2478
        %v4785 = vunpack.c.h.b16 %v2478
        %v4786 = vunpack.c.l.b16 %v2479
        %v4787 = vunpack.c.h.b16 %v2479
        %v4788 = vunpack.c.l.b16 %v2480
        %v4789 = vunpack.c.h.b16 %v2480
        %v4790 = vunpack.c.l.b16 %v2481
        %v4791 = vunpack.c.h.b16 %v2481
        %v4792 = vunpack.c.l.b16 %v2482
        %v4793 = vunpack.c.h.b16 %v2482
        %v4794 = vunpack.c.l.b16 %v2483
        %v4795 = vunpack.c.h.b16 %v2483
        %v4796 = vunpack.c.l.b16 %v2484
        %v4797 = vunpack.c.h.b16 %v2484
        %v4798 = vunpack.c.l.b16 %v2485
        %v4799 = vunpack.c.h.b16 %v2485
        %v4800 = vunpack.c.l.b16 %v2486
        %v4801 = vunpack.c.l.b16 %v2487
        %v4802 = vunpack.c.h.b16 %v2487
        %v4803 = vunpack.c.l.b16 %v2488
        %v4804 = vunpack.c.h.b16 %v2488
        %v4805 = vunpack.c.l.b16 %v2489
        %v4806 = vunpack.c.h.b16 %v2489
        %v4807 = vunpack.c.l.b16 %v2490
        %v4808 = vunpack.c.h.b16 %v2490
        %v4809 = vunpack.c.l.b16 %v2491
        %v4810 = vunpack.c.h.b16 %v2491
        %v4811 = vunpack.c.l.b16 %v2492
        %v4812 = vunpack.c.h.b16 %v2492
        %v4813 = vunpack.c.l.b16 %v2493
        %v4814 = vunpack.c.h.b16 %v2493
        %v4815 = vunpack.c.l.b16 %v2494
        %v4816 = vunpack.c.h.b16 %v2494
        %v4817 = vunpack.c.l.b16 %v2495
        %v4818 = vunpack.c.h.b16 %v2495
        %v4819 = vunpack.c.l.b16 %v2496
        %v4820 = vunpack.c.h.b16 %v2496
        %v4821 = vunpack.c.l.b16 %v2497
        %v4822 = vunpack.c.l.b16 %v2498
        %v4823 = vunpack.c.h.b16 %v2498
        %v4824 = vunpack.c.l.b16 %v2499
        %v4825 = vunpack.c.h.b16 %v2499
        %v4826 = vunpack.c.l.b16 %v2500
        %v4827 = vunpack.c.h.b16 %v2500
        %v4828 = vunpack.c.l.b16 %v2501
        %v4829 = vunpack.c.h.b16 %v2501
        %v4830 = vunpack.c.l.b16 %v2502
        %v4831 = vunpack.c.h.b16 %v2502
        %v4832 = vunpack.c.l.b16 %v2503
        %v4833 = vunpack.c.h.b16 %v2503
        %v4834 = vunpack.c.l.b16 %v2504
        %v4835 = vunpack.c.h.b16 %v2504
        %v4836 = vunpack.c.l.b16 %v2505
        %v4837 = vunpack.c.h.b16 %v2505
        %v4838 = vunpack.c.l.b16 %v2506
        %v4839 = vunpack.c.h.b16 %v2506
        %v4840 = vunpack.c.l.b16 %v2507
        %v4841 = vunpack.c.h.b16 %v2507
        %v4842 = vunpack.c.l.b16 %v2508
        %v4843 = vunpack.c.l.b16 %v2509
        %v4844 = vunpack.c.h.b16 %v2509
        %v4845 = vunpack.c.l.b16 %v2510
        %v4846 = vunpack.c.h.b16 %v2510
        %v4847 = vunpack.c.l.b16 %v2511
        %v4848 = vunpack.c.h.b16 %v2511
        %v4849 = vunpack.c.l.b16 %v2512
        %v4850 = vunpack.c.h.b16 %v2512
        %v4851 = vunpack.c.l.b16 %v2513
        %v4852 = vunpack.c.h.b16 %v2513
        %v4853 = vunpack.c.l.b16 %v2514
        %v4854 = vunpack.c.h.b16 %v2514
        %v4855 = vunpack.c.l.b16 %v2515
        %v4856 = vunpack.c.h.b16 %v2515
        %v4857 = vunpack.c.l.b16 %v2516
        %v4858 = vunpack.c.h.b16 %v2516
        %v4859 = vunpack.c.l.b16 %v2517
        %v4860 = vunpack.c.h.b16 %v2517
        %v4861 = vunpack.c.l.b16 %v2518
        %v4862 = vunpack.c.h.b16 %v2518
        %v4863 = vunpack.c.l.b16 %v2519
        %v4864 = vunpack.c.l.b16 %v2520
        %v4865 = vunpack.c.h.b16 %v2520
        %v4866 = vunpack.c.l.b16 %v2521
        %v4867 = vunpack.c.h.b16 %v2521
        %v4868 = vunpack.c.l.b16 %v2522
        %v4869 = vunpack.c.h.b16 %v2522
        %v4870 = vunpack.c.l.b16 %v2523
        %v4871 = vunpack.c.h.b16 %v2523
        %v4872 = vunpack.c.l.b16 %v2524
        %v4873 = vunpack.c.h.b16 %v2524
        %v4874 = vunpack.c.l.b16 %v2525
        %v4875 = vunpack.c.h.b16 %v2525
        %v4876 = vunpack.c.l.b16 %v2526
        %v4877 = vunpack.c.h.b16 %v2526
        %v4878 = vunpack.c.l.b16 %v2527
        %v4879 = vunpack.c.h.b16 %v2527
        %v4880 = vunpack.c.l.b16 %v2528
        %v4881 = vunpack.c.h.b16 %v2528
        %v4882 = vunpack.c.l.b16 %v2529
        %v4883 = vunpack.c.h.b16 %v2529
        %v4884 = vunpack.c.l.b16 %v2530
        %v4885 = vunpack.c.l.b16 %v2531
        %v4886 = vunpack.c.h.b16 %v2531
        %v4887 = vunpack.c.l.b16 %v2532
        %v4888 = vunpack.c.h.b16 %v2532
        %v4889 = vunpack.c.l.b16 %v2533
        %v4890 = vunpack.c.h.b16 %v2533
        %v4891 = vunpack.c.l.b16 %v2534
        %v4892 = vunpack.c.h.b16 %v2534
        %v4893 = vunpack.c.l.b16 %v2535
        %v4894 = vunpack.c.h.b16 %v2535
        %v4895 = vunpack.c.l.b16 %v2536
        %v4896 = vunpack.c.h.b16 %v2536
        %v4897 = vunpack.c.l.b16 %v2537
        %v4898 = vunpack.c.h.b16 %v2537
        %v4899 = vunpack.c.l.b16 %v2538
        %v4900 = vunpack.c.h.b16 %v2538
        %v4901 = vunpack.c.l.b16 %v2539
        %v4902 = vunpack.c.h.b16 %v2539
        %v4903 = vunpack.c.l.b16 %v2540
        %v4904 = vunpack.c.h.b16 %v2540
        %v4905 = vunpack.c.l.b16 %v2541
        %v4906 = vunpack.c.l.b16 %v2542
        %v4907 = vunpack.c.h.b16 %v2542
        %v4908 = vunpack.c.l.b16 %v2543
        %v4909 = vunpack.c.h.b16 %v2543
        %v4910 = vunpack.c.l.b16 %v2544
        %v4911 = vunpack.c.h.b16 %v2544
        %v4912 = vunpack.c.l.b16 %v2545
        %v4913 = vunpack.c.h.b16 %v2545
        %v4914 = vunpack.c.l.b16 %v2546
        %v4915 = vunpack.c.h.b16 %v2546
        %v4916 = vunpack.c.l.b16 %v2547
        %v4917 = vunpack.c.h.b16 %v2547
        %v4918 = vunpack.c.l.b16 %v2548
        %v4919 = vunpack.c.h.b16 %v2548
        %v4920 = vunpack.c.l.b16 %v2549
        %v4921 = vunpack.c.h.b16 %v2549
        %v4922 = vunpack.c.l.b16 %v2550
        %v4923 = vunpack.c.h.b16 %v2550
        %v4924 = vunpack.c.l.b16 %v2551
        %v4925 = vunpack.c.h.b16 %v2551
        %v4926 = vunpack.c.l.b16 %v2552
        %v4927 = vunpack.c.l.b16 %v2553
        %v4928 = vunpack.c.h.b16 %v2553
        %v4929 = vunpack.c.l.b16 %v2554
        %v4930 = vunpack.c.h.b16 %v2554
        %v4931 = vunpack.c.l.b16 %v2555
        %v4932 = vunpack.c.h.b16 %v2555
        %v4933 = vunpack.c.l.b16 %v2556
        %v4934 = vunpack.c.h.b16 %v2556
        %v4935 = vunpack.c.l.b16 %v2557
        %v4936 = vunpack.c.h.b16 %v2557
        %v4937 = vunpack.c.l.b16 %v2558
        %v4938 = vunpack.c.h.b16 %v2558
        %v4939 = vunpack.c.l.b16 %v2559
        %v4940 = vunpack.c.h.b16 %v2559
        %v4941 = vunpack.c.l.b16 %v2560
        %v4942 = vunpack.c.h.b16 %v2560
        %v4943 = vunpack.c.l.b16 %v2561
        %v4944 = vunpack.c.h.b16 %v2561
        %v4945 = vunpack.c.l.b16 %v2562
        %v4946 = vunpack.c.h.b16 %v2562
        %v4947 = vunpack.c.l.b16 %v2563
        %v4948 = vunpack.c.l.b16 %v2564
        %v4949 = vunpack.c.h.b16 %v2564
        %v4950 = vunpack.c.l.b16 %v2565
        %v4951 = vunpack.c.h.b16 %v2565
        %v4952 = vunpack.c.l.b16 %v2566
        %v4953 = vunpack.c.h.b16 %v2566
        %v4954 = vunpack.c.l.b16 %v2567
        %v4955 = vunpack.c.h.b16 %v2567
        %v4956 = vunpack.c.l.b16 %v2568
        %v4957 = vunpack.c.h.b16 %v2568
        %v4958 = vunpack.c.l.b16 %v2569
        %v4959 = vunpack.c.h.b16 %v2569
        %v4960 = vunpack.c.l.b16 %v2570
        %v4961 = vunpack.c.h.b16 %v2570
        %v4962 = vunpack.c.l.b16 %v2571
        %v4963 = vunpack.c.h.b16 %v2571
        %v4964 = vunpack.c.l.b16 %v2572
        %v4965 = vunpack.c.h.b16 %v2572
        %v4966 = vunpack.c.l.b16 %v2573
        %v4967 = vunpack.c.h.b16 %v2573
        %v4968 = vunpack.c.l.b16 %v2574
        %v4969 = vunpack.c.l.b16 %v2575
        %v4970 = vunpack.c.h.b16 %v2575
        %v4971 = vunpack.c.l.b16 %v2576
        %v4972 = vunpack.c.h.b16 %v2576
        %v4973 = vunpack.c.l.b16 %v2577
        %v4974 = vunpack.c.h.b16 %v2577
        %v4975 = vunpack.c.l.b16 %v2578
        %v4976 = vunpack.c.h.b16 %v2578
        %v4977 = vunpack.c.l.b16 %v2579
        %v4978 = vunpack.c.h.b16 %v2579
        %v4979 = vunpack.c.l.b16 %v2580
        %v4980 = vunpack.c.h.b16 %v2580
        %v4981 = vunpack.c.l.b16 %v2581
        %v4982 = vunpack.c.h.b16 %v2581
        %v4983 = vunpack.c.l.b16 %v2582
        %v4984 = vunpack.c.h.b16 %v2582
        %v4985 = vunpack.c.l.b16 %v2583
        %v4986 = vunpack.c.h.b16 %v2583
        %v4987 = vunpack.c.l.b16 %v2584
        %v4988 = vunpack.c.h.b16 %v2584
        %v4989 = vunpack.c.l.b16 %v2585
        %v4990 = vunpack.c.l.b16 %v2586
        %v4991 = vunpack.c.h.b16 %v2586
        %v4992 = vunpack.c.l.b16 %v2587
        %v4993 = vunpack.c.h.b16 %v2587
        %v4994 = vunpack.c.l.b16 %v2588
        %v4995 = vunpack.c.h.b16 %v2588
        %v4996 = vunpack.c.l.b16 %v2589
        %v4997 = vunpack.c.h.b16 %v2589
        %v4998 = vunpack.c.l.b16 %v2590
        %v4999 = vunpack.c.h.b16 %v2590
        %v5000 = vunpack.c.l.b16 %v2591
        %v5001 = vunpack.c.h.b16 %v2591
        %v5002 = vunpack.c.l.b16 %v2592
        %v5003 = vunpack.c.h.b16 %v2592
        %v5004 = vunpack.c.l.b16 %v2593
        %v5005 = vunpack.c.h.b16 %v2593
        %v5006 = vunpack.c.l.b16 %v2594
        %v5007 = vunpack.c.h.b16 %v2594
        %v5008 = vunpack.c.l.b16 %v2595
        %v5009 = vunpack.c.h.b16 %v2595
        %v5010 = vunpack.c.l.b16 %v2596
        %v5011 = vunpack.c.l.b16 %v2597
        %v5012 = vunpack.c.h.b16 %v2597
        %v5013 = vunpack.c.l.b16 %v2598
        %v5014 = vunpack.c.h.b16 %v2598
        %v5015 = vunpack.c.l.b16 %v2599
        %v5016 = vunpack.c.h.b16 %v2599
        %v5017 = vunpack.c.l.b16 %v2600
        %v5018 = vunpack.c.h.b16 %v2600
        %v5019 = vunpack.c.l.b16 %v2601
        %v5020 = vunpack.c.h.b16 %v2601
        %v5021 = vunpack.c.l.b16 %v2602
        %v5022 = vunpack.c.h.b16 %v2602
        %v5023 = vunpack.c.l.b16 %v2603
        %v5024 = vunpack.c.h.b16 %v2603
        %v5025 = vunpack.c.l.b16 %v2604
        %v5026 = vunpack.c.h.b16 %v2604
        %v5027 = vunpack.c.l.b16 %v2605
        %v5028 = vunpack.c.h.b16 %v2605
        %v5029 = vunpack.c.l.b16 %v2606
        %v5030 = vunpack.c.h.b16 %v2606
        %v5031 = vunpack.c.l.b16 %v2607
        %v5032 = vunpack.c.l.b16 %v2608
        %v5033 = vunpack.c.h.b16 %v2608
        %v5034 = vunpack.c.l.b16 %v2609
        %v5035 = vunpack.c.h.b16 %v2609
        %v5036 = vunpack.c.l.b16 %v2610
        %v5037 = vunpack.c.h.b16 %v2610
        %v5038 = vunpack.c.l.b16 %v2611
        %v5039 = vunpack.c.h.b16 %v2611
        %v5040 = vunpack.c.l.b16 %v2612
        %v5041 = vunpack.c.h.b16 %v2612
        %v5042 = vunpack.c.l.b16 %v2613
        %v5043 = vunpack.c.h.b16 %v2613
        %v5044 = vunpack.c.l.b16 %v2614
        %v5045 = vunpack.c.h.b16 %v2614
        %v5046 = vunpack.c.l.b16 %v2615
        %v5047 = vunpack.c.h.b16 %v2615
        %v5048 = vunpack.c.l.b16 %v2616
        %v5049 = vunpack.c.h.b16 %v2616
        %v5050 = vunpack.c.l.b16 %v2617
        %v5051 = vunpack.c.h.b16 %v2617
        %v5052 = vunpack.c.l.b16 %v2618
        %v5053 = vunpack.c.l.b16 %v2619
        %v5054 = vunpack.c.h.b16 %v2619
        %v5055 = vunpack.c.l.b16 %v2620
        %v5056 = vunpack.c.h.b16 %v2620
        %v5057 = vunpack.c.l.b16 %v2621
        %v5058 = vunpack.c.h.b16 %v2621
        %v5059 = vunpack.c.l.b16 %v2622
        %v5060 = vunpack.c.h.b16 %v2622
        %v5061 = vunpack.c.l.b16 %v2623
        %v5062 = vunpack.c.h.b16 %v2623
        %v5063 = vunpack.c.l.b16 %v2624
        %v5064 = vunpack.c.h.b16 %v2624
        %v5065 = vunpack.c.l.b16 %v2625
        %v5066 = vunpack.c.h.b16 %v2625
        %v5067 = vunpack.c.l.b16 %v2626
        %v5068 = vunpack.c.h.b16 %v2626
        %v5069 = vunpack.c.l.b16 %v2627
        %v5070 = vunpack.c.h.b16 %v2627
        %v5071 = vunpack.c.l.b16 %v2628
        %v5072 = vunpack.c.h.b16 %v2628
        %v5073 = vunpack.c.l.b16 %v2629
        %v5074 = vunpack.c.l.b16 %v2630
        %v5075 = vunpack.c.h.b16 %v2630
        %v5076 = vunpack.c.l.b16 %v2631
        %v5077 = vunpack.c.h.b16 %v2631
        %v5078 = vunpack.c.l.b16 %v2632
        %v5079 = vunpack.c.h.b16 %v2632
        %v5080 = vunpack.c.l.b16 %v2633
        %v5081 = vunpack.c.h.b16 %v2633
        %v5082 = vunpack.c.l.b16 %v2634
        %v5083 = vunpack.c.h.b16 %v2634
        %v5084 = vunpack.c.l.b16 %v2635
        %v5085 = vunpack.c.h.b16 %v2635
        %v5086 = vunpack.c.l.b16 %v2636
        %v5087 = vunpack.c.h.b16 %v2636
        %v5088 = vunpack.c.l.b16 %v2637
        %v5089 = vunpack.c.h.b16 %v2637
        %v5090 = vunpack.c.l.b16 %v2638
        %v5091 = vunpack.c.h.b16 %v2638
        %v5092 = vunpack.c.l.b16 %v2639
        %v5093 = vunpack.c.h.b16 %v2639
        %v5094 = vunpack.c.l.b16 %v2640
        %v5095 = vunpack.c.l.b16 %v2641
        %v5096 = vunpack.c.h.b16 %v2641
        %v5097 = vunpack.c.l.b16 %v2642
        %v5098 = vunpack.c.h.b16 %v2642
        %v5099 = vunpack.c.l.b16 %v2643
        %v5100 = vunpack.c.h.b16 %v2643
        %v5101 = vunpack.c.l.b16 %v2644
        %v5102 = vunpack.c.h.b16 %v2644
        %v5103 = vunpack.c.l.b16 %v2645
        %v5104 = vunpack.c.h.b16 %v2645
        %v5105 = vunpack.c.l.b16 %v2646
        %v5106 = vunpack.c.h.b16 %v2646
        %v5107 = vunpack.c.l.b16 %v2647
        %v5108 = vunpack.c.h.b16 %v2647
        %v5109 = vunpack.c.l.b16 %v2648
        %v5110 = vunpack.c.h.b16 %v2648
        %v5111 = vunpack.c.l.b16 %v2649
        %v5112 = vunpack.c.h.b16 %v2649
        %v5113 = vunpack.c.l.b16 %v2650
        %v5114 = vunpack.c.h.b16 %v2650
        %v5115 = vunpack.c.l.b16 %v2651
        %v5116 = vunpack.c.l.b16 %v2652
        %v5117 = vunpack.c.h.b16 %v2652
        %v5118 = vunpack.c.l.b16 %v2653
        %v5119 = vunpack.c.h.b16 %v2653
        %v5120 = vunpack.c.l.b16 %v2654
        %v5121 = vunpack.c.h.b16 %v2654
        %v5122 = vunpack.c.l.b16 %v2655
        %v5123 = vunpack.c.h.b16 %v2655
        %v5124 = vunpack.c.l.b16 %v2656
        %v5125 = vunpack.c.h.b16 %v2656
        %v5126 = vunpack.c.l.b16 %v2657
        %v5127 = vunpack.c.h.b16 %v2657
        %v5128 = vunpack.c.l.b16 %v2658
        %v5129 = vunpack.c.h.b16 %v2658
        %v5130 = vunpack.c.l.b16 %v2659
        %v5131 = vunpack.c.h.b16 %v2659
        %v5132 = vunpack.c.l.b16 %v2660
        %v5133 = vunpack.c.h.b16 %v2660
        %v5134 = vunpack.c.l.b16 %v2661
        %v5135 = vunpack.c.h.b16 %v2661
        %v5136 = vunpack.c.l.b16 %v2662
        %v5137 = vunpack.c.l.b16 %v2663
        %v5138 = vunpack.c.h.b16 %v2663
        %v5139 = vunpack.c.l.b16 %v2664
        %v5140 = vunpack.c.h.b16 %v2664
        %v5141 = vunpack.c.l.b16 %v2665
        %v5142 = vunpack.c.h.b16 %v2665
        %v5143 = vunpack.c.l.b16 %v2666
        %v5144 = vunpack.c.h.b16 %v2666
        %v5145 = vunpack.c.l.b16 %v2667
        %v5146 = vunpack.c.h.b16 %v2667
        %v5147 = vunpack.c.l.b16 %v2668
        %v5148 = vunpack.c.h.b16 %v2668
        %v5149 = vunpack.c.l.b16 %v2669
        %v5150 = vunpack.c.h.b16 %v2669
        %v5151 = vunpack.c.l.b16 %v2670
        %v5152 = vunpack.c.h.b16 %v2670
        %v5153 = vunpack.c.l.b16 %v2671
        %v5154 = vunpack.c.h.b16 %v2671
        %v5155 = vunpack.c.l.b16 %v2672
        %v5156 = vunpack.c.h.b16 %v2672
        %v5157 = vunpack.c.l.b16 %v2673
        %v5158 = vunpack.c.l.b16 %v2674
        %v5159 = vunpack.c.h.b16 %v2674
        %v5160 = vunpack.c.l.b16 %v2675
        %v5161 = vunpack.c.h.b16 %v2675
        %v5162 = vunpack.c.l.b16 %v2676
        %v5163 = vunpack.c.h.b16 %v2676
        %v5164 = vunpack.c.l.b16 %v2677
        %v5165 = vunpack.c.h.b16 %v2677
        %v5166 = vunpack.c.l.b16 %v2678
        %v5167 = vunpack.c.h.b16 %v2678
        %v5168 = vunpack.c.l.b16 %v2679
        %v5169 = vunpack.c.h.b16 %v2679
        %v5170 = vunpack.c.l.b16 %v2680
        %v5171 = vunpack.c.h.b16 %v2680
        %v5172 = vunpack.c.l.b16 %v2681
        %v5173 = vunpack.c.h.b16 %v2681
        %v5174 = vunpack.c.l.b16 %v2682
        %v5175 = vunpack.c.h.b16 %v2682
        %v5176 = vunpack.c.l.b16 %v2683
        %v5177 = vunpack.c.h.b16 %v2683
        %v5178 = vunpack.c.l.b16 %v2684
        %v5179 = vunpack.c.l.b16 %v2685
        %v5180 = vunpack.c.h.b16 %v2685
        %v5181 = vunpack.c.l.b16 %v2686
        %v5182 = vunpack.c.h.b16 %v2686
        %v5183 = vunpack.c.l.b16 %v2687
        %v5184 = vunpack.c.h.b16 %v2687
        %v5185 = vunpack.c.l.b16 %v2688
        %v5186 = vunpack.c.h.b16 %v2688
        %v5187 = vunpack.c.l.b16 %v2689
        %v5188 = vunpack.c.h.b16 %v2689
        %v5189 = vunpack.c.l.b16 %v2690
        %v5190 = vunpack.c.h.b16 %v2690
        %v5191 = vunpack.c.l.b16 %v2691
        %v5192 = vunpack.c.h.b16 %v2691
        %v5193 = vunpack.c.l.b16 %v2692
        %v5194 = vunpack.c.h.b16 %v2692
        %v5195 = vunpack.c.l.b16 %v2693
        %v5196 = vunpack.c.h.b16 %v2693
        %v5197 = vunpack.c.l.b16 %v2694
        %v5198 = vunpack.c.h.b16 %v2694
        %v5199 = vunpack.c.l.b16 %v2695
        %v5200 = vunpack.c.l.b16 %v2696
        %v5201 = vunpack.c.h.b16 %v2696
        %v5202 = vunpack.c.l.b16 %v2697
        %v5203 = vunpack.c.h.b16 %v2697
        %v5204 = vunpack.c.l.b16 %v2698
        %v5205 = vunpack.c.h.b16 %v2698
        %v5206 = vunpack.c.l.b16 %v2699
        %v5207 = vunpack.c.h.b16 %v2699
        %v5208 = vunpack.c.l.b16 %v2700
        %v5209 = vunpack.c.h.b16 %v2700
        %v5210 = vunpack.c.l.b16 %v2701
        %v5211 = vunpack.c.h.b16 %v2701
        %v5212 = vunpack.c.l.b16 %v2702
        %v5213 = vunpack.c.h.b16 %v2702
        %v5214 = vunpack.c.l.b16 %v2703
        %v5215 = vunpack.c.h.b16 %v2703
        %v5216 = vunpack.c.l.b16 %v2704
        %v5217 = vunpack.c.h.b16 %v2704
        %v5218 = vunpack.c.l.b16 %v2705
        %v5219 = vunpack.c.h.b16 %v2705
        %v5220 = vunpack.c.l.b16 %v2706
        %v5221 = vunpack.c.l.b16 %v2707
        %v5222 = vunpack.c.h.b16 %v2707
        %v5223 = vunpack.c.l.b16 %v2708
        %v5224 = vunpack.c.h.b16 %v2708
        %v5225 = vunpack.c.l.b16 %v2709
        %v5226 = vunpack.c.h.b16 %v2709
        %v5227 = vunpack.c.l.b16 %v2710
        %v5228 = vunpack.c.h.b16 %v2710
        %v5229 = vunpack.c.l.b16 %v2711
        %v5230 = vunpack.c.h.b16 %v2711
        %v5231 = vunpack.c.l.b16 %v2712
        %v5232 = vunpack.c.h.b16 %v2712
        %v5233 = vunpack.c.l.b16 %v2713
        %v5234 = vunpack.c.h.b16 %v2713
        %v5235 = vunpack.c.l.b16 %v2714
        %v5236 = vunpack.c.h.b16 %v2714
        %v5237 = vunpack.c.l.b16 %v2715
        %v5238 = vunpack.c.h.b16 %v2715
        %v5239 = vunpack.c.l.b16 %v2716
        %v5240 = vunpack.c.h.b16 %v2716
        %v5241 = vunpack.c.l.b16 %v2717
        %v5242 = vunpack.c.l.b16 %v2718
        %v5243 = vunpack.c.h.b16 %v2718
        %v5244 = vunpack.c.l.b16 %v2719
        %v5245 = vunpack.c.h.b16 %v2719
        %v5246 = vunpack.c.l.b16 %v2720
        %v5247 = vunpack.c.h.b16 %v2720
        %v5248 = vunpack.c.l.b16 %v2721
        %v5249 = vunpack.c.h.b16 %v2721
        %v5250 = vunpack.c.l.b16 %v2722
        %v5251 = vunpack.c.h.b16 %v2722
        %v5252 = vunpack.c.l.b16 %v2723
        %v5253 = vunpack.c.h.b16 %v2723
        %v5254 = vunpack.c.l.b16 %v2724
        %v5255 = vunpack.c.h.b16 %v2724
        %v5256 = vunpack.c.l.b16 %v2725
        %v5257 = vunpack.c.h.b16 %v2725
        %v5258 = vunpack.c.l.b16 %v2726
        %v5259 = vunpack.c.h.b16 %v2726
        %v5260 = vunpack.c.l.b16 %v2727
        %v5261 = vunpack.c.h.b16 %v2727
        %v5262 = vunpack.c.l.b16 %v2728
        %v5263 = vunpack.c.l.b16 %v2729
        %v5264 = vunpack.c.h.b16 %v2729
        %v5265 = vunpack.c.l.b16 %v2730
        %v5266 = vunpack.c.h.b16 %v2730
        %v5267 = vunpack.c.l.b16 %v2731
        %v5268 = vunpack.c.h.b16 %v2731
        %v5269 = vunpack.c.l.b16 %v2732
        %v5270 = vunpack.c.h.b16 %v2732
        %v5271 = vunpack.c.l.b16 %v2733
        %v5272 = vunpack.c.h.b16 %v2733
        %v5273 = vunpack.c.l.b16 %v2734
        %v5274 = vunpack.c.h.b16 %v2734
        %v5275 = vunpack.c.l.b16 %v2735
        %v5276 = vunpack.c.h.b16 %v2735
        %v5277 = vunpack.c.l.b16 %v2736
        %v5278 = vunpack.c.h.b16 %v2736
        %v5279 = vunpack.c.l.b16 %v2737
        %v5280 = vunpack.c.h.b16 %v2737
        %v5281 = vunpack.c.l.b16 %v2738
        %v5282 = vunpack.c.h.b16 %v2738
        %v5283 = vunpack.c.l.b16 %v2739
        %v5284 = vunpack.c.l.b16 %v2740
        %v5285 = vunpack.c.h.b16 %v2740
        %v5286 = vunpack.c.l.b16 %v2741
        %v5287 = vunpack.c.h.b16 %v2741
        %v5288 = vunpack.c.l.b16 %v2742
        %v5289 = vunpack.c.h.b16 %v2742
        %v5290 = vunpack.c.l.b16 %v2743
        %v5291 = vunpack.c.h.b16 %v2743
        %v5292 = vunpack.c.l.b16 %v2744
        %v5293 = vunpack.c.h.b16 %v2744
        %v5294 = vunpack.c.l.b16 %v2745
        %v5295 = vunpack.c.h.b16 %v2745
        %v5296 = vunpack.c.l.b16 %v2746
        %v5297 = vunpack.c.h.b16 %v2746
        %v5298 = vunpack.c.l.b16 %v2747
        %v5299 = vunpack.c.h.b16 %v2747
        %v5300 = vunpack.c.l.b16 %v2748
        %v5301 = vunpack.c.h.b16 %v2748
        %v5302 = vunpack.c.l.b16 %v2749
        %v5303 = vunpack.c.h.b16 %v2749
        %v5304 = vunpack.c.l.b16 %v2750
        %v5305 = vunpack.c.l.b16 %v2751
        %v5306 = vunpack.c.h.b16 %v2751
        %v5307 = vunpack.c.l.b16 %v2752
        %v5308 = vunpack.c.h.b16 %v2752
        %v5309 = vunpack.c.l.b16 %v2753
        %v5310 = vunpack.c.h.b16 %v2753
        %v5311 = vunpack.c.l.b16 %v2754
        %v5312 = vunpack.c.h.b16 %v2754
        %v5313 = vunpack.c.l.b16 %v2755
        %v5314 = vunpack.c.h.b16 %v2755
        %v5315 = vunpack.c.l.b16 %v2756
        %v5316 = vunpack.c.h.b16 %v2756
        %v5317 = vunpack.c.l.b16 %v2757
        %v5318 = vunpack.c.h.b16 %v2757
        %v5319 = vunpack.c.l.b16 %v2758
        %v5320 = vunpack.c.h.b16 %v2758
        %v5321 = vunpack.c.l.b16 %v2759
        %v5322 = vunpack.c.h.b16 %v2759
        %v5323 = vunpack.c.l.b16 %v2760
        %v5324 = vunpack.c.h.b16 %v2760
        %v5325 = vunpack.c.l.b16 %v2761
        %v5326 = vunpack.c.l.b16 %v2762
        %v5327 = vunpack.c.h.b16 %v2762
        %v5328 = vunpack.c.l.b16 %v2763
        %v5329 = vunpack.c.h.b16 %v2763
        %v5330 = vunpack.c.l.b16 %v2764
        %v5331 = vunpack.c.h.b16 %v2764
        %v5332 = vunpack.c.l.b16 %v2765
        %v5333 = vunpack.c.h.b16 %v2765
        %v5334 = vunpack.c.l.b16 %v2766
        %v5335 = vunpack.c.h.b16 %v2766
        %v5336 = vunpack.c.l.b16 %v2767
        %v5337 = vunpack.c.h.b16 %v2767
        %v5338 = vunpack.c.l.b16 %v2768
        %v5339 = vunpack.c.h.b16 %v2768
        %v5340 = vunpack.c.l.b16 %v2769
        %v5341 = vunpack.c.h.b16 %v2769
        %v5342 = vunpack.c.l.b16 %v2770
        %v5343 = vunpack.c.h.b16 %v2770
        %v5344 = vunpack.c.l.b16 %v2771
        %v5345 = vunpack.c.h.b16 %v2771
        %v5346 = vunpack.c.l.b16 %v2772
        %v5347 = vunpack.c.l.b16 %v2773
        %v5348 = vunpack.c.h.b16 %v2773
        %v5349 = vunpack.c.l.b16 %v2774
        %v5350 = vunpack.c.h.b16 %v2774
        %v5351 = vunpack.c.l.b16 %v2775
        %v5352 = vunpack.c.h.b16 %v2775
        %v5353 = vunpack.c.l.b16 %v2776
        %v5354 = vunpack.c.h.b16 %v2776
        %v5355 = vunpack.c.l.b16 %v2777
        %v5356 = vunpack.c.h.b16 %v2777
        %v5357 = vunpack.c.l.b16 %v2778
        %v5358 = vunpack.c.h.b16 %v2778
        %v5359 = vunpack.c.l.b16 %v2779
        %v5360 = vunpack.c.h.b16 %v2779
        %v5361 = vunpack.c.l.b16 %v2780
        %v5362 = vunpack.c.h.b16 %v2780
        %v5363 = vunpack.c.l.b16 %v2781
        %v5364 = vunpack.c.h.b16 %v2781
        %v5365 = vunpack.c.l.b16 %v2782
        %v5366 = vunpack.c.h.b16 %v2782
        %v5367 = vunpack.c.l.b16 %v2783
        %v5368 = vunpack.c.l.b16 %v2784
        %v5369 = vunpack.c.h.b16 %v2784
        %v5370 = vunpack.c.l.b16 %v2785
        %v5371 = vunpack.c.h.b16 %v2785
        %v5372 = vunpack.c.l.b16 %v2786
        %v5373 = vunpack.c.h.b16 %v2786
        %v5374 = vunpack.c.l.b16 %v2787
        %v5375 = vunpack.c.h.b16 %v2787
        %v5376 = vunpack.c.l.b16 %v2788
        %v5377 = vunpack.c.h.b16 %v2788
        %v5378 = vunpack.c.l.b16 %v2789
        %v5379 = vunpack.c.h.b16 %v2789
        %v5380 = vunpack.c.l.b16 %v2790
        %v5381 = vunpack.c.h.b16 %v2790
        %v5382 = vunpack.c.l.b16 %v2791
        %v5383 = vunpack.c.h.b16 %v2791
        %v5384 = vunpack.c.l.b16 %v2792
        %v5385 = vunpack.c.h.b16 %v2792
        %v5386 = vunpack.c.l.b16 %v2793
        %v5387 = vunpack.c.h.b16 %v2793
        %v5388 = vunpack.c.l.b16 %v2794
        %v5389 = vunpack.c.l.b16 %v2795
        %v5390 = vunpack.c.h.b16 %v2795
        %v5391 = vunpack.c.l.b16 %v2796
        %v5392 = vunpack.c.h.b16 %v2796
        %v5393 = vunpack.c.l.b16 %v2797
        %v5394 = vunpack.c.h.b16 %v2797
        %v5395 = vunpack.c.l.b16 %v2798
        %v5396 = vunpack.c.h.b16 %v2798
        %v5397 = vunpack.c.l.b16 %v2799
        %v5398 = vunpack.c.h.b16 %v2799
        %v5399 = vunpack.c.l.b16 %v2800
        %v5400 = vunpack.c.h.b16 %v2800
        %v5401 = vunpack.c.l.b16 %v2801
        %v5402 = vunpack.c.h.b16 %v2801
        %v5403 = vunpack.c.l.b16 %v2802
        %v5404 = vunpack.c.h.b16 %v2802
        %v5405 = vunpack.c.l.b16 %v2803
        %v5406 = vunpack.c.h.b16 %v2803
        %v5407 = vunpack.c.l.b16 %v2804
        %v5408 = vunpack.c.h.b16 %v2804
        %v5409 = vunpack.c.l.b16 %v2805
        %v5410 = vunpack.c.l.b16 %v2806
        %v5411 = vunpack.c.h.b16 %v2806
        %v5412 = vunpack.c.l.b16 %v2807
        %v5413 = vunpack.c.h.b16 %v2807
        %v5414 = vunpack.c.l.b16 %v2808
        %v5415 = vunpack.c.h.b16 %v2808
        %v5416 = vunpack.c.l.b16 %v2809
        %v5417 = vunpack.c.h.b16 %v2809
        %v5418 = vunpack.c.l.b16 %v2810
        %v5419 = vunpack.c.h.b16 %v2810
        %v5420 = vunpack.c.l.b16 %v2811
        %v5421 = vunpack.c.h.b16 %v2811
        %v5422 = vunpack.c.l.b16 %v2812
        %v5423 = vunpack.c.h.b16 %v2812
        %v5424 = vunpack.c.l.b16 %v2813
        %v5425 = vunpack.c.h.b16 %v2813
        %v5426 = vunpack.c.l.b16 %v2814
        %v5427 = vunpack.c.h.b16 %v2814
        %v5428 = vunpack.c.l.b16 %v2815
        %v5429 = vunpack.c.h.b16 %v2815
        %v5430 = vunpack.c.l.b16 %v2816
        %v5431 = vunpack.c.l.b16 %v2817
        %v5432 = vunpack.c.h.b16 %v2817
        %v5433 = vunpack.c.l.b16 %v2818
        %v5434 = vunpack.c.h.b16 %v2818
        %v5435 = vunpack.c.l.b16 %v2819
        %v5436 = vunpack.c.h.b16 %v2819
        %v5437 = vunpack.c.l.b16 %v2820
        %v5438 = vunpack.c.h.b16 %v2820
        %v5439 = vunpack.c.l.b16 %v2821
        %v5440 = vunpack.c.h.b16 %v2821
        %v5441 = vunpack.c.l.b16 %v2822
        %v5442 = vunpack.c.h.b16 %v2822
        %v5443 = vunpack.c.l.b16 %v2823
        %v5444 = vunpack.c.h.b16 %v2823
        %v5445 = vunpack.c.l.b16 %v2824
        %v5446 = vunpack.c.h.b16 %v2824
        %v5447 = vunpack.c.l.b16 %v2825
        %v5448 = vunpack.c.h.b16 %v2825
        %v5449 = vunpack.c.l.b16 %v2826
        %v5450 = vunpack.c.h.b16 %v2826
        %v5451 = vunpack.c.l.b16 %v2827
        %v5452 = vunpack.c.l.b16 %v2828
        %v5453 = vunpack.c.h.b16 %v2828
        %v5454 = vunpack.c.l.b16 %v2829
        %v5455 = vunpack.c.h.b16 %v2829
        %v5456 = vunpack.c.l.b16 %v2830
        %v5457 = vunpack.c.h.b16 %v2830
        %v5458 = vunpack.c.l.b16 %v2831
        %v5459 = vunpack.c.h.b16 %v2831
        %v5460 = vunpack.c.l.b16 %v2832
        %v5461 = vunpack.c.h.b16 %v2832
        %v5462 = vunpack.c.l.b16 %v2833
        %v5463 = vunpack.c.h.b16 %v2833
        %v5464 = vunpack.c.l.b16 %v2834
        %v5465 = vunpack.c.h.b16 %v2834
        %v5466 = vunpack.c.l.b16 %v2835
        %v5467 = vunpack.c.h.b16 %v2835
        %v5468 = vunpack.c.l.b16 %v2836
        %v5469 = vunpack.c.h.b16 %v2836
        %v5470 = vunpack.c.l.b16 %v2837
        %v5471 = vunpack.c.h.b16 %v2837
        %v5472 = vunpack.c.l.b16 %v2838
        %v5473 = vunpack.c.l.b16 %v2839
        %v5474 = vunpack.c.h.b16 %v2839
        %v5475 = vunpack.c.l.b16 %v2840
        %v5476 = vunpack.c.h.b16 %v2840
        %v5477 = vunpack.c.l.b16 %v2841
        %v5478 = vunpack.c.h.b16 %v2841
        %v5479 = vunpack.c.l.b16 %v2842
        %v5480 = vunpack.c.h.b16 %v2842
        %v5481 = vunpack.c.l.b16 %v2843
        %v5482 = vunpack.c.h.b16 %v2843
        %v5483 = vunpack.c.l.b16 %v2844
        %v5484 = vunpack.c.h.b16 %v2844
        %v5485 = vunpack.c.l.b16 %v2845
        %v5486 = vunpack.c.h.b16 %v2845
        %v5487 = vunpack.c.l.b16 %v2846
        %v5488 = vunpack.c.h.b16 %v2846
        %v5489 = vunpack.c.l.b16 %v2847
        %v5490 = vunpack.c.h.b16 %v2847
        %v5491 = vunpack.c.l.b16 %v2848
        %v5492 = vunpack.c.h.b16 %v2848
        %v5493 = vunpack.c.l.b16 %v2849
        %v5494 = vunpack.c.l.b16 %v2850
        %v5495 = vunpack.c.h.b16 %v2850
        %v5496 = vunpack.c.l.b16 %v2851
        %v5497 = vunpack.c.h.b16 %v2851
        %v5498 = vunpack.c.l.b16 %v2852
        %v5499 = vunpack.c.h.b16 %v2852
        %v5500 = vunpack.c.l.b16 %v2853
        %v5501 = vunpack.c.h.b16 %v2853
        %v5502 = vunpack.c.l.b16 %v2854
        %v5503 = vunpack.c.h.b16 %v2854
        %v5504 = vunpack.c.l.b16 %v2855
        %v5505 = vunpack.c.h.b16 %v2855
        %v5506 = vunpack.c.l.b16 %v2856
        %v5507 = vunpack.c.h.b16 %v2856
        %v5508 = vunpack.c.l.b16 %v2857
        %v5509 = vunpack.c.h.b16 %v2857
        %v5510 = vunpack.c.l.b16 %v2858
        %v5511 = vunpack.c.h.b16 %v2858
        %v5512 = vunpack.c.l.b16 %v2859
        %v5513 = vunpack.c.h.b16 %v2859
        %v5514 = vunpack.c.l.b16 %v2860
        %v5515 = vunpack.c.l.b16 %v2861
        %v5516 = vunpack.c.h.b16 %v2861
        %v5517 = vunpack.c.l.b16 %v2862
        %v5518 = vunpack.c.h.b16 %v2862
        %v5519 = vunpack.c.l.b16 %v2863
        %v5520 = vunpack.c.h.b16 %v2863
        %v5521 = vunpack.c.l.b16 %v2864
        %v5522 = vunpack.c.h.b16 %v2864
        %v5523 = vunpack.c.l.b16 %v2865
        %v5524 = vunpack.c.h.b16 %v2865
        %v5525 = vunpack.c.l.b16 %v2866
        %v5526 = vunpack.c.h.b16 %v2866
        %v5527 = vunpack.c.l.b16 %v2867
        %v5528 = vunpack.c.h.b16 %v2867
        %v5529 = vunpack.c.l.b16 %v2868
        %v5530 = vunpack.c.h.b16 %v2868
        %v5531 = vunpack.c.l.b16 %v2869
        %v5532 = vunpack.c.h.b16 %v2869
        %v5533 = vunpack.c.l.b16 %v2870
        %v5534 = vunpack.c.h.b16 %v2870
        %v5535 = vunpack.c.l.b16 %v2871
        %v5536 = vunpack.c.l.b16 %v2872
        %v5537 = vunpack.c.h.b16 %v2872
        %v5538 = vunpack.c.l.b16 %v2873
        %v5539 = vunpack.c.h.b16 %v2873
        %v5540 = vunpack.c.l.b16 %v2874
        %v5541 = vunpack.c.h.b16 %v2874
        %v5542 = vunpack.c.l.b16 %v2875
        %v5543 = vunpack.c.h.b16 %v2875
        %v5544 = vunpack.c.l.b16 %v2876
        %v5545 = vunpack.c.h.b16 %v2876
        %v5546 = vunpack.c.l.b16 %v2877
        %v5547 = vunpack.c.h.b16 %v2877
        %v5548 = vunpack.c.l.b16 %v2878
        %v5549 = vunpack.c.h.b16 %v2878
        %v5550 = vunpack.c.l.b16 %v2879
        %v5551 = vunpack.c.h.b16 %v2879
        %v5552 = vunpack.c.l.b16 %v2880
        %v5553 = vunpack.c.h.b16 %v2880
        %v5554 = vunpack.c.l.b16 %v2881
        %v5555 = vunpack.c.h.b16 %v2881
        %v5556 = vunpack.c.l.b16 %v2882
        %v5557 = vunpack.c.l.b16 %v2883
        %v5558 = vunpack.c.h.b16 %v2883
        %v5559 = vunpack.c.l.b16 %v2884
        %v5560 = vunpack.c.h.b16 %v2884
        %v5561 = vunpack.c.l.b16 %v2885
        %v5562 = vunpack.c.h.b16 %v2885
        %v5563 = vunpack.c.l.b16 %v2886
        %v5564 = vunpack.c.h.b16 %v2886
        %v5565 = vunpack.c.l.b16 %v2887
        %v5566 = vunpack.c.h.b16 %v2887
        %v5567 = vunpack.c.l.b16 %v2888
        %v5568 = vunpack.c.h.b16 %v2888
        %v5569 = vunpack.c.l.b16 %v2889
        %v5570 = vunpack.c.h.b16 %v2889
        %v5571 = vunpack.c.l.b16 %v2890
        %v5572 = vunpack.c.h.b16 %v2890
        %v5573 = vunpack.c.l.b16 %v2891
        %v5574 = vunpack.c.h.b16 %v2891
        %v5575 = vunpack.c.l.b16 %v2892
        %v5576 = vunpack.c.h.b16 %v2892
        %v5577 = vunpack.c.l.b16 %v2893
        %v5578 = vunpack.c.l.b16 %v2894
        %v5579 = vunpack.c.h.b16 %v2894
        %v5580 = vunpack.c.l.b16 %v2895
        %v5581 = vunpack.c.h.b16 %v2895
        %v5582 = vunpack.c.l.b16 %v2896
        %v5583 = vunpack.c.h.b16 %v2896
        %v5584 = vunpack.c.l.b16 %v2897
        %v5585 = vunpack.c.h.b16 %v2897
        %v5586 = vunpack.c.l.b16 %v2898
        %v5587 = vunpack.c.h.b16 %v2898
        %v5588 = vunpack.c.l.b16 %v2899
        %v5589 = vunpack.c.h.b16 %v2899
        %v5590 = vunpack.c.l.b16 %v2900
        %v5591 = vunpack.c.h.b16 %v2900
        %v5592 = vunpack.c.l.b16 %v2901
        %v5593 = vunpack.c.h.b16 %v2901
        %v5594 = vunpack.c.l.b16 %v2902
        %v5595 = vunpack.c.h.b16 %v2902
        %v5596 = vunpack.c.l.b16 %v2903
        %v5597 = vunpack.c.h.b16 %v2903
        %v5598 = vunpack.c.l.b16 %v2904
        %v5599 = vunpack.c.l.b16 %v2905
        %v5600 = vunpack.c.h.b16 %v2905
        %v5601 = vunpack.c.l.b16 %v2906
        %v5602 = vunpack.c.h.b16 %v2906
        %v5603 = vunpack.c.l.b16 %v2907
        %v5604 = vunpack.c.h.b16 %v2907
        %v5605 = vunpack.c.l.b16 %v2908
        %v5606 = vunpack.c.h.b16 %v2908
        %v5607 = vunpack.c.l.b16 %v2909
        %v5608 = vunpack.c.h.b16 %v2909
        %v5609 = vunpack.c.l.b16 %v2910
        %v5610 = vunpack.c.h.b16 %v2910
        %v5611 = vunpack.c.l.b16 %v2911
        %v5612 = vunpack.c.h.b16 %v2911
        %v5613 = vunpack.c.l.b16 %v2912
        %v5614 = vunpack.c.h.b16 %v2912
        %v5615 = vunpack.c.l.b16 %v2913
        %v5616 = vunpack.c.h.b16 %v2913
        %v5617 = vunpack.c.l.b16 %v2914
        %v5618 = vunpack.c.h.b16 %v2914
        %v5619 = vunpack.c.l.b16 %v2915
        %v5620 = vunpack.c.l.b16 %v2916
        %v5621 = vunpack.c.h.b16 %v2916
        %v5622 = vunpack.c.l.b16 %v2917
        %v5623 = vunpack.c.h.b16 %v2917
        %v5624 = vunpack.c.l.b16 %v2918
        %v5625 = vunpack.c.h.b16 %v2918
        %v5626 = vunpack.c.l.b16 %v2919
        %v5627 = vunpack.c.h.b16 %v2919
        %v5628 = vunpack.c.l.b16 %v2920
        %v5629 = vunpack.c.h.b16 %v2920
        %v5630 = vunpack.c.l.b16 %v2921
        %v5631 = vunpack.c.h.b16 %v2921
        %v5632 = vunpack.c.l.b16 %v2922
        %v5633 = vunpack.c.h.b16 %v2922
        %v5634 = vunpack.c.l.b16 %v2923
        %v5635 = vunpack.c.h.b16 %v2923
        %v5636 = vunpack.c.l.b16 %v2924
        %v5637 = vunpack.c.h.b16 %v2924
        %v5638 = vunpack.c.l.b16 %v2925
        %v5639 = vunpack.c.h.b16 %v2925
        %v5640 = vunpack.c.l.b16 %v2926
        %v5641 = vunpack.c.l.b16 %v2927
        %v5642 = vunpack.c.h.b16 %v2927
        %v5643 = vunpack.c.l.b16 %v2928
        %v5644 = vunpack.c.h.b16 %v2928
        %v5645 = vunpack.c.l.b16 %v2929
        %v5646 = vunpack.c.h.b16 %v2929
        %v5647 = vunpack.c.l.b16 %v2930
        %v5648 = vunpack.c.h.b16 %v2930
        %v5649 = vunpack.c.l.b16 %v2931
        %v5650 = vunpack.c.h.b16 %v2931
        %v5651 = vunpack.c.l.b16 %v2932
        %v5652 = vunpack.c.h.b16 %v2932
        %v5653 = vunpack.c.l.b16 %v2933
        %v5654 = vunpack.c.h.b16 %v2933
        %v5655 = vunpack.c.l.b16 %v2934
        %v5656 = vunpack.c.h.b16 %v2934
        %v5657 = vunpack.c.l.b16 %v2935
        %v5658 = vunpack.c.h.b16 %v2935
        %v5659 = vunpack.c.l.b16 %v2936
        %v5660 = vunpack.c.h.b16 %v2936
        %v5661 = vunpack.c.l.b16 %v2937
        %v5662 = vunpack.c.l.b16 %v2938
        %v5663 = vunpack.c.h.b16 %v2938
        %v5664 = vunpack.c.l.b16 %v2939
        %v5665 = vunpack.c.h.b16 %v2939
        %v5666 = vunpack.c.l.b16 %v2940
        %v5667 = vunpack.c.h.b16 %v2940
        %v5668 = vunpack.c.l.b16 %v2941
        %v5669 = vunpack.c.h.b16 %v2941
        %v5670 = vunpack.c.l.b16 %v2942
        %v5671 = vunpack.c.h.b16 %v2942
        %v5672 = vunpack.c.l.b16 %v2943
        %v5673 = vunpack.c.h.b16 %v2943
        %v5674 = vunpack.c.l.b16 %v2944
        %v5675 = vunpack.c.h.b16 %v2944
        %v5676 = vunpack.c.l.b16 %v2945
        %v5677 = vunpack.c.h.b16 %v2945
        %v5678 = vunpack.c.l.b16 %v2946
        %v5679 = vunpack.c.h.b16 %v2946
        %v5680 = vunpack.c.l.b16 %v2947
        %v5681 = vunpack.c.h.b16 %v2947
        %v5682 = vunpack.c.l.b16 %v2948
        %v5683 = vunpack.c.l.b16 %v2949
        %v5684 = vunpack.c.h.b16 %v2949
        %v5685 = vunpack.c.l.b16 %v2950
        %v5686 = vunpack.c.h.b16 %v2950
        %v5687 = vunpack.c.l.b16 %v2951
        %v5688 = vunpack.c.h.b16 %v2951
        %v5689 = vunpack.c.l.b16 %v2952
        %v5690 = vunpack.c.h.b16 %v2952
        %v5691 = vunpack.c.l.b16 %v2953
        %v5692 = vunpack.c.h.b16 %v2953
        %v5693 = vunpack.c.l.b16 %v2954
        %v5694 = vunpack.c.h.b16 %v2954
        %v5695 = vunpack.c.l.b16 %v2955
        %v5696 = vunpack.c.h.b16 %v2955
        %v5697 = vunpack.c.l.b16 %v2956
        %v5698 = vunpack.c.h.b16 %v2956
        %v5699 = vunpack.c.l.b16 %v2957
        %v5700 = vunpack.c.h.b16 %v2957
        %v5701 = vunpack.c.l.b16 %v2958
        %v5702 = vunpack.c.h.b16 %v2958
        %v5703 = vunpack.c.l.b16 %v2959
        %v5704 = vunpack.c.l.b16 %v2960
        %v5705 = vunpack.c.h.b16 %v2960
        %v5706 = vunpack.c.l.b16 %v2961
        %v5707 = vunpack.c.h.b16 %v2961
        %v5708 = vunpack.c.l.b16 %v2962
        %v5709 = vunpack.c.h.b16 %v2962
        %v5710 = vunpack.c.l.b16 %v2963
        %v5711 = vunpack.c.h.b16 %v2963
        %v5712 = vunpack.c.l.b16 %v2964
        %v5713 = vunpack.c.h.b16 %v2964
        %v5714 = vunpack.c.l.b16 %v2965
        %v5715 = vunpack.c.h.b16 %v2965
        %v5716 = vunpack.c.l.b16 %v2966
        %v5717 = vunpack.c.h.b16 %v2966
        %v5718 = vunpack.c.l.b16 %v2967
        %v5719 = vunpack.c.h.b16 %v2967
        %v5720 = vunpack.c.l.b16 %v2968
        %v5721 = vunpack.c.h.b16 %v2968
        %v5722 = vunpack.c.l.b16 %v2969
        %v5723 = vunpack.c.h.b16 %v2969
        %v5724 = vunpack.c.l.b16 %v2970
        %v5725 = vunpack.c.l.b16 %v2971
        %v5726 = vunpack.c.h.b16 %v2971
        %v5727 = vunpack.c.l.b16 %v2972
        %v5728 = vunpack.c.h.b16 %v2972
        %v5729 = vunpack.c.l.b16 %v2973
        %v5730 = vunpack.c.h.b16 %v2973
        %v5731 = vunpack.c.l.b16 %v2974
        %v5732 = vunpack.c.h.b16 %v2974
        %v5733 = vunpack.c.l.b16 %v2975
        %v5734 = vunpack.c.h.b16 %v2975
        %v5735 = vunpack.c.l.b16 %v2976
        %v5736 = vunpack.c.h.b16 %v2976
        %v5737 = vunpack.c.l.b16 %v2977
        %v5738 = vunpack.c.h.b16 %v2977
        %v5739 = vunpack.c.l.b16 %v2978
        %v5740 = vunpack.c.h.b16 %v2978
        %v5741 = vunpack.c.l.b16 %v2979
        %v5742 = vunpack.c.h.b16 %v2979
        %v5743 = vunpack.c.l.b16 %v2980
        %v5744 = vunpack.c.h.b16 %v2980
        %v5745 = vunpack.c.l.b16 %v2981
        %v5746 = vunpack.c.l.b16 %v2982
        %v5747 = vunpack.c.h.b16 %v2982
        %v5748 = vunpack.c.l.b16 %v2983
        %v5749 = vunpack.c.h.b16 %v2983
        %v5750 = vunpack.c.l.b16 %v2984
        %v5751 = vunpack.c.h.b16 %v2984
        %v5752 = vunpack.c.l.b16 %v2985
        %v5753 = vunpack.c.h.b16 %v2985
        %v5754 = vunpack.c.l.b16 %v2986
        %v5755 = vunpack.c.h.b16 %v2986
        %v5756 = vunpack.c.l.b16 %v2987
        %v5757 = vunpack.c.h.b16 %v2987
        %v5758 = vunpack.c.l.b16 %v2988
        %v5759 = vunpack.c.h.b16 %v2988
        %v5760 = vunpack.c.l.b16 %v2989
        %v5761 = vunpack.c.h.b16 %v2989
        %v5762 = vunpack.c.l.b16 %v2990
        %v5763 = vunpack.c.h.b16 %v2990
        %v5764 = vunpack.c.l.b16 %v2991
        %v5765 = vunpack.c.h.b16 %v2991
        %v5766 = vunpack.c.l.b16 %v2992
        %v5767 = vunpack.c.l.b16 %v2993
        %v5768 = vunpack.c.h.b16 %v2993
        %v5769 = vunpack.c.l.b16 %v2994
        %v5770 = vunpack.c.h.b16 %v2994
        %v5771 = vunpack.c.l.b16 %v2995
        %v5772 = vunpack.c.h.b16 %v2995
        %v5773 = vunpack.c.l.b16 %v2996
        %v5774 = vunpack.c.h.b16 %v2996
        %v5775 = vunpack.c.l.b16 %v2997
        %v5776 = vunpack.c.h.b16 %v2997
        %v5777 = vunpack.c.l.b16 %v2998
        %v5778 = vunpack.c.h.b16 %v2998
        %v5779 = vunpack.c.l.b16 %v2999
        %v5780 = vunpack.c.h.b16 %v2999
        %v5781 = vunpack.c.l.b16 %v3000
        %v5782 = vunpack.c.h.b16 %v3000
        %v5783 = vunpack.c.l.b16 %v3001
        %v5784 = vunpack.c.h.b16 %v3001
        %v5785 = vunpack.c.l.b16 %v3002
        %v5786 = vunpack.c.h.b16 %v3002
        %v5787 = vunpack.c.l.b16 %v3003
        %v5788 = vunpack.c.l.b16 %v3004
        %v5789 = vunpack.c.h.b16 %v3004
        %v5790 = vunpack.c.l.b16 %v3005
        %v5791 = vunpack.c.h.b16 %v3005
        %v5792 = vunpack.c.l.b16 %v3006
        %v5793 = vunpack.c.h.b16 %v3006
        %v5794 = vunpack.c.l.b16 %v3007
        %v5795 = vunpack.c.h.b16 %v3007
        %v5796 = vunpack.c.l.b16 %v3008
        %v5797 = vunpack.c.h.b16 %v3008
        %v5798 = vunpack.c.l.b16 %v3009
        %v5799 = vunpack.c.h.b16 %v3009
        %v5800 = vunpack.c.l.b16 %v3010
        %v5801 = vunpack.c.h.b16 %v3010
        %v5802 = vunpack.c.l.b16 %v3011
        %v5803 = vunpack.c.h.b16 %v3011
        %v5804 = vunpack.c.l.b16 %v3012
        %v5805 = vunpack.c.h.b16 %v3012
        %v5806 = vunpack.c.l.b16 %v3013
        %v5807 = vunpack.c.h.b16 %v3013
        %v5808 = vunpack.c.l.b16 %v3014
        %v5809 = vunpack.c.l.b16 %v3015
        %v5810 = vunpack.c.h.b16 %v3015
        %v5811 = vunpack.c.l.b16 %v3016
        %v5812 = vunpack.c.h.b16 %v3016
        %v5813 = vunpack.c.l.b16 %v3017
        %v5814 = vunpack.c.h.b16 %v3017
        %v5815 = vunpack.c.l.b16 %v3018
        %v5816 = vunpack.c.h.b16 %v3018
        %v5817 = vunpack.c.l.b16 %v3019
        %v5818 = vunpack.c.h.b16 %v3019
        %v5819 = vunpack.c.l.b16 %v3020
        %v5820 = vunpack.c.h.b16 %v3020
        %v5821 = vunpack.c.l.b16 %v3021
        %v5822 = vunpack.c.h.b16 %v3021
        %v5823 = vunpack.c.l.b16 %v3022
        %v5824 = vunpack.c.h.b16 %v3022
        %v5825 = vunpack.c.l.b16 %v3023
        %v5826 = vunpack.c.h.b16 %v3023
        %v5827 = vunpack.c.l.b16 %v3024
        %v5828 = vunpack.c.h.b16 %v3024
        %v5829 = vunpack.c.l.b16 %v3025
        %v5830 = vunpack.c.l.b16 %v3026
        %v5831 = vunpack.c.h.b16 %v3026
        %v5832 = vunpack.c.l.b16 %v3027
        %v5833 = vunpack.c.h.b16 %v3027
        %v5834 = vunpack.c.l.b16 %v3028
        %v5835 = vunpack.c.h.b16 %v3028
        %v5836 = vunpack.c.l.b16 %v3029
        %v5837 = vunpack.c.h.b16 %v3029
        %v5838 = vunpack.c.l.b16 %v3030
        %v5839 = vunpack.c.h.b16 %v3030
        %v5840 = vunpack.c.l.b16 %v3031
        %v5841 = vunpack.c.h.b16 %v3031
        %v5842 = vunpack.c.l.b16 %v3032
        %v5843 = vunpack.c.h.b16 %v3032
        %v5844 = vunpack.c.l.b16 %v3033
        %v5845 = vunpack.c.h.b16 %v3033
        %v5846 = vunpack.c.l.b16 %v3034
        %v5847 = vunpack.c.h.b16 %v3034
        %v5848 = vunpack.c.l.b16 %v3035
        %v5849 = vunpack.c.h.b16 %v3035
        %v5850 = vunpack.c.l.b16 %v3036
        %v5851 = vunpack.c.l.b16 %v3037
        %v5852 = vunpack.c.h.b16 %v3037
        %v5853 = vunpack.c.l.b16 %v3038
        %v5854 = vunpack.c.h.b16 %v3038
        %v5855 = vunpack.c.l.b16 %v3039
        %v5856 = vunpack.c.h.b16 %v3039
        %v5857 = vunpack.c.l.b16 %v3040
        %v5858 = vunpack.c.h.b16 %v3040
        %v5859 = vunpack.c.l.b16 %v3041
        %v5860 = vunpack.c.h.b16 %v3041
        %v5861 = vunpack.c.l.b16 %v3042
        %v5862 = vunpack.c.h.b16 %v3042
        %v5863 = vunpack.c.l.b16 %v3043
        %v5864 = vunpack.c.h.b16 %v3043
        %v5865 = vunpack.c.l.b16 %v3044
        %v5866 = vunpack.c.h.b16 %v3044
        %v5867 = vunpack.c.l.b16 %v3045
        %v5868 = vunpack.c.h.b16 %v3045
        %v5869 = vunpack.c.l.b16 %v3046
        %v5870 = vunpack.c.h.b16 %v3046
        %v5871 = vunpack.c.l.b16 %v3047
        %v5872 = vunpack.c.l.b16 %v3048
        %v5873 = vunpack.c.h.b16 %v3048
        %v5874 = vunpack.c.l.b16 %v3049
        %v5875 = vunpack.c.h.b16 %v3049
        %v5876 = vunpack.c.l.b16 %v3050
        %v5877 = vunpack.c.h.b16 %v3050
        %v5878 = vunpack.c.l.b16 %v3051
        %v5879 = vunpack.c.h.b16 %v3051
        %v5880 = vunpack.c.l.b16 %v3052
        %v5881 = vunpack.c.h.b16 %v3052
        %v5882 = vunpack.c.l.b16 %v3053
        %v5883 = vunpack.c.h.b16 %v3053
        %v5884 = vunpack.c.l.b16 %v3054
        %v5885 = vunpack.c.h.b16 %v3054
        %v5886 = vunpack.c.l.b16 %v3055
        %v5887 = vunpack.c.h.b16 %v3055
        %v5888 = vunpack.c.l.b16 %v3056
        %v5889 = vunpack.c.h.b16 %v3056
        %v5890 = vunpack.c.l.b16 %v3057
        %v5891 = vunpack.c.h.b16 %v3057
        %v5892 = vunpack.c.l.b16 %v3058
        %v5893 = vunpack.c.l.b16 %v3059
        %v5894 = vunpack.c.h.b16 %v3059
        %v5895 = vunpack.c.l.b16 %v3060
        %v5896 = vunpack.c.h.b16 %v3060
        %v5897 = vunpack.c.l.b16 %v3061
        %v5898 = vunpack.c.h.b16 %v3061
        %v5899 = vunpack.c.l.b16 %v3062
        %v5900 = vunpack.c.h.b16 %v3062
        %v5901 = vunpack.c.l.b16 %v3063
        %v5902 = vunpack.c.h.b16 %v3063
        %v5903 = vunpack.c.l.b16 %v3064
        %v5904 = vunpack.c.h.b16 %v3064
        %v5905 = vunpack.c.l.b16 %v3065
        %v5906 = vunpack.c.h.b16 %v3065
        %v5907 = vunpack.c.l.b16 %v3066
        %v5908 = vunpack.c.h.b16 %v3066
        %v5909 = vunpack.c.l.b16 %v3067
        %v5910 = vunpack.c.h.b16 %v3067
        %v5911 = vunpack.c.l.b16 %v3068
        %v5912 = vunpack.c.h.b16 %v3068
        %v5913 = vunpack.c.l.b16 %v3069
        %v5914 = vunpack.c.l.b16 %v3070
        %v5915 = vunpack.c.h.b16 %v3070
        %v5916 = vunpack.c.l.b16 %v3071
        %v5917 = vunpack.c.h.b16 %v3071
        %v5918 = vunpack.c.l.b16 %v3072
        %v5919 = vunpack.c.h.b16 %v3072
        %v5920 = vunpack.c.l.b16 %v3073
        %v5921 = vunpack.c.h.b16 %v3073
        %v5922 = vunpack.c.l.b16 %v3074
        %v5923 = vunpack.c.h.b16 %v3074
        %v5924 = vunpack.c.l.b16 %v3075
        %v5925 = vunpack.c.h.b16 %v3075
        %v5926 = vunpack.c.l.b16 %v3076
        %v5927 = vunpack.c.h.b16 %v3076
        %v5928 = vunpack.c.l.b16 %v3077
        %v5929 = vunpack.c.h.b16 %v3077
        %v5930 = vunpack.c.l.b16 %v3078
        %v5931 = vunpack.c.h.b16 %v3078
        %v5932 = vunpack.c.l.b16 %v3079
        %v5933 = vunpack.c.h.b16 %v3079
        %v5934 = vunpack.c.l.b16 %v3080
        %v5935 = vunpack.c.l.b16 %v3081
        %v5936 = vunpack.c.h.b16 %v3081
        %v5937 = vunpack.c.l.b16 %v3082
        %v5938 = vunpack.c.h.b16 %v3082
        %v5939 = vunpack.c.l.b16 %v3083
        %v5940 = vunpack.c.h.b16 %v3083
        %v5941 = vunpack.c.l.b16 %v3084
        %v5942 = vunpack.c.h.b16 %v3084
        %v5943 = vunpack.c.l.b16 %v3085
        %v5944 = vunpack.c.h.b16 %v3085
        %v5945 = vunpack.c.l.b16 %v3086
        %v5946 = vunpack.c.h.b16 %v3086
        %v5947 = vunpack.c.l.b16 %v3087
        %v5948 = vunpack.c.h.b16 %v3087
        %v5949 = vunpack.c.l.b16 %v3088
        %v5950 = vunpack.c.h.b16 %v3088
        %v5951 = vunpack.c.l.b16 %v3089
        %v5952 = vunpack.c.h.b16 %v3089
        %v5953 = vunpack.c.l.b16 %v3090
        %v5954 = vunpack.c.h.b16 %v3090
        %v5955 = vunpack.c.l.b16 %v3091
        %v5956 = vunpack.c.l.b16 %v3092
        %v5957 = vunpack.c.h.b16 %v3092
        %v5958 = vunpack.c.l.b16 %v3093
        %v5959 = vunpack.c.h.b16 %v3093
        %v5960 = vunpack.c.l.b16 %v3094
        %v5961 = vunpack.c.h.b16 %v3094
        %v5962 = vunpack.c.l.b16 %v3095
        %v5963 = vunpack.c.h.b16 %v3095
        %v5964 = vunpack.c.l.b16 %v3096
        %v5965 = vunpack.c.h.b16 %v3096
        %v5966 = vunpack.c.l.b16 %v3097
        %v5967 = vunpack.c.h.b16 %v3097
        %v5968 = vunpack.c.l.b16 %v3098
        %v5969 = vunpack.c.h.b16 %v3098
        %v5970 = vunpack.c.l.b16 %v3099
        %v5971 = vunpack.c.h.b16 %v3099
        %v5972 = vunpack.c.l.b16 %v3100
        %v5973 = vunpack.c.h.b16 %v3100
        %v5974 = vunpack.c.l.b16 %v3101
        %v5975 = vunpack.c.h.b16 %v3101
        %v5976 = vunpack.c.l.b16 %v3102
        %v5977 = vunpack.c.l.b16 %v3103
        %v5978 = vunpack.c.h.b16 %v3103
        %v5979 = vunpack.c.l.b16 %v3104
        %v5980 = vunpack.c.h.b16 %v3104
        %v5981 = vunpack.c.l.b16 %v3105
        %v5982 = vunpack.c.h.b16 %v3105
        %v5983 = vunpack.c.l.b16 %v3106
        %v5984 = vunpack.c.h.b16 %v3106
        %v5985 = vunpack.c.l.b16 %v3107
        %v5986 = vunpack.c.h.b16 %v3107
        %v5987 = vunpack.c.l.b16 %v3108
        %v5988 = vunpack.c.h.b16 %v3108
        %v5989 = vunpack.c.l.b16 %v3109
        %v5990 = vunpack.c.h.b16 %v3109
        %v5991 = vunpack.c.l.b16 %v3110
        %v5992 = vunpack.c.h.b16 %v3110
        %v5993 = vunpack.c.l.b16 %v3111
        %v5994 = vunpack.c.h.b16 %v3111
        %v5995 = vunpack.c.l.b16 %v3112
        %v5996 = vunpack.c.h.b16 %v3112
        %v5997 = vunpack.c.l.b16 %v3113
        %v5998 = vunpack.c.l.b16 %v3114
        %v5999 = vunpack.c.h.b16 %v3114
        %v6000 = vunpack.c.l.b16 %v3115
        %v6001 = vunpack.c.h.b16 %v3115
        %v6002 = vunpack.c.l.b16 %v3116
        %v6003 = vunpack.c.h.b16 %v3116
        %v6004 = vunpack.c.l.b16 %v3117
        %v6005 = vunpack.c.h.b16 %v3117
        %v6006 = vunpack.c.l.b16 %v3118
        %v6007 = vunpack.c.h.b16 %v3118
        %v6008 = vunpack.c.l.b16 %v3119
        %v6009 = vunpack.c.h.b16 %v3119
        %v6010 = vunpack.c.l.b16 %v3120
        %v6011 = vunpack.c.h.b16 %v3120
        %v6012 = vunpack.c.l.b16 %v3121
        %v6013 = vunpack.c.h.b16 %v3121
        %v6014 = vunpack.c.l.b16 %v3122
        %v6015 = vunpack.c.h.b16 %v3122
        %v6016 = vunpack.c.l.b16 %v3123
        %v6017 = vunpack.c.h.b16 %v3123
        %v6018 = vunpack.c.l.b16 %v3124
        %v6019 = vunpack.c.l.b16 %v3125
        %v6020 = vunpack.c.h.b16 %v3125
        %v6021 = vunpack.c.l.b16 %v3126
        %v6022 = vunpack.c.h.b16 %v3126
        %v6023 = vunpack.c.l.b16 %v3127
        %v6024 = vunpack.c.h.b16 %v3127
        %v6025 = vunpack.c.l.b16 %v3128
        %v6026 = vunpack.c.h.b16 %v3128
        %v6027 = vunpack.c.l.b16 %v3129
        %v6028 = vunpack.c.h.b16 %v3129
        %v6029 = vunpack.c.l.b16 %v3130
        %v6030 = vunpack.c.h.b16 %v3130
        %v6031 = vunpack.c.l.b16 %v3131
        %v6032 = vunpack.c.h.b16 %v3131
        %v6033 = vunpack.c.l.b16 %v3132
        %v6034 = vunpack.c.h.b16 %v3132
        %v6035 = vunpack.c.l.b16 %v3133
        %v6036 = vunpack.c.h.b16 %v3133
        %v6037 = vunpack.c.l.b16 %v3134
        %v6038 = vunpack.c.h.b16 %v3134
        %v6039 = vunpack.c.l.b16 %v3135
        %v6040 = vunpack.c.l.b16 %v3136
        %v6041 = vunpack.c.h.b16 %v3136
        %v6042 = vunpack.c.l.b16 %v3137
        %v6043 = vunpack.c.h.b16 %v3137
        %v6044 = vunpack.c.l.b16 %v3138
        %v6045 = vunpack.c.h.b16 %v3138
        %v6046 = vunpack.c.l.b16 %v3139
        %v6047 = vunpack.c.h.b16 %v3139
        %v6048 = vunpack.c.l.b16 %v3140
        %v6049 = vunpack.c.h.b16 %v3140
        %v6050 = vunpack.c.l.b16 %v3141
        %v6051 = vunpack.c.h.b16 %v3141
        %v6052 = vunpack.c.l.b16 %v3142
        %v6053 = vunpack.c.h.b16 %v3142
        %v6054 = vunpack.c.l.b16 %v3143
        %v6055 = vunpack.c.h.b16 %v3143
        %v6056 = vunpack.c.l.b16 %v3144
        %v6057 = vunpack.c.h.b16 %v3144
        %v6058 = vunpack.c.l.b16 %v3145
        %v6059 = vunpack.c.h.b16 %v3145
        %v6060 = vunpack.c.l.b16 %v3146
        %v6061 = vunpack.c.l.b16 %v3147
        %v6062 = vunpack.c.h.b16 %v3147
        %v6063 = vunpack.c.l.b16 %v3148
        %v6064 = vunpack.c.h.b16 %v3148
        %v6065 = vunpack.c.l.b16 %v3149
        %v6066 = vunpack.c.h.b16 %v3149
        %v6067 = vunpack.c.l.b16 %v3150
        %v6068 = vunpack.c.h.b16 %v3150
        %v6069 = vunpack.c.l.b16 %v3151
        %v6070 = vunpack.c.h.b16 %v3151
        %v6071 = vunpack.c.l.b16 %v3152
        %v6072 = vunpack.c.h.b16 %v3152
        %v6073 = vunpack.c.l.b16 %v3153
        %v6074 = vunpack.c.h.b16 %v3153
        %v6075 = vunpack.c.l.b16 %v3154
        %v6076 = vunpack.c.h.b16 %v3154
        %v6077 = vunpack.c.l.b16 %v3155
        %v6078 = vunpack.c.h.b16 %v3155
        %v6079 = vunpack.c.l.b16 %v3156
        %v6080 = vunpack.c.h.b16 %v3156
        %v6081 = vunpack.c.l.b16 %v3157
        %v6082 = vunpack.c.l.b16 %v3158
        %v6083 = vunpack.c.h.b16 %v3158
        %v6084 = vunpack.c.l.b16 %v3159
        %v6085 = vunpack.c.h.b16 %v3159
        %v6086 = vunpack.c.l.b16 %v3160
        %v6087 = vunpack.c.h.b16 %v3160
        %v6088 = vunpack.c.l.b16 %v3161
        %v6089 = vunpack.c.h.b16 %v3161
        %v6090 = vunpack.c.l.b16 %v3162
        %v6091 = vunpack.c.h.b16 %v3162
        %v6092 = vunpack.c.l.b16 %v3163
        %v6093 = vunpack.c.h.b16 %v3163
        %v6094 = vunpack.c.l.b16 %v3164
        %v6095 = vunpack.c.h.b16 %v3164
        %v6096 = vunpack.c.l.b16 %v3165
        %v6097 = vunpack.c.h.b16 %v3165
        %v6098 = vunpack.c.l.b16 %v3166
        %v6099 = vunpack.c.h.b16 %v3166
        %v6100 = vunpack.c.l.b16 %v3167
        %v6101 = vunpack.c.h.b16 %v3167
        %v6102 = vunpack.c.l.b16 %v3168
        %v6103 = vunpack.c.l.b16 %v3169
        %v6104 = vunpack.c.h.b16 %v3169
        %v6105 = vunpack.c.l.b16 %v3170
        %v6106 = vunpack.c.h.b16 %v3170
        %v6107 = vunpack.c.l.b16 %v3171
        %v6108 = vunpack.c.h.b16 %v3171
        %v6109 = vunpack.c.l.b16 %v3172
        %v6110 = vunpack.c.h.b16 %v3172
        %v6111 = vunpack.c.l.b16 %v3173
        %v6112 = vunpack.c.h.b16 %v3173
        %v6113 = vunpack.c.l.b16 %v3174
        %v6114 = vunpack.c.h.b16 %v3174
        %v6115 = vunpack.c.l.b16 %v3175
        %v6116 = vunpack.c.h.b16 %v3175
        %v6117 = vunpack.c.l.b16 %v3176
        %v6118 = vunpack.c.h.b16 %v3176
        %v6119 = vunpack.c.l.b16 %v3177
        %v6120 = vunpack.c.h.b16 %v3177
        %v6121 = vunpack.c.l.b16 %v3178
        %v6122 = vunpack.c.h.b16 %v3178
        %v6123 = vunpack.c.l.b16 %v3179
        %v6124 = vunpack.c.l.b16 %v3180
        %v6125 = vunpack.c.h.b16 %v3180
        %v6126 = vunpack.c.l.b16 %v3181
        %v6127 = vunpack.c.h.b16 %v3181
        %v6128 = vunpack.c.l.b16 %v3182
        %v6129 = vunpack.c.h.b16 %v3182
        %v6130 = vunpack.c.l.b16 %v3183
        %v6131 = vunpack.c.h.b16 %v3183
        %v6132 = vunpack.c.l.b16 %v3184
        %v6133 = vunpack.c.h.b16 %v3184
        %v6134 = vunpack.c.l.b16 %v3185
        %v6135 = vunpack.c.h.b16 %v3185
        %v6136 = vunpack.c.l.b16 %v3186
        %v6137 = vunpack.c.h.b16 %v3186
        %v6138 = vunpack.c.l.b16 %v3187
        %v6139 = vunpack.c.h.b16 %v3187
        %v6140 = vunpack.c.l.b16 %v3188
        %v6141 = vunpack.c.h.b16 %v3188
        %v6142 = vunpack.c.l.b16 %v3189
        %v6143 = vunpack.c.h.b16 %v3189
        %v6144 = vunpack.c.l.b16 %v3190
        %v6145 = vunpack.c.l.b16 %v3191
        %v6146 = vunpack.c.h.b16 %v3191
        %v6147 = vunpack.c.l.b16 %v3192
        %v6148 = vunpack.c.h.b16 %v3192
        %v6149 = vunpack.c.l.b16 %v3193
        %v6150 = vunpack.c.h.b16 %v3193
        %v6151 = vunpack.c.l.b16 %v3194
        %v6152 = vunpack.c.h.b16 %v3194
        %v6153 = vunpack.c.l.b16 %v3195
        %v6154 = vunpack.c.h.b16 %v3195
        %v6155 = vunpack.c.l.b16 %v3196
        %v6156 = vunpack.c.h.b16 %v3196
        %v6157 = vunpack.c.l.b16 %v3197
        %v6158 = vunpack.c.h.b16 %v3197
        %v6159 = vunpack.c.l.b16 %v3198
        %v6160 = vunpack.c.h.b16 %v3198
        %v6161 = vunpack.c.l.b16 %v3199
        %v6162 = vunpack.c.h.b16 %v3199
        %v6163 = vunpack.c.l.b16 %v3200
        %v6164 = vunpack.c.h.b16 %v3200
        %v6165 = vunpack.c.l.b16 %v3201
        %v6166 = vunpack.c.l.b16 %v3202
        %v6167 = vunpack.c.h.b16 %v3202
        %v6168 = vunpack.c.l.b16 %v3203
        %v6169 = vunpack.c.h.b16 %v3203
        %v6170 = vunpack.c.l.b16 %v3204
        %v6171 = vunpack.c.h.b16 %v3204
        %v6172 = vunpack.c.l.b16 %v3205
        %v6173 = vunpack.c.h.b16 %v3205
        %v6174 = vunpack.c.l.b16 %v3206
        %v6175 = vunpack.c.h.b16 %v3206
        %v6176 = vunpack.c.l.b16 %v3207
        %v6177 = vunpack.c.h.b16 %v3207
        %v6178 = vunpack.c.l.b16 %v3208
        %v6179 = vunpack.c.h.b16 %v3208
        %v6180 = vunpack.c.l.b16 %v3209
        %v6181 = vunpack.c.h.b16 %v3209
        %v6182 = vunpack.c.l.b16 %v3210
        %v6183 = vunpack.c.h.b16 %v3210
        %v6184 = vunpack.c.l.b16 %v3211
        %v6185 = vunpack.c.h.b16 %v3211
        %v6186 = vunpack.c.l.b16 %v3212
        %v6187 = vunpack.c.l.b16 %v3213
        %v6188 = vunpack.c.h.b16 %v3213
        %v6189 = vunpack.c.l.b16 %v3214
        %v6190 = vunpack.c.h.b16 %v3214
        %v6191 = vunpack.c.l.b16 %v3215
        %v6192 = vunpack.c.h.b16 %v3215
        %v6193 = vunpack.c.l.b16 %v3216
        %v6194 = vunpack.c.h.b16 %v3216
        %v6195 = vunpack.c.l.b16 %v3217
        %v6196 = vunpack.c.h.b16 %v3217
        %v6197 = vunpack.c.l.b16 %v3218
        %v6198 = vunpack.c.h.b16 %v3218
        %v6199 = vunpack.c.l.b16 %v3219
        %v6200 = vunpack.c.h.b16 %v3219
        %v6201 = vunpack.c.l.b16 %v3220
        %v6202 = vunpack.c.h.b16 %v3220
        %v6203 = vunpack.c.l.b16 %v3221
        %v6204 = vunpack.c.h.b16 %v3221
        %v6205 = vunpack.c.l.b16 %v3222
        %v6206 = vunpack.c.h.b16 %v3222
        %v6207 = vunpack.c.l.b16 %v3223
        %v6208 = vunpack.c.l.b16 %v3224
        %v6209 = vunpack.c.h.b16 %v3224
        %v6210 = vunpack.c.l.b16 %v3225
        %v6211 = vunpack.c.h.b16 %v3225
        %v6212 = vunpack.c.l.b16 %v3226
        %v6213 = vunpack.c.h.b16 %v3226
        %v6214 = vunpack.c.l.b16 %v3227
        %v6215 = vunpack.c.h.b16 %v3227
        %v6216 = vunpack.c.l.b16 %v3228
        %v6217 = vunpack.c.h.b16 %v3228
        %v6218 = vunpack.c.l.b16 %v3229
        %v6219 = vunpack.c.h.b16 %v3229
        %v6220 = vunpack.c.l.b16 %v3230
        %v6221 = vunpack.c.h.b16 %v3230
        %v6222 = vunpack.c.l.b16 %v3231
        %v6223 = vunpack.c.h.b16 %v3231
        %v6224 = vunpack.c.l.b16 %v3232
        %v6225 = vunpack.c.h.b16 %v3232
        %v6226 = vunpack.c.l.b16 %v3233
        %v6227 = vunpack.c.h.b16 %v3233
        %v6228 = vunpack.c.l.b16 %v3234
        %v6229 = vunpack.c.l.b16 %v3235
        %v6230 = vunpack.c.h.b16 %v3235
        %v6231 = vunpack.c.l.b16 %v3236
        %v6232 = vunpack.c.h.b16 %v3236
        %v6233 = vunpack.c.l.b16 %v3237
        %v6234 = vunpack.c.h.b16 %v3237
        %v6235 = vunpack.c.l.b16 %v3238
        %v6236 = vunpack.c.h.b16 %v3238
        %v6237 = vunpack.c.l.b16 %v3239
        %v6238 = vunpack.c.h.b16 %v3239
        %v6239 = vunpack.c.l.b16 %v3240
        %v6240 = vunpack.c.h.b16 %v3240
        %v6241 = vunpack.c.l.b16 %v3241
        %v6242 = vunpack.c.h.b16 %v3241
        %v6243 = vunpack.c.l.b16 %v3242
        %v6244 = vunpack.c.h.b16 %v3242
        %v6245 = vunpack.c.l.b16 %v3243
        %v6246 = vunpack.c.h.b16 %v3243
        %v6247 = vunpack.c.l.b16 %v3244
        %v6248 = vunpack.c.h.b16 %v3244
        %v6249 = vunpack.c.l.b16 %v3245
        %v6250 = vunpack.c.l.b16 %v3246
        %v6251 = vunpack.c.h.b16 %v3246
        %v6252 = vunpack.c.l.b16 %v3247
        %v6253 = vunpack.c.h.b16 %v3247
        %v6254 = vunpack.c.l.b16 %v3248
        %v6255 = vunpack.c.h.b16 %v3248
        %v6256 = vunpack.c.l.b16 %v3249
        %v6257 = vunpack.c.h.b16 %v3249
        %v6258 = vunpack.c.l.b16 %v3250
        %v6259 = vunpack.c.h.b16 %v3250
        %v6260 = vunpack.c.l.b16 %v3251
        %v6261 = vunpack.c.h.b16 %v3251
        %v6262 = vunpack.c.l.b16 %v3252
        %v6263 = vunpack.c.h.b16 %v3252
        %v6264 = vunpack.c.l.b16 %v3253
        %v6265 = vunpack.c.h.b16 %v3253
        %v6266 = vunpack.c.l.b16 %v3254
        %v6267 = vunpack.c.h.b16 %v3254
        %v6268 = vunpack.c.l.b16 %v3255
        %v6269 = vunpack.c.h.b16 %v3255
        %v6270 = vunpack.c.l.b16 %v3256
        %v6271 = vunpack.c.l.b16 %v3257
        %v6272 = vunpack.c.h.b16 %v3257
        %v6273 = vunpack.c.l.b16 %v3258
        %v6274 = vunpack.c.h.b16 %v3258
        %v6275 = vunpack.c.l.b16 %v3259
        %v6276 = vunpack.c.h.b16 %v3259
        %v6277 = vunpack.c.l.b16 %v3260
        %v6278 = vunpack.c.h.b16 %v3260
        %v6279 = vunpack.c.l.b16 %v3261
        %v6280 = vunpack.c.h.b16 %v3261
        %v6281 = vunpack.c.l.b16 %v3262
        %v6282 = vunpack.c.h.b16 %v3262
        %v6283 = vunpack.c.l.b16 %v3263
        %v6284 = vunpack.c.h.b16 %v3263
        %v6285 = vunpack.c.l.b16 %v3264
        %v6286 = vunpack.c.h.b16 %v3264
        %v6287 = vunpack.c.l.b16 %v3265
        %v6288 = vunpack.c.h.b16 %v3265
        %v6289 = vunpack.c.l.b16 %v3266
        %v6290 = vunpack.c.h.b16 %v3266
        %v6291 = vunpack.c.l.b16 %v3267
        %v6292 = vunpack.c.l.b16 %v3268
        %v6293 = vunpack.c.h.b16 %v3268
        %v6294 = vunpack.c.l.b16 %v3269
        %v6295 = vunpack.c.h.b16 %v3269
        %v6296 = vunpack.c.l.b16 %v3270
        %v6297 = vunpack.c.h.b16 %v3270
        %v6298 = vunpack.c.l.b16 %v3271
        %v6299 = vunpack.c.h.b16 %v3271
        %v6300 = vunpack.c.l.b16 %v3272
        %v6301 = vunpack.c.h.b16 %v3272
        %v6302 = vunpack.c.l.b16 %v3273
        %v6303 = vunpack.c.h.b16 %v3273
        %v6304 = vunpack.c.l.b16 %v3274
        %v6305 = vunpack.c.h.b16 %v3274
        %v6306 = vunpack.c.l.b16 %v3275
        %v6307 = vunpack.c.h.b16 %v3275
        %v6308 = vunpack.c.l.b16 %v3276
        %v6309 = vunpack.c.h.b16 %v3276
        %v6310 = vunpack.c.l.b16 %v3277
        %v6311 = vunpack.c.h.b16 %v3277
        %v6312 = vunpack.c.l.b16 %v3278
        %v6313 = vunpack.c.l.b16 %v3279
        %v6314 = vunpack.c.h.b16 %v3279
        %v6315 = vunpack.c.l.b16 %v3280
        %v6316 = vunpack.c.h.b16 %v3280
        %v6317 = vunpack.c.l.b16 %v3281
        %v6318 = vunpack.c.h.b16 %v3281
        %v6319 = vunpack.c.l.b16 %v3282
        %v6320 = vunpack.c.h.b16 %v3282
        %v6321 = vunpack.c.l.b16 %v3283
        %v6322 = vunpack.c.h.b16 %v3283
        %v6323 = vunpack.c.l.b16 %v3284
        %v6324 = vunpack.c.h.b16 %v3284
        %v6325 = vunpack.c.l.b16 %v3285
        %v6326 = vunpack.c.h.b16 %v3285
        %v6327 = vunpack.c.l.b16 %v3286
        %v6328 = vunpack.c.h.b16 %v3286
        %v6329 = vunpack.c.l.b16 %v3287
        %v6330 = vunpack.c.h.b16 %v3287
        %v6331 = vunpack.c.l.b16 %v3288
        %v6332 = vunpack.c.h.b16 %v3288
        %v6333 = vunpack.c.l.b16 %v3289
        %v6334 = vunpack.c.l.b16 %v3290
        %v6335 = vunpack.c.h.b16 %v3290
        %v6336 = vunpack.c.l.b16 %v3291
        %v6337 = vunpack.c.h.b16 %v3291
        %v6338 = vunpack.c.l.b16 %v3292
        %v6339 = vunpack.c.h.b16 %v3292
        %v6340 = vunpack.c.l.b16 %v3293
        %v6341 = vunpack.c.h.b16 %v3293
        %v6342 = vunpack.c.l.b16 %v3294
        %v6343 = vunpack.c.h.b16 %v3294
        %v6344 = vunpack.c.l.b16 %v3295
        %v6345 = vunpack.c.h.b16 %v3295
        %v6346 = vunpack.c.l.b16 %v3296
        %v6347 = vunpack.c.h.b16 %v3296
        %v6348 = vunpack.c.l.b16 %v3297
        %v6349 = vunpack.c.h.b16 %v3297
        %v6350 = vunpack.c.l.b16 %v3298
        %v6351 = vunpack.c.h.b16 %v3298
        %v6352 = vunpack.c.l.b16 %v3299
        %v6353 = vunpack.c.h.b16 %v3299
        %v6354 = vunpack.c.l.b16 %v3300
        %v6355 = vunpack.c.l.b16 %v3301
        %v6356 = vunpack.c.h.b16 %v3301
        %v6357 = vunpack.c.l.b16 %v3302
        %v6358 = vunpack.c.h.b16 %v3302
        %v6359 = vunpack.c.l.b16 %v3303
        %v6360 = vunpack.c.h.b16 %v3303
        %v6361 = vunpack.c.l.b16 %v3304
        %v6362 = vunpack.c.h.b16 %v3304
        %v6363 = vunpack.c.l.b16 %v3305
        %v6364 = vunpack.c.h.b16 %v3305
        %v6365 = vunpack.c.l.b16 %v3306
        %v6366 = vunpack.c.h.b16 %v3306
        %v6367 = vunpack.c.l.b16 %v3307
        %v6368 = vunpack.c.h.b16 %v3307
        %v6369 = vunpack.c.l.b16 %v3308
        %v6370 = vunpack.c.h.b16 %v3308
        %v6371 = vunpack.c.l.b16 %v3309
        %v6372 = vunpack.c.h.b16 %v3309
        %v6373 = vunpack.c.l.b16 %v3310
        %v6374 = vunpack.c.h.b16 %v3310
        %v6375 = vunpack.c.l.b16 %v3311
        %v6376 = vunpack.c.l.b16 %v3312
        %v6377 = vunpack.c.h.b16 %v3312
        %v6378 = vunpack.c.l.b16 %v3313
        %v6379 = vunpack.c.h.b16 %v3313
        %v6380 = vunpack.c.l.b16 %v3314
        %v6381 = vunpack.c.h.b16 %v3314
        %v6382 = vunpack.c.l.b16 %v3315
        %v6383 = vunpack.c.h.b16 %v3315
        %v6384 = vunpack.c.l.b16 %v3316
        %v6385 = vunpack.c.h.b16 %v3316
        %v6386 = vunpack.c.l.b16 %v3317
        %v6387 = vunpack.c.h.b16 %v3317
        %v6388 = vunpack.c.l.b16 %v3318
        %v6389 = vunpack.c.h.b16 %v3318
        %v6390 = vunpack.c.l.b16 %v3319
        %v6391 = vunpack.c.h.b16 %v3319
        %v6392 = vunpack.c.l.b16 %v3320
        %v6393 = vunpack.c.h.b16 %v3320
        %v6394 = vunpack.c.l.b16 %v3321
        %v6395 = vunpack.c.h.b16 %v3321
        %v6396 = vunpack.c.l.b16 %v3322
        %v6397 = vunpack.c.l.b16 %v3323
        %v6398 = vunpack.c.h.b16 %v3323
        %v6399 = vunpack.c.l.b16 %v3324
        %v6400 = vunpack.c.h.b16 %v3324
        %v6401 = vunpack.c.l.b16 %v3325
        %v6402 = vunpack.c.h.b16 %v3325
        %v6403 = vunpack.c.l.b16 %v3326
        %v6404 = vunpack.c.h.b16 %v3326
        %v6405 = vunpack.c.l.b16 %v3327
        %v6406 = vunpack.c.h.b16 %v3327
        %v6407 = vunpack.c.l.b16 %v3328
        %v6408 = vunpack.c.h.b16 %v3328
        %v6409 = vunpack.c.l.b16 %v3329
        %v6410 = vunpack.c.h.b16 %v3329
        %v6411 = vunpack.c.l.b16 %v3330
        %v6412 = vunpack.c.h.b16 %v3330
        %v6413 = vunpack.c.l.b16 %v3331
        %v6414 = vunpack.c.h.b16 %v3331
        %v6415 = vunpack.c.l.b16 %v3332
        %v6416 = vunpack.c.h.b16 %v3332
        %v6417 = vunpack.c.l.b16 %v3333
        %v6418 = vunpack.c.l.b16 %v3334
        %v6419 = vunpack.c.h.b16 %v3334
        %v6420 = vunpack.c.l.b16 %v3335
        %v6421 = vunpack.c.h.b16 %v3335
        %v6422 = vunpack.c.l.b16 %v3336
        %v6423 = vunpack.c.h.b16 %v3336
        %v6424 = vunpack.c.l.b16 %v3337
        %v6425 = vunpack.c.h.b16 %v3337
        %v6426 = vunpack.c.l.b16 %v3338
        %v6427 = vunpack.c.h.b16 %v3338
        %v6428 = vunpack.c.l.b16 %v3339
        %v6429 = vunpack.c.h.b16 %v3339
        %v6430 = vunpack.c.l.b16 %v3340
        %v6431 = vunpack.c.h.b16 %v3340
        %v6432 = vunpack.c.l.b16 %v3341
        %v6433 = vunpack.c.h.b16 %v3341
        %v6434 = vunpack.c.l.b16 %v3342
        %v6435 = vunpack.c.h.b16 %v3342
        %v6436 = vunpack.c.l.b16 %v3343
        %v6437 = vunpack.c.h.b16 %v3343
        %v6438 = vunpack.c.l.b16 %v3344
        %v6439 = vunpack.c.l.b16 %v3345
        %v6440 = vunpack.c.h.b16 %v3345
        %v6441 = vunpack.c.l.b16 %v3346
        %v6442 = vunpack.c.h.b16 %v3346
        %v6443 = vunpack.c.l.b16 %v3347
        %v6444 = vunpack.c.h.b16 %v3347
        %v6445 = vunpack.c.l.b16 %v3348
        %v6446 = vunpack.c.h.b16 %v3348
        %v6447 = vunpack.c.l.b16 %v3349
        %v6448 = vunpack.c.h.b16 %v3349
        %v6449 = vunpack.c.l.b16 %v3350
        %v6450 = vunpack.c.h.b16 %v3350
        %v6451 = vunpack.c.l.b16 %v3351
        %v6452 = vunpack.c.h.b16 %v3351
        %v6453 = vunpack.c.l.b16 %v3352
        %v6454 = vunpack.c.h.b16 %v3352
        %v6455 = vunpack.c.l.b16 %v3353
        %v6456 = vunpack.c.h.b16 %v3353
        %v6457 = vunpack.c.l.b16 %v3354
        %v6458 = vunpack.c.h.b16 %v3354
        %v6459 = vunpack.c.l.b16 %v3355
        %v6460 = vunpack.c.l.b16 %v3356
        %v6461 = vunpack.c.h.b16 %v3356
        %v6462 = vunpack.c.l.b16 %v3357
        %v6463 = vunpack.c.h.b16 %v3357
        %v6464 = vunpack.c.l.b16 %v3358
        %v6465 = vunpack.c.h.b16 %v3358
        %v6466 = vunpack.c.l.b16 %v3359
        %v6467 = vunpack.c.h.b16 %v3359
        %v6468 = vunpack.c.l.b16 %v3360
        %v6469 = vunpack.c.h.b16 %v3360
        %v6470 = vunpack.c.l.b16 %v3361
        %v6471 = vunpack.c.h.b16 %v3361
        %v6472 = vunpack.c.l.b16 %v3362
        %v6473 = vunpack.c.h.b16 %v3362
        %v6474 = vunpack.c.l.b16 %v3363
        %v6475 = vunpack.c.h.b16 %v3363
        %v6476 = vunpack.c.l.b16 %v3364
        %v6477 = vunpack.c.h.b16 %v3364
        %v6478 = vunpack.c.l.b16 %v3365
        %v6479 = vunpack.c.h.b16 %v3365
        %v6480 = vunpack.c.l.b16 %v3366
        %v6481 = vunpack.c.l.b16 %v3367
        %v6482 = vunpack.c.h.b16 %v3367
        %v6483 = vunpack.c.l.b16 %v3368
        %v6484 = vunpack.c.h.b16 %v3368
        %v6485 = vunpack.c.l.b16 %v3369
        %v6486 = vunpack.c.h.b16 %v3369
        %v6487 = vunpack.c.l.b16 %v3370
        %v6488 = vunpack.c.h.b16 %v3370
        %v6489 = vunpack.c.l.b16 %v3371
        %v6490 = vunpack.c.h.b16 %v3371
        %v6491 = vunpack.c.l.b16 %v3372
        %v6492 = vunpack.c.h.b16 %v3372
        %v6493 = vunpack.c.l.b16 %v3373
        %v6494 = vunpack.c.h.b16 %v3373
        %v6495 = vunpack.c.l.b16 %v3374
        %v6496 = vunpack.c.h.b16 %v3374
        %v6497 = vunpack.c.l.b16 %v3375
        %v6498 = vunpack.c.h.b16 %v3375
        %v6499 = vunpack.c.l.b16 %v3376
        %v6500 = vunpack.c.h.b16 %v3376
        %v6501 = vunpack.c.l.b16 %v3377
        %v6502 = vunpack.c.l.b16 %v3378
        %v6503 = vunpack.c.h.b16 %v3378
        %v6504 = vunpack.c.l.b16 %v3379
        %v6505 = vunpack.c.h.b16 %v3379
        %v6506 = vunpack.c.l.b16 %v3380
        %v6507 = vunpack.c.h.b16 %v3380
        %v6508 = vunpack.c.l.b16 %v3381
        %v6509 = vunpack.c.h.b16 %v3381
        %v6510 = vunpack.c.l.b16 %v3382
        %v6511 = vunpack.c.h.b16 %v3382
        %v6512 = vunpack.c.l.b16 %v3383
        %v6513 = vunpack.c.h.b16 %v3383
        %v6514 = vunpack.c.l.b16 %v3384
        %v6515 = vunpack.c.h.b16 %v3384
        %v6516 = vunpack.c.l.b16 %v3385
        %v6517 = vunpack.c.h.b16 %v3385
        %v6518 = vunpack.c.l.b16 %v3386
        %v6519 = vunpack.c.h.b16 %v3386
        %v6520 = vunpack.c.l.b16 %v3387
        %v6521 = vunpack.c.h.b16 %v3387
        %v6522 = vunpack.c.l.b16 %v3388
        %v6523 = vpack.c.b16 %v4528, %v4507
        %v6524 = vpack.c.b16 %v4529, %v4508
        %v6525 = vpack.c.b16 %v4530, %v4509
        %v6526 = vpack.c.b16 %v4531, %v4510
        %v6527 = vpack.c.b16 %v4532, %v4511
        %v6528 = vpack.c.b16 %v4533, %v4512
        %v6529 = vpack.c.b16 %v4534, %v4513
        %v6530 = vpack.c.b16 %v4535, %v4514
        %v6531 = vpack.c.b16 %v4536, %v4515
        %v6532 = vpack.c.b16 %v4537, %v4516
        %v6533 = vpack.c.b16 %v4538, %v4517
        %v6534 = vpack.c.b16 %v4539, %v4518
        %v6535 = vpack.c.b16 %v4540, %v4519
        %v6536 = vpack.c.b16 %v4541, %v4520
        %v6537 = vpack.c.b16 %v4542, %v4521
        %v6538 = vpack.c.b16 %v4543, %v4522
        %v6539 = vpack.c.b16 %v4544, %v4523
        %v6540 = vpack.c.b16 %v4545, %v4524
        %v6541 = vpack.c.b16 %v4546, %v4525
        %v6542 = vpack.c.b16 %v4547, %v4526
        %v6543 = vpack.c.b16 %v4548, %v4527
        %v6544 = vpack.c.b16 %v4570, %v4549
        %v6545 = vpack.c.b16 %v4571, %v4550
        %v6546 = vpack.c.b16 %v4572, %v4551
        %v6547 = vpack.c.b16 %v4573, %v4552
        %v6548 = vpack.c.b16 %v4574, %v4553
        %v6549 = vpack.c.b16 %v4575, %v4554
        %v6550 = vpack.c.b16 %v4576, %v4555
        %v6551 = vpack.c.b16 %v4577, %v4556
        %v6552 = vpack.c.b16 %v4578, %v4557
        %v6553 = vpack.c.b16 %v4579, %v4558
        %v6554 = vpack.c.b16 %v4580, %v4559
        %v6555 = vpack.c.b16 %v4581, %v4560
        %v6556 = vpack.c.b16 %v4582, %v4561
        %v6557 = vpack.c.b16 %v4583, %v4562
        %v6558 = vpack.c.b16 %v4584, %v4563
        %v6559 = vpack.c.b16 %v4585, %v4564
        %v6560 = vpack.c.b16 %v4586, %v4565
        %v6561 = vpack.c.b16 %v4587, %v4566
        %v6562 = vpack.c.b16 %v4588, %v4567
        %v6563 = vpack.c.b16 %v4589, %v4568
        %v6564 = vpack.c.b16 %v4590, %v4569
        %v6565 = vpack.c.b16 %v4612, %v4591
        %v6566 = vpack.c.b16 %v4613, %v4592
        %v6567 = vpack.c.b16 %v4614, %v4593
        %v6568 = vpack.c.b16 %v4615, %v4594
        %v6569 = vpack.c.b16 %v4616, %v4595
        %v6570 = vpack.c.b16 %v4617, %v4596
        %v6571 = vpack.c.b16 %v4618, %v4597
        %v6572 = vpack.c.b16 %v4619, %v4598
        %v6573 = vpack.c.b16 %v4620, %v4599
        %v6574 = vpack.c.b16 %v4621, %v4600
        %v6575 = vpack.c.b16 %v4622, %v4601
        %v6576 = vpack.c.b16 %v4623, %v4602
        %v6577 = vpack.c.b16 %v4624, %v4603
        %v6578 = vpack.c.b16 %v4625, %v4604
        %v6579 = vpack.c.b16 %v4626, %v4605
        %v6580 = vpack.c.b16 %v4627, %v4606
        %v6581 = vpack.c.b16 %v4628, %v4607
        %v6582 = vpack.c.b16 %v4629, %v4608
        %v6583 = vpack.c.b16 %v4630, %v4609
        %v6584 = vpack.c.b16 %v4631, %v4610
        %v6585 = vpack.c.b16 %v4632, %v4611
        %v6586 = vpack.c.b16 %v4654, %v4633
        %v6587 = vpack.c.b16 %v4655, %v4634
        %v6588 = vpack.c.b16 %v4656, %v4635
        %v6589 = vpack.c.b16 %v4657, %v4636
        %v6590 = vpack.c.b16 %v4658, %v4637
        %v6591 = vpack.c.b16 %v4659, %v4638
        %v6592 = vpack.c.b16 %v4660, %v4639
        %v6593 = vpack.c.b16 %v4661, %v4640
        %v6594 = vpack.c.b16 %v4662, %v4641
        %v6595 = vpack.c.b16 %v4663, %v4642
        %v6596 = vpack.c.b16 %v4664, %v4643
        %v6597 = vpack.c.b16 %v4665, %v4644
        %v6598 = vpack.c.b16 %v4666, %v4645
        %v6599 = vpack.c.b16 %v4667, %v4646
        %v6600 = vpack.c.b16 %v4668, %v4647
        %v6601 = vpack.c.b16 %v4669, %v4648
        %v6602 = vpack.c.b16 %v4670, %v4649
        %v6603 = vpack.c.b16 %v4671, %v4650
        %v6604 = vpack.c.b16 %v4672, %v4651
        %v6605 = vpack.c.b16 %v4673, %v4652
        %v6606 = vpack.c.b16 %v4674, %v4653
        %v6607 = vpack.c.b16 %v4696, %v4675
        %v6608 = vpack.c.b16 %v4697, %v4676
        %v6609 = vpack.c.b16 %v4698, %v4677
        %v6610 = vpack.c.b16 %v4699, %v4678
        %v6611 = vpack.c.b16 %v4700, %v4679
        %v6612 = vpack.c.b16 %v4701, %v4680
        %v6613 = vpack.c.b16 %v4702, %v4681
        %v6614 = vpack.c.b16 %v4703, %v4682
        %v6615 = vpack.c.b16 %v4704, %v4683
        %v6616 = vpack.c.b16 %v4705, %v4684
        %v6617 = vpack.c.b16 %v4706, %v4685
        %v6618 = vpack.c.b16 %v4707, %v4686
        %v6619 = vpack.c.b16 %v4708, %v4687
        %v6620 = vpack.c.b16 %v4709, %v4688
        %v6621 = vpack.c.b16 %v4710, %v4689
        %v6622 = vpack.c.b16 %v4711, %v4690
        %v6623 = vpack.c.b16 %v4712, %v4691
        %v6624 = vpack.c.b16 %v4713, %v4692
        %v6625 = vpack.c.b16 %v4714, %v4693
        %v6626 = vpack.c.b16 %v4715, %v4694
        %v6627 = vpack.c.b16 %v4716, %v4695
        %v6628 = vpack.c.b16 %v4738, %v4717
        %v6629 = vpack.c.b16 %v4739, %v4718
        %v6630 = vpack.c.b16 %v4740, %v4719
        %v6631 = vpack.c.b16 %v4741, %v4720
        %v6632 = vpack.c.b16 %v4742, %v4721
        %v6633 = vpack.c.b16 %v4743, %v4722
        %v6634 = vpack.c.b16 %v4744, %v4723
        %v6635 = vpack.c.b16 %v4745, %v4724
        %v6636 = vpack.c.b16 %v4746, %v4725
        %v6637 = vpack.c.b16 %v4747, %v4726
        %v6638 = vpack.c.b16 %v4748, %v4727
        %v6639 = vpack.c.b16 %v4749, %v4728
        %v6640 = vpack.c.b16 %v4750, %v4729
        %v6641 = vpack.c.b16 %v4751, %v4730
        %v6642 = vpack.c.b16 %v4752, %v4731
        %v6643 = vpack.c.b16 %v4753, %v4732
        %v6644 = vpack.c.b16 %v4754, %v4733
        %v6645 = vpack.c.b16 %v4755, %v4734
        %v6646 = vpack.c.b16 %v4756, %v4735
        %v6647 = vpack.c.b16 %v4757, %v4736
        %v6648 = vpack.c.b16 %v4758, %v4737
        %v6649 = vpack.c.b16 %v4780, %v4759
        %v6650 = vpack.c.b16 %v4781, %v4760
        %v6651 = vpack.c.b16 %v4782, %v4761
        %v6652 = vpack.c.b16 %v4783, %v4762
        %v6653 = vpack.c.b16 %v4784, %v4763
        %v6654 = vpack.c.b16 %v4785, %v4764
        %v6655 = vpack.c.b16 %v4786, %v4765
        %v6656 = vpack.c.b16 %v4787, %v4766
        %v6657 = vpack.c.b16 %v4788, %v4767
        %v6658 = vpack.c.b16 %v4789, %v4768
        %v6659 = vpack.c.b16 %v4790, %v4769
        %v6660 = vpack.c.b16 %v4791, %v4770
        %v6661 = vpack.c.b16 %v4792, %v4771
        %v6662 = vpack.c.b16 %v4793, %v4772
        %v6663 = vpack.c.b16 %v4794, %v4773
        %v6664 = vpack.c.b16 %v4795, %v4774
        %v6665 = vpack.c.b16 %v4796, %v4775
        %v6666 = vpack.c.b16 %v4797, %v4776
        %v6667 = vpack.c.b16 %v4798, %v4777
        %v6668 = vpack.c.b16 %v4799, %v4778
        %v6669 = vpack.c.b16 %v4800, %v4779
        %v6670 = vpack.c.b16 %v4822, %v4801
        %v6671 = vpack.c.b16 %v4823, %v4802
        %v6672 = vpack.c.b16 %v4824, %v4803
        %v6673 = vpack.c.b16 %v4825, %v4804
        %v6674 = vpack.c.b16 %v4826, %v4805
        %v6675 = vpack.c.b16 %v4827, %v4806
        %v6676 = vpack.c.b16 %v4828, %v4807
        %v6677 = vpack.c.b16 %v4829, %v4808
        %v6678 = vpack.c.b16 %v4830, %v4809
        %v6679 = vpack.c.b16 %v4831, %v4810
        %v6680 = vpack.c.b16 %v4832, %v4811
        %v6681 = vpack.c.b16 %v4833, %v4812
        %v6682 = vpack.c.b16 %v4834, %v4813
        %v6683 = vpack.c.b16 %v4835, %v4814
        %v6684 = vpack.c.b16 %v4836, %v4815
        %v6685 = vpack.c.b16 %v4837, %v4816
        %v6686 = vpack.c.b16 %v4838, %v4817
        %v6687 = vpack.c.b16 %v4839, %v4818
        %v6688 = vpack.c.b16 %v4840, %v4819
        %v6689 = vpack.c.b16 %v4841, %v4820
        %v6690 = vpack.c.b16 %v4842, %v4821
        %v6691 = vpack.c.b16 %v4864, %v4843
        %v6692 = vpack.c.b16 %v4865, %v4844
        %v6693 = vpack.c.b16 %v4866, %v4845
        %v6694 = vpack.c.b16 %v4867, %v4846
        %v6695 = vpack.c.b16 %v4868, %v4847
        %v6696 = vpack.c.b16 %v4869, %v4848
        %v6697 = vpack.c.b16 %v4870, %v4849
        %v6698 = vpack.c.b16 %v4871, %v4850
        %v6699 = vpack.c.b16 %v4872, %v4851
        %v6700 = vpack.c.b16 %v4873, %v4852
        %v6701 = vpack.c.b16 %v4874, %v4853
        %v6702 = vpack.c.b16 %v4875, %v4854
        %v6703 = vpack.c.b16 %v4876, %v4855
        %v6704 = vpack.c.b16 %v4877, %v4856
        %v6705 = vpack.c.b16 %v4878, %v4857
        %v6706 = vpack.c.b16 %v4879, %v4858
        %v6707 = vpack.c.b16 %v4880, %v4859
        %v6708 = vpack.c.b16 %v4881, %v4860
        %v6709 = vpack.c.b16 %v4882, %v4861
        %v6710 = vpack.c.b16 %v4883, %v4862
        %v6711 = vpack.c.b16 %v4884, %v4863
        %v6712 = vpack.c.b16 %v4906, %v4885
        %v6713 = vpack.c.b16 %v4907, %v4886
        %v6714 = vpack.c.b16 %v4908, %v4887
        %v6715 = vpack.c.b16 %v4909, %v4888
        %v6716 = vpack.c.b16 %v4910, %v4889
        %v6717 = vpack.c.b16 %v4911, %v4890
        %v6718 = vpack.c.b16 %v4912, %v4891
        %v6719 = vpack.c.b16 %v4913, %v4892
        %v6720 = vpack.c.b16 %v4914, %v4893
        %v6721 = vpack.c.b16 %v4915, %v4894
        %v6722 = vpack.c.b16 %v4916, %v4895
        %v6723 = vpack.c.b16 %v4917, %v4896
        %v6724 = vpack.c.b16 %v4918, %v4897
        %v6725 = vpack.c.b16 %v4919, %v4898
        %v6726 = vpack.c.b16 %v4920, %v4899
        %v6727 = vpack.c.b16 %v4921, %v4900
        %v6728 = vpack.c.b16 %v4922, %v4901
        %v6729 = vpack.c.b16 %v4923, %v4902
        %v6730 = vpack.c.b16 %v4924, %v4903
        %v6731 = vpack.c.b16 %v4925, %v4904
        %v6732 = vpack.c.b16 %v4926, %v4905
        %v6733 = vpack.c.b16 %v4948, %v4927
        %v6734 = vpack.c.b16 %v4949, %v4928
        %v6735 = vpack.c.b16 %v4950, %v4929
        %v6736 = vpack.c.b16 %v4951, %v4930
        %v6737 = vpack.c.b16 %v4952, %v4931
        %v6738 = vpack.c.b16 %v4953, %v4932
        %v6739 = vpack.c.b16 %v4954, %v4933
        %v6740 = vpack.c.b16 %v4955, %v4934
        %v6741 = vpack.c.b16 %v4956, %v4935
        %v6742 = vpack.c.b16 %v4957, %v4936
        %v6743 = vpack.c.b16 %v4958, %v4937
        %v6744 = vpack.c.b16 %v4959, %v4938
        %v6745 = vpack.c.b16 %v4960, %v4939
        %v6746 = vpack.c.b16 %v4961, %v4940
        %v6747 = vpack.c.b16 %v4962, %v4941
        %v6748 = vpack.c.b16 %v4963, %v4942
        %v6749 = vpack.c.b16 %v4964, %v4943
        %v6750 = vpack.c.b16 %v4965, %v4944
        %v6751 = vpack.c.b16 %v4966, %v4945
        %v6752 = vpack.c.b16 %v4967, %v4946
        %v6753 = vpack.c.b16 %v4968, %v4947
        %v6754 = vpack.c.b16 %v4990, %v4969
        %v6755 = vpack.c.b16 %v4991, %v4970
        %v6756 = vpack.c.b16 %v4992, %v4971
        %v6757 = vpack.c.b16 %v4993, %v4972
        %v6758 = vpack.c.b16 %v4994, %v4973
        %v6759 = vpack.c.b16 %v4995, %v4974
        %v6760 = vpack.c.b16 %v4996, %v4975
        %v6761 = vpack.c.b16 %v4997, %v4976
        %v6762 = vpack.c.b16 %v4998, %v4977
        %v6763 = vpack.c.b16 %v4999, %v4978
        %v6764 = vpack.c.b16 %v5000, %v4979
        %v6765 = vpack.c.b16 %v5001, %v4980
        %v6766 = vpack.c.b16 %v5002, %v4981
        %v6767 = vpack.c.b16 %v5003, %v4982
        %v6768 = vpack.c.b16 %v5004, %v4983
        %v6769 = vpack.c.b16 %v5005, %v4984
        %v6770 = vpack.c.b16 %v5006, %v4985
        %v6771 = vpack.c.b16 %v5007, %v4986
        %v6772 = vpack.c.b16 %v5008, %v4987
        %v6773 = vpack.c.b16 %v5009, %v4988
        %v6774 = vpack.c.b16 %v5010, %v4989
        %v6775 = vpack.c.b16 %v5032, %v5011
        %v6776 = vpack.c.b16 %v5033, %v5012
        %v6777 = vpack.c.b16 %v5034, %v5013
        %v6778 = vpack.c.b16 %v5035, %v5014
        %v6779 = vpack.c.b16 %v5036, %v5015
        %v6780 = vpack.c.b16 %v5037, %v5016
        %v6781 = vpack.c.b16 %v5038, %v5017
        %v6782 = vpack.c.b16 %v5039, %v5018
        %v6783 = vpack.c.b16 %v5040, %v5019
        %v6784 = vpack.c.b16 %v5041, %v5020
        %v6785 = vpack.c.b16 %v5042, %v5021
        %v6786 = vpack.c.b16 %v5043, %v5022
        %v6787 = vpack.c.b16 %v5044, %v5023
        %v6788 = vpack.c.b16 %v5045, %v5024
        %v6789 = vpack.c.b16 %v5046, %v5025
        %v6790 = vpack.c.b16 %v5047, %v5026
        %v6791 = vpack.c.b16 %v5048, %v5027
        %v6792 = vpack.c.b16 %v5049, %v5028
        %v6793 = vpack.c.b16 %v5050, %v5029
        %v6794 = vpack.c.b16 %v5051, %v5030
        %v6795 = vpack.c.b16 %v5052, %v5031
        %v6796 = vpack.c.b16 %v5074, %v5053
        %v6797 = vpack.c.b16 %v5075, %v5054
        %v6798 = vpack.c.b16 %v5076, %v5055
        %v6799 = vpack.c.b16 %v5077, %v5056
        %v6800 = vpack.c.b16 %v5078, %v5057
        %v6801 = vpack.c.b16 %v5079, %v5058
        %v6802 = vpack.c.b16 %v5080, %v5059
        %v6803 = vpack.c.b16 %v5081, %v5060
        %v6804 = vpack.c.b16 %v5082, %v5061
        %v6805 = vpack.c.b16 %v5083, %v5062
        %v6806 = vpack.c.b16 %v5084, %v5063
        %v6807 = vpack.c.b16 %v5085, %v5064
        %v6808 = vpack.c.b16 %v5086, %v5065
        %v6809 = vpack.c.b16 %v5087, %v5066
        %v6810 = vpack.c.b16 %v5088, %v5067
        %v6811 = vpack.c.b16 %v5089, %v5068
        %v6812 = vpack.c.b16 %v5090, %v5069
        %v6813 = vpack.c.b16 %v5091, %v5070
        %v6814 = vpack.c.b16 %v5092, %v5071
        %v6815 = vpack.c.b16 %v5093, %v5072
        %v6816 = vpack.c.b16 %v5094, %v5073
        %v6817 = vpack.c.b16 %v5116, %v5095
        %v6818 = vpack.c.b16 %v5117, %v5096
        %v6819 = vpack.c.b16 %v5118, %v5097
        %v6820 = vpack.c.b16 %v5119, %v5098
        %v6821 = vpack.c.b16 %v5120, %v5099
        %v6822 = vpack.c.b16 %v5121, %v5100
        %v6823 = vpack.c.b16 %v5122, %v5101
        %v6824 = vpack.c.b16 %v5123, %v5102
        %v6825 = vpack.c.b16 %v5124, %v5103
        %v6826 = vpack.c.b16 %v5125, %v5104
        %v6827 = vpack.c.b16 %v5126, %v5105
        %v6828 = vpack.c.b16 %v5127, %v5106
        %v6829 = vpack.c.b16 %v5128, %v5107
        %v6830 = vpack.c.b16 %v5129, %v5108
        %v6831 = vpack.c.b16 %v5130, %v5109
        %v6832 = vpack.c.b16 %v5131, %v5110
        %v6833 = vpack.c.b16 %v5132, %v5111
        %v6834 = vpack.c.b16 %v5133, %v5112
        %v6835 = vpack.c.b16 %v5134, %v5113
        %v6836 = vpack.c.b16 %v5135, %v5114
        %v6837 = vpack.c.b16 %v5136, %v5115
        %v6838 = vpack.c.b16 %v5158, %v5137
        %v6839 = vpack.c.b16 %v5159, %v5138
        %v6840 = vpack.c.b16 %v5160, %v5139
        %v6841 = vpack.c.b16 %v5161, %v5140
        %v6842 = vpack.c.b16 %v5162, %v5141
        %v6843 = vpack.c.b16 %v5163, %v5142
        %v6844 = vpack.c.b16 %v5164, %v5143
        %v6845 = vpack.c.b16 %v5165, %v5144
        %v6846 = vpack.c.b16 %v5166, %v5145
        %v6847 = vpack.c.b16 %v5167, %v5146
        %v6848 = vpack.c.b16 %v5168, %v5147
        %v6849 = vpack.c.b16 %v5169, %v5148
        %v6850 = vpack.c.b16 %v5170, %v5149
        %v6851 = vpack.c.b16 %v5171, %v5150
        %v6852 = vpack.c.b16 %v5172, %v5151
        %v6853 = vpack.c.b16 %v5173, %v5152
        %v6854 = vpack.c.b16 %v5174, %v5153
        %v6855 = vpack.c.b16 %v5175, %v5154
        %v6856 = vpack.c.b16 %v5176, %v5155
        %v6857 = vpack.c.b16 %v5177, %v5156
        %v6858 = vpack.c.b16 %v5178, %v5157
        %v6859 = vpack.c.b16 %v5200, %v5179
        %v6860 = vpack.c.b16 %v5201, %v5180
        %v6861 = vpack.c.b16 %v5202, %v5181
        %v6862 = vpack.c.b16 %v5203, %v5182
        %v6863 = vpack.c.b16 %v5204, %v5183
        %v6864 = vpack.c.b16 %v5205, %v5184
        %v6865 = vpack.c.b16 %v5206, %v5185
        %v6866 = vpack.c.b16 %v5207, %v5186
        %v6867 = vpack.c.b16 %v5208, %v5187
        %v6868 = vpack.c.b16 %v5209, %v5188
        %v6869 = vpack.c.b16 %v5210, %v5189
        %v6870 = vpack.c.b16 %v5211, %v5190
        %v6871 = vpack.c.b16 %v5212, %v5191
        %v6872 = vpack.c.b16 %v5213, %v5192
        %v6873 = vpack.c.b16 %v5214, %v5193
        %v6874 = vpack.c.b16 %v5215, %v5194
        %v6875 = vpack.c.b16 %v5216, %v5195
        %v6876 = vpack.c.b16 %v5217, %v5196
        %v6877 = vpack.c.b16 %v5218, %v5197
        %v6878 = vpack.c.b16 %v5219, %v5198
        %v6879 = vpack.c.b16 %v5220, %v5199
        %v6880 = vpack.c.b16 %v5242, %v5221
        %v6881 = vpack.c.b16 %v5243, %v5222
        %v6882 = vpack.c.b16 %v5244, %v5223
        %v6883 = vpack.c.b16 %v5245, %v5224
        %v6884 = vpack.c.b16 %v5246, %v5225
        %v6885 = vpack.c.b16 %v5247, %v5226
        %v6886 = vpack.c.b16 %v5248, %v5227
        %v6887 = vpack.c.b16 %v5249, %v5228
        %v6888 = vpack.c.b16 %v5250, %v5229
        %v6889 = vpack.c.b16 %v5251, %v5230
        %v6890 = vpack.c.b16 %v5252, %v5231
        %v6891 = vpack.c.b16 %v5253, %v5232
        %v6892 = vpack.c.b16 %v5254, %v5233
        %v6893 = vpack.c.b16 %v5255, %v5234
        %v6894 = vpack.c.b16 %v5256, %v5235
        %v6895 = vpack.c.b16 %v5257, %v5236
        %v6896 = vpack.c.b16 %v5258, %v5237
        %v6897 = vpack.c.b16 %v5259, %v5238
        %v6898 = vpack.c.b16 %v5260, %v5239
        %v6899 = vpack.c.b16 %v5261, %v5240
        %v6900 = vpack.c.b16 %v5262, %v5241
        %v6901 = vpack.c.b16 %v5284, %v5263
        %v6902 = vpack.c.b16 %v5285, %v5264
        %v6903 = vpack.c.b16 %v5286, %v5265
        %v6904 = vpack.c.b16 %v5287, %v5266
        %v6905 = vpack.c.b16 %v5288, %v5267
        %v6906 = vpack.c.b16 %v5289, %v5268
        %v6907 = vpack.c.b16 %v5290, %v5269
        %v6908 = vpack.c.b16 %v5291, %v5270
        %v6909 = vpack.c.b16 %v5292, %v5271
        %v6910 = vpack.c.b16 %v5293, %v5272
        %v6911 = vpack.c.b16 %v5294, %v5273
        %v6912 = vpack.c.b16 %v5295, %v5274
        %v6913 = vpack.c.b16 %v5296, %v5275
        %v6914 = vpack.c.b16 %v5297, %v5276
        %v6915 = vpack.c.b16 %v5298, %v5277
        %v6916 = vpack.c.b16 %v5299, %v5278
        %v6917 = vpack.c.b16 %v5300, %v5279
        %v6918 = vpack.c.b16 %v5301, %v5280
        %v6919 = vpack.c.b16 %v5302, %v5281
        %v6920 = vpack.c.b16 %v5303, %v5282
        %v6921 = vpack.c.b16 %v5304, %v5283
        %v6922 = vpack.c.b16 %v5326, %v5305
        %v6923 = vpack.c.b16 %v5327, %v5306
        %v6924 = vpack.c.b16 %v5328, %v5307
        %v6925 = vpack.c.b16 %v5329, %v5308
        %v6926 = vpack.c.b16 %v5330, %v5309
        %v6927 = vpack.c.b16 %v5331, %v5310
        %v6928 = vpack.c.b16 %v5332, %v5311
        %v6929 = vpack.c.b16 %v5333, %v5312
        %v6930 = vpack.c.b16 %v5334, %v5313
        %v6931 = vpack.c.b16 %v5335, %v5314
        %v6932 = vpack.c.b16 %v5336, %v5315
        %v6933 = vpack.c.b16 %v5337, %v5316
        %v6934 = vpack.c.b16 %v5338, %v5317
        %v6935 = vpack.c.b16 %v5339, %v5318
        %v6936 = vpack.c.b16 %v5340, %v5319
        %v6937 = vpack.c.b16 %v5341, %v5320
        %v6938 = vpack.c.b16 %v5342, %v5321
        %v6939 = vpack.c.b16 %v5343, %v5322
        %v6940 = vpack.c.b16 %v5344, %v5323
        %v6941 = vpack.c.b16 %v5345, %v5324
        %v6942 = vpack.c.b16 %v5346, %v5325
        %v6943 = vpack.c.b16 %v5368, %v5347
        %v6944 = vpack.c.b16 %v5369, %v5348
        %v6945 = vpack.c.b16 %v5370, %v5349
        %v6946 = vpack.c.b16 %v5371, %v5350
        %v6947 = vpack.c.b16 %v5372, %v5351
        %v6948 = vpack.c.b16 %v5373, %v5352
        %v6949 = vpack.c.b16 %v5374, %v5353
        %v6950 = vpack.c.b16 %v5375, %v5354
        %v6951 = vpack.c.b16 %v5376, %v5355
        %v6952 = vpack.c.b16 %v5377, %v5356
        %v6953 = vpack.c.b16 %v5378, %v5357
        %v6954 = vpack.c.b16 %v5379, %v5358
        %v6955 = vpack.c.b16 %v5380, %v5359
        %v6956 = vpack.c.b16 %v5381, %v5360
        %v6957 = vpack.c.b16 %v5382, %v5361
        %v6958 = vpack.c.b16 %v5383, %v5362
        %v6959 = vpack.c.b16 %v5384, %v5363
        %v6960 = vpack.c.b16 %v5385, %v5364
        %v6961 = vpack.c.b16 %v5386, %v5365
        %v6962 = vpack.c.b16 %v5387, %v5366
        %v6963 = vpack.c.b16 %v5388, %v5367
        %v6964 = vpack.c.b16 %v5410, %v5389
        %v6965 = vpack.c.b16 %v5411, %v5390
        %v6966 = vpack.c.b16 %v5412, %v5391
        %v6967 = vpack.c.b16 %v5413, %v5392
        %v6968 = vpack.c.b16 %v5414, %v5393
        %v6969 = vpack.c.b16 %v5415, %v5394
        %v6970 = vpack.c.b16 %v5416, %v5395
        %v6971 = vpack.c.b16 %v5417, %v5396
        %v6972 = vpack.c.b16 %v5418, %v5397
        %v6973 = vpack.c.b16 %v5419, %v5398
        %v6974 = vpack.c.b16 %v5420, %v5399
        %v6975 = vpack.c.b16 %v5421, %v5400
        %v6976 = vpack.c.b16 %v5422, %v5401
        %v6977 = vpack.c.b16 %v5423, %v5402
        %v6978 = vpack.c.b16 %v5424, %v5403
        %v6979 = vpack.c.b16 %v5425, %v5404
        %v6980 = vpack.c.b16 %v5426, %v5405
        %v6981 = vpack.c.b16 %v5427, %v5406
        %v6982 = vpack.c.b16 %v5428, %v5407
        %v6983 = vpack.c.b16 %v5429, %v5408
        %v6984 = vpack.c.b16 %v5430, %v5409
        %v6985 = vpack.c.b16 %v5452, %v5431
        %v6986 = vpack.c.b16 %v5453, %v5432
        %v6987 = vpack.c.b16 %v5454, %v5433
        %v6988 = vpack.c.b16 %v5455, %v5434
        %v6989 = vpack.c.b16 %v5456, %v5435
        %v6990 = vpack.c.b16 %v5457, %v5436
        %v6991 = vpack.c.b16 %v5458, %v5437
        %v6992 = vpack.c.b16 %v5459, %v5438
        %v6993 = vpack.c.b16 %v5460, %v5439
        %v6994 = vpack.c.b16 %v5461, %v5440
        %v6995 = vpack.c.b16 %v5462, %v5441
        %v6996 = vpack.c.b16 %v5463, %v5442
        %v6997 = vpack.c.b16 %v5464, %v5443
        %v6998 = vpack.c.b16 %v5465, %v5444
        %v6999 = vpack.c.b16 %v5466, %v5445
        %v7000 = vpack.c.b16 %v5467, %v5446
        %v7001 = vpack.c.b16 %v5468, %v5447
        %v7002 = vpack.c.b16 %v5469, %v5448
        %v7003 = vpack.c.b16 %v5470, %v5449
        %v7004 = vpack.c.b16 %v5471, %v5450
        %v7005 = vpack.c.b16 %v5472, %v5451
        %v7006 = vpack.c.b16 %v5494, %v5473
        %v7007 = vpack.c.b16 %v5495, %v5474
        %v7008 = vpack.c.b16 %v5496, %v5475
        %v7009 = vpack.c.b16 %v5497, %v5476
        %v7010 = vpack.c.b16 %v5498, %v5477
        %v7011 = vpack.c.b16 %v5499, %v5478
        %v7012 = vpack.c.b16 %v5500, %v5479
        %v7013 = vpack.c.b16 %v5501, %v5480
        %v7014 = vpack.c.b16 %v5502, %v5481
        %v7015 = vpack.c.b16 %v5503, %v5482
        %v7016 = vpack.c.b16 %v5504, %v5483
        %v7017 = vpack.c.b16 %v5505, %v5484
        %v7018 = vpack.c.b16 %v5506, %v5485
        %v7019 = vpack.c.b16 %v5507, %v5486
        %v7020 = vpack.c.b16 %v5508, %v5487
        %v7021 = vpack.c.b16 %v5509, %v5488
        %v7022 = vpack.c.b16 %v5510, %v5489
        %v7023 = vpack.c.b16 %v5511, %v5490
        %v7024 = vpack.c.b16 %v5512, %v5491
        %v7025 = vpack.c.b16 %v5513, %v5492
        %v7026 = vpack.c.b16 %v5514, %v5493
        %v7027 = vpack.c.b16 %v5536, %v5515
        %v7028 = vpack.c.b16 %v5537, %v5516
        %v7029 = vpack.c.b16 %v5538, %v5517
        %v7030 = vpack.c.b16 %v5539, %v5518
        %v7031 = vpack.c.b16 %v5540, %v5519
        %v7032 = vpack.c.b16 %v5541, %v5520
        %v7033 = vpack.c.b16 %v5542, %v5521
        %v7034 = vpack.c.b16 %v5543, %v5522
        %v7035 = vpack.c.b16 %v5544, %v5523
        %v7036 = vpack.c.b16 %v5545, %v5524
        %v7037 = vpack.c.b16 %v5546, %v5525
        %v7038 = vpack.c.b16 %v5547, %v5526
        %v7039 = vpack.c.b16 %v5548, %v5527
        %v7040 = vpack.c.b16 %v5549, %v5528
        %v7041 = vpack.c.b16 %v5550, %v5529
        %v7042 = vpack.c.b16 %v5551, %v5530
        %v7043 = vpack.c.b16 %v5552, %v5531
        %v7044 = vpack.c.b16 %v5553, %v5532
        %v7045 = vpack.c.b16 %v5554, %v5533
        %v7046 = vpack.c.b16 %v5555, %v5534
        %v7047 = vpack.c.b16 %v5556, %v5535
        %v7048 = vpack.c.b16 %v5578, %v5557
        %v7049 = vpack.c.b16 %v5579, %v5558
        %v7050 = vpack.c.b16 %v5580, %v5559
        %v7051 = vpack.c.b16 %v5581, %v5560
        %v7052 = vpack.c.b16 %v5582, %v5561
        %v7053 = vpack.c.b16 %v5583, %v5562
        %v7054 = vpack.c.b16 %v5584, %v5563
        %v7055 = vpack.c.b16 %v5585, %v5564
        %v7056 = vpack.c.b16 %v5586, %v5565
        %v7057 = vpack.c.b16 %v5587, %v5566
        %v7058 = vpack.c.b16 %v5588, %v5567
        %v7059 = vpack.c.b16 %v5589, %v5568
        %v7060 = vpack.c.b16 %v5590, %v5569
        %v7061 = vpack.c.b16 %v5591, %v5570
        %v7062 = vpack.c.b16 %v5592, %v5571
        %v7063 = vpack.c.b16 %v5593, %v5572
        %v7064 = vpack.c.b16 %v5594, %v5573
        %v7065 = vpack.c.b16 %v5595, %v5574
        %v7066 = vpack.c.b16 %v5596, %v5575
        %v7067 = vpack.c.b16 %v5597, %v5576
        %v7068 = vpack.c.b16 %v5598, %v5577
        %v7069 = vpack.c.b16 %v5620, %v5599
        %v7070 = vpack.c.b16 %v5621, %v5600
        %v7071 = vpack.c.b16 %v5622, %v5601
        %v7072 = vpack.c.b16 %v5623, %v5602
        %v7073 = vpack.c.b16 %v5624, %v5603
        %v7074 = vpack.c.b16 %v5625, %v5604
        %v7075 = vpack.c.b16 %v5626, %v5605
        %v7076 = vpack.c.b16 %v5627, %v5606
        %v7077 = vpack.c.b16 %v5628, %v5607
        %v7078 = vpack.c.b16 %v5629, %v5608
        %v7079 = vpack.c.b16 %v5630, %v5609
        %v7080 = vpack.c.b16 %v5631, %v5610
        %v7081 = vpack.c.b16 %v5632, %v5611
        %v7082 = vpack.c.b16 %v5633, %v5612
        %v7083 = vpack.c.b16 %v5634, %v5613
        %v7084 = vpack.c.b16 %v5635, %v5614
        %v7085 = vpack.c.b16 %v5636, %v5615
        %v7086 = vpack.c.b16 %v5637, %v5616
        %v7087 = vpack.c.b16 %v5638, %v5617
        %v7088 = vpack.c.b16 %v5639, %v5618
        %v7089 = vpack.c.b16 %v5640, %v5619
        %v7090 = vpack.c.b16 %v5662, %v5641
        %v7091 = vpack.c.b16 %v5663, %v5642
        %v7092 = vpack.c.b16 %v5664, %v5643
        %v7093 = vpack.c.b16 %v5665, %v5644
        %v7094 = vpack.c.b16 %v5666, %v5645
        %v7095 = vpack.c.b16 %v5667, %v5646
        %v7096 = vpack.c.b16 %v5668, %v5647
        %v7097 = vpack.c.b16 %v5669, %v5648
        %v7098 = vpack.c.b16 %v5670, %v5649
        %v7099 = vpack.c.b16 %v5671, %v5650
        %v7100 = vpack.c.b16 %v5672, %v5651
        %v7101 = vpack.c.b16 %v5673, %v5652
        %v7102 = vpack.c.b16 %v5674, %v5653
        %v7103 = vpack.c.b16 %v5675, %v5654
        %v7104 = vpack.c.b16 %v5676, %v5655
        %v7105 = vpack.c.b16 %v5677, %v5656
        %v7106 = vpack.c.b16 %v5678, %v5657
        %v7107 = vpack.c.b16 %v5679, %v5658
        %v7108 = vpack.c.b16 %v5680, %v5659
        %v7109 = vpack.c.b16 %v5681, %v5660
        %v7110 = vpack.c.b16 %v5682, %v5661
        %v7111 = vpack.c.b16 %v5704, %v5683
        %v7112 = vpack.c.b16 %v5705, %v5684
        %v7113 = vpack.c.b16 %v5706, %v5685
        %v7114 = vpack.c.b16 %v5707, %v5686
        %v7115 = vpack.c.b16 %v5708, %v5687
        %v7116 = vpack.c.b16 %v5709, %v5688
        %v7117 = vpack.c.b16 %v5710, %v5689
        %v7118 = vpack.c.b16 %v5711, %v5690
        %v7119 = vpack.c.b16 %v5712, %v5691
        %v7120 = vpack.c.b16 %v5713, %v5692
        %v7121 = vpack.c.b16 %v5714, %v5693
        %v7122 = vpack.c.b16 %v5715, %v5694
        %v7123 = vpack.c.b16 %v5716, %v5695
        %v7124 = vpack.c.b16 %v5717, %v5696
        %v7125 = vpack.c.b16 %v5718, %v5697
        %v7126 = vpack.c.b16 %v5719, %v5698
        %v7127 = vpack.c.b16 %v5720, %v5699
        %v7128 = vpack.c.b16 %v5721, %v5700
        %v7129 = vpack.c.b16 %v5722, %v5701
        %v7130 = vpack.c.b16 %v5723, %v5702
        %v7131 = vpack.c.b16 %v5724, %v5703
        %v7132 = vpack.c.b16 %v5746, %v5725
        %v7133 = vpack.c.b16 %v5747, %v5726
        %v7134 = vpack.c.b16 %v5748, %v5727
        %v7135 = vpack.c.b16 %v5749, %v5728
        %v7136 = vpack.c.b16 %v5750, %v5729
        %v7137 = vpack.c.b16 %v5751, %v5730
        %v7138 = vpack.c.b16 %v5752, %v5731
        %v7139 = vpack.c.b16 %v5753, %v5732
        %v7140 = vpack.c.b16 %v5754, %v5733
        %v7141 = vpack.c.b16 %v5755, %v5734
        %v7142 = vpack.c.b16 %v5756, %v5735
        %v7143 = vpack.c.b16 %v5757, %v5736
        %v7144 = vpack.c.b16 %v5758, %v5737
        %v7145 = vpack.c.b16 %v5759, %v5738
        %v7146 = vpack.c.b16 %v5760, %v5739
        %v7147 = vpack.c.b16 %v5761, %v5740
        %v7148 = vpack.c.b16 %v5762, %v5741
        %v7149 = vpack.c.b16 %v5763, %v5742
        %v7150 = vpack.c.b16 %v5764, %v5743
        %v7151 = vpack.c.b16 %v5765, %v5744
        %v7152 = vpack.c.b16 %v5766, %v5745
        %v7153 = vpack.c.b16 %v5788, %v5767
        %v7154 = vpack.c.b16 %v5789, %v5768
        %v7155 = vpack.c.b16 %v5790, %v5769
        %v7156 = vpack.c.b16 %v5791, %v5770
        %v7157 = vpack.c.b16 %v5792, %v5771
        %v7158 = vpack.c.b16 %v5793, %v5772
        %v7159 = vpack.c.b16 %v5794, %v5773
        %v7160 = vpack.c.b16 %v5795, %v5774
        %v7161 = vpack.c.b16 %v5796, %v5775
        %v7162 = vpack.c.b16 %v5797, %v5776
        %v7163 = vpack.c.b16 %v5798, %v5777
        %v7164 = vpack.c.b16 %v5799, %v5778
        %v7165 = vpack.c.b16 %v5800, %v5779
        %v7166 = vpack.c.b16 %v5801, %v5780
        %v7167 = vpack.c.b16 %v5802, %v5781
        %v7168 = vpack.c.b16 %v5803, %v5782
        %v7169 = vpack.c.b16 %v5804, %v5783
        %v7170 = vpack.c.b16 %v5805, %v5784
        %v7171 = vpack.c.b16 %v5806, %v5785
        %v7172 = vpack.c.b16 %v5807, %v5786
        %v7173 = vpack.c.b16 %v5808, %v5787
        %v7174 = vpack.c.b16 %v5830, %v5809
        %v7175 = vpack.c.b16 %v5831, %v5810
        %v7176 = vpack.c.b16 %v5832, %v5811
        %v7177 = vpack.c.b16 %v5833, %v5812
        %v7178 = vpack.c.b16 %v5834, %v5813
        %v7179 = vpack.c.b16 %v5835, %v5814
        %v7180 = vpack.c.b16 %v5836, %v5815
        %v7181 = vpack.c.b16 %v5837, %v5816
        %v7182 = vpack.c.b16 %v5838, %v5817
        %v7183 = vpack.c.b16 %v5839, %v5818
        %v7184 = vpack.c.b16 %v5840, %v5819
        %v7185 = vpack.c.b16 %v5841, %v5820
        %v7186 = vpack.c.b16 %v5842, %v5821
        %v7187 = vpack.c.b16 %v5843, %v5822
        %v7188 = vpack.c.b16 %v5844, %v5823
        %v7189 = vpack.c.b16 %v5845, %v5824
        %v7190 = vpack.c.b16 %v5846, %v5825
        %v7191 = vpack.c.b16 %v5847, %v5826
        %v7192 = vpack.c.b16 %v5848, %v5827
        %v7193 = vpack.c.b16 %v5849, %v5828
        %v7194 = vpack.c.b16 %v5850, %v5829
        %v7195 = vpack.c.b16 %v5872, %v5851
        %v7196 = vpack.c.b16 %v5873, %v5852
        %v7197 = vpack.c.b16 %v5874, %v5853
        %v7198 = vpack.c.b16 %v5875, %v5854
        %v7199 = vpack.c.b16 %v5876, %v5855
        %v7200 = vpack.c.b16 %v5877, %v5856
        %v7201 = vpack.c.b16 %v5878, %v5857
        %v7202 = vpack.c.b16 %v5879, %v5858
        %v7203 = vpack.c.b16 %v5880, %v5859
        %v7204 = vpack.c.b16 %v5881, %v5860
        %v7205 = vpack.c.b16 %v5882, %v5861
        %v7206 = vpack.c.b16 %v5883, %v5862
        %v7207 = vpack.c.b16 %v5884, %v5863
        %v7208 = vpack.c.b16 %v5885, %v5864
        %v7209 = vpack.c.b16 %v5886, %v5865
        %v7210 = vpack.c.b16 %v5887, %v5866
        %v7211 = vpack.c.b16 %v5888, %v5867
        %v7212 = vpack.c.b16 %v5889, %v5868
        %v7213 = vpack.c.b16 %v5890, %v5869
        %v7214 = vpack.c.b16 %v5891, %v5870
        %v7215 = vpack.c.b16 %v5892, %v5871
        %v7216 = vpack.c.b16 %v5914, %v5893
        %v7217 = vpack.c.b16 %v5915, %v5894
        %v7218 = vpack.c.b16 %v5916, %v5895
        %v7219 = vpack.c.b16 %v5917, %v5896
        %v7220 = vpack.c.b16 %v5918, %v5897
        %v7221 = vpack.c.b16 %v5919, %v5898
        %v7222 = vpack.c.b16 %v5920, %v5899
        %v7223 = vpack.c.b16 %v5921, %v5900
        %v7224 = vpack.c.b16 %v5922, %v5901
        %v7225 = vpack.c.b16 %v5923, %v5902
        %v7226 = vpack.c.b16 %v5924, %v5903
        %v7227 = vpack.c.b16 %v5925, %v5904
        %v7228 = vpack.c.b16 %v5926, %v5905
        %v7229 = vpack.c.b16 %v5927, %v5906
        %v7230 = vpack.c.b16 %v5928, %v5907
        %v7231 = vpack.c.b16 %v5929, %v5908
        %v7232 = vpack.c.b16 %v5930, %v5909
        %v7233 = vpack.c.b16 %v5931, %v5910
        %v7234 = vpack.c.b16 %v5932, %v5911
        %v7235 = vpack.c.b16 %v5933, %v5912
        %v7236 = vpack.c.b16 %v5934, %v5913
        %v7237 = vpack.c.b16 %v5956, %v5935
        %v7238 = vpack.c.b16 %v5957, %v5936
        %v7239 = vpack.c.b16 %v5958, %v5937
        %v7240 = vpack.c.b16 %v5959, %v5938
        %v7241 = vpack.c.b16 %v5960, %v5939
        %v7242 = vpack.c.b16 %v5961, %v5940
        %v7243 = vpack.c.b16 %v5962, %v5941
        %v7244 = vpack.c.b16 %v5963, %v5942
        %v7245 = vpack.c.b16 %v5964, %v5943
        %v7246 = vpack.c.b16 %v5965, %v5944
        %v7247 = vpack.c.b16 %v5966, %v5945
        %v7248 = vpack.c.b16 %v5967, %v5946
        %v7249 = vpack.c.b16 %v5968, %v5947
        %v7250 = vpack.c.b16 %v5969, %v5948
        %v7251 = vpack.c.b16 %v5970, %v5949
        %v7252 = vpack.c.b16 %v5971, %v5950
        %v7253 = vpack.c.b16 %v5972, %v5951
        %v7254 = vpack.c.b16 %v5973, %v5952
        %v7255 = vpack.c.b16 %v5974, %v5953
        %v7256 = vpack.c.b16 %v5975, %v5954
        %v7257 = vpack.c.b16 %v5976, %v5955
        %v7258 = vpack.c.b16 %v5998, %v5977
        %v7259 = vpack.c.b16 %v5999, %v5978
        %v7260 = vpack.c.b16 %v6000, %v5979
        %v7261 = vpack.c.b16 %v6001, %v5980
        %v7262 = vpack.c.b16 %v6002, %v5981
        %v7263 = vpack.c.b16 %v6003, %v5982
        %v7264 = vpack.c.b16 %v6004, %v5983
        %v7265 = vpack.c.b16 %v6005, %v5984
        %v7266 = vpack.c.b16 %v6006, %v5985
        %v7267 = vpack.c.b16 %v6007, %v5986
        %v7268 = vpack.c.b16 %v6008, %v5987
        %v7269 = vpack.c.b16 %v6009, %v5988
        %v7270 = vpack.c.b16 %v6010, %v5989
        %v7271 = vpack.c.b16 %v6011, %v5990
        %v7272 = vpack.c.b16 %v6012, %v5991
        %v7273 = vpack.c.b16 %v6013, %v5992
        %v7274 = vpack.c.b16 %v6014, %v5993
        %v7275 = vpack.c.b16 %v6015, %v5994
        %v7276 = vpack.c.b16 %v6016, %v5995
        %v7277 = vpack.c.b16 %v6017, %v5996
        %v7278 = vpack.c.b16 %v6018, %v5997
        %v7279 = vpack.c.b16 %v6040, %v6019
        %v7280 = vpack.c.b16 %v6041, %v6020
        %v7281 = vpack.c.b16 %v6042, %v6021
        %v7282 = vpack.c.b16 %v6043, %v6022
        %v7283 = vpack.c.b16 %v6044, %v6023
        %v7284 = vpack.c.b16 %v6045, %v6024
        %v7285 = vpack.c.b16 %v6046, %v6025
        %v7286 = vpack.c.b16 %v6047, %v6026
        %v7287 = vpack.c.b16 %v6048, %v6027
        %v7288 = vpack.c.b16 %v6049, %v6028
        %v7289 = vpack.c.b16 %v6050, %v6029
        %v7290 = vpack.c.b16 %v6051, %v6030
        %v7291 = vpack.c.b16 %v6052, %v6031
        %v7292 = vpack.c.b16 %v6053, %v6032
        %v7293 = vpack.c.b16 %v6054, %v6033
        %v7294 = vpack.c.b16 %v6055, %v6034
        %v7295 = vpack.c.b16 %v6056, %v6035
        %v7296 = vpack.c.b16 %v6057, %v6036
        %v7297 = vpack.c.b16 %v6058, %v6037
        %v7298 = vpack.c.b16 %v6059, %v6038
        %v7299 = vpack.c.b16 %v6060, %v6039
        %v7300 = vpack.c.b16 %v6082, %v6061
        %v7301 = vpack.c.b16 %v6083, %v6062
        %v7302 = vpack.c.b16 %v6084, %v6063
        %v7303 = vpack.c.b16 %v6085, %v6064
        %v7304 = vpack.c.b16 %v6086, %v6065
        %v7305 = vpack.c.b16 %v6087, %v6066
        %v7306 = vpack.c.b16 %v6088, %v6067
        %v7307 = vpack.c.b16 %v6089, %v6068
        %v7308 = vpack.c.b16 %v6090, %v6069
        %v7309 = vpack.c.b16 %v6091, %v6070
        %v7310 = vpack.c.b16 %v6092, %v6071
        %v7311 = vpack.c.b16 %v6093, %v6072
        %v7312 = vpack.c.b16 %v6094, %v6073
        %v7313 = vpack.c.b16 %v6095, %v6074
        %v7314 = vpack.c.b16 %v6096, %v6075
        %v7315 = vpack.c.b16 %v6097, %v6076
        %v7316 = vpack.c.b16 %v6098, %v6077
        %v7317 = vpack.c.b16 %v6099, %v6078
        %v7318 = vpack.c.b16 %v6100, %v6079
        %v7319 = vpack.c.b16 %v6101, %v6080
        %v7320 = vpack.c.b16 %v6102, %v6081
        %v7321 = vpack.c.b16 %v6124, %v6103
        %v7322 = vpack.c.b16 %v6125, %v6104
        %v7323 = vpack.c.b16 %v6126, %v6105
        %v7324 = vpack.c.b16 %v6127, %v6106
        %v7325 = vpack.c.b16 %v6128, %v6107
        %v7326 = vpack.c.b16 %v6129, %v6108
        %v7327 = vpack.c.b16 %v6130, %v6109
        %v7328 = vpack.c.b16 %v6131, %v6110
        %v7329 = vpack.c.b16 %v6132, %v6111
        %v7330 = vpack.c.b16 %v6133, %v6112
        %v7331 = vpack.c.b16 %v6134, %v6113
        %v7332 = vpack.c.b16 %v6135, %v6114
        %v7333 = vpack.c.b16 %v6136, %v6115
        %v7334 = vpack.c.b16 %v6137, %v6116
        %v7335 = vpack.c.b16 %v6138, %v6117
        %v7336 = vpack.c.b16 %v6139, %v6118
        %v7337 = vpack.c.b16 %v6140, %v6119
        %v7338 = vpack.c.b16 %v6141, %v6120
        %v7339 = vpack.c.b16 %v6142, %v6121
        %v7340 = vpack.c.b16 %v6143, %v6122
        %v7341 = vpack.c.b16 %v6144, %v6123
        %v7342 = vpack.c.b16 %v6166, %v6145
        %v7343 = vpack.c.b16 %v6167, %v6146
        %v7344 = vpack.c.b16 %v6168, %v6147
        %v7345 = vpack.c.b16 %v6169, %v6148
        %v7346 = vpack.c.b16 %v6170, %v6149
        %v7347 = vpack.c.b16 %v6171, %v6150
        %v7348 = vpack.c.b16 %v6172, %v6151
        %v7349 = vpack.c.b16 %v6173, %v6152
        %v7350 = vpack.c.b16 %v6174, %v6153
        %v7351 = vpack.c.b16 %v6175, %v6154
        %v7352 = vpack.c.b16 %v6176, %v6155
        %v7353 = vpack.c.b16 %v6177, %v6156
        %v7354 = vpack.c.b16 %v6178, %v6157
        %v7355 = vpack.c.b16 %v6179, %v6158
        %v7356 = vpack.c.b16 %v6180, %v6159
        %v7357 = vpack.c.b16 %v6181, %v6160
        %v7358 = vpack.c.b16 %v6182, %v6161
        %v7359 = vpack.c.b16 %v6183, %v6162
        %v7360 = vpack.c.b16 %v6184, %v6163
        %v7361 = vpack.c.b16 %v6185, %v6164
        %v7362 = vpack.c.b16 %v6186, %v6165
        %v7363 = vpack.c.b16 %v6208, %v6187
        %v7364 = vpack.c.b16 %v6209, %v6188
        %v7365 = vpack.c.b16 %v6210, %v6189
        %v7366 = vpack.c.b16 %v6211, %v6190
        %v7367 = vpack.c.b16 %v6212, %v6191
        %v7368 = vpack.c.b16 %v6213, %v6192
        %v7369 = vpack.c.b16 %v6214, %v6193
        %v7370 = vpack.c.b16 %v6215, %v6194
        %v7371 = vpack.c.b16 %v6216, %v6195
        %v7372 = vpack.c.b16 %v6217, %v6196
        %v7373 = vpack.c.b16 %v6218, %v6197
        %v7374 = vpack.c.b16 %v6219, %v6198
        %v7375 = vpack.c.b16 %v6220, %v6199
        %v7376 = vpack.c.b16 %v6221, %v6200
        %v7377 = vpack.c.b16 %v6222, %v6201
        %v7378 = vpack.c.b16 %v6223, %v6202
        %v7379 = vpack.c.b16 %v6224, %v6203
        %v7380 = vpack.c.b16 %v6225, %v6204
        %v7381 = vpack.c.b16 %v6226, %v6205
        %v7382 = vpack.c.b16 %v6227, %v6206
        %v7383 = vpack.c.b16 %v6228, %v6207
        %v7384 = vpack.c.b16 %v6250, %v6229
        %v7385 = vpack.c.b16 %v6251, %v6230
        %v7386 = vpack.c.b16 %v6252, %v6231
        %v7387 = vpack.c.b16 %v6253, %v6232
        %v7388 = vpack.c.b16 %v6254, %v6233
        %v7389 = vpack.c.b16 %v6255, %v6234
        %v7390 = vpack.c.b16 %v6256, %v6235
        %v7391 = vpack.c.b16 %v6257, %v6236
        %v7392 = vpack.c.b16 %v6258, %v6237
        %v7393 = vpack.c.b16 %v6259, %v6238
        %v7394 = vpack.c.b16 %v6260, %v6239
        %v7395 = vpack.c.b16 %v6261, %v6240
        %v7396 = vpack.c.b16 %v6262, %v6241
        %v7397 = vpack.c.b16 %v6263, %v6242
        %v7398 = vpack.c.b16 %v6264, %v6243
        %v7399 = vpack.c.b16 %v6265, %v6244
        %v7400 = vpack.c.b16 %v6266, %v6245
        %v7401 = vpack.c.b16 %v6267, %v6246
        %v7402 = vpack.c.b16 %v6268, %v6247
        %v7403 = vpack.c.b16 %v6269, %v6248
        %v7404 = vpack.c.b16 %v6270, %v6249
        %v7405 = vpack.c.b16 %v6292, %v6271
        %v7406 = vpack.c.b16 %v6293, %v6272
        %v7407 = vpack.c.b16 %v6294, %v6273
        %v7408 = vpack.c.b16 %v6295, %v6274
        %v7409 = vpack.c.b16 %v6296, %v6275
        %v7410 = vpack.c.b16 %v6297, %v6276
        %v7411 = vpack.c.b16 %v6298, %v6277
        %v7412 = vpack.c.b16 %v6299, %v6278
        %v7413 = vpack.c.b16 %v6300, %v6279
        %v7414 = vpack.c.b16 %v6301, %v6280
        %v7415 = vpack.c.b16 %v6302, %v6281
        %v7416 = vpack.c.b16 %v6303, %v6282
        %v7417 = vpack.c.b16 %v6304, %v6283
        %v7418 = vpack.c.b16 %v6305, %v6284
        %v7419 = vpack.c.b16 %v6306, %v6285
        %v7420 = vpack.c.b16 %v6307, %v6286
        %v7421 = vpack.c.b16 %v6308, %v6287
        %v7422 = vpack.c.b16 %v6309, %v6288
        %v7423 = vpack.c.b16 %v6310, %v6289
        %v7424 = vpack.c.b16 %v6311, %v6290
        %v7425 = vpack.c.b16 %v6312, %v6291
        %v7426 = vpack.c.b16 %v6334, %v6313
        %v7427 = vpack.c.b16 %v6335, %v6314
        %v7428 = vpack.c.b16 %v6336, %v6315
        %v7429 = vpack.c.b16 %v6337, %v6316
        %v7430 = vpack.c.b16 %v6338, %v6317
        %v7431 = vpack.c.b16 %v6339, %v6318
        %v7432 = vpack.c.b16 %v6340, %v6319
        %v7433 = vpack.c.b16 %v6341, %v6320
        %v7434 = vpack.c.b16 %v6342, %v6321
        %v7435 = vpack.c.b16 %v6343, %v6322
        %v7436 = vpack.c.b16 %v6344, %v6323
        %v7437 = vpack.c.b16 %v6345, %v6324
        %v7438 = vpack.c.b16 %v6346, %v6325
        %v7439 = vpack.c.b16 %v6347, %v6326
        %v7440 = vpack.c.b16 %v6348, %v6327
        %v7441 = vpack.c.b16 %v6349, %v6328
        %v7442 = vpack.c.b16 %v6350, %v6329
        %v7443 = vpack.c.b16 %v6351, %v6330
        %v7444 = vpack.c.b16 %v6352, %v6331
        %v7445 = vpack.c.b16 %v6353, %v6332
        %v7446 = vpack.c.b16 %v6354, %v6333
        %v7447 = vpack.c.b16 %v6376, %v6355
        %v7448 = vpack.c.b16 %v6377, %v6356
        %v7449 = vpack.c.b16 %v6378, %v6357
        %v7450 = vpack.c.b16 %v6379, %v6358
        %v7451 = vpack.c.b16 %v6380, %v6359
        %v7452 = vpack.c.b16 %v6381, %v6360
        %v7453 = vpack.c.b16 %v6382, %v6361
        %v7454 = vpack.c.b16 %v6383, %v6362
        %v7455 = vpack.c.b16 %v6384, %v6363
        %v7456 = vpack.c.b16 %v6385, %v6364
        %v7457 = vpack.c.b16 %v6386, %v6365
        %v7458 = vpack.c.b16 %v6387, %v6366
        %v7459 = vpack.c.b16 %v6388, %v6367
        %v7460 = vpack.c.b16 %v6389, %v6368
        %v7461 = vpack.c.b16 %v6390, %v6369
        %v7462 = vpack.c.b16 %v6391, %v6370
        %v7463 = vpack.c.b16 %v6392, %v6371
        %v7464 = vpack.c.b16 %v6393, %v6372
        %v7465 = vpack.c.b16 %v6394, %v6373
        %v7466 = vpack.c.b16 %v6395, %v6374
        %v7467 = vpack.c.b16 %v6396, %v6375
        %v7468 = vpack.c.b16 %v6418, %v6397
        %v7469 = vpack.c.b16 %v6419, %v6398
        %v7470 = vpack.c.b16 %v6420, %v6399
        %v7471 = vpack.c.b16 %v6421, %v6400
        %v7472 = vpack.c.b16 %v6422, %v6401
        %v7473 = vpack.c.b16 %v6423, %v6402
        %v7474 = vpack.c.b16 %v6424, %v6403
        %v7475 = vpack.c.b16 %v6425, %v6404
        %v7476 = vpack.c.b16 %v6426, %v6405
        %v7477 = vpack.c.b16 %v6427, %v6406
        %v7478 = vpack.c.b16 %v6428, %v6407
        %v7479 = vpack.c.b16 %v6429, %v6408
        %v7480 = vpack.c.b16 %v6430, %v6409
        %v7481 = vpack.c.b16 %v6431, %v6410
        %v7482 = vpack.c.b16 %v6432, %v6411
        %v7483 = vpack.c.b16 %v6433, %v6412
        %v7484 = vpack.c.b16 %v6434, %v6413
        %v7485 = vpack.c.b16 %v6435, %v6414
        %v7486 = vpack.c.b16 %v6436, %v6415
        %v7487 = vpack.c.b16 %v6437, %v6416
        %v7488 = vpack.c.b16 %v6438, %v6417
        %v7489 = vpack.c.b16 %v6460, %v6439
        %v7490 = vpack.c.b16 %v6461, %v6440
        %v7491 = vpack.c.b16 %v6462, %v6441
        %v7492 = vpack.c.b16 %v6463, %v6442
        %v7493 = vpack.c.b16 %v6464, %v6443
        %v7494 = vpack.c.b16 %v6465, %v6444
        %v7495 = vpack.c.b16 %v6466, %v6445
        %v7496 = vpack.c.b16 %v6467, %v6446
        %v7497 = vpack.c.b16 %v6468, %v6447
        %v7498 = vpack.c.b16 %v6469, %v6448
        %v7499 = vpack.c.b16 %v6470, %v6449
        %v7500 = vpack.c.b16 %v6471, %v6450
        %v7501 = vpack.c.b16 %v6472, %v6451
        %v7502 = vpack.c.b16 %v6473, %v6452
        %v7503 = vpack.c.b16 %v6474, %v6453
        %v7504 = vpack.c.b16 %v6475, %v6454
        %v7505 = vpack.c.b16 %v6476, %v6455
        %v7506 = vpack.c.b16 %v6477, %v6456
        %v7507 = vpack.c.b16 %v6478, %v6457
        %v7508 = vpack.c.b16 %v6479, %v6458
        %v7509 = vpack.c.b16 %v6480, %v6459
        %v7510 = vpack.c.b16 %v6502, %v6481
        %v7511 = vpack.c.b16 %v6503, %v6482
        %v7512 = vpack.c.b16 %v6504, %v6483
        %v7513 = vpack.c.b16 %v6505, %v6484
        %v7514 = vpack.c.b16 %v6506, %v6485
        %v7515 = vpack.c.b16 %v6507, %v6486
        %v7516 = vpack.c.b16 %v6508, %v6487
        %v7517 = vpack.c.b16 %v6509, %v6488
        %v7518 = vpack.c.b16 %v6510, %v6489
        %v7519 = vpack.c.b16 %v6511, %v6490
        %v7520 = vpack.c.b16 %v6512, %v6491
        %v7521 = vpack.c.b16 %v6513, %v6492
        %v7522 = vpack.c.b16 %v6514, %v6493
        %v7523 = vpack.c.b16 %v6515, %v6494
        %v7524 = vpack.c.b16 %v6516, %v6495
        %v7525 = vpack.c.b16 %v6517, %v6496
        %v7526 = vpack.c.b16 %v6518, %v6497
        %v7527 = vpack.c.b16 %v6519, %v6498
        %v7528 = vpack.c.b16 %v6520, %v6499
        %v7529 = vpack.c.b16 %v6521, %v6500
        %v7530 = vpack.c.b16 %v6522, %v6501
        %8539 = vmatpush.bf16.msra.mxu0 %v6670
        %8540 = vmatpush.bf16.msra.mxu0 %v6649
        %8541 = vmatpush.bf16.msra.mxu0 %v6628
        %8542 = vmatpush.bf16.msra.mxu0 %v6607
        %8543 = vmatpush.bf16.msra.mxu0 %v6586
        %8544 = vmatpush.bf16.msra.mxu0 %v6565
        %8545 = vmatpush.bf16.msra.mxu0 %v6544
        %8546 = vmatpush.bf16.msra.mxu0 %v6523
        %8547 = vmatmul.bf16.gmra.mxu0 %v3439
        %v8548 = vpop.f32.mrf.mxu0
        %v8549 = vadd.f32 %v3395, %v8548
        %v8550 = vpop.f32.mrf.mxu0
        %8551 = vdwg.mxu0
        %8552 = vmatpush.bf16.msra.mxu0 %v6838
        %8553 = vmatpush.bf16.msra.mxu0 %v6817
        %8554 = vmatpush.bf16.msra.mxu0 %v6796
        %8555 = vmatpush.bf16.msra.mxu0 %v6775
        %8556 = vmatpush.bf16.msra.mxu0 %v6754
        %8557 = vmatpush.bf16.msra.mxu0 %v6733
        %8558 = vmatpush.bf16.msra.mxu0 %v6712
        %8559 = vmatpush.bf16.msra.mxu0 %v6691
        %8560 = vmatmul.bf16.gmra.mxu0 %v3440
        %v8561 = vpop.f32.mrf.mxu0
        %v8562 = vadd.f32 %v8549, %v8561
        %v8563 = vpop.f32.mrf.mxu0
        %8564 = vdwg.mxu0
        %8565 = vmatpush.bf16.msra.mxu0 %v7006
        %8566 = vmatpush.bf16.msra.mxu0 %v6985
        %8567 = vmatpush.bf16.msra.mxu0 %v6964
        %8568 = vmatpush.bf16.msra.mxu0 %v6943
        %8569 = vmatpush.bf16.msra.mxu0 %v6922
        %8570 = vmatpush.bf16.msra.mxu0 %v6901
        %8571 = vmatpush.bf16.msra.mxu0 %v6880
        %8572 = vmatpush.bf16.msra.mxu0 %v6859
        %8573 = vmatmul.bf16.gmra.mxu0 %v3441
        %v8574 = vpop.f32.mrf.mxu0
        %v8575 = vadd.f32 %v8562, %v8574
        %v8576 = vpop.f32.mrf.mxu0
        %8577 = vdwg.mxu0
        %8578 = vmatpush.bf16.msra.mxu0 %v7174
        %8579 = vmatpush.bf16.msra.mxu0 %v7153
        %8580 = vmatpush.bf16.msra.mxu0 %v7132
        %8581 = vmatpush.bf16.msra.mxu0 %v7111
        %8582 = vmatpush.bf16.msra.mxu0 %v7090
        %8583 = vmatpush.bf16.msra.mxu0 %v7069
        %8584 = vmatpush.bf16.msra.mxu0 %v7048
        %8585 = vmatpush.bf16.msra.mxu0 %v7027
        %8586 = vmatmul.bf16.gmra.mxu0 %v3442
        %v8587 = vpop.f32.mrf.mxu0
        %v8588 = vadd.f32 %v8575, %v8587
        %v8589 = vpop.f32.mrf.mxu0
        %8590 = vdwg.mxu0
        %8591 = vmatpush.bf16.msra.mxu0 %v7342
        %8592 = vmatpush.bf16.msra.mxu0 %v7321
        %8593 = vmatpush.bf16.msra.mxu0 %v7300
        %8594 = vmatpush.bf16.msra.mxu0 %v7279
        %8595 = vmatpush.bf16.msra.mxu0 %v7258
        %8596 = vmatpush.bf16.msra.mxu0 %v7237
        %8597 = vmatpush.bf16.msra.mxu0 %v7216
        %8598 = vmatpush.bf16.msra.mxu0 %v7195
        %8599 = vmatmul.bf16.gmra.mxu0 %v3443
        %v8600 = vpop.f32.mrf.mxu0
        %v8601 = vadd.f32 %v8588, %v8600
        %v8602 = vpop.f32.mrf.mxu0
        %8603 = vdwg.mxu0
        %8604 = vmatpush.bf16.msra.mxu0 %v7510
        %8605 = vmatpush.bf16.msra.mxu0 %v7489
        %8606 = vmatpush.bf16.msra.mxu0 %v7468
        %8607 = vmatpush.bf16.msra.mxu0 %v7447
        %8608 = vmatpush.bf16.msra.mxu0 %v7426
        %8609 = vmatpush.bf16.msra.mxu0 %v7405
        %8610 = vmatpush.bf16.msra.mxu0 %v7384
        %8611 = vmatpush.bf16.msra.mxu0 %v7363
        %8612 = vmatmul.bf16.gmra.mxu0 %v3444
        %v8613 = vpop.f32.mrf.mxu0
        %v8614 = vadd.f32 %v8601, %v8613
        %v8615 = vpop.f32.mrf.mxu0
        %8616 = vdwg.mxu0
        %8617 = vmatpush.bf16.msra.mxu0 %v6671
        %8618 = vmatpush.bf16.msra.mxu0 %v6650
        %8619 = vmatpush.bf16.msra.mxu0 %v6629
        %8620 = vmatpush.bf16.msra.mxu0 %v6608
        %8621 = vmatpush.bf16.msra.mxu0 %v6587
        %8622 = vmatpush.bf16.msra.mxu0 %v6566
        %8623 = vmatpush.bf16.msra.mxu0 %v6545
        %8624 = vmatpush.bf16.msra.mxu0 %v6524
        %8625 = vmatmul.bf16.gmra.mxu0 %v3439
        %v8626 = vpop.f32.mrf.mxu0
        %v8627 = vadd.f32 %v3396, %v8626
        %v8628 = vpop.f32.mrf.mxu0
        %8629 = vdwg.mxu0
        %8630 = vmatpush.bf16.msra.mxu0 %v6839
        %8631 = vmatpush.bf16.msra.mxu0 %v6818
        %8632 = vmatpush.bf16.msra.mxu0 %v6797
        %8633 = vmatpush.bf16.msra.mxu0 %v6776
        %8634 = vmatpush.bf16.msra.mxu0 %v6755
        %8635 = vmatpush.bf16.msra.mxu0 %v6734
        %8636 = vmatpush.bf16.msra.mxu0 %v6713
        %8637 = vmatpush.bf16.msra.mxu0 %v6692
        %8638 = vmatmul.bf16.gmra.mxu0 %v3440
        %v8639 = vpop.f32.mrf.mxu0
        %v8640 = vadd.f32 %v8627, %v8639
        %v8641 = vpop.f32.mrf.mxu0
        %8642 = vdwg.mxu0
        %8643 = vmatpush.bf16.msra.mxu0 %v7007
        %8644 = vmatpush.bf16.msra.mxu0 %v6986
        %8645 = vmatpush.bf16.msra.mxu0 %v6965
        %8646 = vmatpush.bf16.msra.mxu0 %v6944
        %8647 = vmatpush.bf16.msra.mxu0 %v6923
        %8648 = vmatpush.bf16.msra.mxu0 %v6902
        %8649 = vmatpush.bf16.msra.mxu0 %v6881
        %8650 = vmatpush.bf16.msra.mxu0 %v6860
        %8651 = vmatmul.bf16.gmra.mxu0 %v3441
        %v8652 = vpop.f32.mrf.mxu0
        %v8653 = vadd.f32 %v8640, %v8652
        %v8654 = vpop.f32.mrf.mxu0
        %8655 = vdwg.mxu0
        %8656 = vmatpush.bf16.msra.mxu0 %v7175
        %8657 = vmatpush.bf16.msra.mxu0 %v7154
        %8658 = vmatpush.bf16.msra.mxu0 %v7133
        %8659 = vmatpush.bf16.msra.mxu0 %v7112
        %8660 = vmatpush.bf16.msra.mxu0 %v7091
        %8661 = vmatpush.bf16.msra.mxu0 %v7070
        %8662 = vmatpush.bf16.msra.mxu0 %v7049
        %8663 = vmatpush.bf16.msra.mxu0 %v7028
        %8664 = vmatmul.bf16.gmra.mxu0 %v3442
        %v8665 = vpop.f32.mrf.mxu0
        %v8666 = vadd.f32 %v8653, %v8665
        %v8667 = vpop.f32.mrf.mxu0
        %8668 = vdwg.mxu0
        %8669 = vmatpush.bf16.msra.mxu0 %v7343
        %8670 = vmatpush.bf16.msra.mxu0 %v7322
        %8671 = vmatpush.bf16.msra.mxu0 %v7301
        %8672 = vmatpush.bf16.msra.mxu0 %v7280
        %8673 = vmatpush.bf16.msra.mxu0 %v7259
        %8674 = vmatpush.bf16.msra.mxu0 %v7238
        %8675 = vmatpush.bf16.msra.mxu0 %v7217
        %8676 = vmatpush.bf16.msra.mxu0 %v7196
        %8677 = vmatmul.bf16.gmra.mxu0 %v3443
        %v8678 = vpop.f32.mrf.mxu0
        %v8679 = vadd.f32 %v8666, %v8678
        %v8680 = vpop.f32.mrf.mxu0
        %8681 = vdwg.mxu0
        %8682 = vmatpush.bf16.msra.mxu0 %v7511
        %8683 = vmatpush.bf16.msra.mxu0 %v7490
        %8684 = vmatpush.bf16.msra.mxu0 %v7469
        %8685 = vmatpush.bf16.msra.mxu0 %v7448
        %8686 = vmatpush.bf16.msra.mxu0 %v7427
        %8687 = vmatpush.bf16.msra.mxu0 %v7406
        %8688 = vmatpush.bf16.msra.mxu0 %v7385
        %8689 = vmatpush.bf16.msra.mxu0 %v7364
        %8690 = vmatmul.bf16.gmra.mxu0 %v3444
        %v8691 = vpop.f32.mrf.mxu0
        %v8692 = vadd.f32 %v8679, %v8691
        %v8693 = vpop.f32.mrf.mxu0
        %8694 = vdwg.mxu0
        %8695 = vmatpush.bf16.msra.mxu0 %v6672
        %8696 = vmatpush.bf16.msra.mxu0 %v6651
        %8697 = vmatpush.bf16.msra.mxu0 %v6630
        %8698 = vmatpush.bf16.msra.mxu0 %v6609
        %8699 = vmatpush.bf16.msra.mxu0 %v6588
        %8700 = vmatpush.bf16.msra.mxu0 %v6567
        %8701 = vmatpush.bf16.msra.mxu0 %v6546
        %8702 = vmatpush.bf16.msra.mxu0 %v6525
        %8703 = vmatmul.bf16.gmra.mxu0 %v3439
        %v8704 = vpop.f32.mrf.mxu0
        %v8705 = vadd.f32 %v3397, %v8704
        %v8706 = vpop.f32.mrf.mxu0
        %8707 = vdwg.mxu0
        %8708 = vmatpush.bf16.msra.mxu0 %v6840
        %8709 = vmatpush.bf16.msra.mxu0 %v6819
        %8710 = vmatpush.bf16.msra.mxu0 %v6798
        %8711 = vmatpush.bf16.msra.mxu0 %v6777
        %8712 = vmatpush.bf16.msra.mxu0 %v6756
        %8713 = vmatpush.bf16.msra.mxu0 %v6735
        %8714 = vmatpush.bf16.msra.mxu0 %v6714
        %8715 = vmatpush.bf16.msra.mxu0 %v6693
        %8716 = vmatmul.bf16.gmra.mxu0 %v3440
        %v8717 = vpop.f32.mrf.mxu0
        %v8718 = vadd.f32 %v8705, %v8717
        %v8719 = vpop.f32.mrf.mxu0
        %8720 = vdwg.mxu0
        %8721 = vmatpush.bf16.msra.mxu0 %v7008
        %8722 = vmatpush.bf16.msra.mxu0 %v6987
        %8723 = vmatpush.bf16.msra.mxu0 %v6966
        %8724 = vmatpush.bf16.msra.mxu0 %v6945
        %8725 = vmatpush.bf16.msra.mxu0 %v6924
        %8726 = vmatpush.bf16.msra.mxu0 %v6903
        %8727 = vmatpush.bf16.msra.mxu0 %v6882
        %8728 = vmatpush.bf16.msra.mxu0 %v6861
        %8729 = vmatmul.bf16.gmra.mxu0 %v3441
        %v8730 = vpop.f32.mrf.mxu0
        %v8731 = vadd.f32 %v8718, %v8730
        %v8732 = vpop.f32.mrf.mxu0
        %8733 = vdwg.mxu0
        %8734 = vmatpush.bf16.msra.mxu0 %v7176
        %8735 = vmatpush.bf16.msra.mxu0 %v7155
        %8736 = vmatpush.bf16.msra.mxu0 %v7134
        %8737 = vmatpush.bf16.msra.mxu0 %v7113
        %8738 = vmatpush.bf16.msra.mxu0 %v7092
        %8739 = vmatpush.bf16.msra.mxu0 %v7071
        %8740 = vmatpush.bf16.msra.mxu0 %v7050
        %8741 = vmatpush.bf16.msra.mxu0 %v7029
        %8742 = vmatmul.bf16.gmra.mxu0 %v3442
        %v8743 = vpop.f32.mrf.mxu0
        %v8744 = vadd.f32 %v8731, %v8743
        %v8745 = vpop.f32.mrf.mxu0
        %8746 = vdwg.mxu0
        %8747 = vmatpush.bf16.msra.mxu0 %v7344
        %8748 = vmatpush.bf16.msra.mxu0 %v7323
        %8749 = vmatpush.bf16.msra.mxu0 %v7302
        %8750 = vmatpush.bf16.msra.mxu0 %v7281
        %8751 = vmatpush.bf16.msra.mxu0 %v7260
        %8752 = vmatpush.bf16.msra.mxu0 %v7239
        %8753 = vmatpush.bf16.msra.mxu0 %v7218
        %8754 = vmatpush.bf16.msra.mxu0 %v7197
        %8755 = vmatmul.bf16.gmra.mxu0 %v3443
        %v8756 = vpop.f32.mrf.mxu0
        %v8757 = vadd.f32 %v8744, %v8756
        %v8758 = vpop.f32.mrf.mxu0
        %8759 = vdwg.mxu0
        %8760 = vmatpush.bf16.msra.mxu0 %v7512
        %8761 = vmatpush.bf16.msra.mxu0 %v7491
        %8762 = vmatpush.bf16.msra.mxu0 %v7470
        %8763 = vmatpush.bf16.msra.mxu0 %v7449
        %8764 = vmatpush.bf16.msra.mxu0 %v7428
        %8765 = vmatpush.bf16.msra.mxu0 %v7407
        %8766 = vmatpush.bf16.msra.mxu0 %v7386
        %8767 = vmatpush.bf16.msra.mxu0 %v7365
        %8768 = vmatmul.bf16.gmra.mxu0 %v3444
        %v8769 = vpop.f32.mrf.mxu0
        %v8770 = vadd.f32 %v8757, %v8769
        %v8771 = vpop.f32.mrf.mxu0
        %8772 = vdwg.mxu0
        %8773 = vmatpush.bf16.msra.mxu0 %v6673
        %8774 = vmatpush.bf16.msra.mxu0 %v6652
        %8775 = vmatpush.bf16.msra.mxu0 %v6631
        %8776 = vmatpush.bf16.msra.mxu0 %v6610
        %8777 = vmatpush.bf16.msra.mxu0 %v6589
        %8778 = vmatpush.bf16.msra.mxu0 %v6568
        %8779 = vmatpush.bf16.msra.mxu0 %v6547
        %8780 = vmatpush.bf16.msra.mxu0 %v6526
        %8781 = vmatmul.bf16.gmra.mxu0 %v3439
        %v8782 = vpop.f32.mrf.mxu0
        %v8783 = vadd.f32 %v3398, %v8782
        %v8784 = vpop.f32.mrf.mxu0
        %8785 = vdwg.mxu0
        %8786 = vmatpush.bf16.msra.mxu0 %v6841
        %8787 = vmatpush.bf16.msra.mxu0 %v6820
        %8788 = vmatpush.bf16.msra.mxu0 %v6799
        %8789 = vmatpush.bf16.msra.mxu0 %v6778
        %8790 = vmatpush.bf16.msra.mxu0 %v6757
        %8791 = vmatpush.bf16.msra.mxu0 %v6736
        %8792 = vmatpush.bf16.msra.mxu0 %v6715
        %8793 = vmatpush.bf16.msra.mxu0 %v6694
        %8794 = vmatmul.bf16.gmra.mxu0 %v3440
        %v8795 = vpop.f32.mrf.mxu0
        %v8796 = vadd.f32 %v8783, %v8795
        %v8797 = vpop.f32.mrf.mxu0
        %8798 = vdwg.mxu0
        %8799 = vmatpush.bf16.msra.mxu0 %v7009
        %8800 = vmatpush.bf16.msra.mxu0 %v6988
        %8801 = vmatpush.bf16.msra.mxu0 %v6967
        %8802 = vmatpush.bf16.msra.mxu0 %v6946
        %8803 = vmatpush.bf16.msra.mxu0 %v6925
        %8804 = vmatpush.bf16.msra.mxu0 %v6904
        %8805 = vmatpush.bf16.msra.mxu0 %v6883
        %8806 = vmatpush.bf16.msra.mxu0 %v6862
        %8807 = vmatmul.bf16.gmra.mxu0 %v3441
        %v8808 = vpop.f32.mrf.mxu0
        %v8809 = vadd.f32 %v8796, %v8808
        %v8810 = vpop.f32.mrf.mxu0
        %8811 = vdwg.mxu0
        %8812 = vmatpush.bf16.msra.mxu0 %v7177
        %8813 = vmatpush.bf16.msra.mxu0 %v7156
        %8814 = vmatpush.bf16.msra.mxu0 %v7135
        %8815 = vmatpush.bf16.msra.mxu0 %v7114
        %8816 = vmatpush.bf16.msra.mxu0 %v7093
        %8817 = vmatpush.bf16.msra.mxu0 %v7072
        %8818 = vmatpush.bf16.msra.mxu0 %v7051
        %8819 = vmatpush.bf16.msra.mxu0 %v7030
        %8820 = vmatmul.bf16.gmra.mxu0 %v3442
        %v8821 = vpop.f32.mrf.mxu0
        %v8822 = vadd.f32 %v8809, %v8821
        %v8823 = vpop.f32.mrf.mxu0
        %8824 = vdwg.mxu0
        %8825 = vmatpush.bf16.msra.mxu0 %v7345
        %8826 = vmatpush.bf16.msra.mxu0 %v7324
        %8827 = vmatpush.bf16.msra.mxu0 %v7303
        %8828 = vmatpush.bf16.msra.mxu0 %v7282
        %8829 = vmatpush.bf16.msra.mxu0 %v7261
        %8830 = vmatpush.bf16.msra.mxu0 %v7240
        %8831 = vmatpush.bf16.msra.mxu0 %v7219
        %8832 = vmatpush.bf16.msra.mxu0 %v7198
        %8833 = vmatmul.bf16.gmra.mxu0 %v3443
        %v8834 = vpop.f32.mrf.mxu0
        %v8835 = vadd.f32 %v8822, %v8834
        %v8836 = vpop.f32.mrf.mxu0
        %8837 = vdwg.mxu0
        %8838 = vmatpush.bf16.msra.mxu0 %v7513
        %8839 = vmatpush.bf16.msra.mxu0 %v7492
        %8840 = vmatpush.bf16.msra.mxu0 %v7471
        %8841 = vmatpush.bf16.msra.mxu0 %v7450
        %8842 = vmatpush.bf16.msra.mxu0 %v7429
        %8843 = vmatpush.bf16.msra.mxu0 %v7408
        %8844 = vmatpush.bf16.msra.mxu0 %v7387
        %8845 = vmatpush.bf16.msra.mxu0 %v7366
        %8846 = vmatmul.bf16.gmra.mxu0 %v3444
        %v8847 = vpop.f32.mrf.mxu0
        %v8848 = vadd.f32 %v8835, %v8847
        %v8849 = vpop.f32.mrf.mxu0
        %8850 = vdwg.mxu0
        %8851 = vmatpush.bf16.msra.mxu0 %v6674
        %8852 = vmatpush.bf16.msra.mxu0 %v6653
        %8853 = vmatpush.bf16.msra.mxu0 %v6632
        %8854 = vmatpush.bf16.msra.mxu0 %v6611
        %8855 = vmatpush.bf16.msra.mxu0 %v6590
        %8856 = vmatpush.bf16.msra.mxu0 %v6569
        %8857 = vmatpush.bf16.msra.mxu0 %v6548
        %8858 = vmatpush.bf16.msra.mxu0 %v6527
        %8859 = vmatmul.bf16.gmra.mxu0 %v3439
        %v8860 = vpop.f32.mrf.mxu0
        %v8861 = vadd.f32 %v3399, %v8860
        %v8862 = vpop.f32.mrf.mxu0
        %8863 = vdwg.mxu0
        %8864 = vmatpush.bf16.msra.mxu0 %v6842
        %8865 = vmatpush.bf16.msra.mxu0 %v6821
        %8866 = vmatpush.bf16.msra.mxu0 %v6800
        %8867 = vmatpush.bf16.msra.mxu0 %v6779
        %8868 = vmatpush.bf16.msra.mxu0 %v6758
        %8869 = vmatpush.bf16.msra.mxu0 %v6737
        %8870 = vmatpush.bf16.msra.mxu0 %v6716
        %8871 = vmatpush.bf16.msra.mxu0 %v6695
        %8872 = vmatmul.bf16.gmra.mxu0 %v3440
        %v8873 = vpop.f32.mrf.mxu0
        %v8874 = vadd.f32 %v8861, %v8873
        %v8875 = vpop.f32.mrf.mxu0
        %8876 = vdwg.mxu0
        %8877 = vmatpush.bf16.msra.mxu0 %v7010
        %8878 = vmatpush.bf16.msra.mxu0 %v6989
        %8879 = vmatpush.bf16.msra.mxu0 %v6968
        %8880 = vmatpush.bf16.msra.mxu0 %v6947
        %8881 = vmatpush.bf16.msra.mxu0 %v6926
        %8882 = vmatpush.bf16.msra.mxu0 %v6905
        %8883 = vmatpush.bf16.msra.mxu0 %v6884
        %8884 = vmatpush.bf16.msra.mxu0 %v6863
        %8885 = vmatmul.bf16.gmra.mxu0 %v3441
        %v8886 = vpop.f32.mrf.mxu0
        %v8887 = vadd.f32 %v8874, %v8886
        %v8888 = vpop.f32.mrf.mxu0
        %8889 = vdwg.mxu0
        %8890 = vmatpush.bf16.msra.mxu0 %v7178
        %8891 = vmatpush.bf16.msra.mxu0 %v7157
        %8892 = vmatpush.bf16.msra.mxu0 %v7136
        %8893 = vmatpush.bf16.msra.mxu0 %v7115
        %8894 = vmatpush.bf16.msra.mxu0 %v7094
        %8895 = vmatpush.bf16.msra.mxu0 %v7073
        %8896 = vmatpush.bf16.msra.mxu0 %v7052
        %8897 = vmatpush.bf16.msra.mxu0 %v7031
        %8898 = vmatmul.bf16.gmra.mxu0 %v3442
        %v8899 = vpop.f32.mrf.mxu0
        %v8900 = vadd.f32 %v8887, %v8899
        %v8901 = vpop.f32.mrf.mxu0
        %8902 = vdwg.mxu0
        %8903 = vmatpush.bf16.msra.mxu0 %v7346
        %8904 = vmatpush.bf16.msra.mxu0 %v7325
        %8905 = vmatpush.bf16.msra.mxu0 %v7304
        %8906 = vmatpush.bf16.msra.mxu0 %v7283
        %8907 = vmatpush.bf16.msra.mxu0 %v7262
        %8908 = vmatpush.bf16.msra.mxu0 %v7241
        %8909 = vmatpush.bf16.msra.mxu0 %v7220
        %8910 = vmatpush.bf16.msra.mxu0 %v7199
        %8911 = vmatmul.bf16.gmra.mxu0 %v3443
        %v8912 = vpop.f32.mrf.mxu0
        %v8913 = vadd.f32 %v8900, %v8912
        %v8914 = vpop.f32.mrf.mxu0
        %8915 = vdwg.mxu0
        %8916 = vmatpush.bf16.msra.mxu0 %v7514
        %8917 = vmatpush.bf16.msra.mxu0 %v7493
        %8918 = vmatpush.bf16.msra.mxu0 %v7472
        %8919 = vmatpush.bf16.msra.mxu0 %v7451
        %8920 = vmatpush.bf16.msra.mxu0 %v7430
        %8921 = vmatpush.bf16.msra.mxu0 %v7409
        %8922 = vmatpush.bf16.msra.mxu0 %v7388
        %8923 = vmatpush.bf16.msra.mxu0 %v7367
        %8924 = vmatmul.bf16.gmra.mxu0 %v3444
        %v8925 = vpop.f32.mrf.mxu0
        %v8926 = vadd.f32 %v8913, %v8925
        %v8927 = vpop.f32.mrf.mxu0
        %8928 = vdwg.mxu0
        %8929 = vmatpush.bf16.msra.mxu0 %v6675
        %8930 = vmatpush.bf16.msra.mxu0 %v6654
        %8931 = vmatpush.bf16.msra.mxu0 %v6633
        %8932 = vmatpush.bf16.msra.mxu0 %v6612
        %8933 = vmatpush.bf16.msra.mxu0 %v6591
        %8934 = vmatpush.bf16.msra.mxu0 %v6570
        %8935 = vmatpush.bf16.msra.mxu0 %v6549
        %8936 = vmatpush.bf16.msra.mxu0 %v6528
        %8937 = vmatmul.bf16.gmra.mxu0 %v3439
        %v8938 = vpop.f32.mrf.mxu0
        %v8939 = vadd.f32 %v3400, %v8938
        %v8940 = vpop.f32.mrf.mxu0
        %8941 = vdwg.mxu0
        %8942 = vmatpush.bf16.msra.mxu0 %v6843
        %8943 = vmatpush.bf16.msra.mxu0 %v6822
        %8944 = vmatpush.bf16.msra.mxu0 %v6801
        %8945 = vmatpush.bf16.msra.mxu0 %v6780
        %8946 = vmatpush.bf16.msra.mxu0 %v6759
        %8947 = vmatpush.bf16.msra.mxu0 %v6738
        %8948 = vmatpush.bf16.msra.mxu0 %v6717
        %8949 = vmatpush.bf16.msra.mxu0 %v6696
        %8950 = vmatmul.bf16.gmra.mxu0 %v3440
        %v8951 = vpop.f32.mrf.mxu0
        %v8952 = vadd.f32 %v8939, %v8951
        %v8953 = vpop.f32.mrf.mxu0
        %8954 = vdwg.mxu0
        %8955 = vmatpush.bf16.msra.mxu0 %v7011
        %8956 = vmatpush.bf16.msra.mxu0 %v6990
        %8957 = vmatpush.bf16.msra.mxu0 %v6969
        %8958 = vmatpush.bf16.msra.mxu0 %v6948
        %8959 = vmatpush.bf16.msra.mxu0 %v6927
        %8960 = vmatpush.bf16.msra.mxu0 %v6906
        %8961 = vmatpush.bf16.msra.mxu0 %v6885
        %8962 = vmatpush.bf16.msra.mxu0 %v6864
        %8963 = vmatmul.bf16.gmra.mxu0 %v3441
        %v8964 = vpop.f32.mrf.mxu0
        %v8965 = vadd.f32 %v8952, %v8964
        %v8966 = vpop.f32.mrf.mxu0
        %8967 = vdwg.mxu0
        %8968 = vmatpush.bf16.msra.mxu0 %v7179
        %8969 = vmatpush.bf16.msra.mxu0 %v7158
        %8970 = vmatpush.bf16.msra.mxu0 %v7137
        %8971 = vmatpush.bf16.msra.mxu0 %v7116
        %8972 = vmatpush.bf16.msra.mxu0 %v7095
        %8973 = vmatpush.bf16.msra.mxu0 %v7074
        %8974 = vmatpush.bf16.msra.mxu0 %v7053
        %8975 = vmatpush.bf16.msra.mxu0 %v7032
        %8976 = vmatmul.bf16.gmra.mxu0 %v3442
        %v8977 = vpop.f32.mrf.mxu0
        %v8978 = vadd.f32 %v8965, %v8977
        %v8979 = vpop.f32.mrf.mxu0
        %8980 = vdwg.mxu0
        %8981 = vmatpush.bf16.msra.mxu0 %v7347
        %8982 = vmatpush.bf16.msra.mxu0 %v7326
        %8983 = vmatpush.bf16.msra.mxu0 %v7305
        %8984 = vmatpush.bf16.msra.mxu0 %v7284
        %8985 = vmatpush.bf16.msra.mxu0 %v7263
        %8986 = vmatpush.bf16.msra.mxu0 %v7242
        %8987 = vmatpush.bf16.msra.mxu0 %v7221
        %8988 = vmatpush.bf16.msra.mxu0 %v7200
        %8989 = vmatmul.bf16.gmra.mxu0 %v3443
        %v8990 = vpop.f32.mrf.mxu0
        %v8991 = vadd.f32 %v8978, %v8990
        %v8992 = vpop.f32.mrf.mxu0
        %8993 = vdwg.mxu0
        %8994 = vmatpush.bf16.msra.mxu0 %v7515
        %8995 = vmatpush.bf16.msra.mxu0 %v7494
        %8996 = vmatpush.bf16.msra.mxu0 %v7473
        %8997 = vmatpush.bf16.msra.mxu0 %v7452
        %8998 = vmatpush.bf16.msra.mxu0 %v7431
        %8999 = vmatpush.bf16.msra.mxu0 %v7410
        %9000 = vmatpush.bf16.msra.mxu0 %v7389
        %9001 = vmatpush.bf16.msra.mxu0 %v7368
        %9002 = vmatmul.bf16.gmra.mxu0 %v3444
        %v9003 = vpop.f32.mrf.mxu0
        %v9004 = vadd.f32 %v8991, %v9003
        %v9005 = vpop.f32.mrf.mxu0
        %9006 = vdwg.mxu0
        %9007 = vmatpush.bf16.msra.mxu0 %v6676
        %9008 = vmatpush.bf16.msra.mxu0 %v6655
        %9009 = vmatpush.bf16.msra.mxu0 %v6634
        %9010 = vmatpush.bf16.msra.mxu0 %v6613
        %9011 = vmatpush.bf16.msra.mxu0 %v6592
        %9012 = vmatpush.bf16.msra.mxu0 %v6571
        %9013 = vmatpush.bf16.msra.mxu0 %v6550
        %9014 = vmatpush.bf16.msra.mxu0 %v6529
        %9015 = vmatmul.bf16.gmra.mxu0 %v3439
        %v9016 = vpop.f32.mrf.mxu0
        %v9017 = vadd.f32 %v3401, %v9016
        %v9018 = vpop.f32.mrf.mxu0
        %9019 = vdwg.mxu0
        %9020 = vmatpush.bf16.msra.mxu0 %v6844
        %9021 = vmatpush.bf16.msra.mxu0 %v6823
        %9022 = vmatpush.bf16.msra.mxu0 %v6802
        %9023 = vmatpush.bf16.msra.mxu0 %v6781
        %9024 = vmatpush.bf16.msra.mxu0 %v6760
        %9025 = vmatpush.bf16.msra.mxu0 %v6739
        %9026 = vmatpush.bf16.msra.mxu0 %v6718
        %9027 = vmatpush.bf16.msra.mxu0 %v6697
        %9028 = vmatmul.bf16.gmra.mxu0 %v3440
        %v9029 = vpop.f32.mrf.mxu0
        %v9030 = vadd.f32 %v9017, %v9029
        %v9031 = vpop.f32.mrf.mxu0
        %9032 = vdwg.mxu0
        %9033 = vmatpush.bf16.msra.mxu0 %v7012
        %9034 = vmatpush.bf16.msra.mxu0 %v6991
        %9035 = vmatpush.bf16.msra.mxu0 %v6970
        %9036 = vmatpush.bf16.msra.mxu0 %v6949
        %9037 = vmatpush.bf16.msra.mxu0 %v6928
        %9038 = vmatpush.bf16.msra.mxu0 %v6907
        %9039 = vmatpush.bf16.msra.mxu0 %v6886
        %9040 = vmatpush.bf16.msra.mxu0 %v6865
        %9041 = vmatmul.bf16.gmra.mxu0 %v3441
        %v9042 = vpop.f32.mrf.mxu0
        %v9043 = vadd.f32 %v9030, %v9042
        %v9044 = vpop.f32.mrf.mxu0
        %9045 = vdwg.mxu0
        %9046 = vmatpush.bf16.msra.mxu0 %v7180
        %9047 = vmatpush.bf16.msra.mxu0 %v7159
        %9048 = vmatpush.bf16.msra.mxu0 %v7138
        %9049 = vmatpush.bf16.msra.mxu0 %v7117
        %9050 = vmatpush.bf16.msra.mxu0 %v7096
        %9051 = vmatpush.bf16.msra.mxu0 %v7075
        %9052 = vmatpush.bf16.msra.mxu0 %v7054
        %9053 = vmatpush.bf16.msra.mxu0 %v7033
        %9054 = vmatmul.bf16.gmra.mxu0 %v3442
        %v9055 = vpop.f32.mrf.mxu0
        %v9056 = vadd.f32 %v9043, %v9055
        %v9057 = vpop.f32.mrf.mxu0
        %9058 = vdwg.mxu0
        %9059 = vmatpush.bf16.msra.mxu0 %v7348
        %9060 = vmatpush.bf16.msra.mxu0 %v7327
        %9061 = vmatpush.bf16.msra.mxu0 %v7306
        %9062 = vmatpush.bf16.msra.mxu0 %v7285
        %9063 = vmatpush.bf16.msra.mxu0 %v7264
        %9064 = vmatpush.bf16.msra.mxu0 %v7243
        %9065 = vmatpush.bf16.msra.mxu0 %v7222
        %9066 = vmatpush.bf16.msra.mxu0 %v7201
        %9067 = vmatmul.bf16.gmra.mxu0 %v3443
        %v9068 = vpop.f32.mrf.mxu0
        %v9069 = vadd.f32 %v9056, %v9068
        %v9070 = vpop.f32.mrf.mxu0
        %9071 = vdwg.mxu0
        %9072 = vmatpush.bf16.msra.mxu0 %v7516
        %9073 = vmatpush.bf16.msra.mxu0 %v7495
        %9074 = vmatpush.bf16.msra.mxu0 %v7474
        %9075 = vmatpush.bf16.msra.mxu0 %v7453
        %9076 = vmatpush.bf16.msra.mxu0 %v7432
        %9077 = vmatpush.bf16.msra.mxu0 %v7411
        %9078 = vmatpush.bf16.msra.mxu0 %v7390
        %9079 = vmatpush.bf16.msra.mxu0 %v7369
        %9080 = vmatmul.bf16.gmra.mxu0 %v3444
        %v9081 = vpop.f32.mrf.mxu0
        %v9082 = vadd.f32 %v9069, %v9081
        %v9083 = vpop.f32.mrf.mxu0
        %9084 = vdwg.mxu0
        %9085 = vmatpush.bf16.msra.mxu0 %v6677
        %9086 = vmatpush.bf16.msra.mxu0 %v6656
        %9087 = vmatpush.bf16.msra.mxu0 %v6635
        %9088 = vmatpush.bf16.msra.mxu0 %v6614
        %9089 = vmatpush.bf16.msra.mxu0 %v6593
        %9090 = vmatpush.bf16.msra.mxu0 %v6572
        %9091 = vmatpush.bf16.msra.mxu0 %v6551
        %9092 = vmatpush.bf16.msra.mxu0 %v6530
        %9093 = vmatmul.bf16.gmra.mxu0 %v3439
        %v9094 = vpop.f32.mrf.mxu0
        %v9095 = vadd.f32 %v3402, %v9094
        %v9096 = vpop.f32.mrf.mxu0
        %9097 = vdwg.mxu0
        %9098 = vmatpush.bf16.msra.mxu0 %v6845
        %9099 = vmatpush.bf16.msra.mxu0 %v6824
        %9100 = vmatpush.bf16.msra.mxu0 %v6803
        %9101 = vmatpush.bf16.msra.mxu0 %v6782
        %9102 = vmatpush.bf16.msra.mxu0 %v6761
        %9103 = vmatpush.bf16.msra.mxu0 %v6740
        %9104 = vmatpush.bf16.msra.mxu0 %v6719
        %9105 = vmatpush.bf16.msra.mxu0 %v6698
        %9106 = vmatmul.bf16.gmra.mxu0 %v3440
        %v9107 = vpop.f32.mrf.mxu0
        %v9108 = vadd.f32 %v9095, %v9107
        %v9109 = vpop.f32.mrf.mxu0
        %9110 = vdwg.mxu0
        %9111 = vmatpush.bf16.msra.mxu0 %v7013
        %9112 = vmatpush.bf16.msra.mxu0 %v6992
        %9113 = vmatpush.bf16.msra.mxu0 %v6971
        %9114 = vmatpush.bf16.msra.mxu0 %v6950
        %9115 = vmatpush.bf16.msra.mxu0 %v6929
        %9116 = vmatpush.bf16.msra.mxu0 %v6908
        %9117 = vmatpush.bf16.msra.mxu0 %v6887
        %9118 = vmatpush.bf16.msra.mxu0 %v6866
        %9119 = vmatmul.bf16.gmra.mxu0 %v3441
        %v9120 = vpop.f32.mrf.mxu0
        %v9121 = vadd.f32 %v9108, %v9120
        %v9122 = vpop.f32.mrf.mxu0
        %9123 = vdwg.mxu0
        %9124 = vmatpush.bf16.msra.mxu0 %v7181
        %9125 = vmatpush.bf16.msra.mxu0 %v7160
        %9126 = vmatpush.bf16.msra.mxu0 %v7139
        %9127 = vmatpush.bf16.msra.mxu0 %v7118
        %9128 = vmatpush.bf16.msra.mxu0 %v7097
        %9129 = vmatpush.bf16.msra.mxu0 %v7076
        %9130 = vmatpush.bf16.msra.mxu0 %v7055
        %9131 = vmatpush.bf16.msra.mxu0 %v7034
        %9132 = vmatmul.bf16.gmra.mxu0 %v3442
        %v9133 = vpop.f32.mrf.mxu0
        %v9134 = vadd.f32 %v9121, %v9133
        %v9135 = vpop.f32.mrf.mxu0
        %9136 = vdwg.mxu0
        %9137 = vmatpush.bf16.msra.mxu0 %v7349
        %9138 = vmatpush.bf16.msra.mxu0 %v7328
        %9139 = vmatpush.bf16.msra.mxu0 %v7307
        %9140 = vmatpush.bf16.msra.mxu0 %v7286
        %9141 = vmatpush.bf16.msra.mxu0 %v7265
        %9142 = vmatpush.bf16.msra.mxu0 %v7244
        %9143 = vmatpush.bf16.msra.mxu0 %v7223
        %9144 = vmatpush.bf16.msra.mxu0 %v7202
        %9145 = vmatmul.bf16.gmra.mxu0 %v3443
        %v9146 = vpop.f32.mrf.mxu0
        %v9147 = vadd.f32 %v9134, %v9146
        %v9148 = vpop.f32.mrf.mxu0
        %9149 = vdwg.mxu0
        %9150 = vmatpush.bf16.msra.mxu0 %v7517
        %9151 = vmatpush.bf16.msra.mxu0 %v7496
        %9152 = vmatpush.bf16.msra.mxu0 %v7475
        %9153 = vmatpush.bf16.msra.mxu0 %v7454
        %9154 = vmatpush.bf16.msra.mxu0 %v7433
        %9155 = vmatpush.bf16.msra.mxu0 %v7412
        %9156 = vmatpush.bf16.msra.mxu0 %v7391
        %9157 = vmatpush.bf16.msra.mxu0 %v7370
        %9158 = vmatmul.bf16.gmra.mxu0 %v3444
        %v9159 = vpop.f32.mrf.mxu0
        %v9160 = vadd.f32 %v9147, %v9159
        %v9161 = vpop.f32.mrf.mxu0
        %9162 = vdwg.mxu0
        %9163 = vmatpush.bf16.msra.mxu0 %v6678
        %9164 = vmatpush.bf16.msra.mxu0 %v6657
        %9165 = vmatpush.bf16.msra.mxu0 %v6636
        %9166 = vmatpush.bf16.msra.mxu0 %v6615
        %9167 = vmatpush.bf16.msra.mxu0 %v6594
        %9168 = vmatpush.bf16.msra.mxu0 %v6573
        %9169 = vmatpush.bf16.msra.mxu0 %v6552
        %9170 = vmatpush.bf16.msra.mxu0 %v6531
        %9171 = vmatmul.bf16.gmra.mxu0 %v3439
        %v9172 = vpop.f32.mrf.mxu0
        %v9173 = vadd.f32 %v3403, %v9172
        %v9174 = vpop.f32.mrf.mxu0
        %9175 = vdwg.mxu0
        %9176 = vmatpush.bf16.msra.mxu0 %v6846
        %9177 = vmatpush.bf16.msra.mxu0 %v6825
        %9178 = vmatpush.bf16.msra.mxu0 %v6804
        %9179 = vmatpush.bf16.msra.mxu0 %v6783
        %9180 = vmatpush.bf16.msra.mxu0 %v6762
        %9181 = vmatpush.bf16.msra.mxu0 %v6741
        %9182 = vmatpush.bf16.msra.mxu0 %v6720
        %9183 = vmatpush.bf16.msra.mxu0 %v6699
        %9184 = vmatmul.bf16.gmra.mxu0 %v3440
        %v9185 = vpop.f32.mrf.mxu0
        %v9186 = vadd.f32 %v9173, %v9185
        %v9187 = vpop.f32.mrf.mxu0
        %9188 = vdwg.mxu0
        %9189 = vmatpush.bf16.msra.mxu0 %v7014
        %9190 = vmatpush.bf16.msra.mxu0 %v6993
        %9191 = vmatpush.bf16.msra.mxu0 %v6972
        %9192 = vmatpush.bf16.msra.mxu0 %v6951
        %9193 = vmatpush.bf16.msra.mxu0 %v6930
        %9194 = vmatpush.bf16.msra.mxu0 %v6909
        %9195 = vmatpush.bf16.msra.mxu0 %v6888
        %9196 = vmatpush.bf16.msra.mxu0 %v6867
        %9197 = vmatmul.bf16.gmra.mxu0 %v3441
        %v9198 = vpop.f32.mrf.mxu0
        %v9199 = vadd.f32 %v9186, %v9198
        %v9200 = vpop.f32.mrf.mxu0
        %9201 = vdwg.mxu0
        %9202 = vmatpush.bf16.msra.mxu0 %v7182
        %9203 = vmatpush.bf16.msra.mxu0 %v7161
        %9204 = vmatpush.bf16.msra.mxu0 %v7140
        %9205 = vmatpush.bf16.msra.mxu0 %v7119
        %9206 = vmatpush.bf16.msra.mxu0 %v7098
        %9207 = vmatpush.bf16.msra.mxu0 %v7077
        %9208 = vmatpush.bf16.msra.mxu0 %v7056
        %9209 = vmatpush.bf16.msra.mxu0 %v7035
        %9210 = vmatmul.bf16.gmra.mxu0 %v3442
        %v9211 = vpop.f32.mrf.mxu0
        %v9212 = vadd.f32 %v9199, %v9211
        %v9213 = vpop.f32.mrf.mxu0
        %9214 = vdwg.mxu0
        %9215 = vmatpush.bf16.msra.mxu0 %v7350
        %9216 = vmatpush.bf16.msra.mxu0 %v7329
        %9217 = vmatpush.bf16.msra.mxu0 %v7308
        %9218 = vmatpush.bf16.msra.mxu0 %v7287
        %9219 = vmatpush.bf16.msra.mxu0 %v7266
        %9220 = vmatpush.bf16.msra.mxu0 %v7245
        %9221 = vmatpush.bf16.msra.mxu0 %v7224
        %9222 = vmatpush.bf16.msra.mxu0 %v7203
        %9223 = vmatmul.bf16.gmra.mxu0 %v3443
        %v9224 = vpop.f32.mrf.mxu0
        %v9225 = vadd.f32 %v9212, %v9224
        %v9226 = vpop.f32.mrf.mxu0
        %9227 = vdwg.mxu0
        %9228 = vmatpush.bf16.msra.mxu0 %v7518
        %9229 = vmatpush.bf16.msra.mxu0 %v7497
        %9230 = vmatpush.bf16.msra.mxu0 %v7476
        %9231 = vmatpush.bf16.msra.mxu0 %v7455
        %9232 = vmatpush.bf16.msra.mxu0 %v7434
        %9233 = vmatpush.bf16.msra.mxu0 %v7413
        %9234 = vmatpush.bf16.msra.mxu0 %v7392
        %9235 = vmatpush.bf16.msra.mxu0 %v7371
        %9236 = vmatmul.bf16.gmra.mxu0 %v3444
        %v9237 = vpop.f32.mrf.mxu0
        %v9238 = vadd.f32 %v9225, %v9237
        %v9239 = vpop.f32.mrf.mxu0
        %9240 = vdwg.mxu0
        %9241 = vmatpush.bf16.msra.mxu0 %v6679
        %9242 = vmatpush.bf16.msra.mxu0 %v6658
        %9243 = vmatpush.bf16.msra.mxu0 %v6637
        %9244 = vmatpush.bf16.msra.mxu0 %v6616
        %9245 = vmatpush.bf16.msra.mxu0 %v6595
        %9246 = vmatpush.bf16.msra.mxu0 %v6574
        %9247 = vmatpush.bf16.msra.mxu0 %v6553
        %9248 = vmatpush.bf16.msra.mxu0 %v6532
        %9249 = vmatmul.bf16.gmra.mxu0 %v3439
        %v9250 = vpop.f32.mrf.mxu0
        %v9251 = vadd.f32 %v3404, %v9250
        %v9252 = vpop.f32.mrf.mxu0
        %9253 = vdwg.mxu0
        %9254 = vmatpush.bf16.msra.mxu0 %v6847
        %9255 = vmatpush.bf16.msra.mxu0 %v6826
        %9256 = vmatpush.bf16.msra.mxu0 %v6805
        %9257 = vmatpush.bf16.msra.mxu0 %v6784
        %9258 = vmatpush.bf16.msra.mxu0 %v6763
        %9259 = vmatpush.bf16.msra.mxu0 %v6742
        %9260 = vmatpush.bf16.msra.mxu0 %v6721
        %9261 = vmatpush.bf16.msra.mxu0 %v6700
        %9262 = vmatmul.bf16.gmra.mxu0 %v3440
        %v9263 = vpop.f32.mrf.mxu0
        %v9264 = vadd.f32 %v9251, %v9263
        %v9265 = vpop.f32.mrf.mxu0
        %9266 = vdwg.mxu0
        %9267 = vmatpush.bf16.msra.mxu0 %v7015
        %9268 = vmatpush.bf16.msra.mxu0 %v6994
        %9269 = vmatpush.bf16.msra.mxu0 %v6973
        %9270 = vmatpush.bf16.msra.mxu0 %v6952
        %9271 = vmatpush.bf16.msra.mxu0 %v6931
        %9272 = vmatpush.bf16.msra.mxu0 %v6910
        %9273 = vmatpush.bf16.msra.mxu0 %v6889
        %9274 = vmatpush.bf16.msra.mxu0 %v6868
        %9275 = vmatmul.bf16.gmra.mxu0 %v3441
        %v9276 = vpop.f32.mrf.mxu0
        %v9277 = vadd.f32 %v9264, %v9276
        %v9278 = vpop.f32.mrf.mxu0
        %9279 = vdwg.mxu0
        %9280 = vmatpush.bf16.msra.mxu0 %v7183
        %9281 = vmatpush.bf16.msra.mxu0 %v7162
        %9282 = vmatpush.bf16.msra.mxu0 %v7141
        %9283 = vmatpush.bf16.msra.mxu0 %v7120
        %9284 = vmatpush.bf16.msra.mxu0 %v7099
        %9285 = vmatpush.bf16.msra.mxu0 %v7078
        %9286 = vmatpush.bf16.msra.mxu0 %v7057
        %9287 = vmatpush.bf16.msra.mxu0 %v7036
        %9288 = vmatmul.bf16.gmra.mxu0 %v3442
        %v9289 = vpop.f32.mrf.mxu0
        %v9290 = vadd.f32 %v9277, %v9289
        %v9291 = vpop.f32.mrf.mxu0
        %9292 = vdwg.mxu0
        %9293 = vmatpush.bf16.msra.mxu0 %v7351
        %9294 = vmatpush.bf16.msra.mxu0 %v7330
        %9295 = vmatpush.bf16.msra.mxu0 %v7309
        %9296 = vmatpush.bf16.msra.mxu0 %v7288
        %9297 = vmatpush.bf16.msra.mxu0 %v7267
        %9298 = vmatpush.bf16.msra.mxu0 %v7246
        %9299 = vmatpush.bf16.msra.mxu0 %v7225
        %9300 = vmatpush.bf16.msra.mxu0 %v7204
        %9301 = vmatmul.bf16.gmra.mxu0 %v3443
        %v9302 = vpop.f32.mrf.mxu0
        %v9303 = vadd.f32 %v9290, %v9302
        %v9304 = vpop.f32.mrf.mxu0
        %9305 = vdwg.mxu0
        %9306 = vmatpush.bf16.msra.mxu0 %v7519
        %9307 = vmatpush.bf16.msra.mxu0 %v7498
        %9308 = vmatpush.bf16.msra.mxu0 %v7477
        %9309 = vmatpush.bf16.msra.mxu0 %v7456
        %9310 = vmatpush.bf16.msra.mxu0 %v7435
        %9311 = vmatpush.bf16.msra.mxu0 %v7414
        %9312 = vmatpush.bf16.msra.mxu0 %v7393
        %9313 = vmatpush.bf16.msra.mxu0 %v7372
        %9314 = vmatmul.bf16.gmra.mxu0 %v3444
        %v9315 = vpop.f32.mrf.mxu0
        %v9316 = vadd.f32 %v9303, %v9315
        %v9317 = vpop.f32.mrf.mxu0
        %9318 = vdwg.mxu0
        %9319 = vmatpush.bf16.msra.mxu0 %v6680
        %9320 = vmatpush.bf16.msra.mxu0 %v6659
        %9321 = vmatpush.bf16.msra.mxu0 %v6638
        %9322 = vmatpush.bf16.msra.mxu0 %v6617
        %9323 = vmatpush.bf16.msra.mxu0 %v6596
        %9324 = vmatpush.bf16.msra.mxu0 %v6575
        %9325 = vmatpush.bf16.msra.mxu0 %v6554
        %9326 = vmatpush.bf16.msra.mxu0 %v6533
        %9327 = vmatmul.bf16.gmra.mxu0 %v3439
        %v9328 = vpop.f32.mrf.mxu0
        %v9329 = vadd.f32 %v3405, %v9328
        %v9330 = vpop.f32.mrf.mxu0
        %9331 = vdwg.mxu0
        %9332 = vmatpush.bf16.msra.mxu0 %v6848
        %9333 = vmatpush.bf16.msra.mxu0 %v6827
        %9334 = vmatpush.bf16.msra.mxu0 %v6806
        %9335 = vmatpush.bf16.msra.mxu0 %v6785
        %9336 = vmatpush.bf16.msra.mxu0 %v6764
        %9337 = vmatpush.bf16.msra.mxu0 %v6743
        %9338 = vmatpush.bf16.msra.mxu0 %v6722
        %9339 = vmatpush.bf16.msra.mxu0 %v6701
        %9340 = vmatmul.bf16.gmra.mxu0 %v3440
        %v9341 = vpop.f32.mrf.mxu0
        %v9342 = vadd.f32 %v9329, %v9341
        %v9343 = vpop.f32.mrf.mxu0
        %9344 = vdwg.mxu0
        %9345 = vmatpush.bf16.msra.mxu0 %v7016
        %9346 = vmatpush.bf16.msra.mxu0 %v6995
        %9347 = vmatpush.bf16.msra.mxu0 %v6974
        %9348 = vmatpush.bf16.msra.mxu0 %v6953
        %9349 = vmatpush.bf16.msra.mxu0 %v6932
        %9350 = vmatpush.bf16.msra.mxu0 %v6911
        %9351 = vmatpush.bf16.msra.mxu0 %v6890
        %9352 = vmatpush.bf16.msra.mxu0 %v6869
        %9353 = vmatmul.bf16.gmra.mxu0 %v3441
        %v9354 = vpop.f32.mrf.mxu0
        %v9355 = vadd.f32 %v9342, %v9354
        %v9356 = vpop.f32.mrf.mxu0
        %9357 = vdwg.mxu0
        %9358 = vmatpush.bf16.msra.mxu0 %v7184
        %9359 = vmatpush.bf16.msra.mxu0 %v7163
        %9360 = vmatpush.bf16.msra.mxu0 %v7142
        %9361 = vmatpush.bf16.msra.mxu0 %v7121
        %9362 = vmatpush.bf16.msra.mxu0 %v7100
        %9363 = vmatpush.bf16.msra.mxu0 %v7079
        %9364 = vmatpush.bf16.msra.mxu0 %v7058
        %9365 = vmatpush.bf16.msra.mxu0 %v7037
        %9366 = vmatmul.bf16.gmra.mxu0 %v3442
        %v9367 = vpop.f32.mrf.mxu0
        %v9368 = vadd.f32 %v9355, %v9367
        %v9369 = vpop.f32.mrf.mxu0
        %9370 = vdwg.mxu0
        %9371 = vmatpush.bf16.msra.mxu0 %v7352
        %9372 = vmatpush.bf16.msra.mxu0 %v7331
        %9373 = vmatpush.bf16.msra.mxu0 %v7310
        %9374 = vmatpush.bf16.msra.mxu0 %v7289
        %9375 = vmatpush.bf16.msra.mxu0 %v7268
        %9376 = vmatpush.bf16.msra.mxu0 %v7247
        %9377 = vmatpush.bf16.msra.mxu0 %v7226
        %9378 = vmatpush.bf16.msra.mxu0 %v7205
        %9379 = vmatmul.bf16.gmra.mxu0 %v3443
        %v9380 = vpop.f32.mrf.mxu0
        %v9381 = vadd.f32 %v9368, %v9380
        %v9382 = vpop.f32.mrf.mxu0
        %9383 = vdwg.mxu0
        %9384 = vmatpush.bf16.msra.mxu0 %v7520
        %9385 = vmatpush.bf16.msra.mxu0 %v7499
        %9386 = vmatpush.bf16.msra.mxu0 %v7478
        %9387 = vmatpush.bf16.msra.mxu0 %v7457
        %9388 = vmatpush.bf16.msra.mxu0 %v7436
        %9389 = vmatpush.bf16.msra.mxu0 %v7415
        %9390 = vmatpush.bf16.msra.mxu0 %v7394
        %9391 = vmatpush.bf16.msra.mxu0 %v7373
        %9392 = vmatmul.bf16.gmra.mxu0 %v3444
        %v9393 = vpop.f32.mrf.mxu0
        %v9394 = vadd.f32 %v9381, %v9393
        %v9395 = vpop.f32.mrf.mxu0
        %9396 = vdwg.mxu0
        %9397 = vmatpush.bf16.msra.mxu0 %v6681
        %9398 = vmatpush.bf16.msra.mxu0 %v6660
        %9399 = vmatpush.bf16.msra.mxu0 %v6639
        %9400 = vmatpush.bf16.msra.mxu0 %v6618
        %9401 = vmatpush.bf16.msra.mxu0 %v6597
        %9402 = vmatpush.bf16.msra.mxu0 %v6576
        %9403 = vmatpush.bf16.msra.mxu0 %v6555
        %9404 = vmatpush.bf16.msra.mxu0 %v6534
        %9405 = vmatmul.bf16.gmra.mxu0 %v3439
        %v9406 = vpop.f32.mrf.mxu0
        %v9407 = vadd.f32 %v3406, %v9406
        %v9408 = vpop.f32.mrf.mxu0
        %9409 = vdwg.mxu0
        %9410 = vmatpush.bf16.msra.mxu0 %v6849
        %9411 = vmatpush.bf16.msra.mxu0 %v6828
        %9412 = vmatpush.bf16.msra.mxu0 %v6807
        %9413 = vmatpush.bf16.msra.mxu0 %v6786
        %9414 = vmatpush.bf16.msra.mxu0 %v6765
        %9415 = vmatpush.bf16.msra.mxu0 %v6744
        %9416 = vmatpush.bf16.msra.mxu0 %v6723
        %9417 = vmatpush.bf16.msra.mxu0 %v6702
        %9418 = vmatmul.bf16.gmra.mxu0 %v3440
        %v9419 = vpop.f32.mrf.mxu0
        %v9420 = vadd.f32 %v9407, %v9419
        %v9421 = vpop.f32.mrf.mxu0
        %9422 = vdwg.mxu0
        %9423 = vmatpush.bf16.msra.mxu0 %v7017
        %9424 = vmatpush.bf16.msra.mxu0 %v6996
        %9425 = vmatpush.bf16.msra.mxu0 %v6975
        %9426 = vmatpush.bf16.msra.mxu0 %v6954
        %9427 = vmatpush.bf16.msra.mxu0 %v6933
        %9428 = vmatpush.bf16.msra.mxu0 %v6912
        %9429 = vmatpush.bf16.msra.mxu0 %v6891
        %9430 = vmatpush.bf16.msra.mxu0 %v6870
        %9431 = vmatmul.bf16.gmra.mxu0 %v3441
        %v9432 = vpop.f32.mrf.mxu0
        %v9433 = vadd.f32 %v9420, %v9432
        %v9434 = vpop.f32.mrf.mxu0
        %9435 = vdwg.mxu0
        %9436 = vmatpush.bf16.msra.mxu0 %v7185
        %9437 = vmatpush.bf16.msra.mxu0 %v7164
        %9438 = vmatpush.bf16.msra.mxu0 %v7143
        %9439 = vmatpush.bf16.msra.mxu0 %v7122
        %9440 = vmatpush.bf16.msra.mxu0 %v7101
        %9441 = vmatpush.bf16.msra.mxu0 %v7080
        %9442 = vmatpush.bf16.msra.mxu0 %v7059
        %9443 = vmatpush.bf16.msra.mxu0 %v7038
        %9444 = vmatmul.bf16.gmra.mxu0 %v3442
        %v9445 = vpop.f32.mrf.mxu0
        %v9446 = vadd.f32 %v9433, %v9445
        %v9447 = vpop.f32.mrf.mxu0
        %9448 = vdwg.mxu0
        %9449 = vmatpush.bf16.msra.mxu0 %v7353
        %9450 = vmatpush.bf16.msra.mxu0 %v7332
        %9451 = vmatpush.bf16.msra.mxu0 %v7311
        %9452 = vmatpush.bf16.msra.mxu0 %v7290
        %9453 = vmatpush.bf16.msra.mxu0 %v7269
        %9454 = vmatpush.bf16.msra.mxu0 %v7248
        %9455 = vmatpush.bf16.msra.mxu0 %v7227
        %9456 = vmatpush.bf16.msra.mxu0 %v7206
        %9457 = vmatmul.bf16.gmra.mxu0 %v3443
        %v9458 = vpop.f32.mrf.mxu0
        %v9459 = vadd.f32 %v9446, %v9458
        %v9460 = vpop.f32.mrf.mxu0
        %9461 = vdwg.mxu0
        %9462 = vmatpush.bf16.msra.mxu0 %v7521
        %9463 = vmatpush.bf16.msra.mxu0 %v7500
        %9464 = vmatpush.bf16.msra.mxu0 %v7479
        %9465 = vmatpush.bf16.msra.mxu0 %v7458
        %9466 = vmatpush.bf16.msra.mxu0 %v7437
        %9467 = vmatpush.bf16.msra.mxu0 %v7416
        %9468 = vmatpush.bf16.msra.mxu0 %v7395
        %9469 = vmatpush.bf16.msra.mxu0 %v7374
        %9470 = vmatmul.bf16.gmra.mxu0 %v3444
        %v9471 = vpop.f32.mrf.mxu0
        %v9472 = vadd.f32 %v9459, %v9471
        %v9473 = vpop.f32.mrf.mxu0
        %9474 = vdwg.mxu0
        %9475 = vmatpush.bf16.msra.mxu0 %v6682
        %9476 = vmatpush.bf16.msra.mxu0 %v6661
        %9477 = vmatpush.bf16.msra.mxu0 %v6640
        %9478 = vmatpush.bf16.msra.mxu0 %v6619
        %9479 = vmatpush.bf16.msra.mxu0 %v6598
        %9480 = vmatpush.bf16.msra.mxu0 %v6577
        %9481 = vmatpush.bf16.msra.mxu0 %v6556
        %9482 = vmatpush.bf16.msra.mxu0 %v6535
        %9483 = vmatmul.bf16.gmra.mxu0 %v3439
        %v9484 = vpop.f32.mrf.mxu0
        %v9485 = vadd.f32 %v3407, %v9484
        %v9486 = vpop.f32.mrf.mxu0
        %9487 = vdwg.mxu0
        %9488 = vmatpush.bf16.msra.mxu0 %v6850
        %9489 = vmatpush.bf16.msra.mxu0 %v6829
        %9490 = vmatpush.bf16.msra.mxu0 %v6808
        %9491 = vmatpush.bf16.msra.mxu0 %v6787
        %9492 = vmatpush.bf16.msra.mxu0 %v6766
        %9493 = vmatpush.bf16.msra.mxu0 %v6745
        %9494 = vmatpush.bf16.msra.mxu0 %v6724
        %9495 = vmatpush.bf16.msra.mxu0 %v6703
        %9496 = vmatmul.bf16.gmra.mxu0 %v3440
        %v9497 = vpop.f32.mrf.mxu0
        %v9498 = vadd.f32 %v9485, %v9497
        %v9499 = vpop.f32.mrf.mxu0
        %9500 = vdwg.mxu0
        %9501 = vmatpush.bf16.msra.mxu0 %v7018
        %9502 = vmatpush.bf16.msra.mxu0 %v6997
        %9503 = vmatpush.bf16.msra.mxu0 %v6976
        %9504 = vmatpush.bf16.msra.mxu0 %v6955
        %9505 = vmatpush.bf16.msra.mxu0 %v6934
        %9506 = vmatpush.bf16.msra.mxu0 %v6913
        %9507 = vmatpush.bf16.msra.mxu0 %v6892
        %9508 = vmatpush.bf16.msra.mxu0 %v6871
        %9509 = vmatmul.bf16.gmra.mxu0 %v3441
        %v9510 = vpop.f32.mrf.mxu0
        %v9511 = vadd.f32 %v9498, %v9510
        %v9512 = vpop.f32.mrf.mxu0
        %9513 = vdwg.mxu0
        %9514 = vmatpush.bf16.msra.mxu0 %v7186
        %9515 = vmatpush.bf16.msra.mxu0 %v7165
        %9516 = vmatpush.bf16.msra.mxu0 %v7144
        %9517 = vmatpush.bf16.msra.mxu0 %v7123
        %9518 = vmatpush.bf16.msra.mxu0 %v7102
        %9519 = vmatpush.bf16.msra.mxu0 %v7081
        %9520 = vmatpush.bf16.msra.mxu0 %v7060
        %9521 = vmatpush.bf16.msra.mxu0 %v7039
        %9522 = vmatmul.bf16.gmra.mxu0 %v3442
        %v9523 = vpop.f32.mrf.mxu0
        %v9524 = vadd.f32 %v9511, %v9523
        %v9525 = vpop.f32.mrf.mxu0
        %9526 = vdwg.mxu0
        %9527 = vmatpush.bf16.msra.mxu0 %v7354
        %9528 = vmatpush.bf16.msra.mxu0 %v7333
        %9529 = vmatpush.bf16.msra.mxu0 %v7312
        %9530 = vmatpush.bf16.msra.mxu0 %v7291
        %9531 = vmatpush.bf16.msra.mxu0 %v7270
        %9532 = vmatpush.bf16.msra.mxu0 %v7249
        %9533 = vmatpush.bf16.msra.mxu0 %v7228
        %9534 = vmatpush.bf16.msra.mxu0 %v7207
        %9535 = vmatmul.bf16.gmra.mxu0 %v3443
        %v9536 = vpop.f32.mrf.mxu0
        %v9537 = vadd.f32 %v9524, %v9536
        %v9538 = vpop.f32.mrf.mxu0
        %9539 = vdwg.mxu0
        %9540 = vmatpush.bf16.msra.mxu0 %v7522
        %9541 = vmatpush.bf16.msra.mxu0 %v7501
        %9542 = vmatpush.bf16.msra.mxu0 %v7480
        %9543 = vmatpush.bf16.msra.mxu0 %v7459
        %9544 = vmatpush.bf16.msra.mxu0 %v7438
        %9545 = vmatpush.bf16.msra.mxu0 %v7417
        %9546 = vmatpush.bf16.msra.mxu0 %v7396
        %9547 = vmatpush.bf16.msra.mxu0 %v7375
        %9548 = vmatmul.bf16.gmra.mxu0 %v3444
        %v9549 = vpop.f32.mrf.mxu0
        %v9550 = vadd.f32 %v9537, %v9549
        %v9551 = vpop.f32.mrf.mxu0
        %9552 = vdwg.mxu0
        %9553 = vmatpush.bf16.msra.mxu0 %v6683
        %9554 = vmatpush.bf16.msra.mxu0 %v6662
        %9555 = vmatpush.bf16.msra.mxu0 %v6641
        %9556 = vmatpush.bf16.msra.mxu0 %v6620
        %9557 = vmatpush.bf16.msra.mxu0 %v6599
        %9558 = vmatpush.bf16.msra.mxu0 %v6578
        %9559 = vmatpush.bf16.msra.mxu0 %v6557
        %9560 = vmatpush.bf16.msra.mxu0 %v6536
        %9561 = vmatmul.bf16.gmra.mxu0 %v3439
        %v9562 = vpop.f32.mrf.mxu0
        %v9563 = vadd.f32 %v3408, %v9562
        %v9564 = vpop.f32.mrf.mxu0
        %9565 = vdwg.mxu0
        %9566 = vmatpush.bf16.msra.mxu0 %v6851
        %9567 = vmatpush.bf16.msra.mxu0 %v6830
        %9568 = vmatpush.bf16.msra.mxu0 %v6809
        %9569 = vmatpush.bf16.msra.mxu0 %v6788
        %9570 = vmatpush.bf16.msra.mxu0 %v6767
        %9571 = vmatpush.bf16.msra.mxu0 %v6746
        %9572 = vmatpush.bf16.msra.mxu0 %v6725
        %9573 = vmatpush.bf16.msra.mxu0 %v6704
        %9574 = vmatmul.bf16.gmra.mxu0 %v3440
        %v9575 = vpop.f32.mrf.mxu0
        %v9576 = vadd.f32 %v9563, %v9575
        %v9577 = vpop.f32.mrf.mxu0
        %9578 = vdwg.mxu0
        %9579 = vmatpush.bf16.msra.mxu0 %v7019
        %9580 = vmatpush.bf16.msra.mxu0 %v6998
        %9581 = vmatpush.bf16.msra.mxu0 %v6977
        %9582 = vmatpush.bf16.msra.mxu0 %v6956
        %9583 = vmatpush.bf16.msra.mxu0 %v6935
        %9584 = vmatpush.bf16.msra.mxu0 %v6914
        %9585 = vmatpush.bf16.msra.mxu0 %v6893
        %9586 = vmatpush.bf16.msra.mxu0 %v6872
        %9587 = vmatmul.bf16.gmra.mxu0 %v3441
        %v9588 = vpop.f32.mrf.mxu0
        %v9589 = vadd.f32 %v9576, %v9588
        %v9590 = vpop.f32.mrf.mxu0
        %9591 = vdwg.mxu0
        %9592 = vmatpush.bf16.msra.mxu0 %v7187
        %9593 = vmatpush.bf16.msra.mxu0 %v7166
        %9594 = vmatpush.bf16.msra.mxu0 %v7145
        %9595 = vmatpush.bf16.msra.mxu0 %v7124
        %9596 = vmatpush.bf16.msra.mxu0 %v7103
        %9597 = vmatpush.bf16.msra.mxu0 %v7082
        %9598 = vmatpush.bf16.msra.mxu0 %v7061
        %9599 = vmatpush.bf16.msra.mxu0 %v7040
        %9600 = vmatmul.bf16.gmra.mxu0 %v3442
        %v9601 = vpop.f32.mrf.mxu0
        %v9602 = vadd.f32 %v9589, %v9601
        %v9603 = vpop.f32.mrf.mxu0
        %9604 = vdwg.mxu0
        %9605 = vmatpush.bf16.msra.mxu0 %v7355
        %9606 = vmatpush.bf16.msra.mxu0 %v7334
        %9607 = vmatpush.bf16.msra.mxu0 %v7313
        %9608 = vmatpush.bf16.msra.mxu0 %v7292
        %9609 = vmatpush.bf16.msra.mxu0 %v7271
        %9610 = vmatpush.bf16.msra.mxu0 %v7250
        %9611 = vmatpush.bf16.msra.mxu0 %v7229
        %9612 = vmatpush.bf16.msra.mxu0 %v7208
        %9613 = vmatmul.bf16.gmra.mxu0 %v3443
        %v9614 = vpop.f32.mrf.mxu0
        %v9615 = vadd.f32 %v9602, %v9614
        %v9616 = vpop.f32.mrf.mxu0
        %9617 = vdwg.mxu0
        %9618 = vmatpush.bf16.msra.mxu0 %v7523
        %9619 = vmatpush.bf16.msra.mxu0 %v7502
        %9620 = vmatpush.bf16.msra.mxu0 %v7481
        %9621 = vmatpush.bf16.msra.mxu0 %v7460
        %9622 = vmatpush.bf16.msra.mxu0 %v7439
        %9623 = vmatpush.bf16.msra.mxu0 %v7418
        %9624 = vmatpush.bf16.msra.mxu0 %v7397
        %9625 = vmatpush.bf16.msra.mxu0 %v7376
        %9626 = vmatmul.bf16.gmra.mxu0 %v3444
        %v9627 = vpop.f32.mrf.mxu0
        %v9628 = vadd.f32 %v9615, %v9627
        %v9629 = vpop.f32.mrf.mxu0
        %9630 = vdwg.mxu0
        %9631 = vmatpush.bf16.msra.mxu0 %v6684
        %9632 = vmatpush.bf16.msra.mxu0 %v6663
        %9633 = vmatpush.bf16.msra.mxu0 %v6642
        %9634 = vmatpush.bf16.msra.mxu0 %v6621
        %9635 = vmatpush.bf16.msra.mxu0 %v6600
        %9636 = vmatpush.bf16.msra.mxu0 %v6579
        %9637 = vmatpush.bf16.msra.mxu0 %v6558
        %9638 = vmatpush.bf16.msra.mxu0 %v6537
        %9639 = vmatmul.bf16.gmra.mxu0 %v3439
        %v9640 = vpop.f32.mrf.mxu0
        %v9641 = vadd.f32 %v3409, %v9640
        %v9642 = vpop.f32.mrf.mxu0
        %9643 = vdwg.mxu0
        %9644 = vmatpush.bf16.msra.mxu0 %v6852
        %9645 = vmatpush.bf16.msra.mxu0 %v6831
        %9646 = vmatpush.bf16.msra.mxu0 %v6810
        %9647 = vmatpush.bf16.msra.mxu0 %v6789
        %9648 = vmatpush.bf16.msra.mxu0 %v6768
        %9649 = vmatpush.bf16.msra.mxu0 %v6747
        %9650 = vmatpush.bf16.msra.mxu0 %v6726
        %9651 = vmatpush.bf16.msra.mxu0 %v6705
        %9652 = vmatmul.bf16.gmra.mxu0 %v3440
        %v9653 = vpop.f32.mrf.mxu0
        %v9654 = vadd.f32 %v9641, %v9653
        %v9655 = vpop.f32.mrf.mxu0
        %9656 = vdwg.mxu0
        %9657 = vmatpush.bf16.msra.mxu0 %v7020
        %9658 = vmatpush.bf16.msra.mxu0 %v6999
        %9659 = vmatpush.bf16.msra.mxu0 %v6978
        %9660 = vmatpush.bf16.msra.mxu0 %v6957
        %9661 = vmatpush.bf16.msra.mxu0 %v6936
        %9662 = vmatpush.bf16.msra.mxu0 %v6915
        %9663 = vmatpush.bf16.msra.mxu0 %v6894
        %9664 = vmatpush.bf16.msra.mxu0 %v6873
        %9665 = vmatmul.bf16.gmra.mxu0 %v3441
        %v9666 = vpop.f32.mrf.mxu0
        %v9667 = vadd.f32 %v9654, %v9666
        %v9668 = vpop.f32.mrf.mxu0
        %9669 = vdwg.mxu0
        %9670 = vmatpush.bf16.msra.mxu0 %v7188
        %9671 = vmatpush.bf16.msra.mxu0 %v7167
        %9672 = vmatpush.bf16.msra.mxu0 %v7146
        %9673 = vmatpush.bf16.msra.mxu0 %v7125
        %9674 = vmatpush.bf16.msra.mxu0 %v7104
        %9675 = vmatpush.bf16.msra.mxu0 %v7083
        %9676 = vmatpush.bf16.msra.mxu0 %v7062
        %9677 = vmatpush.bf16.msra.mxu0 %v7041
        %9678 = vmatmul.bf16.gmra.mxu0 %v3442
        %v9679 = vpop.f32.mrf.mxu0
        %v9680 = vadd.f32 %v9667, %v9679
        %v9681 = vpop.f32.mrf.mxu0
        %9682 = vdwg.mxu0
        %9683 = vmatpush.bf16.msra.mxu0 %v7356
        %9684 = vmatpush.bf16.msra.mxu0 %v7335
        %9685 = vmatpush.bf16.msra.mxu0 %v7314
        %9686 = vmatpush.bf16.msra.mxu0 %v7293
        %9687 = vmatpush.bf16.msra.mxu0 %v7272
        %9688 = vmatpush.bf16.msra.mxu0 %v7251
        %9689 = vmatpush.bf16.msra.mxu0 %v7230
        %9690 = vmatpush.bf16.msra.mxu0 %v7209
        %9691 = vmatmul.bf16.gmra.mxu0 %v3443
        %v9692 = vpop.f32.mrf.mxu0
        %v9693 = vadd.f32 %v9680, %v9692
        %v9694 = vpop.f32.mrf.mxu0
        %9695 = vdwg.mxu0
        %9696 = vmatpush.bf16.msra.mxu0 %v7524
        %9697 = vmatpush.bf16.msra.mxu0 %v7503
        %9698 = vmatpush.bf16.msra.mxu0 %v7482
        %9699 = vmatpush.bf16.msra.mxu0 %v7461
        %9700 = vmatpush.bf16.msra.mxu0 %v7440
        %9701 = vmatpush.bf16.msra.mxu0 %v7419
        %9702 = vmatpush.bf16.msra.mxu0 %v7398
        %9703 = vmatpush.bf16.msra.mxu0 %v7377
        %9704 = vmatmul.bf16.gmra.mxu0 %v3444
        %v9705 = vpop.f32.mrf.mxu0
        %v9706 = vadd.f32 %v9693, %v9705
        %v9707 = vpop.f32.mrf.mxu0
        %9708 = vdwg.mxu0
        %9709 = vmatpush.bf16.msra.mxu0 %v6685
        %9710 = vmatpush.bf16.msra.mxu0 %v6664
        %9711 = vmatpush.bf16.msra.mxu0 %v6643
        %9712 = vmatpush.bf16.msra.mxu0 %v6622
        %9713 = vmatpush.bf16.msra.mxu0 %v6601
        %9714 = vmatpush.bf16.msra.mxu0 %v6580
        %9715 = vmatpush.bf16.msra.mxu0 %v6559
        %9716 = vmatpush.bf16.msra.mxu0 %v6538
        %9717 = vmatmul.bf16.gmra.mxu0 %v3439
        %v9718 = vpop.f32.mrf.mxu0
        %v9719 = vadd.f32 %v3410, %v9718
        %v9720 = vpop.f32.mrf.mxu0
        %9721 = vdwg.mxu0
        %9722 = vmatpush.bf16.msra.mxu0 %v6853
        %9723 = vmatpush.bf16.msra.mxu0 %v6832
        %9724 = vmatpush.bf16.msra.mxu0 %v6811
        %9725 = vmatpush.bf16.msra.mxu0 %v6790
        %9726 = vmatpush.bf16.msra.mxu0 %v6769
        %9727 = vmatpush.bf16.msra.mxu0 %v6748
        %9728 = vmatpush.bf16.msra.mxu0 %v6727
        %9729 = vmatpush.bf16.msra.mxu0 %v6706
        %9730 = vmatmul.bf16.gmra.mxu0 %v3440
        %v9731 = vpop.f32.mrf.mxu0
        %v9732 = vadd.f32 %v9719, %v9731
        %v9733 = vpop.f32.mrf.mxu0
        %9734 = vdwg.mxu0
        %9735 = vmatpush.bf16.msra.mxu0 %v7021
        %9736 = vmatpush.bf16.msra.mxu0 %v7000
        %9737 = vmatpush.bf16.msra.mxu0 %v6979
        %9738 = vmatpush.bf16.msra.mxu0 %v6958
        %9739 = vmatpush.bf16.msra.mxu0 %v6937
        %9740 = vmatpush.bf16.msra.mxu0 %v6916
        %9741 = vmatpush.bf16.msra.mxu0 %v6895
        %9742 = vmatpush.bf16.msra.mxu0 %v6874
        %9743 = vmatmul.bf16.gmra.mxu0 %v3441
        %v9744 = vpop.f32.mrf.mxu0
        %v9745 = vadd.f32 %v9732, %v9744
        %v9746 = vpop.f32.mrf.mxu0
        %9747 = vdwg.mxu0
        %9748 = vmatpush.bf16.msra.mxu0 %v7189
        %9749 = vmatpush.bf16.msra.mxu0 %v7168
        %9750 = vmatpush.bf16.msra.mxu0 %v7147
        %9751 = vmatpush.bf16.msra.mxu0 %v7126
        %9752 = vmatpush.bf16.msra.mxu0 %v7105
        %9753 = vmatpush.bf16.msra.mxu0 %v7084
        %9754 = vmatpush.bf16.msra.mxu0 %v7063
        %9755 = vmatpush.bf16.msra.mxu0 %v7042
        %9756 = vmatmul.bf16.gmra.mxu0 %v3442
        %v9757 = vpop.f32.mrf.mxu0
        %v9758 = vadd.f32 %v9745, %v9757
        %v9759 = vpop.f32.mrf.mxu0
        %9760 = vdwg.mxu0
        %9761 = vmatpush.bf16.msra.mxu0 %v7357
        %9762 = vmatpush.bf16.msra.mxu0 %v7336
        %9763 = vmatpush.bf16.msra.mxu0 %v7315
        %9764 = vmatpush.bf16.msra.mxu0 %v7294
        %9765 = vmatpush.bf16.msra.mxu0 %v7273
        %9766 = vmatpush.bf16.msra.mxu0 %v7252
        %9767 = vmatpush.bf16.msra.mxu0 %v7231
        %9768 = vmatpush.bf16.msra.mxu0 %v7210
        %9769 = vmatmul.bf16.gmra.mxu0 %v3443
        %v9770 = vpop.f32.mrf.mxu0
        %v9771 = vadd.f32 %v9758, %v9770
        %v9772 = vpop.f32.mrf.mxu0
        %9773 = vdwg.mxu0
        %9774 = vmatpush.bf16.msra.mxu0 %v7525
        %9775 = vmatpush.bf16.msra.mxu0 %v7504
        %9776 = vmatpush.bf16.msra.mxu0 %v7483
        %9777 = vmatpush.bf16.msra.mxu0 %v7462
        %9778 = vmatpush.bf16.msra.mxu0 %v7441
        %9779 = vmatpush.bf16.msra.mxu0 %v7420
        %9780 = vmatpush.bf16.msra.mxu0 %v7399
        %9781 = vmatpush.bf16.msra.mxu0 %v7378
        %9782 = vmatmul.bf16.gmra.mxu0 %v3444
        %v9783 = vpop.f32.mrf.mxu0
        %v9784 = vadd.f32 %v9771, %v9783
        %v9785 = vpop.f32.mrf.mxu0
        %9786 = vdwg.mxu0
        %9787 = vmatpush.bf16.msra.mxu0 %v6686
        %9788 = vmatpush.bf16.msra.mxu0 %v6665
        %9789 = vmatpush.bf16.msra.mxu0 %v6644
        %9790 = vmatpush.bf16.msra.mxu0 %v6623
        %9791 = vmatpush.bf16.msra.mxu0 %v6602
        %9792 = vmatpush.bf16.msra.mxu0 %v6581
        %9793 = vmatpush.bf16.msra.mxu0 %v6560
        %9794 = vmatpush.bf16.msra.mxu0 %v6539
        %9795 = vmatmul.bf16.gmra.mxu0 %v3439
        %v9796 = vpop.f32.mrf.mxu0
        %v9797 = vadd.f32 %v3411, %v9796
        %v9798 = vpop.f32.mrf.mxu0
        %9799 = vdwg.mxu0
        %9800 = vmatpush.bf16.msra.mxu0 %v6854
        %9801 = vmatpush.bf16.msra.mxu0 %v6833
        %9802 = vmatpush.bf16.msra.mxu0 %v6812
        %9803 = vmatpush.bf16.msra.mxu0 %v6791
        %9804 = vmatpush.bf16.msra.mxu0 %v6770
        %9805 = vmatpush.bf16.msra.mxu0 %v6749
        %9806 = vmatpush.bf16.msra.mxu0 %v6728
        %9807 = vmatpush.bf16.msra.mxu0 %v6707
        %9808 = vmatmul.bf16.gmra.mxu0 %v3440
        %v9809 = vpop.f32.mrf.mxu0
        %v9810 = vadd.f32 %v9797, %v9809
        %v9811 = vpop.f32.mrf.mxu0
        %9812 = vdwg.mxu0
        %9813 = vmatpush.bf16.msra.mxu0 %v7022
        %9814 = vmatpush.bf16.msra.mxu0 %v7001
        %9815 = vmatpush.bf16.msra.mxu0 %v6980
        %9816 = vmatpush.bf16.msra.mxu0 %v6959
        %9817 = vmatpush.bf16.msra.mxu0 %v6938
        %9818 = vmatpush.bf16.msra.mxu0 %v6917
        %9819 = vmatpush.bf16.msra.mxu0 %v6896
        %9820 = vmatpush.bf16.msra.mxu0 %v6875
        %9821 = vmatmul.bf16.gmra.mxu0 %v3441
        %v9822 = vpop.f32.mrf.mxu0
        %v9823 = vadd.f32 %v9810, %v9822
        %v9824 = vpop.f32.mrf.mxu0
        %9825 = vdwg.mxu0
        %9826 = vmatpush.bf16.msra.mxu0 %v7190
        %9827 = vmatpush.bf16.msra.mxu0 %v7169
        %9828 = vmatpush.bf16.msra.mxu0 %v7148
        %9829 = vmatpush.bf16.msra.mxu0 %v7127
        %9830 = vmatpush.bf16.msra.mxu0 %v7106
        %9831 = vmatpush.bf16.msra.mxu0 %v7085
        %9832 = vmatpush.bf16.msra.mxu0 %v7064
        %9833 = vmatpush.bf16.msra.mxu0 %v7043
        %9834 = vmatmul.bf16.gmra.mxu0 %v3442
        %v9835 = vpop.f32.mrf.mxu0
        %v9836 = vadd.f32 %v9823, %v9835
        %v9837 = vpop.f32.mrf.mxu0
        %9838 = vdwg.mxu0
        %9839 = vmatpush.bf16.msra.mxu0 %v7358
        %9840 = vmatpush.bf16.msra.mxu0 %v7337
        %9841 = vmatpush.bf16.msra.mxu0 %v7316
        %9842 = vmatpush.bf16.msra.mxu0 %v7295
        %9843 = vmatpush.bf16.msra.mxu0 %v7274
        %9844 = vmatpush.bf16.msra.mxu0 %v7253
        %9845 = vmatpush.bf16.msra.mxu0 %v7232
        %9846 = vmatpush.bf16.msra.mxu0 %v7211
        %9847 = vmatmul.bf16.gmra.mxu0 %v3443
        %v9848 = vpop.f32.mrf.mxu0
        %v9849 = vadd.f32 %v9836, %v9848
        %v9850 = vpop.f32.mrf.mxu0
        %9851 = vdwg.mxu0
        %9852 = vmatpush.bf16.msra.mxu0 %v7526
        %9853 = vmatpush.bf16.msra.mxu0 %v7505
        %9854 = vmatpush.bf16.msra.mxu0 %v7484
        %9855 = vmatpush.bf16.msra.mxu0 %v7463
        %9856 = vmatpush.bf16.msra.mxu0 %v7442
        %9857 = vmatpush.bf16.msra.mxu0 %v7421
        %9858 = vmatpush.bf16.msra.mxu0 %v7400
        %9859 = vmatpush.bf16.msra.mxu0 %v7379
        %9860 = vmatmul.bf16.gmra.mxu0 %v3444
        %v9861 = vpop.f32.mrf.mxu0
        %v9862 = vadd.f32 %v9849, %v9861
        %v9863 = vpop.f32.mrf.mxu0
        %9864 = vdwg.mxu0
        %9865 = vmatpush.bf16.msra.mxu0 %v6687
        %9866 = vmatpush.bf16.msra.mxu0 %v6666
        %9867 = vmatpush.bf16.msra.mxu0 %v6645
        %9868 = vmatpush.bf16.msra.mxu0 %v6624
        %9869 = vmatpush.bf16.msra.mxu0 %v6603
        %9870 = vmatpush.bf16.msra.mxu0 %v6582
        %9871 = vmatpush.bf16.msra.mxu0 %v6561
        %9872 = vmatpush.bf16.msra.mxu0 %v6540
        %9873 = vmatmul.bf16.gmra.mxu0 %v3439
        %v9874 = vpop.f32.mrf.mxu0
        %v9875 = vadd.f32 %v3412, %v9874
        %v9876 = vpop.f32.mrf.mxu0
        %9877 = vdwg.mxu0
        %9878 = vmatpush.bf16.msra.mxu0 %v6855
        %9879 = vmatpush.bf16.msra.mxu0 %v6834
        %9880 = vmatpush.bf16.msra.mxu0 %v6813
        %9881 = vmatpush.bf16.msra.mxu0 %v6792
        %9882 = vmatpush.bf16.msra.mxu0 %v6771
        %9883 = vmatpush.bf16.msra.mxu0 %v6750
        %9884 = vmatpush.bf16.msra.mxu0 %v6729
        %9885 = vmatpush.bf16.msra.mxu0 %v6708
        %9886 = vmatmul.bf16.gmra.mxu0 %v3440
        %v9887 = vpop.f32.mrf.mxu0
        %v9888 = vadd.f32 %v9875, %v9887
        %v9889 = vpop.f32.mrf.mxu0
        %9890 = vdwg.mxu0
        %9891 = vmatpush.bf16.msra.mxu0 %v7023
        %9892 = vmatpush.bf16.msra.mxu0 %v7002
        %9893 = vmatpush.bf16.msra.mxu0 %v6981
        %9894 = vmatpush.bf16.msra.mxu0 %v6960
        %9895 = vmatpush.bf16.msra.mxu0 %v6939
        %9896 = vmatpush.bf16.msra.mxu0 %v6918
        %9897 = vmatpush.bf16.msra.mxu0 %v6897
        %9898 = vmatpush.bf16.msra.mxu0 %v6876
        %9899 = vmatmul.bf16.gmra.mxu0 %v3441
        %v9900 = vpop.f32.mrf.mxu0
        %v9901 = vadd.f32 %v9888, %v9900
        %v9902 = vpop.f32.mrf.mxu0
        %9903 = vdwg.mxu0
        %9904 = vmatpush.bf16.msra.mxu0 %v7191
        %9905 = vmatpush.bf16.msra.mxu0 %v7170
        %9906 = vmatpush.bf16.msra.mxu0 %v7149
        %9907 = vmatpush.bf16.msra.mxu0 %v7128
        %9908 = vmatpush.bf16.msra.mxu0 %v7107
        %9909 = vmatpush.bf16.msra.mxu0 %v7086
        %9910 = vmatpush.bf16.msra.mxu0 %v7065
        %9911 = vmatpush.bf16.msra.mxu0 %v7044
        %9912 = vmatmul.bf16.gmra.mxu0 %v3442
        %v9913 = vpop.f32.mrf.mxu0
        %v9914 = vadd.f32 %v9901, %v9913
        %v9915 = vpop.f32.mrf.mxu0
        %9916 = vdwg.mxu0
        %9917 = vmatpush.bf16.msra.mxu0 %v7359
        %9918 = vmatpush.bf16.msra.mxu0 %v7338
        %9919 = vmatpush.bf16.msra.mxu0 %v7317
        %9920 = vmatpush.bf16.msra.mxu0 %v7296
        %9921 = vmatpush.bf16.msra.mxu0 %v7275
        %9922 = vmatpush.bf16.msra.mxu0 %v7254
        %9923 = vmatpush.bf16.msra.mxu0 %v7233
        %9924 = vmatpush.bf16.msra.mxu0 %v7212
        %9925 = vmatmul.bf16.gmra.mxu0 %v3443
        %v9926 = vpop.f32.mrf.mxu0
        %v9927 = vadd.f32 %v9914, %v9926
        %v9928 = vpop.f32.mrf.mxu0
        %9929 = vdwg.mxu0
        %9930 = vmatpush.bf16.msra.mxu0 %v7527
        %9931 = vmatpush.bf16.msra.mxu0 %v7506
        %9932 = vmatpush.bf16.msra.mxu0 %v7485
        %9933 = vmatpush.bf16.msra.mxu0 %v7464
        %9934 = vmatpush.bf16.msra.mxu0 %v7443
        %9935 = vmatpush.bf16.msra.mxu0 %v7422
        %9936 = vmatpush.bf16.msra.mxu0 %v7401
        %9937 = vmatpush.bf16.msra.mxu0 %v7380
        %9938 = vmatmul.bf16.gmra.mxu0 %v3444
        %v9939 = vpop.f32.mrf.mxu0
        %v9940 = vadd.f32 %v9927, %v9939
        %v9941 = vpop.f32.mrf.mxu0
        %9942 = vdwg.mxu0
        %9943 = vmatpush.bf16.msra.mxu0 %v6688
        %9944 = vmatpush.bf16.msra.mxu0 %v6667
        %9945 = vmatpush.bf16.msra.mxu0 %v6646
        %9946 = vmatpush.bf16.msra.mxu0 %v6625
        %9947 = vmatpush.bf16.msra.mxu0 %v6604
        %9948 = vmatpush.bf16.msra.mxu0 %v6583
        %9949 = vmatpush.bf16.msra.mxu0 %v6562
        %9950 = vmatpush.bf16.msra.mxu0 %v6541
        %9951 = vmatmul.bf16.gmra.mxu0 %v3439
        %v9952 = vpop.f32.mrf.mxu0
        %v9953 = vadd.f32 %v3413, %v9952
        %v9954 = vpop.f32.mrf.mxu0
        %9955 = vdwg.mxu0
        %9956 = vmatpush.bf16.msra.mxu0 %v6856
        %9957 = vmatpush.bf16.msra.mxu0 %v6835
        %9958 = vmatpush.bf16.msra.mxu0 %v6814
        %9959 = vmatpush.bf16.msra.mxu0 %v6793
        %9960 = vmatpush.bf16.msra.mxu0 %v6772
        %9961 = vmatpush.bf16.msra.mxu0 %v6751
        %9962 = vmatpush.bf16.msra.mxu0 %v6730
        %9963 = vmatpush.bf16.msra.mxu0 %v6709
        %9964 = vmatmul.bf16.gmra.mxu0 %v3440
        %v9965 = vpop.f32.mrf.mxu0
        %v9966 = vadd.f32 %v9953, %v9965
        %v9967 = vpop.f32.mrf.mxu0
        %9968 = vdwg.mxu0
        %9969 = vmatpush.bf16.msra.mxu0 %v7024
        %9970 = vmatpush.bf16.msra.mxu0 %v7003
        %9971 = vmatpush.bf16.msra.mxu0 %v6982
        %9972 = vmatpush.bf16.msra.mxu0 %v6961
        %9973 = vmatpush.bf16.msra.mxu0 %v6940
        %9974 = vmatpush.bf16.msra.mxu0 %v6919
        %9975 = vmatpush.bf16.msra.mxu0 %v6898
        %9976 = vmatpush.bf16.msra.mxu0 %v6877
        %9977 = vmatmul.bf16.gmra.mxu0 %v3441
        %v9978 = vpop.f32.mrf.mxu0
        %v9979 = vadd.f32 %v9966, %v9978
        %v9980 = vpop.f32.mrf.mxu0
        %9981 = vdwg.mxu0
        %9982 = vmatpush.bf16.msra.mxu0 %v7192
        %9983 = vmatpush.bf16.msra.mxu0 %v7171
        %9984 = vmatpush.bf16.msra.mxu0 %v7150
        %9985 = vmatpush.bf16.msra.mxu0 %v7129
        %9986 = vmatpush.bf16.msra.mxu0 %v7108
        %9987 = vmatpush.bf16.msra.mxu0 %v7087
        %9988 = vmatpush.bf16.msra.mxu0 %v7066
        %9989 = vmatpush.bf16.msra.mxu0 %v7045
        %9990 = vmatmul.bf16.gmra.mxu0 %v3442
        %v9991 = vpop.f32.mrf.mxu0
        %v9992 = vadd.f32 %v9979, %v9991
        %v9993 = vpop.f32.mrf.mxu0
        %9994 = vdwg.mxu0
        %9995 = vmatpush.bf16.msra.mxu0 %v7360
        %9996 = vmatpush.bf16.msra.mxu0 %v7339
        %9997 = vmatpush.bf16.msra.mxu0 %v7318
        %9998 = vmatpush.bf16.msra.mxu0 %v7297
        %9999 = vmatpush.bf16.msra.mxu0 %v7276
        %10000 = vmatpush.bf16.msra.mxu0 %v7255
        %10001 = vmatpush.bf16.msra.mxu0 %v7234
        %10002 = vmatpush.bf16.msra.mxu0 %v7213
        %10003 = vmatmul.bf16.gmra.mxu0 %v3443
        %v10004 = vpop.f32.mrf.mxu0
        %v10005 = vadd.f32 %v9992, %v10004
        %v10006 = vpop.f32.mrf.mxu0
        %10007 = vdwg.mxu0
        %10008 = vmatpush.bf16.msra.mxu0 %v7528
        %10009 = vmatpush.bf16.msra.mxu0 %v7507
        %10010 = vmatpush.bf16.msra.mxu0 %v7486
        %10011 = vmatpush.bf16.msra.mxu0 %v7465
        %10012 = vmatpush.bf16.msra.mxu0 %v7444
        %10013 = vmatpush.bf16.msra.mxu0 %v7423
        %10014 = vmatpush.bf16.msra.mxu0 %v7402
        %10015 = vmatpush.bf16.msra.mxu0 %v7381
        %10016 = vmatmul.bf16.gmra.mxu0 %v3444
        %v10017 = vpop.f32.mrf.mxu0
        %v10018 = vadd.f32 %v10005, %v10017
        %v10019 = vpop.f32.mrf.mxu0
        %10020 = vdwg.mxu0
        %10021 = vmatpush.bf16.msra.mxu0 %v6689
        %10022 = vmatpush.bf16.msra.mxu0 %v6668
        %10023 = vmatpush.bf16.msra.mxu0 %v6647
        %10024 = vmatpush.bf16.msra.mxu0 %v6626
        %10025 = vmatpush.bf16.msra.mxu0 %v6605
        %10026 = vmatpush.bf16.msra.mxu0 %v6584
        %10027 = vmatpush.bf16.msra.mxu0 %v6563
        %10028 = vmatpush.bf16.msra.mxu0 %v6542
        %10029 = vmatmul.bf16.gmra.mxu0 %v3439
        %v10030 = vpop.f32.mrf.mxu0
        %v10031 = vadd.f32 %v3414, %v10030
        %v10032 = vpop.f32.mrf.mxu0
        %10033 = vdwg.mxu0
        %10034 = vmatpush.bf16.msra.mxu0 %v6857
        %10035 = vmatpush.bf16.msra.mxu0 %v6836
        %10036 = vmatpush.bf16.msra.mxu0 %v6815
        %10037 = vmatpush.bf16.msra.mxu0 %v6794
        %10038 = vmatpush.bf16.msra.mxu0 %v6773
        %10039 = vmatpush.bf16.msra.mxu0 %v6752
        %10040 = vmatpush.bf16.msra.mxu0 %v6731
        %10041 = vmatpush.bf16.msra.mxu0 %v6710
        %10042 = vmatmul.bf16.gmra.mxu0 %v3440
        %v10043 = vpop.f32.mrf.mxu0
        %v10044 = vadd.f32 %v10031, %v10043
        %v10045 = vpop.f32.mrf.mxu0
        %10046 = vdwg.mxu0
        %10047 = vmatpush.bf16.msra.mxu0 %v7025
        %10048 = vmatpush.bf16.msra.mxu0 %v7004
        %10049 = vmatpush.bf16.msra.mxu0 %v6983
        %10050 = vmatpush.bf16.msra.mxu0 %v6962
        %10051 = vmatpush.bf16.msra.mxu0 %v6941
        %10052 = vmatpush.bf16.msra.mxu0 %v6920
        %10053 = vmatpush.bf16.msra.mxu0 %v6899
        %10054 = vmatpush.bf16.msra.mxu0 %v6878
        %10055 = vmatmul.bf16.gmra.mxu0 %v3441
        %v10056 = vpop.f32.mrf.mxu0
        %v10057 = vadd.f32 %v10044, %v10056
        %v10058 = vpop.f32.mrf.mxu0
        %10059 = vdwg.mxu0
        %10060 = vmatpush.bf16.msra.mxu0 %v7193
        %10061 = vmatpush.bf16.msra.mxu0 %v7172
        %10062 = vmatpush.bf16.msra.mxu0 %v7151
        %10063 = vmatpush.bf16.msra.mxu0 %v7130
        %10064 = vmatpush.bf16.msra.mxu0 %v7109
        %10065 = vmatpush.bf16.msra.mxu0 %v7088
        %10066 = vmatpush.bf16.msra.mxu0 %v7067
        %10067 = vmatpush.bf16.msra.mxu0 %v7046
        %10068 = vmatmul.bf16.gmra.mxu0 %v3442
        %v10069 = vpop.f32.mrf.mxu0
        %v10070 = vadd.f32 %v10057, %v10069
        %v10071 = vpop.f32.mrf.mxu0
        %10072 = vdwg.mxu0
        %10073 = vmatpush.bf16.msra.mxu0 %v7361
        %10074 = vmatpush.bf16.msra.mxu0 %v7340
        %10075 = vmatpush.bf16.msra.mxu0 %v7319
        %10076 = vmatpush.bf16.msra.mxu0 %v7298
        %10077 = vmatpush.bf16.msra.mxu0 %v7277
        %10078 = vmatpush.bf16.msra.mxu0 %v7256
        %10079 = vmatpush.bf16.msra.mxu0 %v7235
        %10080 = vmatpush.bf16.msra.mxu0 %v7214
        %10081 = vmatmul.bf16.gmra.mxu0 %v3443
        %v10082 = vpop.f32.mrf.mxu0
        %v10083 = vadd.f32 %v10070, %v10082
        %v10084 = vpop.f32.mrf.mxu0
        %10085 = vdwg.mxu0
        %10086 = vmatpush.bf16.msra.mxu0 %v7529
        %10087 = vmatpush.bf16.msra.mxu0 %v7508
        %10088 = vmatpush.bf16.msra.mxu0 %v7487
        %10089 = vmatpush.bf16.msra.mxu0 %v7466
        %10090 = vmatpush.bf16.msra.mxu0 %v7445
        %10091 = vmatpush.bf16.msra.mxu0 %v7424
        %10092 = vmatpush.bf16.msra.mxu0 %v7403
        %10093 = vmatpush.bf16.msra.mxu0 %v7382
        %10094 = vmatmul.bf16.gmra.mxu0 %v3444
        %v10095 = vpop.f32.mrf.mxu0
        %v10096 = vadd.f32 %v10083, %v10095
        %v10097 = vpop.f32.mrf.mxu0
        %10098 = vdwg.mxu0
        %10099 = vmatpush.bf16.msra.mxu0 %v6690
        %10100 = vmatpush.bf16.msra.mxu0 %v6669
        %10101 = vmatpush.bf16.msra.mxu0 %v6648
        %10102 = vmatpush.bf16.msra.mxu0 %v6627
        %10103 = vmatpush.bf16.msra.mxu0 %v6606
        %10104 = vmatpush.bf16.msra.mxu0 %v6585
        %10105 = vmatpush.bf16.msra.mxu0 %v6564
        %10106 = vmatpush.bf16.msra.mxu0 %v6543
        %10107 = vmatmul.bf16.gmra.mxu0 %v3439
        %v10108 = vpop.f32.mrf.mxu0
        %v10109 = vadd.f32 %v3415, %v10108
        %v10110 = vpop.f32.mrf.mxu0
        %10111 = vdwg.mxu0
        %10112 = vmatpush.bf16.msra.mxu0 %v6858
        %10113 = vmatpush.bf16.msra.mxu0 %v6837
        %10114 = vmatpush.bf16.msra.mxu0 %v6816
        %10115 = vmatpush.bf16.msra.mxu0 %v6795
        %10116 = vmatpush.bf16.msra.mxu0 %v6774
        %10117 = vmatpush.bf16.msra.mxu0 %v6753
        %10118 = vmatpush.bf16.msra.mxu0 %v6732
        %10119 = vmatpush.bf16.msra.mxu0 %v6711
        %10120 = vmatmul.bf16.gmra.mxu0 %v3440
        %v10121 = vpop.f32.mrf.mxu0
        %v10122 = vadd.f32 %v10109, %v10121
        %v10123 = vpop.f32.mrf.mxu0
        %10124 = vdwg.mxu0
        %10125 = vmatpush.bf16.msra.mxu0 %v7026
        %10126 = vmatpush.bf16.msra.mxu0 %v7005
        %10127 = vmatpush.bf16.msra.mxu0 %v6984
        %10128 = vmatpush.bf16.msra.mxu0 %v6963
        %10129 = vmatpush.bf16.msra.mxu0 %v6942
        %10130 = vmatpush.bf16.msra.mxu0 %v6921
        %10131 = vmatpush.bf16.msra.mxu0 %v6900
        %10132 = vmatpush.bf16.msra.mxu0 %v6879
        %10133 = vmatmul.bf16.gmra.mxu0 %v3441
        %v10134 = vpop.f32.mrf.mxu0
        %v10135 = vadd.f32 %v10122, %v10134
        %v10136 = vpop.f32.mrf.mxu0
        %10137 = vdwg.mxu0
        %10138 = vmatpush.bf16.msra.mxu0 %v7194
        %10139 = vmatpush.bf16.msra.mxu0 %v7173
        %10140 = vmatpush.bf16.msra.mxu0 %v7152
        %10141 = vmatpush.bf16.msra.mxu0 %v7131
        %10142 = vmatpush.bf16.msra.mxu0 %v7110
        %10143 = vmatpush.bf16.msra.mxu0 %v7089
        %10144 = vmatpush.bf16.msra.mxu0 %v7068
        %10145 = vmatpush.bf16.msra.mxu0 %v7047
        %10146 = vmatmul.bf16.gmra.mxu0 %v3442
        %v10147 = vpop.f32.mrf.mxu0
        %v10148 = vadd.f32 %v10135, %v10147
        %v10149 = vpop.f32.mrf.mxu0
        %10150 = vdwg.mxu0
        %10151 = vmatpush.bf16.msra.mxu0 %v7362
        %10152 = vmatpush.bf16.msra.mxu0 %v7341
        %10153 = vmatpush.bf16.msra.mxu0 %v7320
        %10154 = vmatpush.bf16.msra.mxu0 %v7299
        %10155 = vmatpush.bf16.msra.mxu0 %v7278
        %10156 = vmatpush.bf16.msra.mxu0 %v7257
        %10157 = vmatpush.bf16.msra.mxu0 %v7236
        %10158 = vmatpush.bf16.msra.mxu0 %v7215
        %10159 = vmatmul.bf16.gmra.mxu0 %v3443
        %v10160 = vpop.f32.mrf.mxu0
        %v10161 = vadd.f32 %v10148, %v10160
        %v10162 = vpop.f32.mrf.mxu0
        %10163 = vdwg.mxu0
        %10164 = vmatpush.bf16.msra.mxu0 %v7530
        %10165 = vmatpush.bf16.msra.mxu0 %v7509
        %10166 = vmatpush.bf16.msra.mxu0 %v7488
        %10167 = vmatpush.bf16.msra.mxu0 %v7467
        %10168 = vmatpush.bf16.msra.mxu0 %v7446
        %10169 = vmatpush.bf16.msra.mxu0 %v7425
        %10170 = vmatpush.bf16.msra.mxu0 %v7404
        %10171 = vmatpush.bf16.msra.mxu0 %v7383
        %10172 = vmatmul.bf16.gmra.mxu0 %v3444
        %v10173 = vpop.f32.mrf.mxu0
        %v10174 = vadd.f32 %v10161, %v10173
        %v10175 = vpop.f32.mrf.mxu0
        %10176 = vdwg.mxu0
        %v10197 = vrot.slane %v8692, 6
        %v10198 = vrot.slane %v8770, 4
        %v10199 = vrot.slane %v8848, 2
        %v10200 = vrot.slane %v9004, 6
        %v10201 = vrot.slane %v9082, 4
        %v10202 = vrot.slane %v9160, 2
        %v10203 = vrot.slane %v9316, 6
        %v10204 = vrot.slane %v9394, 4
        %v10205 = vrot.slane %v9472, 2
        %v10206 = vrot.slane %v9628, 6
        %v10207 = vrot.slane %v9706, 4
        %v10208 = vrot.slane %v9784, 2
        %v10209 = vrot.slane %v9940, 6
        %v10210 = vrot.slane %v10018, 4
        %v10211 = vrot.slane %v10096, 2
        %vm10212 = vcmask 1041408
        %v10213 = vsel %vm10212, %v8614, %v10197
        %vm10214 = vcmask 1045508
        %v10215 = vsel %vm10214, %v10198, %v10199
        %vm10216 = vcmask 1043456
        %v10217 = vsel %vm10216, %v10213, %v10215
        %v10218 = vsel %vm10212, %v8926, %v10200
        %v10219 = vsel %vm10214, %v10201, %v10202
        %v10220 = vsel %vm10216, %v10218, %v10219
        %v10221 = vsel %vm10212, %v9238, %v10203
        %v10222 = vsel %vm10214, %v10204, %v10205
        %v10223 = vsel %vm10216, %v10221, %v10222
        %v10224 = vsel %vm10212, %v9550, %v10206
        %v10225 = vsel %vm10214, %v10207, %v10208
        %v10226 = vsel %vm10216, %v10224, %v10225
        %v10227 = vsel %vm10212, %v9862, %v10209
        %v10228 = vsel %vm10214, %v10210, %v10211
        %v10229 = vsel %vm10216, %v10227, %v10228
        %10235 = vst [vmem:[%s2330] sm:$0xff] %v10217
        %10236 = vst [vmem:[%s2330 + $0x8] sm:$0xff] %v10220
        %10237 = vst [vmem:[%s2330 + $0x10] sm:$0xff] %v10223
        %10238 = vst [vmem:[%s2330 + $0x18] sm:$0xff] %v10226
        %10239 = vst [vmem:[%s2330 + $0x20] sm:$0xff] %v10229
        %10240 = vst [vmem:[%s2330 + $0x28] sm:$0x3] %v10174
        %s10241 = smul.u32 21, %s14
        %p10242 = scmp.lt.s32.totalorder %s10241, 167
        %s10243 = scalar_select %p10242, %s10241, 167
        %s10244 = smul.addr %s10243, 2
        %s10245 = scalar_lea.vmem %s3, %s10244
        // Predicated region
        $region59: #{model_forward.1} parent=53 // pred_check
          %p10246 = pneg %p105
        $region60: #{model_forward.1} parent=53 // pred_check_branch
          %10248 = sbr.rel (%p10246) target = $region62
        $region61: #{model_forward.1} parent=53 // pred_region
          %s10249 = smul.u32 21, %s14
        $region62: #{model_forward.1} parent=53 // pred_fallthru
          _
      $region54: #{model_forward.1} parent=5 // pred_fallthru
        _
      %p10250 = scmp.le.s32.totalorder 2, %s9
      // Predicated region
      $region63: #{model_forward.1} parent=5 // pred_check
        %p10251 = pneg %p10250
      $region64: #{model_forward.1} parent=5 // pred_check_branch
        %10253 = sbr.rel (%p10251) target = $region66
      $region65: #{model_forward.1} parent=5 // pred_region
        %s10254 = ssub.s32 %s9, 2
        // Predicated region
        $region67: #{model_forward.1} parent=65 // pred_check
          %p10255 = pneg %p111
        $region68: #{model_forward.1} parent=65 // pred_check_branch
          %10257 = sbr.rel (%p10255) target = $region70
        $region69: #{model_forward.1} parent=65 // pred_region
          %s10258 = smul.u32 21, %s15
          %p10259 = scmp.lt.s32.totalorder %s10258, 167
          %s10260 = scalar_select %p10259, %s10258, 167
          %s10261 = smul.addr %s10260, 2
          %s10262 = scalar_lea.vmem %s3, %s10261
        $region70: #{model_forward.1} parent=65 // pred_fallthru
          _
      $region66: #{model_forward.1} parent=5 // pred_fallthru
        _
    $region6: #{model_forward.1} parent=1 // loop_footer
      %s13 = sadd.s32 1, %s9
    $region7: #{model_forward.1} parent=1 // loop_footer_branch
      %8 = sbr.rel target = $region3
    $region8: #{model_forward.1} parent=1 // loop_exit
      _

</llo_original>
